<compile_context>
chip_gen: v6e
topology: v6e:2x2x1
jax: 0.10.0
libtpu: 0.0.40
codegen_flags: <defaults>
</compile_context>

<pallas_src>
import functools

import jax
import jax.numpy as jnp
from jax.experimental import pallas as pl
from jax.experimental.pallas import tpu as pltpu


# ---------------------------------------------------------------------------
# In-kernel helpers (traced inside the Pallas kernel body)
# ---------------------------------------------------------------------------

def _layernorm(y, g, b, eps=1e-6):
    mu = jnp.mean(y, axis=-1, keepdims=True)
    var = jnp.mean((y - mu) ** 2, axis=-1, keepdims=True)
    return (y - mu) * jax.lax.rsqrt(var + eps) * g + b


# ---------------------------------------------------------------------------
# Fused Encoder kernel: grid iterates over layers, activation stays in VMEM
# ---------------------------------------------------------------------------

def encoder_kernel(x_ref,
                   m1_wq, m1_wk, m1_wv, m1_wo, m1_g, m1_b,
                   m2_wq, m2_wk, m2_wv, m2_wo, m2_g, m2_b,
                   n1_g, n1_b, n2_g, n2_b,
                   f_w1, f_b1, f_w2, f_b2, f_g, f_b,
                   o_ref, *, n_head, d_k, d_v, seq_len, batch):
    H, L = n_head, seq_len
    inv_temp = 1.0 / (d_k ** 0.5)

    # Layer 0: seed the VMEM-resident activation.  The output block's index_map is
    # constant across the layer grid, so it stays resident and is written back to HBM
    # only once at the end of the grid.
    @pl.when(pl.program_id(0) == 0)
    def _():
        o_ref[...] = x_ref[...]

    x = o_ref[...].astype(jnp.float32)                      # (B*L, D) carried activation

    # Hoist all weight/gain/bias reads once per layer (reused across the batch loop).
    w1q, w1k, w1v, w1o = m1_wq[0], m1_wk[0], m1_wv[0], m1_wo[0]
    g1m, b1m = m1_g[0], m1_b[0]
    w2q, w2k, w2v, w2o = m2_wq[0], m2_wk[0], m2_wv[0], m2_wo[0]
    g2m, b2m = m2_g[0], m2_b[0]
    gn1, bn1, gn2, bn2 = n1_g[0], n1_b[0], n2_g[0], n2_b[0]
    fw1, fb1, fw2, fb2 = f_w1[0], f_b1[0], f_w2[0], f_b2[0]
    gf, bf = f_g[0], f_b[0]

    def mha(xb, wq, wk, wv, wo, g, b):
        # xb: (L, D); wq/wk: (H, D, d_k); wv: (H, D, d_v); wo: (H, d_v, D); g/b: (1, D)
        xh = jnp.broadcast_to(xb[None], (H,) + xb.shape)    # (H, L, D)
        q = jnp.einsum('hld,hdk->hlk', xh, wq,
                       preferred_element_type=jnp.float32) * inv_temp
        k = jnp.einsum('hld,hdk->hlk', xh, wk, preferred_element_type=jnp.float32)
        v = jnp.einsum('hld,hdk->hlk', xh, wv, preferred_element_type=jnp.float32)
        s = jnp.einsum('hqd,hkd->hqk', q, k, preferred_element_type=jnp.float32)
        s = s - jnp.max(s, axis=-1, keepdims=True)
        e = jnp.exp(s)
        p = e * pl.reciprocal(jnp.sum(e, axis=-1, keepdims=True), approx=True)
        ctx = jnp.einsum('hqk,hkv->hqv', p, v, preferred_element_type=jnp.float32)
        oh = jnp.einsum('hqv,hvd->hqd', ctx, wo, preferred_element_type=jnp.float32)
        o = jnp.sum(oh, axis=0) + xb                        # == fc(concat_heads) + residual
        return _layernorm(o, g, b)

    # GuidedAttention (per batch element; B is small, static unroll)
    h2_rows = []
    for bi in range(batch):
        xb = x[bi * L:(bi + 1) * L, :]                      # (L, D), static slice
        a1 = mha(xb, w1q, w1k, w1v, w1o, g1m, b1m)
        h1 = _layernorm(xb + a1, gn1, bn1)
        a2 = mha(xb, w2q, w2k, w2v, w2o, g2m, b2m)
        h2_rows.append(_layernorm(h1 + a2, gn2, bn2))
    h2 = h2_rows[0] if batch == 1 else jnp.concatenate(h2_rows, axis=0)   # (B*L, D)

    # PositionwiseFeedForward on the full flattened batch (large-M 2-D matmuls)
    t = jnp.dot(h2, fw1, preferred_element_type=jnp.float32) + fb1
    t = jnp.maximum(t, 0.0)
    t = jnp.dot(t, fw2, preferred_element_type=jnp.float32) + fb2
    out = _layernorm(t + h2, gf, bf)

    o_ref[...] = out.astype(o_ref.dtype)


# ---------------------------------------------------------------------------
# Wrapper: stack per-layer params, reshape weights per-head, single pallas_call
# ---------------------------------------------------------------------------

def _per_head_in(w, n_head, d):
    # (D, H*d) -> (H, D, d)   (head-major column order, matching torch .view)
    D = w.shape[0]
    return w.reshape(D, n_head, d).transpose(1, 0, 2)


def _stack_params(layer_params, *, n_head, d_k, d_v):
    def stk(fn):
        return jnp.stack([fn(p) for p in layer_params], axis=0)

    flat = []
    for m in ("m1", "m2"):
        flat.append(stk(lambda p, m=m: _per_head_in(p[m]["wq"], n_head, d_k)))
        flat.append(stk(lambda p, m=m: _per_head_in(p[m]["wk"], n_head, d_k)))
        flat.append(stk(lambda p, m=m: _per_head_in(p[m]["wv"], n_head, d_v)))
        flat.append(stk(lambda p, m=m: p[m]["wo"].reshape(n_head, d_v, -1)))
        flat.append(stk(lambda p, m=m: p[m]["g"]))
        flat.append(stk(lambda p, m=m: p[m]["b"]))
    for name in ("n1_g", "n1_b", "n2_g", "n2_b",
                 "f_w1", "f_b1", "f_w2", "f_b2", "f_g", "f_b"):
        flat.append(stk(lambda p, name=name: p[name]))
    return flat


def encoder_forward(src_seq, layer_params, *, n_head, d_k, d_v):
    B, L, D = src_seq.shape
    n_layers = len(layer_params)
    d_inner = layer_params[0]["f_w1"].shape[1]

    flat = _stack_params(layer_params, n_head=n_head, d_k=d_k, d_v=d_v)
    x2 = src_seq.reshape(B * L, D)

    in_specs = [pl.BlockSpec((B * L, D), lambda l: (0, 0))]
    for w in flat:
        nd = w.ndim
        in_specs.append(
            pl.BlockSpec((1,) + tuple(w.shape[1:]),
                         lambda l, _n=nd: (l,) + (0,) * (_n - 1)))

    # Advisory cost estimate for XLA scheduling.
    flops_mha = (2 * 2 * B * L * D * n_head * d_k          # q, k projections
                 + 2 * B * L * D * n_head * d_v            # v projection
                 + 2 * B * n_head * L * L * d_k            # scores
                 + 2 * B * n_head * L * L * d_v            # context
                 + 2 * B * L * n_head * d_v * D)           # output projection
    flops = n_layers * (2 * flops_mha + 2 * 2 * B * L * D * d_inner)
    transc = n_layers * 2 * B * n_head * L * L
    bytes_acc = (2 * x2.size * x2.dtype.itemsize
                 + sum(int(w.size) * w.dtype.itemsize for w in flat))

    kernel = functools.partial(encoder_kernel, n_head=n_head, d_k=d_k, d_v=d_v,
                               seq_len=L, batch=B)
    out = pl.pallas_call(
        kernel,
        out_shape=jax.ShapeDtypeStruct((B * L, D), src_seq.dtype),
        grid=(n_layers,),
        in_specs=in_specs,
        out_specs=pl.BlockSpec((B * L, D), lambda l: (0, 0)),
        compiler_params=pltpu.CompilerParams(
            dimension_semantics=("arbitrary",)),            # layers carry state -> sequential
        cost_estimate=pl.CostEstimate(flops=int(flops),
                                      transcendentals=int(transc),
                                      bytes_accessed=int(bytes_acc)),
    )(x2, *flat)
    # NOTE: Encoder.forward in the reference never applies the trailing LayerNorm.
    return out.reshape(B, L, D)


# ---------------------------------------------------------------------------
# Parameter init (PyTorch-like layouts; transformed per-head in the wrapper)
# ---------------------------------------------------------------------------

def _init_mha_params(key, d_model, n_head, d_k, d_v, scale=0.05):
    k0, k1, k2, k3 = jax.random.split(key, 4)
    return dict(
        wq=jax.random.normal(k0, (d_model, n_head * d_k), jnp.float32) * scale,
        wk=jax.random.normal(k1, (d_model, n_head * d_k), jnp.float32) * scale,
        wv=jax.random.normal(k2, (d_model, n_head * d_v), jnp.float32) * scale,
        wo=jax.random.normal(k3, (n_head * d_v, d_model), jnp.float32) * scale,
        g=jnp.ones((1, d_model), jnp.float32),
        b=jnp.zeros((1, d_model), jnp.float32),
    )


def init_layer_params(key, d_model, d_inner, n_head, d_k, d_v):
    k1, k2, k3, k4 = jax.random.split(key, 4)
    scale = 0.05
    return dict(
        m1=_init_mha_params(k1, d_model, n_head, d_k, d_v, scale),
        m2=_init_mha_params(k2, d_model, n_head, d_k, d_v, scale),
        n1_g=jnp.ones((1, d_model), jnp.float32),
        n1_b=jnp.zeros((1, d_model), jnp.float32),
        n2_g=jnp.ones((1, d_model), jnp.float32),
        n2_b=jnp.zeros((1, d_model), jnp.float32),
        f_w1=jax.random.normal(k3, (d_model, d_inner), jnp.float32) * scale,
        f_b1=jnp.zeros((1, d_inner), jnp.float32),
        f_w2=jax.random.normal(k4, (d_inner, d_model), jnp.float32) * scale,
        f_b2=jnp.zeros((1, d_model), jnp.float32),
        f_g=jnp.ones((1, d_model), jnp.float32),
        f_b=jnp.zeros((1, d_model), jnp.float32),
    )


def init_encoder_params(key, n_layers, d_model, d_inner, n_head, d_k, d_v):
    keys = jax.random.split(key, n_layers)
    return [init_layer_params(k, d_model, d_inner, n_head, d_k, d_v) for k in keys]


# ---------------------------------------------------------------------------
if __name__ == "__main__":
    B, L = 2, 8
    D_MODEL, D_INNER = 32, 64
    N_HEAD, D_K, D_V = 4, 8, 8
    N_LAYERS = 2

    root = jax.random.PRNGKey(0)
    k_x, k_p = jax.random.split(root)
    x = jax.random.normal(k_x, (B, L, D_MODEL), jnp.float32)
    params = init_encoder_params(k_p, N_LAYERS, D_MODEL, D_INNER, N_HEAD, D_K, D_V)

    fwd = jax.jit(functools.partial(encoder_forward, n_head=N_HEAD, d_k=D_K, d_v=D_V))
    out = fwd(x, params)
    jax.block_until_ready(out)
    assert out.shape == (B, L, D_MODEL) and out.dtype == jnp.float32
    assert bool(jnp.all(jnp.isfinite(out)))
    print("KERNEL_OK")
</pallas_src>

<mosaic_0001>
module attributes {stable_mosaic.version = 11 : i64} {
  func.func @encoder_kernel(%arg0: i32, %arg1: memref<16x32xf32, #tpu.memory_space<vmem>>, %arg2: memref<1x4x32x8xf32, #tpu.memory_space<vmem>>, %arg3: memref<1x4x32x8xf32, #tpu.memory_space<vmem>>, %arg4: memref<1x4x32x8xf32, #tpu.memory_space<vmem>>, %arg5: memref<1x4x8x32xf32, #tpu.memory_space<vmem>>, %arg6: memref<1x1x32xf32, #tpu.memory_space<vmem>>, %arg7: memref<1x1x32xf32, #tpu.memory_space<vmem>>, %arg8: memref<1x4x32x8xf32, #tpu.memory_space<vmem>>, %arg9: memref<1x4x32x8xf32, #tpu.memory_space<vmem>>, %arg10: memref<1x4x32x8xf32, #tpu.memory_space<vmem>>, %arg11: memref<1x4x8x32xf32, #tpu.memory_space<vmem>>, %arg12: memref<1x1x32xf32, #tpu.memory_space<vmem>>, %arg13: memref<1x1x32xf32, #tpu.memory_space<vmem>>, %arg14: memref<1x1x32xf32, #tpu.memory_space<vmem>>, %arg15: memref<1x1x32xf32, #tpu.memory_space<vmem>>, %arg16: memref<1x1x32xf32, #tpu.memory_space<vmem>>, %arg17: memref<1x1x32xf32, #tpu.memory_space<vmem>>, %arg18: memref<1x32x64xf32, #tpu.memory_space<vmem>>, %arg19: memref<1x1x64xf32, #tpu.memory_space<vmem>>, %arg20: memref<1x64x32xf32, #tpu.memory_space<vmem>>, %arg21: memref<1x1x32xf32, #tpu.memory_space<vmem>>, %arg22: memref<1x1x32xf32, #tpu.memory_space<vmem>>, %arg23: memref<1x1x32xf32, #tpu.memory_space<vmem>>, %arg24: memref<16x32xf32, #tpu.memory_space<vmem>>) attributes {dimension_semantics = [#tpu.dimension_semantics<arbitrary>], iteration_bounds = array<i64: 2>, scalar_prefetch = 0 : i64, scratch_operands = 0 : i64, tpu.core_type = #tpu.core_type<tc>, window_params = [{pipeline_mode = #tpu.pipeline_mode<synchronous>, transform_indices = @transform_0, window_bounds = array<i64: 16, 32>}, {transform_indices = @transform_1, window_bounds = array<i64: 1, 4, 32, 8>}, {transform_indices = @transform_2, window_bounds = array<i64: 1, 4, 32, 8>}, {transform_indices = @transform_3, window_bounds = array<i64: 1, 4, 32, 8>}, {transform_indices = @transform_4, window_bounds = array<i64: 1, 4, 8, 32>}, {transform_indices = @transform_5, window_bounds = array<i64: 1, 1, 32>}, {transform_indices = @transform_6, window_bounds = array<i64: 1, 1, 32>}, {transform_indices = @transform_7, window_bounds = array<i64: 1, 4, 32, 8>}, {transform_indices = @transform_8, window_bounds = array<i64: 1, 4, 32, 8>}, {transform_indices = @transform_9, window_bounds = array<i64: 1, 4, 32, 8>}, {transform_indices = @transform_10, window_bounds = array<i64: 1, 4, 8, 32>}, {transform_indices = @transform_11, window_bounds = array<i64: 1, 1, 32>}, {transform_indices = @transform_12, window_bounds = array<i64: 1, 1, 32>}, {transform_indices = @transform_13, window_bounds = array<i64: 1, 1, 32>}, {transform_indices = @transform_14, window_bounds = array<i64: 1, 1, 32>}, {transform_indices = @transform_15, window_bounds = array<i64: 1, 1, 32>}, {transform_indices = @transform_16, window_bounds = array<i64: 1, 1, 32>}, {transform_indices = @transform_17, window_bounds = array<i64: 1, 32, 64>}, {transform_indices = @transform_18, window_bounds = array<i64: 1, 1, 64>}, {transform_indices = @transform_19, window_bounds = array<i64: 1, 64, 32>}, {transform_indices = @transform_20, window_bounds = array<i64: 1, 1, 32>}, {transform_indices = @transform_21, window_bounds = array<i64: 1, 1, 32>}, {transform_indices = @transform_22, window_bounds = array<i64: 1, 1, 32>}, {pipeline_mode = #tpu.pipeline_mode<synchronous>, transform_indices = @transform_23, window_bounds = array<i64: 16, 32>}]} {
    %c0_i32 = arith.constant 0 : i32
    %0 = arith.cmpi eq, %arg0, %c0_i32 : i32
    %1 = arith.extui %0 : i1 to i32
    %c0_i32_0 = arith.constant 0 : i32
    %2 = arith.cmpi ne, %1, %c0_i32_0 : i32
    scf.if %2 {
      %c0_165 = arith.constant 0 : index
      %c0_166 = arith.constant 0 : index
      %355 = vector.load %arg1[%c0_165, %c0_166] : memref<16x32xf32, #tpu.memory_space<vmem>>, vector<16x32xf32>
      %c0_167 = arith.constant 0 : index
      %c0_168 = arith.constant 0 : index
      %356 = vector.load %arg24[%c0_167, %c0_168] : memref<16x32xf32, #tpu.memory_space<vmem>>, vector<16x32xf32>
      tpu.vector_store %arg24[%c0_167, %c0_168], %355 {strides = array<i32>} : memref<16x32xf32, #tpu.memory_space<vmem>>, vector<16x32xf32>,
    } else {
    }
    %c0 = arith.constant 0 : index
    %c0_1 = arith.constant 0 : index
    %3 = vector.load %arg24[%c0, %c0_1] : memref<16x32xf32, #tpu.memory_space<vmem>>, vector<16x32xf32>
    %c0_2 = arith.constant 0 : index
    %c0_3 = arith.constant 0 : index
    %c0_4 = arith.constant 0 : index
    %c0_5 = arith.constant 0 : index
    %4 = vector.load %arg2[%c0_2, %c0_3, %c0_4, %c0_5] : memref<1x4x32x8xf32, #tpu.memory_space<vmem>>, vector<1x4x32x8xf32>
    %5 = vector.shape_cast %4 : vector<1x4x32x8xf32> to vector<4x32x8xf32>
    %c0_6 = arith.constant 0 : index
    %c0_7 = arith.constant 0 : index
    %c0_8 = arith.constant 0 : index
    %c0_9 = arith.constant 0 : index
    %6 = vector.load %arg3[%c0_6, %c0_7, %c0_8, %c0_9] : memref<1x4x32x8xf32, #tpu.memory_space<vmem>>, vector<1x4x32x8xf32>
    %7 = vector.shape_cast %6 : vector<1x4x32x8xf32> to vector<4x32x8xf32>
    %c0_10 = arith.constant 0 : index
    %c0_11 = arith.constant 0 : index
    %c0_12 = arith.constant 0 : index
    %c0_13 = arith.constant 0 : index
    %8 = vector.load %arg4[%c0_10, %c0_11, %c0_12, %c0_13] : memref<1x4x32x8xf32, #tpu.memory_space<vmem>>, vector<1x4x32x8xf32>
    %9 = vector.shape_cast %8 : vector<1x4x32x8xf32> to vector<4x32x8xf32>
    %c0_14 = arith.constant 0 : index
    %c0_15 = arith.constant 0 : index
    %c0_16 = arith.constant 0 : index
    %c0_17 = arith.constant 0 : index
    %10 = vector.load %arg5[%c0_14, %c0_15, %c0_16, %c0_17] : memref<1x4x8x32xf32, #tpu.memory_space<vmem>>, vector<1x4x8x32xf32>
    %11 = vector.shape_cast %10 : vector<1x4x8x32xf32> to vector<4x8x32xf32>
    %c0_18 = arith.constant 0 : index
    %c0_19 = arith.constant 0 : index
    %c0_20 = arith.constant 0 : index
    %12 = vector.load %arg6[%c0_18, %c0_19, %c0_20] : memref<1x1x32xf32, #tpu.memory_space<vmem>>, vector<1x1x32xf32>
    %13 = vector.shape_cast %12 : vector<1x1x32xf32> to vector<1x32xf32>
    %c0_21 = arith.constant 0 : index
    %c0_22 = arith.constant 0 : index
    %c0_23 = arith.constant 0 : index
    %14 = vector.load %arg7[%c0_21, %c0_22, %c0_23] : memref<1x1x32xf32, #tpu.memory_space<vmem>>, vector<1x1x32xf32>
    %15 = vector.shape_cast %14 : vector<1x1x32xf32> to vector<1x32xf32>
    %c0_24 = arith.constant 0 : index
    %c0_25 = arith.constant 0 : index
    %c0_26 = arith.constant 0 : index
    %c0_27 = arith.constant 0 : index
    %16 = vector.load %arg8[%c0_24, %c0_25, %c0_26, %c0_27] : memref<1x4x32x8xf32, #tpu.memory_space<vmem>>, vector<1x4x32x8xf32>
    %17 = vector.shape_cast %16 : vector<1x4x32x8xf32> to vector<4x32x8xf32>
    %c0_28 = arith.constant 0 : index
    %c0_29 = arith.constant 0 : index
    %c0_30 = arith.constant 0 : index
    %c0_31 = arith.constant 0 : index
    %18 = vector.load %arg9[%c0_28, %c0_29, %c0_30, %c0_31] : memref<1x4x32x8xf32, #tpu.memory_space<vmem>>, vector<1x4x32x8xf32>
    %19 = vector.shape_cast %18 : vector<1x4x32x8xf32> to vector<4x32x8xf32>
    %c0_32 = arith.constant 0 : index
    %c0_33 = arith.constant 0 : index
    %c0_34 = arith.constant 0 : index
    %c0_35 = arith.constant 0 : index
    %20 = vector.load %arg10[%c0_32, %c0_33, %c0_34, %c0_35] : memref<1x4x32x8xf32, #tpu.memory_space<vmem>>, vector<1x4x32x8xf32>
    %21 = vector.shape_cast %20 : vector<1x4x32x8xf32> to vector<4x32x8xf32>
    %c0_36 = arith.constant 0 : index
    %c0_37 = arith.constant 0 : index
    %c0_38 = arith.constant 0 : index
    %c0_39 = arith.constant 0 : index
    %22 = vector.load %arg11[%c0_36, %c0_37, %c0_38, %c0_39] : memref<1x4x8x32xf32, #tpu.memory_space<vmem>>, vector<1x4x8x32xf32>
    %23 = vector.shape_cast %22 : vector<1x4x8x32xf32> to vector<4x8x32xf32>
    %c0_40 = arith.constant 0 : index
    %c0_41 = arith.constant 0 : index
    %c0_42 = arith.constant 0 : index
    %24 = vector.load %arg12[%c0_40, %c0_41, %c0_42] : memref<1x1x32xf32, #tpu.memory_space<vmem>>, vector<1x1x32xf32>
    %25 = vector.shape_cast %24 : vector<1x1x32xf32> to vector<1x32xf32>
    %c0_43 = arith.constant 0 : index
    %c0_44 = arith.constant 0 : index
    %c0_45 = arith.constant 0 : index
    %26 = vector.load %arg13[%c0_43, %c0_44, %c0_45] : memref<1x1x32xf32, #tpu.memory_space<vmem>>, vector<1x1x32xf32>
    %27 = vector.shape_cast %26 : vector<1x1x32xf32> to vector<1x32xf32>
    %c0_46 = arith.constant 0 : index
    %c0_47 = arith.constant 0 : index
    %c0_48 = arith.constant 0 : index
    %28 = vector.load %arg14[%c0_46, %c0_47, %c0_48] : memref<1x1x32xf32, #tpu.memory_space<vmem>>, vector<1x1x32xf32>
    %29 = vector.shape_cast %28 : vector<1x1x32xf32> to vector<1x32xf32>
    %c0_49 = arith.constant 0 : index
    %c0_50 = arith.constant 0 : index
    %c0_51 = arith.constant 0 : index
    %30 = vector.load %arg15[%c0_49, %c0_50, %c0_51] : memref<1x1x32xf32, #tpu.memory_space<vmem>>, vector<1x1x32xf32>
    %31 = vector.shape_cast %30 : vector<1x1x32xf32> to vector<1x32xf32>
    %c0_52 = arith.constant 0 : index
    %c0_53 = arith.constant 0 : index
    %c0_54 = arith.constant 0 : index
    %32 = vector.load %arg16[%c0_52, %c0_53, %c0_54] : memref<1x1x32xf32, #tpu.memory_space<vmem>>, vector<1x1x32xf32>
    %33 = vector.shape_cast %32 : vector<1x1x32xf32> to vector<1x32xf32>
    %c0_55 = arith.constant 0 : index
    %c0_56 = arith.constant 0 : index
    %c0_57 = arith.constant 0 : index
    %34 = vector.load %arg17[%c0_55, %c0_56, %c0_57] : memref<1x1x32xf32, #tpu.memory_space<vmem>>, vector<1x1x32xf32>
    %35 = vector.shape_cast %34 : vector<1x1x32xf32> to vector<1x32xf32>
    %c0_58 = arith.constant 0 : index
    %c0_59 = arith.constant 0 : index
    %c0_60 = arith.constant 0 : index
    %36 = vector.load %arg18[%c0_58, %c0_59, %c0_60] : memref<1x32x64xf32, #tpu.memory_space<vmem>>, vector<1x32x64xf32>
    %37 = vector.shape_cast %36 : vector<1x32x64xf32> to vector<32x64xf32>
    %c0_61 = arith.constant 0 : index
    %c0_62 = arith.constant 0 : index
    %c0_63 = arith.constant 0 : index
    %38 = vector.load %arg19[%c0_61, %c0_62, %c0_63] : memref<1x1x64xf32, #tpu.memory_space<vmem>>, vector<1x1x64xf32>
    %39 = vector.shape_cast %38 : vector<1x1x64xf32> to vector<1x64xf32>
    %c0_64 = arith.constant 0 : index
    %c0_65 = arith.constant 0 : index
    %c0_66 = arith.constant 0 : index
    %40 = vector.load %arg20[%c0_64, %c0_65, %c0_66] : memref<1x64x32xf32, #tpu.memory_space<vmem>>, vector<1x64x32xf32>
    %41 = vector.shape_cast %40 : vector<1x64x32xf32> to vector<64x32xf32>
    %c0_67 = arith.constant 0 : index
    %c0_68 = arith.constant 0 : index
    %c0_69 = arith.constant 0 : index
    %42 = vector.load %arg21[%c0_67, %c0_68, %c0_69] : memref<1x1x32xf32, #tpu.memory_space<vmem>>, vector<1x1x32xf32>
    %43 = vector.shape_cast %42 : vector<1x1x32xf32> to vector<1x32xf32>
    %c0_70 = arith.constant 0 : index
    %c0_71 = arith.constant 0 : index
    %c0_72 = arith.constant 0 : index
    %44 = vector.load %arg22[%c0_70, %c0_71, %c0_72] : memref<1x1x32xf32, #tpu.memory_space<vmem>>, vector<1x1x32xf32>
    %45 = vector.shape_cast %44 : vector<1x1x32xf32> to vector<1x32xf32>
    %c0_73 = arith.constant 0 : index
    %c0_74 = arith.constant 0 : index
    %c0_75 = arith.constant 0 : index
    %46 = vector.load %arg23[%c0_73, %c0_74, %c0_75] : memref<1x1x32xf32, #tpu.memory_space<vmem>>, vector<1x1x32xf32>
    %47 = vector.shape_cast %46 : vector<1x1x32xf32> to vector<1x32xf32>
    %48 = vector.extract_strided_slice %3 {offsets = [0, 0], sizes = [8, 32], strides = [1, 1]} : vector<16x32xf32> to vector<8x32xf32>
    %49 = vector.shape_cast %48 : vector<8x32xf32> to vector<1x8x32xf32>
    %50 = vector.shape_cast %49 : vector<1x8x32xf32> to vector<1x8x32xf32>
    %51 = vector.broadcast %50 : vector<1x8x32xf32> to vector<4x8x32xf32>
    "tpu.trace_start"() <{level = 10 : i32, message = "hld,hdk->hlk"}> : () -> ()
    %cst = arith.constant dense<0.000000e+00> : vector<4x8x8xf32>
    %52 = tpu.matmul %51, %5, %cst {dimension_numbers = #tpu.dot_dimension_numbers<[2], [1], [1], [2], [0, 0, 0, 1, 1, 2], [0], [0]>} : vector<4x8x32xf32>, vector<4x32x8xf32>, vector<4x8x8xf32> -> vector<4x8x8xf32>
    "tpu.trace_stop"() : () -> ()
    %cst_76 = arith.constant 0.353553385 : f32
    %53 = vector.broadcast %cst_76 : f32 to vector<4x8x8xf32>
    %54 = arith.mulf %52, %53 : vector<4x8x8xf32>
    "tpu.trace_start"() <{level = 10 : i32, message = "hld,hdk->hlk"}> : () -> ()
    %cst_77 = arith.constant dense<0.000000e+00> : vector<4x8x8xf32>
    %55 = tpu.matmul %51, %7, %cst_77 {dimension_numbers = #tpu.dot_dimension_numbers<[2], [1], [1], [2], [0, 0, 0, 1, 1, 2], [0], [0]>} : vector<4x8x32xf32>, vector<4x32x8xf32>, vector<4x8x8xf32> -> vector<4x8x8xf32>
    %cst_78 = arith.constant dense<0.000000e+00> : vector<4x8x8xf32>
    %56 = tpu.matmul %51, %9, %cst_78 {dimension_numbers = #tpu.dot_dimension_numbers<[2], [1], [1], [2], [0, 0, 0, 1, 1, 2], [0], [0]>} : vector<4x8x32xf32>, vector<4x32x8xf32>, vector<4x8x8xf32> -> vector<4x8x8xf32>
    "tpu.trace_stop"() : () -> ()
    "tpu.trace_start"() <{level = 10 : i32, message = "hqd,hkd->hqk"}> : () -> ()
    %cst_79 = arith.constant dense<0.000000e+00> : vector<4x8x8xf32>
    %57 = tpu.matmul %54, %55, %cst_79 {dimension_numbers = #tpu.dot_dimension_numbers<[2], [2], [1], [1], [0, 0, 0, 1, 1, 1], [0], [0]>} : vector<4x8x8xf32>, vector<4x8x8xf32>, vector<4x8x8xf32> -> vector<4x8x8xf32>
    "tpu.trace_stop"() : () -> ()
    %cst_80 = arith.constant dense<0xFF800000> : vector<4x8xf32>
    %58 = vector.multi_reduction <maximumf>, %57, %cst_80 [2] : vector<4x8x8xf32> to vector<4x8xf32>
    %59 = vector.shape_cast %58 : vector<4x8xf32> to vector<4x8x1xf32>
    %60 = vector.broadcast %59 : vector<4x8x1xf32> to vector<4x8x8xf32>
    %61 = arith.subf %57, %60 : vector<4x8x8xf32>
    %62 = math.exp %61 : vector<4x8x8xf32>
    %cst_81 = arith.constant dense<0.000000e+00> : vector<4x8xf32>
    %63 = vector.multi_reduction <add>, %62, %cst_81 [2] : vector<4x8x8xf32> to vector<4x8xf32>
    %64 = vector.shape_cast %63 : vector<4x8xf32> to vector<4x8x1xf32>
    %65 = tpu.reciprocal %64 {approx = true} : vector<4x8x1xf32> -> vector<4x8x1xf32>
    %66 = vector.broadcast %65 : vector<4x8x1xf32> to vector<4x8x8xf32>
    %67 = arith.mulf %62, %66 : vector<4x8x8xf32>
    "tpu.trace_start"() <{level = 10 : i32, message = "hqk,hkv->hqv"}> : () -> ()
    %cst_82 = arith.constant dense<0.000000e+00> : vector<4x8x8xf32>
    %68 = tpu.matmul %67, %56, %cst_82 {dimension_numbers = #tpu.dot_dimension_numbers<[2], [1], [1], [2], [0, 0, 0, 1, 1, 2], [0], [0]>} : vector<4x8x8xf32>, vector<4x8x8xf32>, vector<4x8x8xf32> -> vector<4x8x8xf32>
    "tpu.trace_stop"() : () -> ()
    "tpu.trace_start"() <{level = 10 : i32, message = "hqv,hvd->hqd"}> : () -> ()
    %cst_83 = arith.constant dense<0.000000e+00> : vector<4x8x32xf32>
    %69 = tpu.matmul %68, %11, %cst_83 {dimension_numbers = #tpu.dot_dimension_numbers<[2], [1], [1], [2], [0, 0, 0, 1, 1, 2], [0], [0]>} : vector<4x8x8xf32>, vector<4x8x32xf32>, vector<4x8x32xf32> -> vector<4x8x32xf32>
    "tpu.trace_stop"() : () -> ()
    %cst_84 = arith.constant dense<0.000000e+00> : vector<8x32xf32>
    %70 = vector.multi_reduction <add>, %69, %cst_84 [0] : vector<4x8x32xf32> to vector<8x32xf32>
    %71 = arith.addf %70, %48 : vector<8x32xf32>
    %cst_85 = arith.constant dense<0.000000e+00> : vector<8xf32>
    %72 = vector.multi_reduction <add>, %71, %cst_85 [1] : vector<8x32xf32> to vector<8xf32>
    %73 = vector.shape_cast %72 : vector<8xf32> to vector<8x1xf32>
    %cst_86 = arith.constant 3.200000e+01 : f32
    %74 = vector.broadcast %cst_86 : f32 to vector<8x1xf32>
    %75 = arith.divf %73, %74 : vector<8x1xf32>
    %76 = vector.broadcast %75 : vector<8x1xf32> to vector<8x32xf32>
    %77 = arith.subf %71, %76 : vector<8x32xf32>
    %78 = arith.mulf %77, %77 : vector<8x32xf32>
    %cst_87 = arith.constant dense<0.000000e+00> : vector<8xf32>
    %79 = vector.multi_reduction <add>, %78, %cst_87 [1] : vector<8x32xf32> to vector<8xf32>
    %80 = vector.shape_cast %79 : vector<8xf32> to vector<8x1xf32>
    %cst_88 = arith.constant 3.200000e+01 : f32
    %81 = vector.broadcast %cst_88 : f32 to vector<8x1xf32>
    %82 = arith.divf %80, %81 : vector<8x1xf32>
    %83 = vector.broadcast %75 : vector<8x1xf32> to vector<8x32xf32>
    %84 = arith.subf %71, %83 : vector<8x32xf32>
    %cst_89 = arith.constant 9.99999997E-7 : f32
    %85 = vector.broadcast %cst_89 : f32 to vector<8x1xf32>
    %86 = arith.addf %82, %85 : vector<8x1xf32>
    %87 = math.rsqrt %86 : vector<8x1xf32>
    %88 = vector.broadcast %87 : vector<8x1xf32> to vector<8x32xf32>
    %89 = arith.mulf %84, %88 : vector<8x32xf32>
    %90 = vector.broadcast %13 : vector<1x32xf32> to vector<8x32xf32>
    %91 = arith.mulf %89, %90 : vector<8x32xf32>
    %92 = vector.broadcast %15 : vector<1x32xf32> to vector<8x32xf32>
    %93 = arith.addf %91, %92 : vector<8x32xf32>
    %94 = arith.addf %48, %93 : vector<8x32xf32>
    %cst_90 = arith.constant dense<0.000000e+00> : vector<8xf32>
    %95 = vector.multi_reduction <add>, %94, %cst_90 [1] : vector<8x32xf32> to vector<8xf32>
    %96 = vector.shape_cast %95 : vector<8xf32> to vector<8x1xf32>
    %cst_91 = arith.constant 3.200000e+01 : f32
    %97 = vector.broadcast %cst_91 : f32 to vector<8x1xf32>
    %98 = arith.divf %96, %97 : vector<8x1xf32>
    %99 = vector.broadcast %98 : vector<8x1xf32> to vector<8x32xf32>
    %100 = arith.subf %94, %99 : vector<8x32xf32>
    %101 = arith.mulf %100, %100 : vector<8x32xf32>
    %cst_92 = arith.constant dense<0.000000e+00> : vector<8xf32>
    %102 = vector.multi_reduction <add>, %101, %cst_92 [1] : vector<8x32xf32> to vector<8xf32>
    %103 = vector.shape_cast %102 : vector<8xf32> to vector<8x1xf32>
    %cst_93 = arith.constant 3.200000e+01 : f32
    %104 = vector.broadcast %cst_93 : f32 to vector<8x1xf32>
    %105 = arith.divf %103, %104 : vector<8x1xf32>
    %106 = vector.broadcast %98 : vector<8x1xf32> to vector<8x32xf32>
    %107 = arith.subf %94, %106 : vector<8x32xf32>
    %cst_94 = arith.constant 9.99999997E-7 : f32
    %108 = vector.broadcast %cst_94 : f32 to vector<8x1xf32>
    %109 = arith.addf %105, %108 : vector<8x1xf32>
    %110 = math.rsqrt %109 : vector<8x1xf32>
    %111 = vector.broadcast %110 : vector<8x1xf32> to vector<8x32xf32>
    %112 = arith.mulf %107, %111 : vector<8x32xf32>
    %113 = vector.broadcast %29 : vector<1x32xf32> to vector<8x32xf32>
    %114 = arith.mulf %112, %113 : vector<8x32xf32>
    %115 = vector.broadcast %31 : vector<1x32xf32> to vector<8x32xf32>
    %116 = arith.addf %114, %115 : vector<8x32xf32>
    %117 = vector.shape_cast %48 : vector<8x32xf32> to vector<1x8x32xf32>
    %118 = vector.shape_cast %117 : vector<1x8x32xf32> to vector<1x8x32xf32>
    %119 = vector.broadcast %118 : vector<1x8x32xf32> to vector<4x8x32xf32>
    "tpu.trace_start"() <{level = 10 : i32, message = "hld,hdk->hlk"}> : () -> ()
    %cst_95 = arith.constant dense<0.000000e+00> : vector<4x8x8xf32>
    %120 = tpu.matmul %119, %17, %cst_95 {dimension_numbers = #tpu.dot_dimension_numbers<[2], [1], [1], [2], [0, 0, 0, 1, 1, 2], [0], [0]>} : vector<4x8x32xf32>, vector<4x32x8xf32>, vector<4x8x8xf32> -> vector<4x8x8xf32>
    "tpu.trace_stop"() : () -> ()
    %cst_96 = arith.constant 0.353553385 : f32
    %121 = vector.broadcast %cst_96 : f32 to vector<4x8x8xf32>
    %122 = arith.mulf %120, %121 : vector<4x8x8xf32>
    "tpu.trace_start"() <{level = 10 : i32, message = "hld,hdk->hlk"}> : () -> ()
    %cst_97 = arith.constant dense<0.000000e+00> : vector<4x8x8xf32>
    %123 = tpu.matmul %119, %19, %cst_97 {dimension_numbers = #tpu.dot_dimension_numbers<[2], [1], [1], [2], [0, 0, 0, 1, 1, 2], [0], [0]>} : vector<4x8x32xf32>, vector<4x32x8xf32>, vector<4x8x8xf32> -> vector<4x8x8xf32>
    %cst_98 = arith.constant dense<0.000000e+00> : vector<4x8x8xf32>
    %124 = tpu.matmul %119, %21, %cst_98 {dimension_numbers = #tpu.dot_dimension_numbers<[2], [1], [1], [2], [0, 0, 0, 1, 1, 2], [0], [0]>} : vector<4x8x32xf32>, vector<4x32x8xf32>, vector<4x8x8xf32> -> vector<4x8x8xf32>
    "tpu.trace_stop"() : () -> ()
    "tpu.trace_start"() <{level = 10 : i32, message = "hqd,hkd->hqk"}> : () -> ()
    %cst_99 = arith.constant dense<0.000000e+00> : vector<4x8x8xf32>
    %125 = tpu.matmul %122, %123, %cst_99 {dimension_numbers = #tpu.dot_dimension_numbers<[2], [2], [1], [1], [0, 0, 0, 1, 1, 1], [0], [0]>} : vector<4x8x8xf32>, vector<4x8x8xf32>, vector<4x8x8xf32> -> vector<4x8x8xf32>
    "tpu.trace_stop"() : () -> ()
    %cst_100 = arith.constant dense<0xFF800000> : vector<4x8xf32>
    %126 = vector.multi_reduction <maximumf>, %125, %cst_100 [2] : vector<4x8x8xf32> to vector<4x8xf32>
    %127 = vector.shape_cast %126 : vector<4x8xf32> to vector<4x8x1xf32>
    %128 = vector.broadcast %127 : vector<4x8x1xf32> to vector<4x8x8xf32>
    %129 = arith.subf %125, %128 : vector<4x8x8xf32>
    %130 = math.exp %129 : vector<4x8x8xf32>
    %cst_101 = arith.constant dense<0.000000e+00> : vector<4x8xf32>
    %131 = vector.multi_reduction <add>, %130, %cst_101 [2] : vector<4x8x8xf32> to vector<4x8xf32>
    %132 = vector.shape_cast %131 : vector<4x8xf32> to vector<4x8x1xf32>
    %133 = tpu.reciprocal %132 {approx = true} : vector<4x8x1xf32> -> vector<4x8x1xf32>
    %134 = vector.broadcast %133 : vector<4x8x1xf32> to vector<4x8x8xf32>
    %135 = arith.mulf %130, %134 : vector<4x8x8xf32>
    "tpu.trace_start"() <{level = 10 : i32, message = "hqk,hkv->hqv"}> : () -> ()
    %cst_102 = arith.constant dense<0.000000e+00> : vector<4x8x8xf32>
    %136 = tpu.matmul %135, %124, %cst_102 {dimension_numbers = #tpu.dot_dimension_numbers<[2], [1], [1], [2], [0, 0, 0, 1, 1, 2], [0], [0]>} : vector<4x8x8xf32>, vector<4x8x8xf32>, vector<4x8x8xf32> -> vector<4x8x8xf32>
    "tpu.trace_stop"() : () -> ()
    "tpu.trace_start"() <{level = 10 : i32, message = "hqv,hvd->hqd"}> : () -> ()
    %cst_103 = arith.constant dense<0.000000e+00> : vector<4x8x32xf32>
    %137 = tpu.matmul %136, %23, %cst_103 {dimension_numbers = #tpu.dot_dimension_numbers<[2], [1], [1], [2], [0, 0, 0, 1, 1, 2], [0], [0]>} : vector<4x8x8xf32>, vector<4x8x32xf32>, vector<4x8x32xf32> -> vector<4x8x32xf32>
    "tpu.trace_stop"() : () -> ()
    %cst_104 = arith.constant dense<0.000000e+00> : vector<8x32xf32>
    %138 = vector.multi_reduction <add>, %137, %cst_104 [0] : vector<4x8x32xf32> to vector<8x32xf32>
    %139 = arith.addf %138, %48 : vector<8x32xf32>
    %cst_105 = arith.constant dense<0.000000e+00> : vector<8xf32>
    %140 = vector.multi_reduction <add>, %139, %cst_105 [1] : vector<8x32xf32> to vector<8xf32>
    %141 = vector.shape_cast %140 : vector<8xf32> to vector<8x1xf32>
    %cst_106 = arith.constant 3.200000e+01 : f32
    %142 = vector.broadcast %cst_106 : f32 to vector<8x1xf32>
    %143 = arith.divf %141, %142 : vector<8x1xf32>
    %144 = vector.broadcast %143 : vector<8x1xf32> to vector<8x32xf32>
    %145 = arith.subf %139, %144 : vector<8x32xf32>
    %146 = arith.mulf %145, %145 : vector<8x32xf32>
    %cst_107 = arith.constant dense<0.000000e+00> : vector<8xf32>
    %147 = vector.multi_reduction <add>, %146, %cst_107 [1] : vector<8x32xf32> to vector<8xf32>
    %148 = vector.shape_cast %147 : vector<8xf32> to vector<8x1xf32>
    %cst_108 = arith.constant 3.200000e+01 : f32
    %149 = vector.broadcast %cst_108 : f32 to vector<8x1xf32>
    %150 = arith.divf %148, %149 : vector<8x1xf32>
    %151 = vector.broadcast %143 : vector<8x1xf32> to vector<8x32xf32>
    %152 = arith.subf %139, %151 : vector<8x32xf32>
    %cst_109 = arith.constant 9.99999997E-7 : f32
    %153 = vector.broadcast %cst_109 : f32 to vector<8x1xf32>
    %154 = arith.addf %150, %153 : vector<8x1xf32>
    %155 = math.rsqrt %154 : vector<8x1xf32>
    %156 = vector.broadcast %155 : vector<8x1xf32> to vector<8x32xf32>
    %157 = arith.mulf %152, %156 : vector<8x32xf32>
    %158 = vector.broadcast %25 : vector<1x32xf32> to vector<8x32xf32>
    %159 = arith.mulf %157, %158 : vector<8x32xf32>
    %160 = vector.broadcast %27 : vector<1x32xf32> to vector<8x32xf32>
    %161 = arith.addf %159, %160 : vector<8x32xf32>
    %162 = arith.addf %116, %161 : vector<8x32xf32>
    %cst_110 = arith.constant dense<0.000000e+00> : vector<8xf32>
    %163 = vector.multi_reduction <add>, %162, %cst_110 [1] : vector<8x32xf32> to vector<8xf32>
    %164 = vector.shape_cast %163 : vector<8xf32> to vector<8x1xf32>
    %cst_111 = arith.constant 3.200000e+01 : f32
    %165 = vector.broadcast %cst_111 : f32 to vector<8x1xf32>
    %166 = arith.divf %164, %165 : vector<8x1xf32>
    %167 = vector.broadcast %166 : vector<8x1xf32> to vector<8x32xf32>
    %168 = arith.subf %162, %167 : vector<8x32xf32>
    %169 = arith.mulf %168, %168 : vector<8x32xf32>
    %cst_112 = arith.constant dense<0.000000e+00> : vector<8xf32>
    %170 = vector.multi_reduction <add>, %169, %cst_112 [1] : vector<8x32xf32> to vector<8xf32>
    %171 = vector.shape_cast %170 : vector<8xf32> to vector<8x1xf32>
    %cst_113 = arith.constant 3.200000e+01 : f32
    %172 = vector.broadcast %cst_113 : f32 to vector<8x1xf32>
    %173 = arith.divf %171, %172 : vector<8x1xf32>
    %174 = vector.broadcast %166 : vector<8x1xf32> to vector<8x32xf32>
    %175 = arith.subf %162, %174 : vector<8x32xf32>
    %cst_114 = arith.constant 9.99999997E-7 : f32
    %176 = vector.broadcast %cst_114 : f32 to vector<8x1xf32>
    %177 = arith.addf %173, %176 : vector<8x1xf32>
    %178 = math.rsqrt %177 : vector<8x1xf32>
    %179 = vector.broadcast %178 : vector<8x1xf32> to vector<8x32xf32>
    %180 = arith.mulf %175, %179 : vector<8x32xf32>
    %181 = vector.broadcast %33 : vector<1x32xf32> to vector<8x32xf32>
    %182 = arith.mulf %180, %181 : vector<8x32xf32>
    %183 = vector.broadcast %35 : vector<1x32xf32> to vector<8x32xf32>
    %184 = arith.addf %182, %183 : vector<8x32xf32>
    %185 = vector.extract_strided_slice %3 {offsets = [8, 0], sizes = [8, 32], strides = [1, 1]} : vector<16x32xf32> to vector<8x32xf32>
    %186 = vector.shape_cast %185 : vector<8x32xf32> to vector<1x8x32xf32>
    %187 = vector.shape_cast %186 : vector<1x8x32xf32> to vector<1x8x32xf32>
    %188 = vector.broadcast %187 : vector<1x8x32xf32> to vector<4x8x32xf32>
    "tpu.trace_start"() <{level = 10 : i32, message = "hld,hdk->hlk"}> : () -> ()
    %cst_115 = arith.constant dense<0.000000e+00> : vector<4x8x8xf32>
    %189 = tpu.matmul %188, %5, %cst_115 {dimension_numbers = #tpu.dot_dimension_numbers<[2], [1], [1], [2], [0, 0, 0, 1, 1, 2], [0], [0]>} : vector<4x8x32xf32>, vector<4x32x8xf32>, vector<4x8x8xf32> -> vector<4x8x8xf32>
    "tpu.trace_stop"() : () -> ()
    %cst_116 = arith.constant 0.353553385 : f32
    %190 = vector.broadcast %cst_116 : f32 to vector<4x8x8xf32>
    %191 = arith.mulf %189, %190 : vector<4x8x8xf32>
    "tpu.trace_start"() <{level = 10 : i32, message = "hld,hdk->hlk"}> : () -> ()
    %cst_117 = arith.constant dense<0.000000e+00> : vector<4x8x8xf32>
    %192 = tpu.matmul %188, %7, %cst_117 {dimension_numbers = #tpu.dot_dimension_numbers<[2], [1], [1], [2], [0, 0, 0, 1, 1, 2], [0], [0]>} : vector<4x8x32xf32>, vector<4x32x8xf32>, vector<4x8x8xf32> -> vector<4x8x8xf32>
    %cst_118 = arith.constant dense<0.000000e+00> : vector<4x8x8xf32>
    %193 = tpu.matmul %188, %9, %cst_118 {dimension_numbers = #tpu.dot_dimension_numbers<[2], [1], [1], [2], [0, 0, 0, 1, 1, 2], [0], [0]>} : vector<4x8x32xf32>, vector<4x32x8xf32>, vector<4x8x8xf32> -> vector<4x8x8xf32>
    "tpu.trace_stop"() : () -> ()
    "tpu.trace_start"() <{level = 10 : i32, message = "hqd,hkd->hqk"}> : () -> ()
    %cst_119 = arith.constant dense<0.000000e+00> : vector<4x8x8xf32>
    %194 = tpu.matmul %191, %192, %cst_119 {dimension_numbers = #tpu.dot_dimension_numbers<[2], [2], [1], [1], [0, 0, 0, 1, 1, 1], [0], [0]>} : vector<4x8x8xf32>, vector<4x8x8xf32>, vector<4x8x8xf32> -> vector<4x8x8xf32>
    "tpu.trace_stop"() : () -> ()
    %cst_120 = arith.constant dense<0xFF800000> : vector<4x8xf32>
    %195 = vector.multi_reduction <maximumf>, %194, %cst_120 [2] : vector<4x8x8xf32> to vector<4x8xf32>
    %196 = vector.shape_cast %195 : vector<4x8xf32> to vector<4x8x1xf32>
    %197 = vector.broadcast %196 : vector<4x8x1xf32> to vector<4x8x8xf32>
    %198 = arith.subf %194, %197 : vector<4x8x8xf32>
    %199 = math.exp %198 : vector<4x8x8xf32>
    %cst_121 = arith.constant dense<0.000000e+00> : vector<4x8xf32>
    %200 = vector.multi_reduction <add>, %199, %cst_121 [2] : vector<4x8x8xf32> to vector<4x8xf32>
    %201 = vector.shape_cast %200 : vector<4x8xf32> to vector<4x8x1xf32>
    %202 = tpu.reciprocal %201 {approx = true} : vector<4x8x1xf32> -> vector<4x8x1xf32>
    %203 = vector.broadcast %202 : vector<4x8x1xf32> to vector<4x8x8xf32>
    %204 = arith.mulf %199, %203 : vector<4x8x8xf32>
    "tpu.trace_start"() <{level = 10 : i32, message = "hqk,hkv->hqv"}> : () -> ()
    %cst_122 = arith.constant dense<0.000000e+00> : vector<4x8x8xf32>
    %205 = tpu.matmul %204, %193, %cst_122 {dimension_numbers = #tpu.dot_dimension_numbers<[2], [1], [1], [2], [0, 0, 0, 1, 1, 2], [0], [0]>} : vector<4x8x8xf32>, vector<4x8x8xf32>, vector<4x8x8xf32> -> vector<4x8x8xf32>
    "tpu.trace_stop"() : () -> ()
    "tpu.trace_start"() <{level = 10 : i32, message = "hqv,hvd->hqd"}> : () -> ()
    %cst_123 = arith.constant dense<0.000000e+00> : vector<4x8x32xf32>
    %206 = tpu.matmul %205, %11, %cst_123 {dimension_numbers = #tpu.dot_dimension_numbers<[2], [1], [1], [2], [0, 0, 0, 1, 1, 2], [0], [0]>} : vector<4x8x8xf32>, vector<4x8x32xf32>, vector<4x8x32xf32> -> vector<4x8x32xf32>
    "tpu.trace_stop"() : () -> ()
    %cst_124 = arith.constant dense<0.000000e+00> : vector<8x32xf32>
    %207 = vector.multi_reduction <add>, %206, %cst_124 [0] : vector<4x8x32xf32> to vector<8x32xf32>
    %208 = arith.addf %207, %185 : vector<8x32xf32>
    %cst_125 = arith.constant dense<0.000000e+00> : vector<8xf32>
    %209 = vector.multi_reduction <add>, %208, %cst_125 [1] : vector<8x32xf32> to vector<8xf32>
    %210 = vector.shape_cast %209 : vector<8xf32> to vector<8x1xf32>
    %cst_126 = arith.constant 3.200000e+01 : f32
    %211 = vector.broadcast %cst_126 : f32 to vector<8x1xf32>
    %212 = arith.divf %210, %211 : vector<8x1xf32>
    %213 = vector.broadcast %212 : vector<8x1xf32> to vector<8x32xf32>
    %214 = arith.subf %208, %213 : vector<8x32xf32>
    %215 = arith.mulf %214, %214 : vector<8x32xf32>
    %cst_127 = arith.constant dense<0.000000e+00> : vector<8xf32>
    %216 = vector.multi_reduction <add>, %215, %cst_127 [1] : vector<8x32xf32> to vector<8xf32>
    %217 = vector.shape_cast %216 : vector<8xf32> to vector<8x1xf32>
    %cst_128 = arith.constant 3.200000e+01 : f32
    %218 = vector.broadcast %cst_128 : f32 to vector<8x1xf32>
    %219 = arith.divf %217, %218 : vector<8x1xf32>
    %220 = vector.broadcast %212 : vector<8x1xf32> to vector<8x32xf32>
    %221 = arith.subf %208, %220 : vector<8x32xf32>
    %cst_129 = arith.constant 9.99999997E-7 : f32
    %222 = vector.broadcast %cst_129 : f32 to vector<8x1xf32>
    %223 = arith.addf %219, %222 : vector<8x1xf32>
    %224 = math.rsqrt %223 : vector<8x1xf32>
    %225 = vector.broadcast %224 : vector<8x1xf32> to vector<8x32xf32>
    %226 = arith.mulf %221, %225 : vector<8x32xf32>
    %227 = vector.broadcast %13 : vector<1x32xf32> to vector<8x32xf32>
    %228 = arith.mulf %226, %227 : vector<8x32xf32>
    %229 = vector.broadcast %15 : vector<1x32xf32> to vector<8x32xf32>
    %230 = arith.addf %228, %229 : vector<8x32xf32>
    %231 = arith.addf %185, %230 : vector<8x32xf32>
    %cst_130 = arith.constant dense<0.000000e+00> : vector<8xf32>
    %232 = vector.multi_reduction <add>, %231, %cst_130 [1] : vector<8x32xf32> to vector<8xf32>
    %233 = vector.shape_cast %232 : vector<8xf32> to vector<8x1xf32>
    %cst_131 = arith.constant 3.200000e+01 : f32
    %234 = vector.broadcast %cst_131 : f32 to vector<8x1xf32>
    %235 = arith.divf %233, %234 : vector<8x1xf32>
    %236 = vector.broadcast %235 : vector<8x1xf32> to vector<8x32xf32>
    %237 = arith.subf %231, %236 : vector<8x32xf32>
    %238 = arith.mulf %237, %237 : vector<8x32xf32>
    %cst_132 = arith.constant dense<0.000000e+00> : vector<8xf32>
    %239 = vector.multi_reduction <add>, %238, %cst_132 [1] : vector<8x32xf32> to vector<8xf32>
    %240 = vector.shape_cast %239 : vector<8xf32> to vector<8x1xf32>
    %cst_133 = arith.constant 3.200000e+01 : f32
    %241 = vector.broadcast %cst_133 : f32 to vector<8x1xf32>
    %242 = arith.divf %240, %241 : vector<8x1xf32>
    %243 = vector.broadcast %235 : vector<8x1xf32> to vector<8x32xf32>
    %244 = arith.subf %231, %243 : vector<8x32xf32>
    %cst_134 = arith.constant 9.99999997E-7 : f32
    %245 = vector.broadcast %cst_134 : f32 to vector<8x1xf32>
    %246 = arith.addf %242, %245 : vector<8x1xf32>
    %247 = math.rsqrt %246 : vector<8x1xf32>
    %248 = vector.broadcast %247 : vector<8x1xf32> to vector<8x32xf32>
    %249 = arith.mulf %244, %248 : vector<8x32xf32>
    %250 = vector.broadcast %29 : vector<1x32xf32> to vector<8x32xf32>
    %251 = arith.mulf %249, %250 : vector<8x32xf32>
    %252 = vector.broadcast %31 : vector<1x32xf32> to vector<8x32xf32>
    %253 = arith.addf %251, %252 : vector<8x32xf32>
    %254 = vector.shape_cast %185 : vector<8x32xf32> to vector<1x8x32xf32>
    %255 = vector.shape_cast %254 : vector<1x8x32xf32> to vector<1x8x32xf32>
    %256 = vector.broadcast %255 : vector<1x8x32xf32> to vector<4x8x32xf32>
    "tpu.trace_start"() <{level = 10 : i32, message = "hld,hdk->hlk"}> : () -> ()
    %cst_135 = arith.constant dense<0.000000e+00> : vector<4x8x8xf32>
    %257 = tpu.matmul %256, %17, %cst_135 {dimension_numbers = #tpu.dot_dimension_numbers<[2], [1], [1], [2], [0, 0, 0, 1, 1, 2], [0], [0]>} : vector<4x8x32xf32>, vector<4x32x8xf32>, vector<4x8x8xf32> -> vector<4x8x8xf32>
    "tpu.trace_stop"() : () -> ()
    %cst_136 = arith.constant 0.353553385 : f32
    %258 = vector.broadcast %cst_136 : f32 to vector<4x8x8xf32>
    %259 = arith.mulf %257, %258 : vector<4x8x8xf32>
    "tpu.trace_start"() <{level = 10 : i32, message = "hld,hdk->hlk"}> : () -> ()
    %cst_137 = arith.constant dense<0.000000e+00> : vector<4x8x8xf32>
    %260 = tpu.matmul %256, %19, %cst_137 {dimension_numbers = #tpu.dot_dimension_numbers<[2], [1], [1], [2], [0, 0, 0, 1, 1, 2], [0], [0]>} : vector<4x8x32xf32>, vector<4x32x8xf32>, vector<4x8x8xf32> -> vector<4x8x8xf32>
    %cst_138 = arith.constant dense<0.000000e+00> : vector<4x8x8xf32>
    %261 = tpu.matmul %256, %21, %cst_138 {dimension_numbers = #tpu.dot_dimension_numbers<[2], [1], [1], [2], [0, 0, 0, 1, 1, 2], [0], [0]>} : vector<4x8x32xf32>, vector<4x32x8xf32>, vector<4x8x8xf32> -> vector<4x8x8xf32>
    "tpu.trace_stop"() : () -> ()
    "tpu.trace_start"() <{level = 10 : i32, message = "hqd,hkd->hqk"}> : () -> ()
    %cst_139 = arith.constant dense<0.000000e+00> : vector<4x8x8xf32>
    %262 = tpu.matmul %259, %260, %cst_139 {dimension_numbers = #tpu.dot_dimension_numbers<[2], [2], [1], [1], [0, 0, 0, 1, 1, 1], [0], [0]>} : vector<4x8x8xf32>, vector<4x8x8xf32>, vector<4x8x8xf32> -> vector<4x8x8xf32>
    "tpu.trace_stop"() : () -> ()
    %cst_140 = arith.constant dense<0xFF800000> : vector<4x8xf32>
    %263 = vector.multi_reduction <maximumf>, %262, %cst_140 [2] : vector<4x8x8xf32> to vector<4x8xf32>
    %264 = vector.shape_cast %263 : vector<4x8xf32> to vector<4x8x1xf32>
    %265 = vector.broadcast %264 : vector<4x8x1xf32> to vector<4x8x8xf32>
    %266 = arith.subf %262, %265 : vector<4x8x8xf32>
    %267 = math.exp %266 : vector<4x8x8xf32>
    %cst_141 = arith.constant dense<0.000000e+00> : vector<4x8xf32>
    %268 = vector.multi_reduction <add>, %267, %cst_141 [2] : vector<4x8x8xf32> to vector<4x8xf32>
    %269 = vector.shape_cast %268 : vector<4x8xf32> to vector<4x8x1xf32>
    %270 = tpu.reciprocal %269 {approx = true} : vector<4x8x1xf32> -> vector<4x8x1xf32>
    %271 = vector.broadcast %270 : vector<4x8x1xf32> to vector<4x8x8xf32>
    %272 = arith.mulf %267, %271 : vector<4x8x8xf32>
    "tpu.trace_start"() <{level = 10 : i32, message = "hqk,hkv->hqv"}> : () -> ()
    %cst_142 = arith.constant dense<0.000000e+00> : vector<4x8x8xf32>
    %273 = tpu.matmul %272, %261, %cst_142 {dimension_numbers = #tpu.dot_dimension_numbers<[2], [1], [1], [2], [0, 0, 0, 1, 1, 2], [0], [0]>} : vector<4x8x8xf32>, vector<4x8x8xf32>, vector<4x8x8xf32> -> vector<4x8x8xf32>
    "tpu.trace_stop"() : () -> ()
    "tpu.trace_start"() <{level = 10 : i32, message = "hqv,hvd->hqd"}> : () -> ()
    %cst_143 = arith.constant dense<0.000000e+00> : vector<4x8x32xf32>
    %274 = tpu.matmul %273, %23, %cst_143 {dimension_numbers = #tpu.dot_dimension_numbers<[2], [1], [1], [2], [0, 0, 0, 1, 1, 2], [0], [0]>} : vector<4x8x8xf32>, vector<4x8x32xf32>, vector<4x8x32xf32> -> vector<4x8x32xf32>
    "tpu.trace_stop"() : () -> ()
    %cst_144 = arith.constant dense<0.000000e+00> : vector<8x32xf32>
    %275 = vector.multi_reduction <add>, %274, %cst_144 [0] : vector<4x8x32xf32> to vector<8x32xf32>
    %276 = arith.addf %275, %185 : vector<8x32xf32>
    %cst_145 = arith.constant dense<0.000000e+00> : vector<8xf32>
    %277 = vector.multi_reduction <add>, %276, %cst_145 [1] : vector<8x32xf32> to vector<8xf32>
    %278 = vector.shape_cast %277 : vector<8xf32> to vector<8x1xf32>
    %cst_146 = arith.constant 3.200000e+01 : f32
    %279 = vector.broadcast %cst_146 : f32 to vector<8x1xf32>
    %280 = arith.divf %278, %279 : vector<8x1xf32>
    %281 = vector.broadcast %280 : vector<8x1xf32> to vector<8x32xf32>
    %282 = arith.subf %276, %281 : vector<8x32xf32>
    %283 = arith.mulf %282, %282 : vector<8x32xf32>
    %cst_147 = arith.constant dense<0.000000e+00> : vector<8xf32>
    %284 = vector.multi_reduction <add>, %283, %cst_147 [1] : vector<8x32xf32> to vector<8xf32>
    %285 = vector.shape_cast %284 : vector<8xf32> to vector<8x1xf32>
    %cst_148 = arith.constant 3.200000e+01 : f32
    %286 = vector.broadcast %cst_148 : f32 to vector<8x1xf32>
    %287 = arith.divf %285, %286 : vector<8x1xf32>
    %288 = vector.broadcast %280 : vector<8x1xf32> to vector<8x32xf32>
    %289 = arith.subf %276, %288 : vector<8x32xf32>
    %cst_149 = arith.constant 9.99999997E-7 : f32
    %290 = vector.broadcast %cst_149 : f32 to vector<8x1xf32>
    %291 = arith.addf %287, %290 : vector<8x1xf32>
    %292 = math.rsqrt %291 : vector<8x1xf32>
    %293 = vector.broadcast %292 : vector<8x1xf32> to vector<8x32xf32>
    %294 = arith.mulf %289, %293 : vector<8x32xf32>
    %295 = vector.broadcast %25 : vector<1x32xf32> to vector<8x32xf32>
    %296 = arith.mulf %294, %295 : vector<8x32xf32>
    %297 = vector.broadcast %27 : vector<1x32xf32> to vector<8x32xf32>
    %298 = arith.addf %296, %297 : vector<8x32xf32>
    %299 = arith.addf %253, %298 : vector<8x32xf32>
    %cst_150 = arith.constant dense<0.000000e+00> : vector<8xf32>
    %300 = vector.multi_reduction <add>, %299, %cst_150 [1] : vector<8x32xf32> to vector<8xf32>
    %301 = vector.shape_cast %300 : vector<8xf32> to vector<8x1xf32>
    %cst_151 = arith.constant 3.200000e+01 : f32
    %302 = vector.broadcast %cst_151 : f32 to vector<8x1xf32>
    %303 = arith.divf %301, %302 : vector<8x1xf32>
    %304 = vector.broadcast %303 : vector<8x1xf32> to vector<8x32xf32>
    %305 = arith.subf %299, %304 : vector<8x32xf32>
    %306 = arith.mulf %305, %305 : vector<8x32xf32>
    %cst_152 = arith.constant dense<0.000000e+00> : vector<8xf32>
    %307 = vector.multi_reduction <add>, %306, %cst_152 [1] : vector<8x32xf32> to vector<8xf32>
    %308 = vector.shape_cast %307 : vector<8xf32> to vector<8x1xf32>
    %cst_153 = arith.constant 3.200000e+01 : f32
    %309 = vector.broadcast %cst_153 : f32 to vector<8x1xf32>
    %310 = arith.divf %308, %309 : vector<8x1xf32>
    %311 = vector.broadcast %303 : vector<8x1xf32> to vector<8x32xf32>
    %312 = arith.subf %299, %311 : vector<8x32xf32>
    %cst_154 = arith.constant 9.99999997E-7 : f32
    %313 = vector.broadcast %cst_154 : f32 to vector<8x1xf32>
    %314 = arith.addf %310, %313 : vector<8x1xf32>
    %315 = math.rsqrt %314 : vector<8x1xf32>
    %316 = vector.broadcast %315 : vector<8x1xf32> to vector<8x32xf32>
    %317 = arith.mulf %312, %316 : vector<8x32xf32>
    %318 = vector.broadcast %33 : vector<1x32xf32> to vector<8x32xf32>
    %319 = arith.mulf %317, %318 : vector<8x32xf32>
    %320 = vector.broadcast %35 : vector<1x32xf32> to vector<8x32xf32>
    %321 = arith.addf %319, %320 : vector<8x32xf32>
    %322 = tpu.concatenate %184, %321 in 0 : vector<8x32xf32>, vector<8x32xf32> -> vector<16x32xf32>
    %cst_155 = arith.constant dense<0.000000e+00> : vector<16x64xf32>
    %323 = tpu.matmul %322, %37, %cst_155 {dimension_numbers = #tpu.dot_dimension_numbers<[1], [0], [0], [1], [0, 0, 1, 1], [], []>} : vector<16x32xf32>, vector<32x64xf32>, vector<16x64xf32> -> vector<16x64xf32>
    %324 = vector.broadcast %39 : vector<1x64xf32> to vector<16x64xf32>
    %325 = arith.addf %323, %324 : vector<16x64xf32>
    %cst_156 = arith.constant 0.000000e+00 : f32
    %326 = vector.broadcast %cst_156 : f32 to vector<16x64xf32>
    %327 = arith.maximumf %325, %326 : vector<16x64xf32>
    %cst_157 = arith.constant dense<0.000000e+00> : vector<16x32xf32>
    %328 = tpu.matmul %327, %41, %cst_157 {dimension_numbers = #tpu.dot_dimension_numbers<[1], [0], [0], [1], [0, 0, 1, 1], [], []>} : vector<16x64xf32>, vector<64x32xf32>, vector<16x32xf32> -> vector<16x32xf32>
    %329 = vector.broadcast %43 : vector<1x32xf32> to vector<16x32xf32>
    %330 = arith.addf %328, %329 : vector<16x32xf32>
    %331 = arith.addf %330, %322 : vector<16x32xf32>
    %cst_158 = arith.constant dense<0.000000e+00> : vector<16xf32>
    %332 = vector.multi_reduction <add>, %331, %cst_158 [1] : vector<16x32xf32> to vector<16xf32>
    %333 = vector.shape_cast %332 : vector<16xf32> to vector<16x1xf32>
    %cst_159 = arith.constant 3.200000e+01 : f32
    %334 = vector.broadcast %cst_159 : f32 to vector<16x1xf32>
    %335 = arith.divf %333, %334 : vector<16x1xf32>
    %336 = vector.broadcast %335 : vector<16x1xf32> to vector<16x32xf32>
    %337 = arith.subf %331, %336 : vector<16x32xf32>
    %338 = arith.mulf %337, %337 : vector<16x32xf32>
    %cst_160 = arith.constant dense<0.000000e+00> : vector<16xf32>
    %339 = vector.multi_reduction <add>, %338, %cst_160 [1] : vector<16x32xf32> to vector<16xf32>
    %340 = vector.shape_cast %339 : vector<16xf32> to vector<16x1xf32>
    %cst_161 = arith.constant 3.200000e+01 : f32
    %341 = vector.broadcast %cst_161 : f32 to vector<16x1xf32>
    %342 = arith.divf %340, %341 : vector<16x1xf32>
    %343 = vector.broadcast %335 : vector<16x1xf32> to vector<16x32xf32>
    %344 = arith.subf %331, %343 : vector<16x32xf32>
    %cst_162 = arith.constant 9.99999997E-7 : f32
    %345 = vector.broadcast %cst_162 : f32 to vector<16x1xf32>
    %346 = arith.addf %342, %345 : vector<16x1xf32>
    %347 = math.rsqrt %346 : vector<16x1xf32>
    %348 = vector.broadcast %347 : vector<16x1xf32> to vector<16x32xf32>
    %349 = arith.mulf %344, %348 : vector<16x32xf32>
    %350 = vector.broadcast %45 : vector<1x32xf32> to vector<16x32xf32>
    %351 = arith.mulf %349, %350 : vector<16x32xf32>
    %352 = vector.broadcast %47 : vector<1x32xf32> to vector<16x32xf32>
    %353 = arith.addf %351, %352 : vector<16x32xf32>
    %c0_163 = arith.constant 0 : index
    %c0_164 = arith.constant 0 : index
    %354 = vector.load %arg24[%c0_163, %c0_164] : memref<16x32xf32, #tpu.memory_space<vmem>>, vector<16x32xf32>
    tpu.vector_store %arg24[%c0_163, %c0_164], %353 {strides = array<i32>} : memref<16x32xf32, #tpu.memory_space<vmem>>, vector<16x32xf32>,
    return
  }
  func.func @transform_0(%arg0: i32) -> (i32, i32) {
    %c0_i32 = arith.constant 0 : i32
    %c0_i32_0 = arith.constant 0 : i32
    %c0_i32_1 = arith.constant 0 : i32
    return %c0_i32, %c0_i32_0 : i32, i32
  }
  func.func @transform_1(%arg0: i32) -> (i32, i32, i32, i32) {
    %c0_i32 = arith.constant 0 : i32
    %c0_i32_0 = arith.constant 0 : i32
    %c0_i32_1 = arith.constant 0 : i32
    %c0_i32_2 = arith.constant 0 : i32
    return %arg0, %c0_i32, %c0_i32_0, %c0_i32_1 : i32, i32, i32, i32
  }
  func.func @transform_2(%arg0: i32) -> (i32, i32, i32, i32) {
    %c0_i32 = arith.constant 0 : i32
    %c0_i32_0 = arith.constant 0 : i32
    %c0_i32_1 = arith.constant 0 : i32
    %c0_i32_2 = arith.constant 0 : i32
    return %arg0, %c0_i32, %c0_i32_0, %c0_i32_1 : i32, i32, i32, i32
  }
  func.func @transform_3(%arg0: i32) -> (i32, i32, i32, i32) {
    %c0_i32 = arith.constant 0 : i32
    %c0_i32_0 = arith.constant 0 : i32
    %c0_i32_1 = arith.constant 0 : i32
    %c0_i32_2 = arith.constant 0 : i32
    return %arg0, %c0_i32, %c0_i32_0, %c0_i32_1 : i32, i32, i32, i32
  }
  func.func @transform_4(%arg0: i32) -> (i32, i32, i32, i32) {
    %c0_i32 = arith.constant 0 : i32
    %c0_i32_0 = arith.constant 0 : i32
    %c0_i32_1 = arith.constant 0 : i32
    %c0_i32_2 = arith.constant 0 : i32
    return %arg0, %c0_i32, %c0_i32_0, %c0_i32_1 : i32, i32, i32, i32
  }
  func.func @transform_5(%arg0: i32) -> (i32, i32, i32) {
    %c0_i32 = arith.constant 0 : i32
    %c0_i32_0 = arith.constant 0 : i32
    %c0_i32_1 = arith.constant 0 : i32
    return %arg0, %c0_i32, %c0_i32_0 : i32, i32, i32
  }
  func.func @transform_6(%arg0: i32) -> (i32, i32, i32) {
    %c0_i32 = arith.constant 0 : i32
    %c0_i32_0 = arith.constant 0 : i32
    %c0_i32_1 = arith.constant 0 : i32
    return %arg0, %c0_i32, %c0_i32_0 : i32, i32, i32
  }
  func.func @transform_7(%arg0: i32) -> (i32, i32, i32, i32) {
    %c0_i32 = arith.constant 0 : i32
    %c0_i32_0 = arith.constant 0 : i32
    %c0_i32_1 = arith.constant 0 : i32
    %c0_i32_2 = arith.constant 0 : i32
    return %arg0, %c0_i32, %c0_i32_0, %c0_i32_1 : i32, i32, i32, i32
  }
  func.func @transform_8(%arg0: i32) -> (i32, i32, i32, i32) {
    %c0_i32 = arith.constant 0 : i32
    %c0_i32_0 = arith.constant 0 : i32
    %c0_i32_1 = arith.constant 0 : i32
    %c0_i32_2 = arith.constant 0 : i32
    return %arg0, %c0_i32, %c0_i32_0, %c0_i32_1 : i32, i32, i32, i32
  }
  func.func @transform_9(%arg0: i32) -> (i32, i32, i32, i32) {
    %c0_i32 = arith.constant 0 : i32
    %c0_i32_0 = arith.constant 0 : i32
    %c0_i32_1 = arith.constant 0 : i32
    %c0_i32_2 = arith.constant 0 : i32
    return %arg0, %c0_i32, %c0_i32_0, %c0_i32_1 : i32, i32, i32, i32
  }
  func.func @transform_10(%arg0: i32) -> (i32, i32, i32, i32) {
    %c0_i32 = arith.constant 0 : i32
    %c0_i32_0 = arith.constant 0 : i32
    %c0_i32_1 = arith.constant 0 : i32
    %c0_i32_2 = arith.constant 0 : i32
    return %arg0, %c0_i32, %c0_i32_0, %c0_i32_1 : i32, i32, i32, i32
  }
  func.func @transform_11(%arg0: i32) -> (i32, i32, i32) {
    %c0_i32 = arith.constant 0 : i32
    %c0_i32_0 = arith.constant 0 : i32
    %c0_i32_1 = arith.constant 0 : i32
    return %arg0, %c0_i32, %c0_i32_0 : i32, i32, i32
  }
  func.func @transform_12(%arg0: i32) -> (i32, i32, i32) {
    %c0_i32 = arith.constant 0 : i32
    %c0_i32_0 = arith.constant 0 : i32
    %c0_i32_1 = arith.constant 0 : i32
    return %arg0, %c0_i32, %c0_i32_0 : i32, i32, i32
  }
  func.func @transform_13(%arg0: i32) -> (i32, i32, i32) {
    %c0_i32 = arith.constant 0 : i32
    %c0_i32_0 = arith.constant 0 : i32
    %c0_i32_1 = arith.constant 0 : i32
    return %arg0, %c0_i32, %c0_i32_0 : i32, i32, i32
  }
  func.func @transform_14(%arg0: i32) -> (i32, i32, i32) {
    %c0_i32 = arith.constant 0 : i32
    %c0_i32_0 = arith.constant 0 : i32
    %c0_i32_1 = arith.constant 0 : i32
    return %arg0, %c0_i32, %c0_i32_0 : i32, i32, i32
  }
  func.func @transform_15(%arg0: i32) -> (i32, i32, i32) {
    %c0_i32 = arith.constant 0 : i32
    %c0_i32_0 = arith.constant 0 : i32
    %c0_i32_1 = arith.constant 0 : i32
    return %arg0, %c0_i32, %c0_i32_0 : i32, i32, i32
  }
  func.func @transform_16(%arg0: i32) -> (i32, i32, i32) {
    %c0_i32 = arith.constant 0 : i32
    %c0_i32_0 = arith.constant 0 : i32
    %c0_i32_1 = arith.constant 0 : i32
    return %arg0, %c0_i32, %c0_i32_0 : i32, i32, i32
  }
  func.func @transform_17(%arg0: i32) -> (i32, i32, i32) {
    %c0_i32 = arith.constant 0 : i32
    %c0_i32_0 = arith.constant 0 : i32
    %c0_i32_1 = arith.constant 0 : i32
    return %arg0, %c0_i32, %c0_i32_0 : i32, i32, i32
  }
  func.func @transform_18(%arg0: i32) -> (i32, i32, i32) {
    %c0_i32 = arith.constant 0 : i32
    %c0_i32_0 = arith.constant 0 : i32
    %c0_i32_1 = arith.constant 0 : i32
    return %arg0, %c0_i32, %c0_i32_0 : i32, i32, i32
  }
  func.func @transform_19(%arg0: i32) -> (i32, i32, i32) {
    %c0_i32 = arith.constant 0 : i32
    %c0_i32_0 = arith.constant 0 : i32
    %c0_i32_1 = arith.constant 0 : i32
    return %arg0, %c0_i32, %c0_i32_0 : i32, i32, i32
  }
  func.func @transform_20(%arg0: i32) -> (i32, i32, i32) {
    %c0_i32 = arith.constant 0 : i32
    %c0_i32_0 = arith.constant 0 : i32
    %c0_i32_1 = arith.constant 0 : i32
    return %arg0, %c0_i32, %c0_i32_0 : i32, i32, i32
  }
  func.func @transform_21(%arg0: i32) -> (i32, i32, i32) {
    %c0_i32 = arith.constant 0 : i32
    %c0_i32_0 = arith.constant 0 : i32
    %c0_i32_1 = arith.constant 0 : i32
    return %arg0, %c0_i32, %c0_i32_0 : i32, i32, i32
  }
  func.func @transform_22(%arg0: i32) -> (i32, i32, i32) {
    %c0_i32 = arith.constant 0 : i32
    %c0_i32_0 = arith.constant 0 : i32
    %c0_i32_1 = arith.constant 0 : i32
    return %arg0, %c0_i32, %c0_i32_0 : i32, i32, i32
  }
  func.func @transform_23(%arg0: i32) -> (i32, i32) {
    %c0_i32 = arith.constant 0 : i32
    %c0_i32_0 = arith.constant 0 : i32
    %c0_i32_1 = arith.constant 0 : i32
    return %c0_i32, %c0_i32_0 : i32, i32
  }
}

</mosaic_0001>

<llo_original>
// kernel: encoder_forward.1
$region0: #{encoder_forward.1}
  #allocation0 [shape = 'u32[]', space=smem, size = 0x4, offset = 0x4, fixed_abs, tag = 'smem constant byte address 0x4 - core index']
  #allocation1 [shape = 'u32[144,128]{1,0:T(1,128)}', space=vmem, size = 0x12000, scoped, tag = 'internal scratch']
  %s0 = inlined_call_operand.vmem [shape: f32[16,32], index: 0, kind: input, shape index: {}]
  %s1 = inlined_call_operand.vmem [shape: f32[2,4,32,8], index: 1, kind: input, shape index: {}]
  %s2 = inlined_call_operand.vmem [shape: f32[2,4,32,8], index: 2, kind: input, shape index: {}]
  %s3 = inlined_call_operand.vmem [shape: f32[2,4,32,8], index: 3, kind: input, shape index: {}]
  %s4 = inlined_call_operand.vmem [shape: f32[2,4,8,32], index: 4, kind: input, shape index: {}]
  %s5 = inlined_call_operand.vmem [shape: f32[2,1,32], index: 5, kind: input, shape index: {}]
  %s6 = inlined_call_operand.vmem [shape: f32[2,1,32], index: 6, kind: input, shape index: {}]
  %s7 = inlined_call_operand.vmem [shape: f32[2,4,32,8], index: 7, kind: input, shape index: {}]
  %s8 = inlined_call_operand.vmem [shape: f32[2,4,32,8], index: 8, kind: input, shape index: {}]
  %s9 = inlined_call_operand.vmem [shape: f32[2,4,32,8], index: 9, kind: input, shape index: {}]
  %s10 = inlined_call_operand.vmem [shape: f32[2,4,8,32], index: 10, kind: input, shape index: {}]
  %s11 = inlined_call_operand.vmem [shape: f32[2,1,32], index: 11, kind: input, shape index: {}]
  %s12 = inlined_call_operand.vmem [shape: f32[2,1,32], index: 12, kind: input, shape index: {}]
  %s13 = inlined_call_operand.vmem [shape: f32[2,1,32], index: 13, kind: input, shape index: {}]
  %s14 = inlined_call_operand.vmem [shape: f32[2,1,32], index: 14, kind: input, shape index: {}]
  %s15 = inlined_call_operand.vmem [shape: f32[2,1,32], index: 15, kind: input, shape index: {}]
  %s16 = inlined_call_operand.vmem [shape: f32[2,1,32], index: 16, kind: input, shape index: {}]
  %s17 = inlined_call_operand.vmem [shape: f32[2,32,64], index: 17, kind: input, shape index: {}]
  %s18 = inlined_call_operand.vmem [shape: f32[2,1,64], index: 18, kind: input, shape index: {}]
  %s19 = inlined_call_operand.vmem [shape: f32[2,64,32], index: 19, kind: input, shape index: {}]
  %s20 = inlined_call_operand.vmem [shape: f32[2,1,32], index: 20, kind: input, shape index: {}]
  %s21 = inlined_call_operand.vmem [shape: f32[2,1,32], index: 21, kind: input, shape index: {}]
  %s22 = inlined_call_operand.vmem [shape: f32[2,1,32], index: 22, kind: input, shape index: {}]
  %s23 = inlined_call_operand.hbm [shape: f32[16,32], index: 23, kind: output, shape index: {}]
  %s24 = sld [smem:[#allocation0]]
  $region129: #{encoder_forward.1} parent=0
    _
  %s26 = ssub.s32 1, %s24
  %s27 = scalar_select 0, %s26, %s24
  $region1: #{encoder_forward.1} parent=0
    #allocation2 [shape = 'u8[8192]{0}', space=vmem, size = 0x2000, scoped, tag = 'output window, operand 0, single buffered']
    #allocation3 [shape = 's32[2]{0}', space=sflag, size = 0x8, scoped, tag = 'scoped memory for encoder_forward.1']
    %28 = vsyncpa [#allocation3], 0
    loop: start=0, step=1, limit=4
    $region2: #{encoder_forward.1} parent=1 // loop_pre_header
      _
    $region3: #{encoder_forward.1} parent=1 // loop_header
      %s30 = sphi 0, %s34
      %p31 = scmp.ge.s32.totalorder %s30, 4
      %s38 = sphi 0, %s38
      %s40 = sphi 0, %s38
      %s41 = sphi 0, %s40
      %s55 = sphi 0, %s41
      %s61 = sphi 0, %s63
      %s64 = sphi 0, %s61
      %s65 = sphi 0, %s64
      %s81 = sphi 0, %s65
      %s87 = sphi 0, %s89
      %s90 = sphi 0, %s87
      %s91 = sphi 0, %s90
      %s107 = sphi 0, %s91
      %s113 = sphi 0, %s115
      %s116 = sphi 0, %s113
      %s117 = sphi 0, %s116
      %s133 = sphi 0, %s117
      %s139 = sphi 0, %s141
      %s142 = sphi 0, %s139
      %s143 = sphi 0, %s142
      %s159 = sphi 0, %s143
      %s165 = sphi 0, %s167
      %s168 = sphi 0, %s165
      %s169 = sphi 0, %s168
      %s185 = sphi 0, %s169
      %s191 = sphi 0, %s193
      %s194 = sphi 0, %s191
      %s195 = sphi 0, %s194
      %s211 = sphi 0, %s195
      %s217 = sphi 0, %s219
      %s220 = sphi 0, %s217
      %s221 = sphi 0, %s220
      %s237 = sphi 0, %s221
      %s243 = sphi 0, %s245
      %s246 = sphi 0, %s243
      %s247 = sphi 0, %s246
      %s263 = sphi 0, %s247
      %s269 = sphi 0, %s271
      %s272 = sphi 0, %s269
      %s273 = sphi 0, %s272
      %s289 = sphi 0, %s273
      %s295 = sphi 0, %s297
      %s298 = sphi 0, %s295
      %s299 = sphi 0, %s298
      %s315 = sphi 0, %s299
      %s321 = sphi 0, %s323
      %s324 = sphi 0, %s321
      %s325 = sphi 0, %s324
      %s341 = sphi 0, %s325
      %s347 = sphi 0, %s349
      %s350 = sphi 0, %s347
      %s351 = sphi 0, %s350
      %s367 = sphi 0, %s351
      %s373 = sphi 0, %s375
      %s376 = sphi 0, %s373
      %s377 = sphi 0, %s376
      %s393 = sphi 0, %s377
      %s399 = sphi 0, %s401
      %s402 = sphi 0, %s399
      %s403 = sphi 0, %s402
      %s419 = sphi 0, %s403
      %s425 = sphi 0, %s427
      %s428 = sphi 0, %s425
      %s429 = sphi 0, %s428
      %s445 = sphi 0, %s429
      %s451 = sphi 0, %s453
      %s454 = sphi 0, %s451
      %s455 = sphi 0, %s454
      %s471 = sphi 0, %s455
      %s477 = sphi 0, %s479
      %s480 = sphi 0, %s477
      %s481 = sphi 0, %s480
      %s497 = sphi 0, %s481
      %s503 = sphi 0, %s505
      %s506 = sphi 0, %s503
      %s507 = sphi 0, %s506
      %s523 = sphi 0, %s507
      %s529 = sphi 0, %s531
      %s532 = sphi 0, %s529
      %s533 = sphi 0, %s532
      %s549 = sphi 0, %s533
      %s555 = sphi 0, %s557
      %s558 = sphi 0, %s555
      %s559 = sphi 0, %s558
      %s575 = sphi 0, %s559
      %s581 = sphi 0, %s583
      %s584 = sphi 0, %s581
      %s585 = sphi 0, %s584
      %s601 = sphi 0, %s585
      %s607 = sphi 0, %s609
      %s610 = sphi 0, %s607
      %s611 = sphi 0, %s610
      %s627 = sphi 0, %s611
      %s631 = sphi 0, %s631
      %s633 = sphi 0, %s631
      %s634 = sphi 0, %s633
      %s648 = sphi 0, %s634
    $region4: #{encoder_forward.1} parent=1 // loop_header_branch
      %33 = sbr.rel (%p31) target = $region8
    $region5: #{encoder_forward.1} parent=1 // loop_body
      %s35 = ssub.s32 %s30, 1
      %s36 = ssub.s32 %s30, 2
      %s37 = sadd.s32 %s30, 1
      %s39 = sadd.s32 %s38, 1
      %p42 = scmp.eq.s32.totalorder %s30, 1
      %p43 = scmp.ne.s32.totalorder %s38, %s40
      %p44 = scmp.eq.s32.totalorder %s30, 0
      %p45 = por %p43, %p44
      %p46 = scmp.ne.s32.totalorder %s38, %s40
      %p47 = scmp.eq.s32.totalorder %s35, 1
      %p48 = por %p46, %p47
      %p49 = scmp.ne.s32.totalorder %s40, %s41
      %p50 = scmp.eq.s32.totalorder %s35, 0
      %p51 = por %p49, %p50
      %p52 = scmp.ne.s32.totalorder %s40, %s41
      %p53 = scmp.eq.s32.totalorder %s36, 1
      %p54 = por %p52, %p53
      %p56 = scmp.ne.s32.totalorder %s41, %s55
      %p57 = scmp.eq.s32.totalorder %s36, 0
      %p58 = por %p56, %p57
      %s59 = ssub.s32 %s30, %s37
      %p60 = scmp.eq.s32.totalorder %s59, 0
      %s62 = sadd.s32 %s61, 1
      %s63 = scalar_select %p60, %s61, %s62
      %p66 = pneg %p60
      %p67 = scmp.eq.s32.totalorder %s30, 1
      %p68 = por %p66, %p67
      %p69 = scmp.ne.s32.totalorder %s61, %s64
      %p70 = scmp.eq.s32.totalorder %s30, 0
      %p71 = por %p69, %p70
      %p72 = scmp.ne.s32.totalorder %s61, %s64
      %p73 = scmp.eq.s32.totalorder %s35, 1
      %p74 = por %p72, %p73
      %p75 = scmp.ne.s32.totalorder %s64, %s65
      %p76 = scmp.eq.s32.totalorder %s35, 0
      %p77 = por %p75, %p76
      %p78 = scmp.ne.s32.totalorder %s64, %s65
      %p79 = scmp.eq.s32.totalorder %s36, 1
      %p80 = por %p78, %p79
      %p82 = scmp.ne.s32.totalorder %s65, %s81
      %p83 = scmp.eq.s32.totalorder %s36, 0
      %p84 = por %p82, %p83
      %s85 = ssub.s32 %s30, %s37
      %p86 = scmp.eq.s32.totalorder %s85, 0
      %s88 = sadd.s32 %s87, 1
      %s89 = scalar_select %p86, %s87, %s88
      %p92 = pneg %p86
      %p93 = scmp.eq.s32.totalorder %s30, 1
      %p94 = por %p92, %p93
      %p95 = scmp.ne.s32.totalorder %s87, %s90
      %p96 = scmp.eq.s32.totalorder %s30, 0
      %p97 = por %p95, %p96
      %p98 = scmp.ne.s32.totalorder %s87, %s90
      %p99 = scmp.eq.s32.totalorder %s35, 1
      %p100 = por %p98, %p99
      %p101 = scmp.ne.s32.totalorder %s90, %s91
      %p102 = scmp.eq.s32.totalorder %s35, 0
      %p103 = por %p101, %p102
      %p104 = scmp.ne.s32.totalorder %s90, %s91
      %p105 = scmp.eq.s32.totalorder %s36, 1
      %p106 = por %p104, %p105
      %p108 = scmp.ne.s32.totalorder %s91, %s107
      %p109 = scmp.eq.s32.totalorder %s36, 0
      %p110 = por %p108, %p109
      %s111 = ssub.s32 %s30, %s37
      %p112 = scmp.eq.s32.totalorder %s111, 0
      %s114 = sadd.s32 %s113, 1
      %s115 = scalar_select %p112, %s113, %s114
      %p118 = pneg %p112
      %p119 = scmp.eq.s32.totalorder %s30, 1
      %p120 = por %p118, %p119
      %p121 = scmp.ne.s32.totalorder %s113, %s116
      %p122 = scmp.eq.s32.totalorder %s30, 0
      %p123 = por %p121, %p122
      %p124 = scmp.ne.s32.totalorder %s113, %s116
      %p125 = scmp.eq.s32.totalorder %s35, 1
      %p126 = por %p124, %p125
      %p127 = scmp.ne.s32.totalorder %s116, %s117
      %p128 = scmp.eq.s32.totalorder %s35, 0
      %p129 = por %p127, %p128
      %p130 = scmp.ne.s32.totalorder %s116, %s117
      %p131 = scmp.eq.s32.totalorder %s36, 1
      %p132 = por %p130, %p131
      %p134 = scmp.ne.s32.totalorder %s117, %s133
      %p135 = scmp.eq.s32.totalorder %s36, 0
      %p136 = por %p134, %p135
      %s137 = ssub.s32 %s30, %s37
      %p138 = scmp.eq.s32.totalorder %s137, 0
      %s140 = sadd.s32 %s139, 1
      %s141 = scalar_select %p138, %s139, %s140
      %p144 = pneg %p138
      %p145 = scmp.eq.s32.totalorder %s30, 1
      %p146 = por %p144, %p145
      %p147 = scmp.ne.s32.totalorder %s139, %s142
      %p148 = scmp.eq.s32.totalorder %s30, 0
      %p149 = por %p147, %p148
      %p150 = scmp.ne.s32.totalorder %s139, %s142
      %p151 = scmp.eq.s32.totalorder %s35, 1
      %p152 = por %p150, %p151
      %p153 = scmp.ne.s32.totalorder %s142, %s143
      %p154 = scmp.eq.s32.totalorder %s35, 0
      %p155 = por %p153, %p154
      %p156 = scmp.ne.s32.totalorder %s142, %s143
      %p157 = scmp.eq.s32.totalorder %s36, 1
      %p158 = por %p156, %p157
      %p160 = scmp.ne.s32.totalorder %s143, %s159
      %p161 = scmp.eq.s32.totalorder %s36, 0
      %p162 = por %p160, %p161
      %s163 = ssub.s32 %s30, %s37
      %p164 = scmp.eq.s32.totalorder %s163, 0
      %s166 = sadd.s32 %s165, 1
      %s167 = scalar_select %p164, %s165, %s166
      %p170 = pneg %p164
      %p171 = scmp.eq.s32.totalorder %s30, 1
      %p172 = por %p170, %p171
      %p173 = scmp.ne.s32.totalorder %s165, %s168
      %p174 = scmp.eq.s32.totalorder %s30, 0
      %p175 = por %p173, %p174
      %p176 = scmp.ne.s32.totalorder %s165, %s168
      %p177 = scmp.eq.s32.totalorder %s35, 1
      %p178 = por %p176, %p177
      %p179 = scmp.ne.s32.totalorder %s168, %s169
      %p180 = scmp.eq.s32.totalorder %s35, 0
      %p181 = por %p179, %p180
      %p182 = scmp.ne.s32.totalorder %s168, %s169
      %p183 = scmp.eq.s32.totalorder %s36, 1
      %p184 = por %p182, %p183
      %p186 = scmp.ne.s32.totalorder %s169, %s185
      %p187 = scmp.eq.s32.totalorder %s36, 0
      %p188 = por %p186, %p187
      %s189 = ssub.s32 %s30, %s37
      %p190 = scmp.eq.s32.totalorder %s189, 0
      %s192 = sadd.s32 %s191, 1
      %s193 = scalar_select %p190, %s191, %s192
      %p196 = pneg %p190
      %p197 = scmp.eq.s32.totalorder %s30, 1
      %p198 = por %p196, %p197
      %p199 = scmp.ne.s32.totalorder %s191, %s194
      %p200 = scmp.eq.s32.totalorder %s30, 0
      %p201 = por %p199, %p200
      %p202 = scmp.ne.s32.totalorder %s191, %s194
      %p203 = scmp.eq.s32.totalorder %s35, 1
      %p204 = por %p202, %p203
      %p205 = scmp.ne.s32.totalorder %s194, %s195
      %p206 = scmp.eq.s32.totalorder %s35, 0
      %p207 = por %p205, %p206
      %p208 = scmp.ne.s32.totalorder %s194, %s195
      %p209 = scmp.eq.s32.totalorder %s36, 1
      %p210 = por %p208, %p209
      %p212 = scmp.ne.s32.totalorder %s195, %s211
      %p213 = scmp.eq.s32.totalorder %s36, 0
      %p214 = por %p212, %p213
      %s215 = ssub.s32 %s30, %s37
      %p216 = scmp.eq.s32.totalorder %s215, 0
      %s218 = sadd.s32 %s217, 1
      %s219 = scalar_select %p216, %s217, %s218
      %p222 = pneg %p216
      %p223 = scmp.eq.s32.totalorder %s30, 1
      %p224 = por %p222, %p223
      %p225 = scmp.ne.s32.totalorder %s217, %s220
      %p226 = scmp.eq.s32.totalorder %s30, 0
      %p227 = por %p225, %p226
      %p228 = scmp.ne.s32.totalorder %s217, %s220
      %p229 = scmp.eq.s32.totalorder %s35, 1
      %p230 = por %p228, %p229
      %p231 = scmp.ne.s32.totalorder %s220, %s221
      %p232 = scmp.eq.s32.totalorder %s35, 0
      %p233 = por %p231, %p232
      %p234 = scmp.ne.s32.totalorder %s220, %s221
      %p235 = scmp.eq.s32.totalorder %s36, 1
      %p236 = por %p234, %p235
      %p238 = scmp.ne.s32.totalorder %s221, %s237
      %p239 = scmp.eq.s32.totalorder %s36, 0
      %p240 = por %p238, %p239
      %s241 = ssub.s32 %s30, %s37
      %p242 = scmp.eq.s32.totalorder %s241, 0
      %s244 = sadd.s32 %s243, 1
      %s245 = scalar_select %p242, %s243, %s244
      %p248 = pneg %p242
      %p249 = scmp.eq.s32.totalorder %s30, 1
      %p250 = por %p248, %p249
      %p251 = scmp.ne.s32.totalorder %s243, %s246
      %p252 = scmp.eq.s32.totalorder %s30, 0
      %p253 = por %p251, %p252
      %p254 = scmp.ne.s32.totalorder %s243, %s246
      %p255 = scmp.eq.s32.totalorder %s35, 1
      %p256 = por %p254, %p255
      %p257 = scmp.ne.s32.totalorder %s246, %s247
      %p258 = scmp.eq.s32.totalorder %s35, 0
      %p259 = por %p257, %p258
      %p260 = scmp.ne.s32.totalorder %s246, %s247
      %p261 = scmp.eq.s32.totalorder %s36, 1
      %p262 = por %p260, %p261
      %p264 = scmp.ne.s32.totalorder %s247, %s263
      %p265 = scmp.eq.s32.totalorder %s36, 0
      %p266 = por %p264, %p265
      %s267 = ssub.s32 %s30, %s37
      %p268 = scmp.eq.s32.totalorder %s267, 0
      %s270 = sadd.s32 %s269, 1
      %s271 = scalar_select %p268, %s269, %s270
      %p274 = pneg %p268
      %p275 = scmp.eq.s32.totalorder %s30, 1
      %p276 = por %p274, %p275
      %p277 = scmp.ne.s32.totalorder %s269, %s272
      %p278 = scmp.eq.s32.totalorder %s30, 0
      %p279 = por %p277, %p278
      %p280 = scmp.ne.s32.totalorder %s269, %s272
      %p281 = scmp.eq.s32.totalorder %s35, 1
      %p282 = por %p280, %p281
      %p283 = scmp.ne.s32.totalorder %s272, %s273
      %p284 = scmp.eq.s32.totalorder %s35, 0
      %p285 = por %p283, %p284
      %p286 = scmp.ne.s32.totalorder %s272, %s273
      %p287 = scmp.eq.s32.totalorder %s36, 1
      %p288 = por %p286, %p287
      %p290 = scmp.ne.s32.totalorder %s273, %s289
      %p291 = scmp.eq.s32.totalorder %s36, 0
      %p292 = por %p290, %p291
      %s293 = ssub.s32 %s30, %s37
      %p294 = scmp.eq.s32.totalorder %s293, 0
      %s296 = sadd.s32 %s295, 1
      %s297 = scalar_select %p294, %s295, %s296
      %p300 = pneg %p294
      %p301 = scmp.eq.s32.totalorder %s30, 1
      %p302 = por %p300, %p301
      %p303 = scmp.ne.s32.totalorder %s295, %s298
      %p304 = scmp.eq.s32.totalorder %s30, 0
      %p305 = por %p303, %p304
      %p306 = scmp.ne.s32.totalorder %s295, %s298
      %p307 = scmp.eq.s32.totalorder %s35, 1
      %p308 = por %p306, %p307
      %p309 = scmp.ne.s32.totalorder %s298, %s299
      %p310 = scmp.eq.s32.totalorder %s35, 0
      %p311 = por %p309, %p310
      %p312 = scmp.ne.s32.totalorder %s298, %s299
      %p313 = scmp.eq.s32.totalorder %s36, 1
      %p314 = por %p312, %p313
      %p316 = scmp.ne.s32.totalorder %s299, %s315
      %p317 = scmp.eq.s32.totalorder %s36, 0
      %p318 = por %p316, %p317
      %s319 = ssub.s32 %s30, %s37
      %p320 = scmp.eq.s32.totalorder %s319, 0
      %s322 = sadd.s32 %s321, 1
      %s323 = scalar_select %p320, %s321, %s322
      %p326 = pneg %p320
      %p327 = scmp.eq.s32.totalorder %s30, 1
      %p328 = por %p326, %p327
      %p329 = scmp.ne.s32.totalorder %s321, %s324
      %p330 = scmp.eq.s32.totalorder %s30, 0
      %p331 = por %p329, %p330
      %p332 = scmp.ne.s32.totalorder %s321, %s324
      %p333 = scmp.eq.s32.totalorder %s35, 1
      %p334 = por %p332, %p333
      %p335 = scmp.ne.s32.totalorder %s324, %s325
      %p336 = scmp.eq.s32.totalorder %s35, 0
      %p337 = por %p335, %p336
      %p338 = scmp.ne.s32.totalorder %s324, %s325
      %p339 = scmp.eq.s32.totalorder %s36, 1
      %p340 = por %p338, %p339
      %p342 = scmp.ne.s32.totalorder %s325, %s341
      %p343 = scmp.eq.s32.totalorder %s36, 0
      %p344 = por %p342, %p343
      %s345 = ssub.s32 %s30, %s37
      %p346 = scmp.eq.s32.totalorder %s345, 0
      %s348 = sadd.s32 %s347, 1
      %s349 = scalar_select %p346, %s347, %s348
      %p352 = pneg %p346
      %p353 = scmp.eq.s32.totalorder %s30, 1
      %p354 = por %p352, %p353
      %p355 = scmp.ne.s32.totalorder %s347, %s350
      %p356 = scmp.eq.s32.totalorder %s30, 0
      %p357 = por %p355, %p356
      %p358 = scmp.ne.s32.totalorder %s347, %s350
      %p359 = scmp.eq.s32.totalorder %s35, 1
      %p360 = por %p358, %p359
      %p361 = scmp.ne.s32.totalorder %s350, %s351
      %p362 = scmp.eq.s32.totalorder %s35, 0
      %p363 = por %p361, %p362
      %p364 = scmp.ne.s32.totalorder %s350, %s351
      %p365 = scmp.eq.s32.totalorder %s36, 1
      %p366 = por %p364, %p365
      %p368 = scmp.ne.s32.totalorder %s351, %s367
      %p369 = scmp.eq.s32.totalorder %s36, 0
      %p370 = por %p368, %p369
      %s371 = ssub.s32 %s30, %s37
      %p372 = scmp.eq.s32.totalorder %s371, 0
      %s374 = sadd.s32 %s373, 1
      %s375 = scalar_select %p372, %s373, %s374
      %p378 = pneg %p372
      %p379 = scmp.eq.s32.totalorder %s30, 1
      %p380 = por %p378, %p379
      %p381 = scmp.ne.s32.totalorder %s373, %s376
      %p382 = scmp.eq.s32.totalorder %s30, 0
      %p383 = por %p381, %p382
      %p384 = scmp.ne.s32.totalorder %s373, %s376
      %p385 = scmp.eq.s32.totalorder %s35, 1
      %p386 = por %p384, %p385
      %p387 = scmp.ne.s32.totalorder %s376, %s377
      %p388 = scmp.eq.s32.totalorder %s35, 0
      %p389 = por %p387, %p388
      %p390 = scmp.ne.s32.totalorder %s376, %s377
      %p391 = scmp.eq.s32.totalorder %s36, 1
      %p392 = por %p390, %p391
      %p394 = scmp.ne.s32.totalorder %s377, %s393
      %p395 = scmp.eq.s32.totalorder %s36, 0
      %p396 = por %p394, %p395
      %s397 = ssub.s32 %s30, %s37
      %p398 = scmp.eq.s32.totalorder %s397, 0
      %s400 = sadd.s32 %s399, 1
      %s401 = scalar_select %p398, %s399, %s400
      %p404 = pneg %p398
      %p405 = scmp.eq.s32.totalorder %s30, 1
      %p406 = por %p404, %p405
      %p407 = scmp.ne.s32.totalorder %s399, %s402
      %p408 = scmp.eq.s32.totalorder %s30, 0
      %p409 = por %p407, %p408
      %p410 = scmp.ne.s32.totalorder %s399, %s402
      %p411 = scmp.eq.s32.totalorder %s35, 1
      %p412 = por %p410, %p411
      %p413 = scmp.ne.s32.totalorder %s402, %s403
      %p414 = scmp.eq.s32.totalorder %s35, 0
      %p415 = por %p413, %p414
      %p416 = scmp.ne.s32.totalorder %s402, %s403
      %p417 = scmp.eq.s32.totalorder %s36, 1
      %p418 = por %p416, %p417
      %p420 = scmp.ne.s32.totalorder %s403, %s419
      %p421 = scmp.eq.s32.totalorder %s36, 0
      %p422 = por %p420, %p421
      %s423 = ssub.s32 %s30, %s37
      %p424 = scmp.eq.s32.totalorder %s423, 0
      %s426 = sadd.s32 %s425, 1
      %s427 = scalar_select %p424, %s425, %s426
      %p430 = pneg %p424
      %p431 = scmp.eq.s32.totalorder %s30, 1
      %p432 = por %p430, %p431
      %p433 = scmp.ne.s32.totalorder %s425, %s428
      %p434 = scmp.eq.s32.totalorder %s30, 0
      %p435 = por %p433, %p434
      %p436 = scmp.ne.s32.totalorder %s425, %s428
      %p437 = scmp.eq.s32.totalorder %s35, 1
      %p438 = por %p436, %p437
      %p439 = scmp.ne.s32.totalorder %s428, %s429
      %p440 = scmp.eq.s32.totalorder %s35, 0
      %p441 = por %p439, %p440
      %p442 = scmp.ne.s32.totalorder %s428, %s429
      %p443 = scmp.eq.s32.totalorder %s36, 1
      %p444 = por %p442, %p443
      %p446 = scmp.ne.s32.totalorder %s429, %s445
      %p447 = scmp.eq.s32.totalorder %s36, 0
      %p448 = por %p446, %p447
      %s449 = ssub.s32 %s30, %s37
      %p450 = scmp.eq.s32.totalorder %s449, 0
      %s452 = sadd.s32 %s451, 1
      %s453 = scalar_select %p450, %s451, %s452
      %p456 = pneg %p450
      %p457 = scmp.eq.s32.totalorder %s30, 1
      %p458 = por %p456, %p457
      %p459 = scmp.ne.s32.totalorder %s451, %s454
      %p460 = scmp.eq.s32.totalorder %s30, 0
      %p461 = por %p459, %p460
      %p462 = scmp.ne.s32.totalorder %s451, %s454
      %p463 = scmp.eq.s32.totalorder %s35, 1
      %p464 = por %p462, %p463
      %p465 = scmp.ne.s32.totalorder %s454, %s455
      %p466 = scmp.eq.s32.totalorder %s35, 0
      %p467 = por %p465, %p466
      %p468 = scmp.ne.s32.totalorder %s454, %s455
      %p469 = scmp.eq.s32.totalorder %s36, 1
      %p470 = por %p468, %p469
      %p472 = scmp.ne.s32.totalorder %s455, %s471
      %p473 = scmp.eq.s32.totalorder %s36, 0
      %p474 = por %p472, %p473
      %s475 = ssub.s32 %s30, %s37
      %p476 = scmp.eq.s32.totalorder %s475, 0
      %s478 = sadd.s32 %s477, 1
      %s479 = scalar_select %p476, %s477, %s478
      %p482 = pneg %p476
      %p483 = scmp.eq.s32.totalorder %s30, 1
      %p484 = por %p482, %p483
      %p485 = scmp.ne.s32.totalorder %s477, %s480
      %p486 = scmp.eq.s32.totalorder %s30, 0
      %p487 = por %p485, %p486
      %p488 = scmp.ne.s32.totalorder %s477, %s480
      %p489 = scmp.eq.s32.totalorder %s35, 1
      %p490 = por %p488, %p489
      %p491 = scmp.ne.s32.totalorder %s480, %s481
      %p492 = scmp.eq.s32.totalorder %s35, 0
      %p493 = por %p491, %p492
      %p494 = scmp.ne.s32.totalorder %s480, %s481
      %p495 = scmp.eq.s32.totalorder %s36, 1
      %p496 = por %p494, %p495
      %p498 = scmp.ne.s32.totalorder %s481, %s497
      %p499 = scmp.eq.s32.totalorder %s36, 0
      %p500 = por %p498, %p499
      %s501 = ssub.s32 %s30, %s37
      %p502 = scmp.eq.s32.totalorder %s501, 0
      %s504 = sadd.s32 %s503, 1
      %s505 = scalar_select %p502, %s503, %s504
      %p508 = pneg %p502
      %p509 = scmp.eq.s32.totalorder %s30, 1
      %p510 = por %p508, %p509
      %p511 = scmp.ne.s32.totalorder %s503, %s506
      %p512 = scmp.eq.s32.totalorder %s30, 0
      %p513 = por %p511, %p512
      %p514 = scmp.ne.s32.totalorder %s503, %s506
      %p515 = scmp.eq.s32.totalorder %s35, 1
      %p516 = por %p514, %p515
      %p517 = scmp.ne.s32.totalorder %s506, %s507
      %p518 = scmp.eq.s32.totalorder %s35, 0
      %p519 = por %p517, %p518
      %p520 = scmp.ne.s32.totalorder %s506, %s507
      %p521 = scmp.eq.s32.totalorder %s36, 1
      %p522 = por %p520, %p521
      %p524 = scmp.ne.s32.totalorder %s507, %s523
      %p525 = scmp.eq.s32.totalorder %s36, 0
      %p526 = por %p524, %p525
      %s527 = ssub.s32 %s30, %s37
      %p528 = scmp.eq.s32.totalorder %s527, 0
      %s530 = sadd.s32 %s529, 1
      %s531 = scalar_select %p528, %s529, %s530
      %p534 = pneg %p528
      %p535 = scmp.eq.s32.totalorder %s30, 1
      %p536 = por %p534, %p535
      %p537 = scmp.ne.s32.totalorder %s529, %s532
      %p538 = scmp.eq.s32.totalorder %s30, 0
      %p539 = por %p537, %p538
      %p540 = scmp.ne.s32.totalorder %s529, %s532
      %p541 = scmp.eq.s32.totalorder %s35, 1
      %p542 = por %p540, %p541
      %p543 = scmp.ne.s32.totalorder %s532, %s533
      %p544 = scmp.eq.s32.totalorder %s35, 0
      %p545 = por %p543, %p544
      %p546 = scmp.ne.s32.totalorder %s532, %s533
      %p547 = scmp.eq.s32.totalorder %s36, 1
      %p548 = por %p546, %p547
      %p550 = scmp.ne.s32.totalorder %s533, %s549
      %p551 = scmp.eq.s32.totalorder %s36, 0
      %p552 = por %p550, %p551
      %s553 = ssub.s32 %s30, %s37
      %p554 = scmp.eq.s32.totalorder %s553, 0
      %s556 = sadd.s32 %s555, 1
      %s557 = scalar_select %p554, %s555, %s556
      %p560 = pneg %p554
      %p561 = scmp.eq.s32.totalorder %s30, 1
      %p562 = por %p560, %p561
      %p563 = scmp.ne.s32.totalorder %s555, %s558
      %p564 = scmp.eq.s32.totalorder %s30, 0
      %p565 = por %p563, %p564
      %p566 = scmp.ne.s32.totalorder %s555, %s558
      %p567 = scmp.eq.s32.totalorder %s35, 1
      %p568 = por %p566, %p567
      %p569 = scmp.ne.s32.totalorder %s558, %s559
      %p570 = scmp.eq.s32.totalorder %s35, 0
      %p571 = por %p569, %p570
      %p572 = scmp.ne.s32.totalorder %s558, %s559
      %p573 = scmp.eq.s32.totalorder %s36, 1
      %p574 = por %p572, %p573
      %p576 = scmp.ne.s32.totalorder %s559, %s575
      %p577 = scmp.eq.s32.totalorder %s36, 0
      %p578 = por %p576, %p577
      %s579 = ssub.s32 %s30, %s37
      %p580 = scmp.eq.s32.totalorder %s579, 0
      %s582 = sadd.s32 %s581, 1
      %s583 = scalar_select %p580, %s581, %s582
      %p586 = pneg %p580
      %p587 = scmp.eq.s32.totalorder %s30, 1
      %p588 = por %p586, %p587
      %p589 = scmp.ne.s32.totalorder %s581, %s584
      %p590 = scmp.eq.s32.totalorder %s30, 0
      %p591 = por %p589, %p590
      %p592 = scmp.ne.s32.totalorder %s581, %s584
      %p593 = scmp.eq.s32.totalorder %s35, 1
      %p594 = por %p592, %p593
      %p595 = scmp.ne.s32.totalorder %s584, %s585
      %p596 = scmp.eq.s32.totalorder %s35, 0
      %p597 = por %p595, %p596
      %p598 = scmp.ne.s32.totalorder %s584, %s585
      %p599 = scmp.eq.s32.totalorder %s36, 1
      %p600 = por %p598, %p599
      %p602 = scmp.ne.s32.totalorder %s585, %s601
      %p603 = scmp.eq.s32.totalorder %s36, 0
      %p604 = por %p602, %p603
      %s605 = ssub.s32 %s30, %s37
      %p606 = scmp.eq.s32.totalorder %s605, 0
      %s608 = sadd.s32 %s607, 1
      %s609 = scalar_select %p606, %s607, %s608
      %p612 = pneg %p606
      %p613 = scmp.eq.s32.totalorder %s30, 1
      %p614 = por %p612, %p613
      %p615 = scmp.ne.s32.totalorder %s607, %s610
      %p616 = scmp.eq.s32.totalorder %s30, 0
      %p617 = por %p615, %p616
      %p618 = scmp.ne.s32.totalorder %s607, %s610
      %p619 = scmp.eq.s32.totalorder %s35, 1
      %p620 = por %p618, %p619
      %p621 = scmp.ne.s32.totalorder %s610, %s611
      %p622 = scmp.eq.s32.totalorder %s35, 0
      %p623 = por %p621, %p622
      %p624 = scmp.ne.s32.totalorder %s610, %s611
      %p625 = scmp.eq.s32.totalorder %s36, 1
      %p626 = por %p624, %p625
      %p628 = scmp.ne.s32.totalorder %s611, %s627
      %p629 = scmp.eq.s32.totalorder %s36, 0
      %p630 = por %p628, %p629
      %s632 = sadd.s32 %s631, 1
      %p635 = scmp.eq.s32.totalorder %s30, 1
      %p636 = scmp.ne.s32.totalorder %s631, %s633
      %p637 = scmp.eq.s32.totalorder %s30, 0
      %p638 = por %p636, %p637
      %p639 = scmp.ne.s32.totalorder %s631, %s633
      %p640 = scmp.eq.s32.totalorder %s35, 1
      %p641 = por %p639, %p640
      %p642 = scmp.ne.s32.totalorder %s633, %s634
      %p643 = scmp.eq.s32.totalorder %s35, 0
      %p644 = por %p642, %p643
      %p645 = scmp.ne.s32.totalorder %s633, %s634
      %p646 = scmp.eq.s32.totalorder %s36, 1
      %p647 = por %p645, %p646
      %p649 = scmp.ne.s32.totalorder %s634, %s648
      %p650 = scmp.eq.s32.totalorder %s36, 0
      %p651 = por %p649, %p650
      %p652 = scmp.le.s32.totalorder 1, %s30
      %p653 = scmp.lt.s32.totalorder %s30, 3
      %p654 = pnand %p652, %p653
      %p655 = pneg %p654
      // Predicated region
      $region9: #{encoder_forward.1} parent=5 // pred_check
        _
      $region10: #{encoder_forward.1} parent=5 // pred_check_branch
        %657 = sbr.rel (%p654) target = $region12
      $region11: #{encoder_forward.1} parent=5 // pred_region
        %s658 = ssub.s32 %s30, 1
        // Predicated region
        $region13: #{encoder_forward.1} parent=11 // pred_check
          %p659 = pneg %p51
        $region14: #{encoder_forward.1} parent=11 // pred_check_branch
          %661 = sbr.rel (%p659) target = $region16
        $region15: #{encoder_forward.1} parent=11 // pred_region
          _
        $region16: #{encoder_forward.1} parent=11 // pred_fallthru
          _
      $region12: #{encoder_forward.1} parent=5 // pred_fallthru
        _
      %p662 = scmp.lt.s32.totalorder %s30, 2
      // Predicated region
      $region17: #{encoder_forward.1} parent=5 // pred_check
        %p663 = pneg %p662
      $region18: #{encoder_forward.1} parent=5 // pred_check_branch
        %665 = sbr.rel (%p663) target = $region20
      $region19: #{encoder_forward.1} parent=5 // pred_region
        // Predicated region
        $region21: #{encoder_forward.1} parent=19 // pred_check
          %p666 = pneg %p71
        $region22: #{encoder_forward.1} parent=19 // pred_check_branch
          %668 = sbr.rel (%p666) target = $region24
        $region23: #{encoder_forward.1} parent=19 // pred_region
          %p669 = scmp.lt.s32.totalorder %s30, 1
          %s670 = scalar_select %p669, %s30, 1
          %s671 = smul.addr %s670, 16
          %s672 = smul.addr %s671, 8
          %s673 = scalar_lea.vmem %s1, %s672
        $region24: #{encoder_forward.1} parent=19 // pred_fallthru
          _
        // Predicated region
        $region25: #{encoder_forward.1} parent=19 // pred_check
          %p674 = pneg %p97
        $region26: #{encoder_forward.1} parent=19 // pred_check_branch
          %676 = sbr.rel (%p674) target = $region28
        $region27: #{encoder_forward.1} parent=19 // pred_region
          %p677 = scmp.lt.s32.totalorder %s30, 1
          %s678 = scalar_select %p677, %s30, 1
          %s679 = smul.addr %s678, 16
          %s680 = smul.addr %s679, 8
          %s681 = scalar_lea.vmem %s2, %s680
        $region28: #{encoder_forward.1} parent=19 // pred_fallthru
          _
        // Predicated region
        $region29: #{encoder_forward.1} parent=19 // pred_check
          %p682 = pneg %p123
        $region30: #{encoder_forward.1} parent=19 // pred_check_branch
          %684 = sbr.rel (%p682) target = $region32
        $region31: #{encoder_forward.1} parent=19 // pred_region
          %p685 = scmp.lt.s32.totalorder %s30, 1
          %s686 = scalar_select %p685, %s30, 1
          %s687 = smul.addr %s686, 16
          %s688 = smul.addr %s687, 8
          %s689 = scalar_lea.vmem %s3, %s688
        $region32: #{encoder_forward.1} parent=19 // pred_fallthru
          _
        // Predicated region
        $region33: #{encoder_forward.1} parent=19 // pred_check
          %p690 = pneg %p149
        $region34: #{encoder_forward.1} parent=19 // pred_check_branch
          %692 = sbr.rel (%p690) target = $region36
        $region35: #{encoder_forward.1} parent=19 // pred_region
          %p693 = scmp.lt.s32.totalorder %s30, 1
          %s694 = scalar_select %p693, %s30, 1
          %s695 = smul.addr %s694, 4
          %s696 = smul.addr %s695, 8
          %s697 = scalar_lea.vmem %s4, %s696
        $region36: #{encoder_forward.1} parent=19 // pred_fallthru
          _
        // Predicated region
        $region37: #{encoder_forward.1} parent=19 // pred_check
          %p698 = pneg %p175
        $region38: #{encoder_forward.1} parent=19 // pred_check_branch
          %700 = sbr.rel (%p698) target = $region40
        $region39: #{encoder_forward.1} parent=19 // pred_region
          %p701 = scmp.lt.s32.totalorder %s30, 1
          %s702 = scalar_select %p701, %s30, 1
          %s703 = scalar_lea.vmem %s5, %s702
        $region40: #{encoder_forward.1} parent=19 // pred_fallthru
          _
        // Predicated region
        $region41: #{encoder_forward.1} parent=19 // pred_check
          %p704 = pneg %p201
        $region42: #{encoder_forward.1} parent=19 // pred_check_branch
          %706 = sbr.rel (%p704) target = $region44
        $region43: #{encoder_forward.1} parent=19 // pred_region
          %p707 = scmp.lt.s32.totalorder %s30, 1
          %s708 = scalar_select %p707, %s30, 1
          %s709 = scalar_lea.vmem %s6, %s708
        $region44: #{encoder_forward.1} parent=19 // pred_fallthru
          _
        // Predicated region
        $region45: #{encoder_forward.1} parent=19 // pred_check
          %p710 = pneg %p227
        $region46: #{encoder_forward.1} parent=19 // pred_check_branch
          %712 = sbr.rel (%p710) target = $region48
        $region47: #{encoder_forward.1} parent=19 // pred_region
          %p713 = scmp.lt.s32.totalorder %s30, 1
          %s714 = scalar_select %p713, %s30, 1
          %s715 = smul.addr %s714, 16
          %s716 = smul.addr %s715, 8
          %s717 = scalar_lea.vmem %s7, %s716
        $region48: #{encoder_forward.1} parent=19 // pred_fallthru
          _
        // Predicated region
        $region49: #{encoder_forward.1} parent=19 // pred_check
          %p718 = pneg %p253
        $region50: #{encoder_forward.1} parent=19 // pred_check_branch
          %720 = sbr.rel (%p718) target = $region52
        $region51: #{encoder_forward.1} parent=19 // pred_region
          %p721 = scmp.lt.s32.totalorder %s30, 1
          %s722 = scalar_select %p721, %s30, 1
          %s723 = smul.addr %s722, 16
          %s724 = smul.addr %s723, 8
          %s725 = scalar_lea.vmem %s8, %s724
        $region52: #{encoder_forward.1} parent=19 // pred_fallthru
          _
        // Predicated region
        $region53: #{encoder_forward.1} parent=19 // pred_check
          %p726 = pneg %p279
        $region54: #{encoder_forward.1} parent=19 // pred_check_branch
          %728 = sbr.rel (%p726) target = $region56
        $region55: #{encoder_forward.1} parent=19 // pred_region
          %p729 = scmp.lt.s32.totalorder %s30, 1
          %s730 = scalar_select %p729, %s30, 1
          %s731 = smul.addr %s730, 16
          %s732 = smul.addr %s731, 8
          %s733 = scalar_lea.vmem %s9, %s732
        $region56: #{encoder_forward.1} parent=19 // pred_fallthru
          _
        // Predicated region
        $region57: #{encoder_forward.1} parent=19 // pred_check
          %p734 = pneg %p305
        $region58: #{encoder_forward.1} parent=19 // pred_check_branch
          %736 = sbr.rel (%p734) target = $region60
        $region59: #{encoder_forward.1} parent=19 // pred_region
          %p737 = scmp.lt.s32.totalorder %s30, 1
          %s738 = scalar_select %p737, %s30, 1
          %s739 = smul.addr %s738, 4
          %s740 = smul.addr %s739, 8
          %s741 = scalar_lea.vmem %s10, %s740
        $region60: #{encoder_forward.1} parent=19 // pred_fallthru
          _
        // Predicated region
        $region61: #{encoder_forward.1} parent=19 // pred_check
          %p742 = pneg %p331
        $region62: #{encoder_forward.1} parent=19 // pred_check_branch
          %744 = sbr.rel (%p742) target = $region64
        $region63: #{encoder_forward.1} parent=19 // pred_region
          %p745 = scmp.lt.s32.totalorder %s30, 1
          %s746 = scalar_select %p745, %s30, 1
          %s747 = scalar_lea.vmem %s11, %s746
        $region64: #{encoder_forward.1} parent=19 // pred_fallthru
          _
        // Predicated region
        $region65: #{encoder_forward.1} parent=19 // pred_check
          %p748 = pneg %p357
        $region66: #{encoder_forward.1} parent=19 // pred_check_branch
          %750 = sbr.rel (%p748) target = $region68
        $region67: #{encoder_forward.1} parent=19 // pred_region
          %p751 = scmp.lt.s32.totalorder %s30, 1
          %s752 = scalar_select %p751, %s30, 1
          %s753 = scalar_lea.vmem %s12, %s752
        $region68: #{encoder_forward.1} parent=19 // pred_fallthru
          _
        // Predicated region
        $region69: #{encoder_forward.1} parent=19 // pred_check
          %p754 = pneg %p383
        $region70: #{encoder_forward.1} parent=19 // pred_check_branch
          %756 = sbr.rel (%p754) target = $region72
        $region71: #{encoder_forward.1} parent=19 // pred_region
          %p757 = scmp.lt.s32.totalorder %s30, 1
          %s758 = scalar_select %p757, %s30, 1
          %s759 = scalar_lea.vmem %s13, %s758
        $region72: #{encoder_forward.1} parent=19 // pred_fallthru
          _
        // Predicated region
        $region73: #{encoder_forward.1} parent=19 // pred_check
          %p760 = pneg %p409
        $region74: #{encoder_forward.1} parent=19 // pred_check_branch
          %762 = sbr.rel (%p760) target = $region76
        $region75: #{encoder_forward.1} parent=19 // pred_region
          %p763 = scmp.lt.s32.totalorder %s30, 1
          %s764 = scalar_select %p763, %s30, 1
          %s765 = scalar_lea.vmem %s14, %s764
        $region76: #{encoder_forward.1} parent=19 // pred_fallthru
          _
        // Predicated region
        $region77: #{encoder_forward.1} parent=19 // pred_check
          %p766 = pneg %p435
        $region78: #{encoder_forward.1} parent=19 // pred_check_branch
          %768 = sbr.rel (%p766) target = $region80
        $region79: #{encoder_forward.1} parent=19 // pred_region
          %p769 = scmp.lt.s32.totalorder %s30, 1
          %s770 = scalar_select %p769, %s30, 1
          %s771 = scalar_lea.vmem %s15, %s770
        $region80: #{encoder_forward.1} parent=19 // pred_fallthru
          _
        // Predicated region
        $region81: #{encoder_forward.1} parent=19 // pred_check
          %p772 = pneg %p461
        $region82: #{encoder_forward.1} parent=19 // pred_check_branch
          %774 = sbr.rel (%p772) target = $region84
        $region83: #{encoder_forward.1} parent=19 // pred_region
          %p775 = scmp.lt.s32.totalorder %s30, 1
          %s776 = scalar_select %p775, %s30, 1
          %s777 = scalar_lea.vmem %s16, %s776
        $region84: #{encoder_forward.1} parent=19 // pred_fallthru
          _
        // Predicated region
        $region85: #{encoder_forward.1} parent=19 // pred_check
          %p778 = pneg %p487
        $region86: #{encoder_forward.1} parent=19 // pred_check_branch
          %780 = sbr.rel (%p778) target = $region88
        $region87: #{encoder_forward.1} parent=19 // pred_region
          %p781 = scmp.lt.s32.totalorder %s30, 1
          %s782 = scalar_select %p781, %s30, 1
          %s783 = smul.addr %s782, 4
          %s784 = smul.addr %s783, 8
          %s785 = scalar_lea.vmem %s17, %s784
        $region88: #{encoder_forward.1} parent=19 // pred_fallthru
          _
        // Predicated region
        $region89: #{encoder_forward.1} parent=19 // pred_check
          %p786 = pneg %p513
        $region90: #{encoder_forward.1} parent=19 // pred_check_branch
          %788 = sbr.rel (%p786) target = $region92
        $region91: #{encoder_forward.1} parent=19 // pred_region
          %p789 = scmp.lt.s32.totalorder %s30, 1
          %s790 = scalar_select %p789, %s30, 1
          %s791 = scalar_lea.vmem %s18, %s790
        $region92: #{encoder_forward.1} parent=19 // pred_fallthru
          _
        // Predicated region
        $region93: #{encoder_forward.1} parent=19 // pred_check
          %p792 = pneg %p539
        $region94: #{encoder_forward.1} parent=19 // pred_check_branch
          %794 = sbr.rel (%p792) target = $region96
        $region95: #{encoder_forward.1} parent=19 // pred_region
          %p795 = scmp.lt.s32.totalorder %s30, 1
          %s796 = scalar_select %p795, %s30, 1
          %s797 = smul.addr %s796, 8
          %s798 = smul.addr %s797, 8
          %s799 = scalar_lea.vmem %s19, %s798
        $region96: #{encoder_forward.1} parent=19 // pred_fallthru
          _
        // Predicated region
        $region97: #{encoder_forward.1} parent=19 // pred_check
          %p800 = pneg %p565
        $region98: #{encoder_forward.1} parent=19 // pred_check_branch
          %802 = sbr.rel (%p800) target = $region100
        $region99: #{encoder_forward.1} parent=19 // pred_region
          %p803 = scmp.lt.s32.totalorder %s30, 1
          %s804 = scalar_select %p803, %s30, 1
          %s805 = scalar_lea.vmem %s20, %s804
        $region100: #{encoder_forward.1} parent=19 // pred_fallthru
          _
        // Predicated region
        $region101: #{encoder_forward.1} parent=19 // pred_check
          %p806 = pneg %p591
        $region102: #{encoder_forward.1} parent=19 // pred_check_branch
          %808 = sbr.rel (%p806) target = $region104
        $region103: #{encoder_forward.1} parent=19 // pred_region
          %p809 = scmp.lt.s32.totalorder %s30, 1
          %s810 = scalar_select %p809, %s30, 1
          %s811 = scalar_lea.vmem %s21, %s810
        $region104: #{encoder_forward.1} parent=19 // pred_fallthru
          _
        // Predicated region
        $region105: #{encoder_forward.1} parent=19 // pred_check
          %p812 = pneg %p617
        $region106: #{encoder_forward.1} parent=19 // pred_check_branch
          %814 = sbr.rel (%p812) target = $region108
        $region107: #{encoder_forward.1} parent=19 // pred_region
          %p815 = scmp.lt.s32.totalorder %s30, 1
          %s816 = scalar_select %p815, %s30, 1
          %s817 = scalar_lea.vmem %s22, %s816
        $region108: #{encoder_forward.1} parent=19 // pred_fallthru
          _
      $region20: #{encoder_forward.1} parent=5 // pred_fallthru
        _
      %p818 = scmp.le.s32.totalorder 1, %s30
      %p819 = scmp.lt.s32.totalorder %s30, 3
      %p820 = pnand %p818, %p819
      %p821 = pneg %p820
      // Predicated region
      $region109: #{encoder_forward.1} parent=5 // pred_check
        _
      $region110: #{encoder_forward.1} parent=5 // pred_check_branch
        %823 = sbr.rel (%p820) target = $region112
      $region111: #{encoder_forward.1} parent=5 // pred_region
        %s824 = ssub.s32 %s30, 1
        %p825 = pneg %p51
        %p826 = pneg %p48
        %p827 = scmp.lt.s32.totalorder %s35, 1
        %s828 = scalar_select %p827, %s35, 1
        %s829 = smul.addr %s828, 16
        %s830 = smul.addr %s829, 8
        %s831 = scalar_lea.vmem %s1, %s830
        %p832 = pneg %p77
        %p833 = pneg %p74
        %p834 = scmp.lt.s32.totalorder %s35, 1
        %s835 = scalar_select %p834, %s35, 1
        %s836 = smul.addr %s835, 16
        %s837 = smul.addr %s836, 8
        %s838 = scalar_lea.vmem %s2, %s837
        %p839 = pneg %p103
        %p840 = pneg %p100
        %p841 = scmp.lt.s32.totalorder %s35, 1
        %s842 = scalar_select %p841, %s35, 1
        %s843 = smul.addr %s842, 16
        %s844 = smul.addr %s843, 8
        %s845 = scalar_lea.vmem %s3, %s844
        %p846 = pneg %p129
        %p847 = pneg %p126
        %p848 = scmp.lt.s32.totalorder %s35, 1
        %s849 = scalar_select %p848, %s35, 1
        %s850 = smul.addr %s849, 4
        %s851 = smul.addr %s850, 8
        %s852 = scalar_lea.vmem %s4, %s851
        %p853 = pneg %p155
        %p854 = pneg %p152
        %p855 = scmp.lt.s32.totalorder %s35, 1
        %s856 = scalar_select %p855, %s35, 1
        %s857 = scalar_lea.vmem %s5, %s856
        %p858 = pneg %p181
        %p859 = pneg %p178
        %p860 = scmp.lt.s32.totalorder %s35, 1
        %s861 = scalar_select %p860, %s35, 1
        %s862 = scalar_lea.vmem %s6, %s861
        %p863 = pneg %p207
        %p864 = pneg %p204
        %p865 = scmp.lt.s32.totalorder %s35, 1
        %s866 = scalar_select %p865, %s35, 1
        %s867 = smul.addr %s866, 16
        %s868 = smul.addr %s867, 8
        %s869 = scalar_lea.vmem %s7, %s868
        %p870 = pneg %p233
        %p871 = pneg %p230
        %p872 = scmp.lt.s32.totalorder %s35, 1
        %s873 = scalar_select %p872, %s35, 1
        %s874 = smul.addr %s873, 16
        %s875 = smul.addr %s874, 8
        %s876 = scalar_lea.vmem %s8, %s875
        %p877 = pneg %p259
        %p878 = pneg %p256
        %p879 = scmp.lt.s32.totalorder %s35, 1
        %s880 = scalar_select %p879, %s35, 1
        %s881 = smul.addr %s880, 16
        %s882 = smul.addr %s881, 8
        %s883 = scalar_lea.vmem %s9, %s882
        %p884 = pneg %p285
        %p885 = pneg %p282
        %p886 = scmp.lt.s32.totalorder %s35, 1
        %s887 = scalar_select %p886, %s35, 1
        %s888 = smul.addr %s887, 4
        %s889 = smul.addr %s888, 8
        %s890 = scalar_lea.vmem %s10, %s889
        %p891 = pneg %p311
        %p892 = pneg %p308
        %p893 = scmp.lt.s32.totalorder %s35, 1
        %s894 = scalar_select %p893, %s35, 1
        %s895 = scalar_lea.vmem %s11, %s894
        %p896 = pneg %p337
        %p897 = pneg %p334
        %p898 = scmp.lt.s32.totalorder %s35, 1
        %s899 = scalar_select %p898, %s35, 1
        %s900 = scalar_lea.vmem %s12, %s899
        %p901 = pneg %p363
        %p902 = pneg %p360
        %p903 = scmp.lt.s32.totalorder %s35, 1
        %s904 = scalar_select %p903, %s35, 1
        %s905 = scalar_lea.vmem %s13, %s904
        %p906 = pneg %p389
        %p907 = pneg %p386
        %p908 = scmp.lt.s32.totalorder %s35, 1
        %s909 = scalar_select %p908, %s35, 1
        %s910 = scalar_lea.vmem %s14, %s909
        %p911 = pneg %p415
        %p912 = pneg %p412
        %p913 = scmp.lt.s32.totalorder %s35, 1
        %s914 = scalar_select %p913, %s35, 1
        %s915 = scalar_lea.vmem %s15, %s914
        %p916 = pneg %p441
        %p917 = pneg %p438
        %p918 = scmp.lt.s32.totalorder %s35, 1
        %s919 = scalar_select %p918, %s35, 1
        %s920 = scalar_lea.vmem %s16, %s919
        %p921 = pneg %p467
        %p922 = pneg %p464
        %p923 = scmp.lt.s32.totalorder %s35, 1
        %s924 = scalar_select %p923, %s35, 1
        %s925 = smul.addr %s924, 4
        %s926 = smul.addr %s925, 8
        %s927 = scalar_lea.vmem %s17, %s926
        %p928 = pneg %p493
        %p929 = pneg %p490
        %p930 = scmp.lt.s32.totalorder %s35, 1
        %s931 = scalar_select %p930, %s35, 1
        %s932 = scalar_lea.vmem %s18, %s931
        %p933 = pneg %p519
        %p934 = pneg %p516
        %p935 = scmp.lt.s32.totalorder %s35, 1
        %s936 = scalar_select %p935, %s35, 1
        %s937 = smul.addr %s936, 8
        %s938 = smul.addr %s937, 8
        %s939 = scalar_lea.vmem %s19, %s938
        %p940 = pneg %p545
        %p941 = pneg %p542
        %p942 = scmp.lt.s32.totalorder %s35, 1
        %s943 = scalar_select %p942, %s35, 1
        %s944 = scalar_lea.vmem %s20, %s943
        %p945 = pneg %p571
        %p946 = pneg %p568
        %p947 = scmp.lt.s32.totalorder %s35, 1
        %s948 = scalar_select %p947, %s35, 1
        %s949 = scalar_lea.vmem %s21, %s948
        %p950 = pneg %p597
        %p951 = pneg %p594
        %p952 = scmp.lt.s32.totalorder %s35, 1
        %s953 = scalar_select %p952, %s35, 1
        %s954 = scalar_lea.vmem %s22, %s953
        %p955 = pneg %p623
        %p956 = pneg %p620
        %p957 = pneg %p644
        %p958 = pneg %p641
        %p959 = scmp.lt.s32.totalorder %s35, 1
        %s960 = scalar_select %p959, %s35, 1
        %s961 = smul.addr %s960, 16
        %s962 = smul.addr %s961, 8
        %s963 = scalar_lea.vmem %s1, %s962
        %p964 = scmp.lt.s32.totalorder %s35, 1
        %s965 = scalar_select %p964, %s35, 1
        %s966 = smul.addr %s965, 16
        %s967 = smul.addr %s966, 8
        %s968 = scalar_lea.vmem %s2, %s967
        %p969 = scmp.lt.s32.totalorder %s35, 1
        %s970 = scalar_select %p969, %s35, 1
        %s971 = smul.addr %s970, 16
        %s972 = smul.addr %s971, 8
        %s973 = scalar_lea.vmem %s3, %s972
        %p974 = scmp.lt.s32.totalorder %s35, 1
        %s975 = scalar_select %p974, %s35, 1
        %s976 = smul.addr %s975, 4
        %s977 = smul.addr %s976, 8
        %s978 = scalar_lea.vmem %s4, %s977
        %p979 = scmp.lt.s32.totalorder %s35, 1
        %s980 = scalar_select %p979, %s35, 1
        %s981 = scalar_lea.vmem %s5, %s980
        %p982 = scmp.lt.s32.totalorder %s35, 1
        %s983 = scalar_select %p982, %s35, 1
        %s984 = scalar_lea.vmem %s6, %s983
        %p985 = scmp.lt.s32.totalorder %s35, 1
        %s986 = scalar_select %p985, %s35, 1
        %s987 = smul.addr %s986, 16
        %s988 = smul.addr %s987, 8
        %s989 = scalar_lea.vmem %s7, %s988
        %p990 = scmp.lt.s32.totalorder %s35, 1
        %s991 = scalar_select %p990, %s35, 1
        %s992 = smul.addr %s991, 16
        %s993 = smul.addr %s992, 8
        %s994 = scalar_lea.vmem %s8, %s993
        %p995 = scmp.lt.s32.totalorder %s35, 1
        %s996 = scalar_select %p995, %s35, 1
        %s997 = smul.addr %s996, 16
        %s998 = smul.addr %s997, 8
        %s999 = scalar_lea.vmem %s9, %s998
        %p1000 = scmp.lt.s32.totalorder %s35, 1
        %s1001 = scalar_select %p1000, %s35, 1
        %s1002 = smul.addr %s1001, 4
        %s1003 = smul.addr %s1002, 8
        %s1004 = scalar_lea.vmem %s10, %s1003
        %p1005 = scmp.lt.s32.totalorder %s35, 1
        %s1006 = scalar_select %p1005, %s35, 1
        %s1007 = scalar_lea.vmem %s11, %s1006
        %p1008 = scmp.lt.s32.totalorder %s35, 1
        %s1009 = scalar_select %p1008, %s35, 1
        %s1010 = scalar_lea.vmem %s12, %s1009
        %p1011 = scmp.lt.s32.totalorder %s35, 1
        %s1012 = scalar_select %p1011, %s35, 1
        %s1013 = scalar_lea.vmem %s13, %s1012
        %p1014 = scmp.lt.s32.totalorder %s35, 1
        %s1015 = scalar_select %p1014, %s35, 1
        %s1016 = scalar_lea.vmem %s14, %s1015
        %p1017 = scmp.lt.s32.totalorder %s35, 1
        %s1018 = scalar_select %p1017, %s35, 1
        %s1019 = scalar_lea.vmem %s15, %s1018
        %p1020 = scmp.lt.s32.totalorder %s35, 1
        %s1021 = scalar_select %p1020, %s35, 1
        %s1022 = scalar_lea.vmem %s16, %s1021
        %p1023 = scmp.lt.s32.totalorder %s35, 1
        %s1024 = scalar_select %p1023, %s35, 1
        %s1025 = smul.addr %s1024, 4
        %s1026 = smul.addr %s1025, 8
        %s1027 = scalar_lea.vmem %s17, %s1026
        %p1028 = scmp.lt.s32.totalorder %s35, 1
        %s1029 = scalar_select %p1028, %s35, 1
        %s1030 = scalar_lea.vmem %s18, %s1029
        %p1031 = scmp.lt.s32.totalorder %s35, 1
        %s1032 = scalar_select %p1031, %s35, 1
        %s1033 = smul.addr %s1032, 8
        %s1034 = smul.addr %s1033, 8
        %s1035 = scalar_lea.vmem %s19, %s1034
        %p1036 = scmp.lt.s32.totalorder %s35, 1
        %s1037 = scalar_select %p1036, %s35, 1
        %s1038 = scalar_lea.vmem %s20, %s1037
        %p1039 = scmp.lt.s32.totalorder %s35, 1
        %s1040 = scalar_select %p1039, %s35, 1
        %s1041 = scalar_lea.vmem %s21, %s1040
        %p1042 = scmp.lt.s32.totalorder %s35, 1
        %s1043 = scalar_select %p1042, %s35, 1
        %s1044 = scalar_lea.vmem %s22, %s1043
        %p1045 = scmp.eq.s32.totalorder %s35, 0
        // Predicated region
        $region113: #{encoder_forward.1} parent=111 // pred_check
          %p1046 = pneg %p1045
        $region114: #{encoder_forward.1} parent=111 // pred_check_branch
          %1048 = sbr.rel (%p1046) target = $region116
        $region115: #{encoder_forward.1} parent=111 // pred_region
          %v1049 = vld [vmem:[%s0] sm:$0xff]
          %v1050 = vld [vmem:[%s0 + $0x8] sm:$0xff]
          %vm1051 = vcmask 261120
          %1052 = vst.msk [vmem:[#allocation2] sm:$0xff] %vm1051, %v1049
          %1053 = vst.msk [vmem:[#allocation2 + $0x8] sm:$0xff] %vm1051, %v1050
        $region116: #{encoder_forward.1} parent=111 // pred_fallthru
          _
        %v1054 = vld [vmem:[#allocation2] sm:$0xff]
        %v1055 = vld [vmem:[#allocation2 + $0x8] sm:$0xff]
        %v1056 = vld [vmem:[%s963] sm:$0xff]
        %v1057 = vld [vmem:[%s963 + $0x8] sm:$0xff]
        %v1058 = vld [vmem:[%s963 + $0x10] sm:$0xff]
        %v1059 = vld [vmem:[%s963 + $0x18] sm:$0xff]
        %v1060 = vld [vmem:[%s963 + $0x20] sm:$0xff]
        %v1061 = vld [vmem:[%s963 + $0x28] sm:$0xff]
        %v1062 = vld [vmem:[%s963 + $0x30] sm:$0xff]
        %v1063 = vld [vmem:[%s963 + $0x38] sm:$0xff]
        %v1064 = vld [vmem:[%s963 + $0x40] sm:$0xff]
        %v1065 = vld [vmem:[%s963 + $0x48] sm:$0xff]
        %v1066 = vld [vmem:[%s963 + $0x50] sm:$0xff]
        %v1067 = vld [vmem:[%s963 + $0x58] sm:$0xff]
        %v1068 = vld [vmem:[%s963 + $0x60] sm:$0xff]
        %v1069 = vld [vmem:[%s963 + $0x68] sm:$0xff]
        %v1070 = vld [vmem:[%s963 + $0x70] sm:$0xff]
        %v1071 = vld [vmem:[%s963 + $0x78] sm:$0xff]
        %v1072 = vld [vmem:[%s968] sm:$0xff]
        %v1073 = vld [vmem:[%s968 + $0x8] sm:$0xff]
        %v1074 = vld [vmem:[%s968 + $0x10] sm:$0xff]
        %v1075 = vld [vmem:[%s968 + $0x18] sm:$0xff]
        %v1076 = vld [vmem:[%s968 + $0x20] sm:$0xff]
        %v1077 = vld [vmem:[%s968 + $0x28] sm:$0xff]
        %v1078 = vld [vmem:[%s968 + $0x30] sm:$0xff]
        %v1079 = vld [vmem:[%s968 + $0x38] sm:$0xff]
        %v1080 = vld [vmem:[%s968 + $0x40] sm:$0xff]
        %v1081 = vld [vmem:[%s968 + $0x48] sm:$0xff]
        %v1082 = vld [vmem:[%s968 + $0x50] sm:$0xff]
        %v1083 = vld [vmem:[%s968 + $0x58] sm:$0xff]
        %v1084 = vld [vmem:[%s968 + $0x60] sm:$0xff]
        %v1085 = vld [vmem:[%s968 + $0x68] sm:$0xff]
        %v1086 = vld [vmem:[%s968 + $0x70] sm:$0xff]
        %v1087 = vld [vmem:[%s968 + $0x78] sm:$0xff]
        %v1088 = vld [vmem:[%s973] sm:$0xff]
        %v1089 = vld [vmem:[%s973 + $0x8] sm:$0xff]
        %v1090 = vld [vmem:[%s973 + $0x10] sm:$0xff]
        %v1091 = vld [vmem:[%s973 + $0x18] sm:$0xff]
        %v1092 = vld [vmem:[%s973 + $0x20] sm:$0xff]
        %v1093 = vld [vmem:[%s973 + $0x28] sm:$0xff]
        %v1094 = vld [vmem:[%s973 + $0x30] sm:$0xff]
        %v1095 = vld [vmem:[%s973 + $0x38] sm:$0xff]
        %v1096 = vld [vmem:[%s973 + $0x40] sm:$0xff]
        %v1097 = vld [vmem:[%s973 + $0x48] sm:$0xff]
        %v1098 = vld [vmem:[%s973 + $0x50] sm:$0xff]
        %v1099 = vld [vmem:[%s973 + $0x58] sm:$0xff]
        %v1100 = vld [vmem:[%s973 + $0x60] sm:$0xff]
        %v1101 = vld [vmem:[%s973 + $0x68] sm:$0xff]
        %v1102 = vld [vmem:[%s973 + $0x70] sm:$0xff]
        %v1103 = vld [vmem:[%s973 + $0x78] sm:$0xff]
        %v1104 = vld [vmem:[%s978] sm:$0xff]
        %v1105 = vld [vmem:[%s978 + $0x8] sm:$0xff]
        %v1106 = vld [vmem:[%s978 + $0x10] sm:$0xff]
        %v1107 = vld [vmem:[%s978 + $0x18] sm:$0xff]
        %v1108 = vld [vmem:[%s981] sm:$0x1]
        %v1109 = vld [vmem:[%s984] sm:$0x1]
        %v1110 = vld [vmem:[%s989] sm:$0xff]
        %v1111 = vld [vmem:[%s989 + $0x8] sm:$0xff]
        %v1112 = vld [vmem:[%s989 + $0x10] sm:$0xff]
        %v1113 = vld [vmem:[%s989 + $0x18] sm:$0xff]
        %v1114 = vld [vmem:[%s989 + $0x20] sm:$0xff]
        %v1115 = vld [vmem:[%s989 + $0x28] sm:$0xff]
        %v1116 = vld [vmem:[%s989 + $0x30] sm:$0xff]
        %v1117 = vld [vmem:[%s989 + $0x38] sm:$0xff]
        %v1118 = vld [vmem:[%s989 + $0x40] sm:$0xff]
        %v1119 = vld [vmem:[%s989 + $0x48] sm:$0xff]
        %v1120 = vld [vmem:[%s989 + $0x50] sm:$0xff]
        %v1121 = vld [vmem:[%s989 + $0x58] sm:$0xff]
        %v1122 = vld [vmem:[%s989 + $0x60] sm:$0xff]
        %v1123 = vld [vmem:[%s989 + $0x68] sm:$0xff]
        %v1124 = vld [vmem:[%s989 + $0x70] sm:$0xff]
        %v1125 = vld [vmem:[%s989 + $0x78] sm:$0xff]
        %v1126 = vld [vmem:[%s994] sm:$0xff]
        %v1127 = vld [vmem:[%s994 + $0x8] sm:$0xff]
        %v1128 = vld [vmem:[%s994 + $0x10] sm:$0xff]
        %v1129 = vld [vmem:[%s994 + $0x18] sm:$0xff]
        %v1130 = vld [vmem:[%s994 + $0x20] sm:$0xff]
        %v1131 = vld [vmem:[%s994 + $0x28] sm:$0xff]
        %v1132 = vld [vmem:[%s994 + $0x30] sm:$0xff]
        %v1133 = vld [vmem:[%s994 + $0x38] sm:$0xff]
        %v1134 = vld [vmem:[%s994 + $0x40] sm:$0xff]
        %v1135 = vld [vmem:[%s994 + $0x48] sm:$0xff]
        %v1136 = vld [vmem:[%s994 + $0x50] sm:$0xff]
        %v1137 = vld [vmem:[%s994 + $0x58] sm:$0xff]
        %v1138 = vld [vmem:[%s994 + $0x60] sm:$0xff]
        %v1139 = vld [vmem:[%s994 + $0x68] sm:$0xff]
        %v1140 = vld [vmem:[%s994 + $0x70] sm:$0xff]
        %v1141 = vld [vmem:[%s994 + $0x78] sm:$0xff]
        %v1142 = vld [vmem:[%s999] sm:$0xff]
        %v1143 = vld [vmem:[%s999 + $0x8] sm:$0xff]
        %v1144 = vld [vmem:[%s999 + $0x10] sm:$0xff]
        %v1145 = vld [vmem:[%s999 + $0x18] sm:$0xff]
        %v1146 = vld [vmem:[%s999 + $0x20] sm:$0xff]
        %v1147 = vld [vmem:[%s999 + $0x28] sm:$0xff]
        %v1148 = vld [vmem:[%s999 + $0x30] sm:$0xff]
        %v1149 = vld [vmem:[%s999 + $0x38] sm:$0xff]
        %v1150 = vld [vmem:[%s999 + $0x40] sm:$0xff]
        %v1151 = vld [vmem:[%s999 + $0x48] sm:$0xff]
        %v1152 = vld [vmem:[%s999 + $0x50] sm:$0xff]
        %v1153 = vld [vmem:[%s999 + $0x58] sm:$0xff]
        %v1154 = vld [vmem:[%s999 + $0x60] sm:$0xff]
        %v1155 = vld [vmem:[%s999 + $0x68] sm:$0xff]
        %v1156 = vld [vmem:[%s999 + $0x70] sm:$0xff]
        %v1157 = vld [vmem:[%s999 + $0x78] sm:$0xff]
        %v1158 = vld [vmem:[%s1004] sm:$0xff]
        %v1159 = vld [vmem:[%s1004 + $0x8] sm:$0xff]
        %v1160 = vld [vmem:[%s1004 + $0x10] sm:$0xff]
        %v1161 = vld [vmem:[%s1004 + $0x18] sm:$0xff]
        %v1162 = vld [vmem:[%s1007] sm:$0x1]
        %v1163 = vld [vmem:[%s1010] sm:$0x1]
        %v1164 = vld [vmem:[%s1013] sm:$0x1]
        %v1165 = vld [vmem:[%s1016] sm:$0x1]
        %v1166 = vld [vmem:[%s1019] sm:$0x1]
        %v1167 = vld [vmem:[%s1022] sm:$0x1]
        %v1168 = vld [vmem:[%s1027] sm:$0xff]
        %v1169 = vld [vmem:[%s1027 + $0x8] sm:$0xff]
        %v1170 = vld [vmem:[%s1027 + $0x10] sm:$0xff]
        %v1171 = vld [vmem:[%s1027 + $0x18] sm:$0xff]
        %v1172 = vld [vmem:[%s1030] sm:$0x1]
        %v1173 = vld [vmem:[%s1035] sm:$0xff]
        %v1174 = vld [vmem:[%s1035 + $0x8] sm:$0xff]
        %v1175 = vld [vmem:[%s1035 + $0x10] sm:$0xff]
        %v1176 = vld [vmem:[%s1035 + $0x18] sm:$0xff]
        %v1177 = vld [vmem:[%s1035 + $0x20] sm:$0xff]
        %v1178 = vld [vmem:[%s1035 + $0x28] sm:$0xff]
        %v1179 = vld [vmem:[%s1035 + $0x30] sm:$0xff]
        %v1180 = vld [vmem:[%s1035 + $0x38] sm:$0xff]
        %v1181 = vld [vmem:[%s1038] sm:$0x1]
        %v1182 = vld [vmem:[%s1041] sm:$0x1]
        %v1183 = vld [vmem:[%s1044] sm:$0x1]
        %vm1184 = vcmask 261120
        %v1186 = vsel %vm1184, %v1054, 0
        %1188 = vmatprep.subr.mxu0 0.0
        %1189 = vmatpush1.msra.mxu0 0.0
        %1190 = vmatprep.subr.mxu0 0.0
        %1191 = vmatpush1.msra.mxu0 0.0
        %1192 = vmatprep.subr.mxu0 0.0
        %1193 = vmatpush1.msra.mxu0 0.0
        %1194 = vmatprep.subr.mxu0 0.0
        %1195 = vmatpush1.msra.mxu0 0.0
        %1196 = vmatprep.subr.mxu0 0.0
        %1197 = vmatpush1.msra.mxu0 0.0
        %1198 = vmatprep.subr.mxu0 0.0
        %1199 = vmatpush1.msra.mxu0 0.0
        %1200 = vmatprep.subr.mxu0 0.0
        %1201 = vmatpush1.msra.mxu0 0.0
        %1202 = vmatprep.subr.mxu0 0.0
        %1203 = vmatpush1.msra.mxu0 0.0
        %1204 = vmatprep.subr.mxu0 0.0
        %1205 = vmatpush1.msra.mxu0 0.0
        %1206 = vmatprep.subr.mxu0 0.0
        %1207 = vmatpush1.msra.mxu0 0.0
        %1208 = vmatprep.subr.mxu0 0.0
        %1209 = vmatpush1.msra.mxu0 0.0
        %1210 = vmatprep.subr.mxu0 0.0
        %1211 = vmatpush1.msra.mxu0 0.0
        %1212 = vmatprep.subr.mxu0 0.0
        %1213 = vmatpush1.msra.mxu0 %v1059
        %1214 = vmatprep.subr.mxu0 0.0
        %1215 = vmatpush1.msra.mxu0 %v1058
        %1216 = vmatprep.subr.mxu0 0.0
        %1217 = vmatpush1.msra.mxu0 %v1057
        %1218 = vmatprep.subr.mxu0 0.0
        %1219 = vmatpush1.msra.mxu0 %v1056
        %1220 = vmatprep.subr.mxu0 0.0
        %1221 = vmatpush2.msra.mxu0 0.0
        %1222 = vmatprep.subr.mxu0 0.0
        %1223 = vmatpush2.msra.mxu0 0.0
        %1224 = vmatprep.subr.mxu0 0.0
        %1225 = vmatpush2.msra.mxu0 0.0
        %1226 = vmatprep.subr.mxu0 0.0
        %1227 = vmatpush2.msra.mxu0 0.0
        %1228 = vmatprep.subr.mxu0 0.0
        %1229 = vmatpush2.msra.mxu0 0.0
        %1230 = vmatprep.subr.mxu0 0.0
        %1231 = vmatpush2.msra.mxu0 0.0
        %1232 = vmatprep.subr.mxu0 0.0
        %1233 = vmatpush2.msra.mxu0 0.0
        %1234 = vmatprep.subr.mxu0 0.0
        %1235 = vmatpush2.msra.mxu0 0.0
        %1236 = vmatprep.subr.mxu0 0.0
        %1237 = vmatpush2.msra.mxu0 0.0
        %1238 = vmatprep.subr.mxu0 0.0
        %1239 = vmatpush2.msra.mxu0 0.0
        %1240 = vmatprep.subr.mxu0 0.0
        %1241 = vmatpush2.msra.mxu0 0.0
        %1242 = vmatprep.subr.mxu0 0.0
        %1243 = vmatpush2.msra.mxu0 0.0
        %1244 = vmatprep.subr.mxu0 0.0
        %1245 = vmatpush2.msra.mxu0 0.0
        %1246 = vmatprep.subr.mxu0 0.0
        %1247 = vmatpush2.msra.mxu0 0.0
        %1248 = vmatprep.subr.mxu0 0.0
        %1249 = vmatpush2.msra.mxu0 0.0
        %1250 = vmatprep.subr.mxu0 0.0
        %1251 = vmatpush2.msra.mxu0 0.0
        %1252 = vmatprep.mubr.f32.mxu0 0.0
        %1253 = vmatmul.mubr.f32.gmra.mxu0 %v1186
        %v1254 = vpop.f32.mrf.mxu0
        %v1255 = vadd.f32 0.0, %v1254
        %v1256 = vpop.f32.mrf.mxu0
        %1257 = vdwg.mxu0
        %1258 = vmatprep.subr.mxu0 0.0
        %1259 = vmatpush1.msra.mxu0 0.0
        %1260 = vmatprep.subr.mxu0 0.0
        %1261 = vmatpush1.msra.mxu0 0.0
        %1262 = vmatprep.subr.mxu0 0.0
        %1263 = vmatpush1.msra.mxu0 0.0
        %1264 = vmatprep.subr.mxu0 0.0
        %1265 = vmatpush1.msra.mxu0 0.0
        %1266 = vmatprep.subr.mxu0 0.0
        %1267 = vmatpush1.msra.mxu0 0.0
        %1268 = vmatprep.subr.mxu0 0.0
        %1269 = vmatpush1.msra.mxu0 0.0
        %1270 = vmatprep.subr.mxu0 0.0
        %1271 = vmatpush1.msra.mxu0 0.0
        %1272 = vmatprep.subr.mxu0 0.0
        %1273 = vmatpush1.msra.mxu0 0.0
        %1274 = vmatprep.subr.mxu0 0.0
        %1275 = vmatpush1.msra.mxu0 0.0
        %1276 = vmatprep.subr.mxu0 0.0
        %1277 = vmatpush1.msra.mxu0 0.0
        %1278 = vmatprep.subr.mxu0 0.0
        %1279 = vmatpush1.msra.mxu0 0.0
        %1280 = vmatprep.subr.mxu0 0.0
        %1281 = vmatpush1.msra.mxu0 0.0
        %1282 = vmatprep.subr.mxu0 0.0
        %1283 = vmatpush1.msra.mxu0 %v1063
        %1284 = vmatprep.subr.mxu0 0.0
        %1285 = vmatpush1.msra.mxu0 %v1062
        %1286 = vmatprep.subr.mxu0 0.0
        %1287 = vmatpush1.msra.mxu0 %v1061
        %1288 = vmatprep.subr.mxu0 0.0
        %1289 = vmatpush1.msra.mxu0 %v1060
        %1290 = vmatprep.subr.mxu0 0.0
        %1291 = vmatpush2.msra.mxu0 0.0
        %1292 = vmatprep.subr.mxu0 0.0
        %1293 = vmatpush2.msra.mxu0 0.0
        %1294 = vmatprep.subr.mxu0 0.0
        %1295 = vmatpush2.msra.mxu0 0.0
        %1296 = vmatprep.subr.mxu0 0.0
        %1297 = vmatpush2.msra.mxu0 0.0
        %1298 = vmatprep.subr.mxu0 0.0
        %1299 = vmatpush2.msra.mxu0 0.0
        %1300 = vmatprep.subr.mxu0 0.0
        %1301 = vmatpush2.msra.mxu0 0.0
        %1302 = vmatprep.subr.mxu0 0.0
        %1303 = vmatpush2.msra.mxu0 0.0
        %1304 = vmatprep.subr.mxu0 0.0
        %1305 = vmatpush2.msra.mxu0 0.0
        %1306 = vmatprep.subr.mxu0 0.0
        %1307 = vmatpush2.msra.mxu0 0.0
        %1308 = vmatprep.subr.mxu0 0.0
        %1309 = vmatpush2.msra.mxu0 0.0
        %1310 = vmatprep.subr.mxu0 0.0
        %1311 = vmatpush2.msra.mxu0 0.0
        %1312 = vmatprep.subr.mxu0 0.0
        %1313 = vmatpush2.msra.mxu0 0.0
        %1314 = vmatprep.subr.mxu0 0.0
        %1315 = vmatpush2.msra.mxu0 0.0
        %1316 = vmatprep.subr.mxu0 0.0
        %1317 = vmatpush2.msra.mxu0 0.0
        %1318 = vmatprep.subr.mxu0 0.0
        %1319 = vmatpush2.msra.mxu0 0.0
        %1320 = vmatprep.subr.mxu0 0.0
        %1321 = vmatpush2.msra.mxu0 0.0
        %1322 = vmatprep.mubr.f32.mxu0 0.0
        %1323 = vmatmul.mubr.f32.gmra.mxu0 %v1186
        %v1324 = vpop.f32.mrf.mxu0
        %v1325 = vadd.f32 0.0, %v1324
        %v1326 = vpop.f32.mrf.mxu0
        %1327 = vdwg.mxu0
        %1328 = vmatprep.subr.mxu0 0.0
        %1329 = vmatpush1.msra.mxu0 0.0
        %1330 = vmatprep.subr.mxu0 0.0
        %1331 = vmatpush1.msra.mxu0 0.0
        %1332 = vmatprep.subr.mxu0 0.0
        %1333 = vmatpush1.msra.mxu0 0.0
        %1334 = vmatprep.subr.mxu0 0.0
        %1335 = vmatpush1.msra.mxu0 0.0
        %1336 = vmatprep.subr.mxu0 0.0
        %1337 = vmatpush1.msra.mxu0 0.0
        %1338 = vmatprep.subr.mxu0 0.0
        %1339 = vmatpush1.msra.mxu0 0.0
        %1340 = vmatprep.subr.mxu0 0.0
        %1341 = vmatpush1.msra.mxu0 0.0
        %1342 = vmatprep.subr.mxu0 0.0
        %1343 = vmatpush1.msra.mxu0 0.0
        %1344 = vmatprep.subr.mxu0 0.0
        %1345 = vmatpush1.msra.mxu0 0.0
        %1346 = vmatprep.subr.mxu0 0.0
        %1347 = vmatpush1.msra.mxu0 0.0
        %1348 = vmatprep.subr.mxu0 0.0
        %1349 = vmatpush1.msra.mxu0 0.0
        %1350 = vmatprep.subr.mxu0 0.0
        %1351 = vmatpush1.msra.mxu0 0.0
        %1352 = vmatprep.subr.mxu0 0.0
        %1353 = vmatpush1.msra.mxu0 %v1067
        %1354 = vmatprep.subr.mxu0 0.0
        %1355 = vmatpush1.msra.mxu0 %v1066
        %1356 = vmatprep.subr.mxu0 0.0
        %1357 = vmatpush1.msra.mxu0 %v1065
        %1358 = vmatprep.subr.mxu0 0.0
        %1359 = vmatpush1.msra.mxu0 %v1064
        %1360 = vmatprep.subr.mxu0 0.0
        %1361 = vmatpush2.msra.mxu0 0.0
        %1362 = vmatprep.subr.mxu0 0.0
        %1363 = vmatpush2.msra.mxu0 0.0
        %1364 = vmatprep.subr.mxu0 0.0
        %1365 = vmatpush2.msra.mxu0 0.0
        %1366 = vmatprep.subr.mxu0 0.0
        %1367 = vmatpush2.msra.mxu0 0.0
        %1368 = vmatprep.subr.mxu0 0.0
        %1369 = vmatpush2.msra.mxu0 0.0
        %1370 = vmatprep.subr.mxu0 0.0
        %1371 = vmatpush2.msra.mxu0 0.0
        %1372 = vmatprep.subr.mxu0 0.0
        %1373 = vmatpush2.msra.mxu0 0.0
        %1374 = vmatprep.subr.mxu0 0.0
        %1375 = vmatpush2.msra.mxu0 0.0
        %1376 = vmatprep.subr.mxu0 0.0
        %1377 = vmatpush2.msra.mxu0 0.0
        %1378 = vmatprep.subr.mxu0 0.0
        %1379 = vmatpush2.msra.mxu0 0.0
        %1380 = vmatprep.subr.mxu0 0.0
        %1381 = vmatpush2.msra.mxu0 0.0
        %1382 = vmatprep.subr.mxu0 0.0
        %1383 = vmatpush2.msra.mxu0 0.0
        %1384 = vmatprep.subr.mxu0 0.0
        %1385 = vmatpush2.msra.mxu0 0.0
        %1386 = vmatprep.subr.mxu0 0.0
        %1387 = vmatpush2.msra.mxu0 0.0
        %1388 = vmatprep.subr.mxu0 0.0
        %1389 = vmatpush2.msra.mxu0 0.0
        %1390 = vmatprep.subr.mxu0 0.0
        %1391 = vmatpush2.msra.mxu0 0.0
        %1392 = vmatprep.mubr.f32.mxu0 0.0
        %1393 = vmatmul.mubr.f32.gmra.mxu0 %v1186
        %v1394 = vpop.f32.mrf.mxu0
        %v1395 = vadd.f32 0.0, %v1394
        %v1396 = vpop.f32.mrf.mxu0
        %1397 = vdwg.mxu0
        %1398 = vmatprep.subr.mxu0 0.0
        %1399 = vmatpush1.msra.mxu0 0.0
        %1400 = vmatprep.subr.mxu0 0.0
        %1401 = vmatpush1.msra.mxu0 0.0
        %1402 = vmatprep.subr.mxu0 0.0
        %1403 = vmatpush1.msra.mxu0 0.0
        %1404 = vmatprep.subr.mxu0 0.0
        %1405 = vmatpush1.msra.mxu0 0.0
        %1406 = vmatprep.subr.mxu0 0.0
        %1407 = vmatpush1.msra.mxu0 0.0
        %1408 = vmatprep.subr.mxu0 0.0
        %1409 = vmatpush1.msra.mxu0 0.0
        %1410 = vmatprep.subr.mxu0 0.0
        %1411 = vmatpush1.msra.mxu0 0.0
        %1412 = vmatprep.subr.mxu0 0.0
        %1413 = vmatpush1.msra.mxu0 0.0
        %1414 = vmatprep.subr.mxu0 0.0
        %1415 = vmatpush1.msra.mxu0 0.0
        %1416 = vmatprep.subr.mxu0 0.0
        %1417 = vmatpush1.msra.mxu0 0.0
        %1418 = vmatprep.subr.mxu0 0.0
        %1419 = vmatpush1.msra.mxu0 0.0
        %1420 = vmatprep.subr.mxu0 0.0
        %1421 = vmatpush1.msra.mxu0 0.0
        %1422 = vmatprep.subr.mxu0 0.0
        %1423 = vmatpush1.msra.mxu0 %v1071
        %1424 = vmatprep.subr.mxu0 0.0
        %1425 = vmatpush1.msra.mxu0 %v1070
        %1426 = vmatprep.subr.mxu0 0.0
        %1427 = vmatpush1.msra.mxu0 %v1069
        %1428 = vmatprep.subr.mxu0 0.0
        %1429 = vmatpush1.msra.mxu0 %v1068
        %1430 = vmatprep.subr.mxu0 0.0
        %1431 = vmatpush2.msra.mxu0 0.0
        %1432 = vmatprep.subr.mxu0 0.0
        %1433 = vmatpush2.msra.mxu0 0.0
        %1434 = vmatprep.subr.mxu0 0.0
        %1435 = vmatpush2.msra.mxu0 0.0
        %1436 = vmatprep.subr.mxu0 0.0
        %1437 = vmatpush2.msra.mxu0 0.0
        %1438 = vmatprep.subr.mxu0 0.0
        %1439 = vmatpush2.msra.mxu0 0.0
        %1440 = vmatprep.subr.mxu0 0.0
        %1441 = vmatpush2.msra.mxu0 0.0
        %1442 = vmatprep.subr.mxu0 0.0
        %1443 = vmatpush2.msra.mxu0 0.0
        %1444 = vmatprep.subr.mxu0 0.0
        %1445 = vmatpush2.msra.mxu0 0.0
        %1446 = vmatprep.subr.mxu0 0.0
        %1447 = vmatpush2.msra.mxu0 0.0
        %1448 = vmatprep.subr.mxu0 0.0
        %1449 = vmatpush2.msra.mxu0 0.0
        %1450 = vmatprep.subr.mxu0 0.0
        %1451 = vmatpush2.msra.mxu0 0.0
        %1452 = vmatprep.subr.mxu0 0.0
        %1453 = vmatpush2.msra.mxu0 0.0
        %1454 = vmatprep.subr.mxu0 0.0
        %1455 = vmatpush2.msra.mxu0 0.0
        %1456 = vmatprep.subr.mxu0 0.0
        %1457 = vmatpush2.msra.mxu0 0.0
        %1458 = vmatprep.subr.mxu0 0.0
        %1459 = vmatpush2.msra.mxu0 0.0
        %1460 = vmatprep.subr.mxu0 0.0
        %1461 = vmatpush2.msra.mxu0 0.0
        %1462 = vmatprep.mubr.f32.mxu0 0.0
        %1463 = vmatmul.mubr.f32.gmra.mxu0 %v1186
        %v1464 = vpop.f32.mrf.mxu0
        %v1465 = vadd.f32 0.0, %v1464
        %v1466 = vpop.f32.mrf.mxu0
        %1467 = vdwg.mxu0
        %v1468 = vmul.f32 %v1255, 0.35355338
        %v1469 = vmul.f32 %v1325, 0.35355338
        %v1470 = vmul.f32 %v1395, 0.35355338
        %v1471 = vmul.f32 %v1465, 0.35355338
        %1472 = vmatprep.subr.mxu0 0.0
        %1473 = vmatpush1.msra.mxu0 0.0
        %1474 = vmatprep.subr.mxu0 0.0
        %1475 = vmatpush1.msra.mxu0 0.0
        %1476 = vmatprep.subr.mxu0 0.0
        %1477 = vmatpush1.msra.mxu0 0.0
        %1478 = vmatprep.subr.mxu0 0.0
        %1479 = vmatpush1.msra.mxu0 0.0
        %1480 = vmatprep.subr.mxu0 0.0
        %1481 = vmatpush1.msra.mxu0 0.0
        %1482 = vmatprep.subr.mxu0 0.0
        %1483 = vmatpush1.msra.mxu0 0.0
        %1484 = vmatprep.subr.mxu0 0.0
        %1485 = vmatpush1.msra.mxu0 0.0
        %1486 = vmatprep.subr.mxu0 0.0
        %1487 = vmatpush1.msra.mxu0 0.0
        %1488 = vmatprep.subr.mxu0 0.0
        %1489 = vmatpush1.msra.mxu0 0.0
        %1490 = vmatprep.subr.mxu0 0.0
        %1491 = vmatpush1.msra.mxu0 0.0
        %1492 = vmatprep.subr.mxu0 0.0
        %1493 = vmatpush1.msra.mxu0 0.0
        %1494 = vmatprep.subr.mxu0 0.0
        %1495 = vmatpush1.msra.mxu0 0.0
        %1496 = vmatprep.subr.mxu0 0.0
        %1497 = vmatpush1.msra.mxu0 %v1075
        %1498 = vmatprep.subr.mxu0 0.0
        %1499 = vmatpush1.msra.mxu0 %v1074
        %1500 = vmatprep.subr.mxu0 0.0
        %1501 = vmatpush1.msra.mxu0 %v1073
        %1502 = vmatprep.subr.mxu0 0.0
        %1503 = vmatpush1.msra.mxu0 %v1072
        %1504 = vmatprep.subr.mxu0 0.0
        %1505 = vmatpush2.msra.mxu0 0.0
        %1506 = vmatprep.subr.mxu0 0.0
        %1507 = vmatpush2.msra.mxu0 0.0
        %1508 = vmatprep.subr.mxu0 0.0
        %1509 = vmatpush2.msra.mxu0 0.0
        %1510 = vmatprep.subr.mxu0 0.0
        %1511 = vmatpush2.msra.mxu0 0.0
        %1512 = vmatprep.subr.mxu0 0.0
        %1513 = vmatpush2.msra.mxu0 0.0
        %1514 = vmatprep.subr.mxu0 0.0
        %1515 = vmatpush2.msra.mxu0 0.0
        %1516 = vmatprep.subr.mxu0 0.0
        %1517 = vmatpush2.msra.mxu0 0.0
        %1518 = vmatprep.subr.mxu0 0.0
        %1519 = vmatpush2.msra.mxu0 0.0
        %1520 = vmatprep.subr.mxu0 0.0
        %1521 = vmatpush2.msra.mxu0 0.0
        %1522 = vmatprep.subr.mxu0 0.0
        %1523 = vmatpush2.msra.mxu0 0.0
        %1524 = vmatprep.subr.mxu0 0.0
        %1525 = vmatpush2.msra.mxu0 0.0
        %1526 = vmatprep.subr.mxu0 0.0
        %1527 = vmatpush2.msra.mxu0 0.0
        %1528 = vmatprep.subr.mxu0 0.0
        %1529 = vmatpush2.msra.mxu0 0.0
        %1530 = vmatprep.subr.mxu0 0.0
        %1531 = vmatpush2.msra.mxu0 0.0
        %1532 = vmatprep.subr.mxu0 0.0
        %1533 = vmatpush2.msra.mxu0 0.0
        %1534 = vmatprep.subr.mxu0 0.0
        %1535 = vmatpush2.msra.mxu0 0.0
        %1536 = vmatprep.mubr.f32.mxu0 0.0
        %1537 = vmatmul.mubr.f32.gmra.mxu0 %v1186
        %v1538 = vpop.f32.mrf.mxu0
        %v1539 = vadd.f32 0.0, %v1538
        %v1540 = vpop.f32.mrf.mxu0
        %1541 = vdwg.mxu0
        %1542 = vmatprep.subr.mxu0 0.0
        %1543 = vmatpush1.msra.mxu0 0.0
        %1544 = vmatprep.subr.mxu0 0.0
        %1545 = vmatpush1.msra.mxu0 0.0
        %1546 = vmatprep.subr.mxu0 0.0
        %1547 = vmatpush1.msra.mxu0 0.0
        %1548 = vmatprep.subr.mxu0 0.0
        %1549 = vmatpush1.msra.mxu0 0.0
        %1550 = vmatprep.subr.mxu0 0.0
        %1551 = vmatpush1.msra.mxu0 0.0
        %1552 = vmatprep.subr.mxu0 0.0
        %1553 = vmatpush1.msra.mxu0 0.0
        %1554 = vmatprep.subr.mxu0 0.0
        %1555 = vmatpush1.msra.mxu0 0.0
        %1556 = vmatprep.subr.mxu0 0.0
        %1557 = vmatpush1.msra.mxu0 0.0
        %1558 = vmatprep.subr.mxu0 0.0
        %1559 = vmatpush1.msra.mxu0 0.0
        %1560 = vmatprep.subr.mxu0 0.0
        %1561 = vmatpush1.msra.mxu0 0.0
        %1562 = vmatprep.subr.mxu0 0.0
        %1563 = vmatpush1.msra.mxu0 0.0
        %1564 = vmatprep.subr.mxu0 0.0
        %1565 = vmatpush1.msra.mxu0 0.0
        %1566 = vmatprep.subr.mxu0 0.0
        %1567 = vmatpush1.msra.mxu0 %v1079
        %1568 = vmatprep.subr.mxu0 0.0
        %1569 = vmatpush1.msra.mxu0 %v1078
        %1570 = vmatprep.subr.mxu0 0.0
        %1571 = vmatpush1.msra.mxu0 %v1077
        %1572 = vmatprep.subr.mxu0 0.0
        %1573 = vmatpush1.msra.mxu0 %v1076
        %1574 = vmatprep.subr.mxu0 0.0
        %1575 = vmatpush2.msra.mxu0 0.0
        %1576 = vmatprep.subr.mxu0 0.0
        %1577 = vmatpush2.msra.mxu0 0.0
        %1578 = vmatprep.subr.mxu0 0.0
        %1579 = vmatpush2.msra.mxu0 0.0
        %1580 = vmatprep.subr.mxu0 0.0
        %1581 = vmatpush2.msra.mxu0 0.0
        %1582 = vmatprep.subr.mxu0 0.0
        %1583 = vmatpush2.msra.mxu0 0.0
        %1584 = vmatprep.subr.mxu0 0.0
        %1585 = vmatpush2.msra.mxu0 0.0
        %1586 = vmatprep.subr.mxu0 0.0
        %1587 = vmatpush2.msra.mxu0 0.0
        %1588 = vmatprep.subr.mxu0 0.0
        %1589 = vmatpush2.msra.mxu0 0.0
        %1590 = vmatprep.subr.mxu0 0.0
        %1591 = vmatpush2.msra.mxu0 0.0
        %1592 = vmatprep.subr.mxu0 0.0
        %1593 = vmatpush2.msra.mxu0 0.0
        %1594 = vmatprep.subr.mxu0 0.0
        %1595 = vmatpush2.msra.mxu0 0.0
        %1596 = vmatprep.subr.mxu0 0.0
        %1597 = vmatpush2.msra.mxu0 0.0
        %1598 = vmatprep.subr.mxu0 0.0
        %1599 = vmatpush2.msra.mxu0 0.0
        %1600 = vmatprep.subr.mxu0 0.0
        %1601 = vmatpush2.msra.mxu0 0.0
        %1602 = vmatprep.subr.mxu0 0.0
        %1603 = vmatpush2.msra.mxu0 0.0
        %1604 = vmatprep.subr.mxu0 0.0
        %1605 = vmatpush2.msra.mxu0 0.0
        %1606 = vmatprep.mubr.f32.mxu0 0.0
        %1607 = vmatmul.mubr.f32.gmra.mxu0 %v1186
        %v1608 = vpop.f32.mrf.mxu0
        %v1609 = vadd.f32 0.0, %v1608
        %v1610 = vpop.f32.mrf.mxu0
        %1611 = vdwg.mxu0
        %1612 = vmatprep.subr.mxu0 0.0
        %1613 = vmatpush1.msra.mxu0 0.0
        %1614 = vmatprep.subr.mxu0 0.0
        %1615 = vmatpush1.msra.mxu0 0.0
        %1616 = vmatprep.subr.mxu0 0.0
        %1617 = vmatpush1.msra.mxu0 0.0
        %1618 = vmatprep.subr.mxu0 0.0
        %1619 = vmatpush1.msra.mxu0 0.0
        %1620 = vmatprep.subr.mxu0 0.0
        %1621 = vmatpush1.msra.mxu0 0.0
        %1622 = vmatprep.subr.mxu0 0.0
        %1623 = vmatpush1.msra.mxu0 0.0
        %1624 = vmatprep.subr.mxu0 0.0
        %1625 = vmatpush1.msra.mxu0 0.0
        %1626 = vmatprep.subr.mxu0 0.0
        %1627 = vmatpush1.msra.mxu0 0.0
        %1628 = vmatprep.subr.mxu0 0.0
        %1629 = vmatpush1.msra.mxu0 0.0
        %1630 = vmatprep.subr.mxu0 0.0
        %1631 = vmatpush1.msra.mxu0 0.0
        %1632 = vmatprep.subr.mxu0 0.0
        %1633 = vmatpush1.msra.mxu0 0.0
        %1634 = vmatprep.subr.mxu0 0.0
        %1635 = vmatpush1.msra.mxu0 0.0
        %1636 = vmatprep.subr.mxu0 0.0
        %1637 = vmatpush1.msra.mxu0 %v1083
        %1638 = vmatprep.subr.mxu0 0.0
        %1639 = vmatpush1.msra.mxu0 %v1082
        %1640 = vmatprep.subr.mxu0 0.0
        %1641 = vmatpush1.msra.mxu0 %v1081
        %1642 = vmatprep.subr.mxu0 0.0
        %1643 = vmatpush1.msra.mxu0 %v1080
        %1644 = vmatprep.subr.mxu0 0.0
        %1645 = vmatpush2.msra.mxu0 0.0
        %1646 = vmatprep.subr.mxu0 0.0
        %1647 = vmatpush2.msra.mxu0 0.0
        %1648 = vmatprep.subr.mxu0 0.0
        %1649 = vmatpush2.msra.mxu0 0.0
        %1650 = vmatprep.subr.mxu0 0.0
        %1651 = vmatpush2.msra.mxu0 0.0
        %1652 = vmatprep.subr.mxu0 0.0
        %1653 = vmatpush2.msra.mxu0 0.0
        %1654 = vmatprep.subr.mxu0 0.0
        %1655 = vmatpush2.msra.mxu0 0.0
        %1656 = vmatprep.subr.mxu0 0.0
        %1657 = vmatpush2.msra.mxu0 0.0
        %1658 = vmatprep.subr.mxu0 0.0
        %1659 = vmatpush2.msra.mxu0 0.0
        %1660 = vmatprep.subr.mxu0 0.0
        %1661 = vmatpush2.msra.mxu0 0.0
        %1662 = vmatprep.subr.mxu0 0.0
        %1663 = vmatpush2.msra.mxu0 0.0
        %1664 = vmatprep.subr.mxu0 0.0
        %1665 = vmatpush2.msra.mxu0 0.0
        %1666 = vmatprep.subr.mxu0 0.0
        %1667 = vmatpush2.msra.mxu0 0.0
        %1668 = vmatprep.subr.mxu0 0.0
        %1669 = vmatpush2.msra.mxu0 0.0
        %1670 = vmatprep.subr.mxu0 0.0
        %1671 = vmatpush2.msra.mxu0 0.0
        %1672 = vmatprep.subr.mxu0 0.0
        %1673 = vmatpush2.msra.mxu0 0.0
        %1674 = vmatprep.subr.mxu0 0.0
        %1675 = vmatpush2.msra.mxu0 0.0
        %1676 = vmatprep.mubr.f32.mxu0 0.0
        %1677 = vmatmul.mubr.f32.gmra.mxu0 %v1186
        %v1678 = vpop.f32.mrf.mxu0
        %v1679 = vadd.f32 0.0, %v1678
        %v1680 = vpop.f32.mrf.mxu0
        %1681 = vdwg.mxu0
        %1682 = vmatprep.subr.mxu0 0.0
        %1683 = vmatpush1.msra.mxu0 0.0
        %1684 = vmatprep.subr.mxu0 0.0
        %1685 = vmatpush1.msra.mxu0 0.0
        %1686 = vmatprep.subr.mxu0 0.0
        %1687 = vmatpush1.msra.mxu0 0.0
        %1688 = vmatprep.subr.mxu0 0.0
        %1689 = vmatpush1.msra.mxu0 0.0
        %1690 = vmatprep.subr.mxu0 0.0
        %1691 = vmatpush1.msra.mxu0 0.0
        %1692 = vmatprep.subr.mxu0 0.0
        %1693 = vmatpush1.msra.mxu0 0.0
        %1694 = vmatprep.subr.mxu0 0.0
        %1695 = vmatpush1.msra.mxu0 0.0
        %1696 = vmatprep.subr.mxu0 0.0
        %1697 = vmatpush1.msra.mxu0 0.0
        %1698 = vmatprep.subr.mxu0 0.0
        %1699 = vmatpush1.msra.mxu0 0.0
        %1700 = vmatprep.subr.mxu0 0.0
        %1701 = vmatpush1.msra.mxu0 0.0
        %1702 = vmatprep.subr.mxu0 0.0
        %1703 = vmatpush1.msra.mxu0 0.0
        %1704 = vmatprep.subr.mxu0 0.0
        %1705 = vmatpush1.msra.mxu0 0.0
        %1706 = vmatprep.subr.mxu0 0.0
        %1707 = vmatpush1.msra.mxu0 %v1087
        %1708 = vmatprep.subr.mxu0 0.0
        %1709 = vmatpush1.msra.mxu0 %v1086
        %1710 = vmatprep.subr.mxu0 0.0
        %1711 = vmatpush1.msra.mxu0 %v1085
        %1712 = vmatprep.subr.mxu0 0.0
        %1713 = vmatpush1.msra.mxu0 %v1084
        %1714 = vmatprep.subr.mxu0 0.0
        %1715 = vmatpush2.msra.mxu0 0.0
        %1716 = vmatprep.subr.mxu0 0.0
        %1717 = vmatpush2.msra.mxu0 0.0
        %1718 = vmatprep.subr.mxu0 0.0
        %1719 = vmatpush2.msra.mxu0 0.0
        %1720 = vmatprep.subr.mxu0 0.0
        %1721 = vmatpush2.msra.mxu0 0.0
        %1722 = vmatprep.subr.mxu0 0.0
        %1723 = vmatpush2.msra.mxu0 0.0
        %1724 = vmatprep.subr.mxu0 0.0
        %1725 = vmatpush2.msra.mxu0 0.0
        %1726 = vmatprep.subr.mxu0 0.0
        %1727 = vmatpush2.msra.mxu0 0.0
        %1728 = vmatprep.subr.mxu0 0.0
        %1729 = vmatpush2.msra.mxu0 0.0
        %1730 = vmatprep.subr.mxu0 0.0
        %1731 = vmatpush2.msra.mxu0 0.0
        %1732 = vmatprep.subr.mxu0 0.0
        %1733 = vmatpush2.msra.mxu0 0.0
        %1734 = vmatprep.subr.mxu0 0.0
        %1735 = vmatpush2.msra.mxu0 0.0
        %1736 = vmatprep.subr.mxu0 0.0
        %1737 = vmatpush2.msra.mxu0 0.0
        %1738 = vmatprep.subr.mxu0 0.0
        %1739 = vmatpush2.msra.mxu0 0.0
        %1740 = vmatprep.subr.mxu0 0.0
        %1741 = vmatpush2.msra.mxu0 0.0
        %1742 = vmatprep.subr.mxu0 0.0
        %1743 = vmatpush2.msra.mxu0 0.0
        %1744 = vmatprep.subr.mxu0 0.0
        %1745 = vmatpush2.msra.mxu0 0.0
        %1746 = vmatprep.mubr.f32.mxu0 0.0
        %1747 = vmatmul.mubr.f32.gmra.mxu0 %v1186
        %v1748 = vpop.f32.mrf.mxu0
        %v1749 = vadd.f32 0.0, %v1748
        %v1750 = vpop.f32.mrf.mxu0
        %1751 = vdwg.mxu0
        %1752 = vmatprep.subr.mxu0 0.0
        %1753 = vmatpush1.msra.mxu0 0.0
        %1754 = vmatprep.subr.mxu0 0.0
        %1755 = vmatpush1.msra.mxu0 0.0
        %1756 = vmatprep.subr.mxu0 0.0
        %1757 = vmatpush1.msra.mxu0 0.0
        %1758 = vmatprep.subr.mxu0 0.0
        %1759 = vmatpush1.msra.mxu0 0.0
        %1760 = vmatprep.subr.mxu0 0.0
        %1761 = vmatpush1.msra.mxu0 0.0
        %1762 = vmatprep.subr.mxu0 0.0
        %1763 = vmatpush1.msra.mxu0 0.0
        %1764 = vmatprep.subr.mxu0 0.0
        %1765 = vmatpush1.msra.mxu0 0.0
        %1766 = vmatprep.subr.mxu0 0.0
        %1767 = vmatpush1.msra.mxu0 0.0
        %1768 = vmatprep.subr.mxu0 0.0
        %1769 = vmatpush1.msra.mxu0 0.0
        %1770 = vmatprep.subr.mxu0 0.0
        %1771 = vmatpush1.msra.mxu0 0.0
        %1772 = vmatprep.subr.mxu0 0.0
        %1773 = vmatpush1.msra.mxu0 0.0
        %1774 = vmatprep.subr.mxu0 0.0
        %1775 = vmatpush1.msra.mxu0 0.0
        %1776 = vmatprep.subr.mxu0 0.0
        %1777 = vmatpush1.msra.mxu0 %v1091
        %1778 = vmatprep.subr.mxu0 0.0
        %1779 = vmatpush1.msra.mxu0 %v1090
        %1780 = vmatprep.subr.mxu0 0.0
        %1781 = vmatpush1.msra.mxu0 %v1089
        %1782 = vmatprep.subr.mxu0 0.0
        %1783 = vmatpush1.msra.mxu0 %v1088
        %1784 = vmatprep.subr.mxu0 0.0
        %1785 = vmatpush2.msra.mxu0 0.0
        %1786 = vmatprep.subr.mxu0 0.0
        %1787 = vmatpush2.msra.mxu0 0.0
        %1788 = vmatprep.subr.mxu0 0.0
        %1789 = vmatpush2.msra.mxu0 0.0
        %1790 = vmatprep.subr.mxu0 0.0
        %1791 = vmatpush2.msra.mxu0 0.0
        %1792 = vmatprep.subr.mxu0 0.0
        %1793 = vmatpush2.msra.mxu0 0.0
        %1794 = vmatprep.subr.mxu0 0.0
        %1795 = vmatpush2.msra.mxu0 0.0
        %1796 = vmatprep.subr.mxu0 0.0
        %1797 = vmatpush2.msra.mxu0 0.0
        %1798 = vmatprep.subr.mxu0 0.0
        %1799 = vmatpush2.msra.mxu0 0.0
        %1800 = vmatprep.subr.mxu0 0.0
        %1801 = vmatpush2.msra.mxu0 0.0
        %1802 = vmatprep.subr.mxu0 0.0
        %1803 = vmatpush2.msra.mxu0 0.0
        %1804 = vmatprep.subr.mxu0 0.0
        %1805 = vmatpush2.msra.mxu0 0.0
        %1806 = vmatprep.subr.mxu0 0.0
        %1807 = vmatpush2.msra.mxu0 0.0
        %1808 = vmatprep.subr.mxu0 0.0
        %1809 = vmatpush2.msra.mxu0 0.0
        %1810 = vmatprep.subr.mxu0 0.0
        %1811 = vmatpush2.msra.mxu0 0.0
        %1812 = vmatprep.subr.mxu0 0.0
        %1813 = vmatpush2.msra.mxu0 0.0
        %1814 = vmatprep.subr.mxu0 0.0
        %1815 = vmatpush2.msra.mxu0 0.0
        %1816 = vmatprep.mubr.f32.mxu0 0.0
        %1817 = vmatmul.mubr.f32.gmra.mxu0 %v1186
        %v1818 = vpop.f32.mrf.mxu0
        %v1819 = vadd.f32 0.0, %v1818
        %v1820 = vpop.f32.mrf.mxu0
        %1821 = vdwg.mxu0
        %1822 = vmatprep.subr.mxu0 0.0
        %1823 = vmatpush1.msra.mxu0 0.0
        %1824 = vmatprep.subr.mxu0 0.0
        %1825 = vmatpush1.msra.mxu0 0.0
        %1826 = vmatprep.subr.mxu0 0.0
        %1827 = vmatpush1.msra.mxu0 0.0
        %1828 = vmatprep.subr.mxu0 0.0
        %1829 = vmatpush1.msra.mxu0 0.0
        %1830 = vmatprep.subr.mxu0 0.0
        %1831 = vmatpush1.msra.mxu0 0.0
        %1832 = vmatprep.subr.mxu0 0.0
        %1833 = vmatpush1.msra.mxu0 0.0
        %1834 = vmatprep.subr.mxu0 0.0
        %1835 = vmatpush1.msra.mxu0 0.0
        %1836 = vmatprep.subr.mxu0 0.0
        %1837 = vmatpush1.msra.mxu0 0.0
        %1838 = vmatprep.subr.mxu0 0.0
        %1839 = vmatpush1.msra.mxu0 0.0
        %1840 = vmatprep.subr.mxu0 0.0
        %1841 = vmatpush1.msra.mxu0 0.0
        %1842 = vmatprep.subr.mxu0 0.0
        %1843 = vmatpush1.msra.mxu0 0.0
        %1844 = vmatprep.subr.mxu0 0.0
        %1845 = vmatpush1.msra.mxu0 0.0
        %1846 = vmatprep.subr.mxu0 0.0
        %1847 = vmatpush1.msra.mxu0 %v1095
        %1848 = vmatprep.subr.mxu0 0.0
        %1849 = vmatpush1.msra.mxu0 %v1094
        %1850 = vmatprep.subr.mxu0 0.0
        %1851 = vmatpush1.msra.mxu0 %v1093
        %1852 = vmatprep.subr.mxu0 0.0
        %1853 = vmatpush1.msra.mxu0 %v1092
        %1854 = vmatprep.subr.mxu0 0.0
        %1855 = vmatpush2.msra.mxu0 0.0
        %1856 = vmatprep.subr.mxu0 0.0
        %1857 = vmatpush2.msra.mxu0 0.0
        %1858 = vmatprep.subr.mxu0 0.0
        %1859 = vmatpush2.msra.mxu0 0.0
        %1860 = vmatprep.subr.mxu0 0.0
        %1861 = vmatpush2.msra.mxu0 0.0
        %1862 = vmatprep.subr.mxu0 0.0
        %1863 = vmatpush2.msra.mxu0 0.0
        %1864 = vmatprep.subr.mxu0 0.0
        %1865 = vmatpush2.msra.mxu0 0.0
        %1866 = vmatprep.subr.mxu0 0.0
        %1867 = vmatpush2.msra.mxu0 0.0
        %1868 = vmatprep.subr.mxu0 0.0
        %1869 = vmatpush2.msra.mxu0 0.0
        %1870 = vmatprep.subr.mxu0 0.0
        %1871 = vmatpush2.msra.mxu0 0.0
        %1872 = vmatprep.subr.mxu0 0.0
        %1873 = vmatpush2.msra.mxu0 0.0
        %1874 = vmatprep.subr.mxu0 0.0
        %1875 = vmatpush2.msra.mxu0 0.0
        %1876 = vmatprep.subr.mxu0 0.0
        %1877 = vmatpush2.msra.mxu0 0.0
        %1878 = vmatprep.subr.mxu0 0.0
        %1879 = vmatpush2.msra.mxu0 0.0
        %1880 = vmatprep.subr.mxu0 0.0
        %1881 = vmatpush2.msra.mxu0 0.0
        %1882 = vmatprep.subr.mxu0 0.0
        %1883 = vmatpush2.msra.mxu0 0.0
        %1884 = vmatprep.subr.mxu0 0.0
        %1885 = vmatpush2.msra.mxu0 0.0
        %1886 = vmatprep.mubr.f32.mxu0 0.0
        %1887 = vmatmul.mubr.f32.gmra.mxu0 %v1186
        %v1888 = vpop.f32.mrf.mxu0
        %v1889 = vadd.f32 0.0, %v1888
        %v1890 = vpop.f32.mrf.mxu0
        %1891 = vdwg.mxu0
        %1892 = vmatprep.subr.mxu0 0.0
        %1893 = vmatpush1.msra.mxu0 0.0
        %1894 = vmatprep.subr.mxu0 0.0
        %1895 = vmatpush1.msra.mxu0 0.0
        %1896 = vmatprep.subr.mxu0 0.0
        %1897 = vmatpush1.msra.mxu0 0.0
        %1898 = vmatprep.subr.mxu0 0.0
        %1899 = vmatpush1.msra.mxu0 0.0
        %1900 = vmatprep.subr.mxu0 0.0
        %1901 = vmatpush1.msra.mxu0 0.0
        %1902 = vmatprep.subr.mxu0 0.0
        %1903 = vmatpush1.msra.mxu0 0.0
        %1904 = vmatprep.subr.mxu0 0.0
        %1905 = vmatpush1.msra.mxu0 0.0
        %1906 = vmatprep.subr.mxu0 0.0
        %1907 = vmatpush1.msra.mxu0 0.0
        %1908 = vmatprep.subr.mxu0 0.0
        %1909 = vmatpush1.msra.mxu0 0.0
        %1910 = vmatprep.subr.mxu0 0.0
        %1911 = vmatpush1.msra.mxu0 0.0
        %1912 = vmatprep.subr.mxu0 0.0
        %1913 = vmatpush1.msra.mxu0 0.0
        %1914 = vmatprep.subr.mxu0 0.0
        %1915 = vmatpush1.msra.mxu0 0.0
        %1916 = vmatprep.subr.mxu0 0.0
        %1917 = vmatpush1.msra.mxu0 %v1099
        %1918 = vmatprep.subr.mxu0 0.0
        %1919 = vmatpush1.msra.mxu0 %v1098
        %1920 = vmatprep.subr.mxu0 0.0
        %1921 = vmatpush1.msra.mxu0 %v1097
        %1922 = vmatprep.subr.mxu0 0.0
        %1923 = vmatpush1.msra.mxu0 %v1096
        %1924 = vmatprep.subr.mxu0 0.0
        %1925 = vmatpush2.msra.mxu0 0.0
        %1926 = vmatprep.subr.mxu0 0.0
        %1927 = vmatpush2.msra.mxu0 0.0
        %1928 = vmatprep.subr.mxu0 0.0
        %1929 = vmatpush2.msra.mxu0 0.0
        %1930 = vmatprep.subr.mxu0 0.0
        %1931 = vmatpush2.msra.mxu0 0.0
        %1932 = vmatprep.subr.mxu0 0.0
        %1933 = vmatpush2.msra.mxu0 0.0
        %1934 = vmatprep.subr.mxu0 0.0
        %1935 = vmatpush2.msra.mxu0 0.0
        %1936 = vmatprep.subr.mxu0 0.0
        %1937 = vmatpush2.msra.mxu0 0.0
        %1938 = vmatprep.subr.mxu0 0.0
        %1939 = vmatpush2.msra.mxu0 0.0
        %1940 = vmatprep.subr.mxu0 0.0
        %1941 = vmatpush2.msra.mxu0 0.0
        %1942 = vmatprep.subr.mxu0 0.0
        %1943 = vmatpush2.msra.mxu0 0.0
        %1944 = vmatprep.subr.mxu0 0.0
        %1945 = vmatpush2.msra.mxu0 0.0
        %1946 = vmatprep.subr.mxu0 0.0
        %1947 = vmatpush2.msra.mxu0 0.0
        %1948 = vmatprep.subr.mxu0 0.0
        %1949 = vmatpush2.msra.mxu0 0.0
        %1950 = vmatprep.subr.mxu0 0.0
        %1951 = vmatpush2.msra.mxu0 0.0
        %1952 = vmatprep.subr.mxu0 0.0
        %1953 = vmatpush2.msra.mxu0 0.0
        %1954 = vmatprep.subr.mxu0 0.0
        %1955 = vmatpush2.msra.mxu0 0.0
        %1956 = vmatprep.mubr.f32.mxu0 0.0
        %1957 = vmatmul.mubr.f32.gmra.mxu0 %v1186
        %v1958 = vpop.f32.mrf.mxu0
        %v1959 = vadd.f32 0.0, %v1958
        %v1960 = vpop.f32.mrf.mxu0
        %1961 = vdwg.mxu0
        %1962 = vmatprep.subr.mxu0 0.0
        %1963 = vmatpush1.msra.mxu0 0.0
        %1964 = vmatprep.subr.mxu0 0.0
        %1965 = vmatpush1.msra.mxu0 0.0
        %1966 = vmatprep.subr.mxu0 0.0
        %1967 = vmatpush1.msra.mxu0 0.0
        %1968 = vmatprep.subr.mxu0 0.0
        %1969 = vmatpush1.msra.mxu0 0.0
        %1970 = vmatprep.subr.mxu0 0.0
        %1971 = vmatpush1.msra.mxu0 0.0
        %1972 = vmatprep.subr.mxu0 0.0
        %1973 = vmatpush1.msra.mxu0 0.0
        %1974 = vmatprep.subr.mxu0 0.0
        %1975 = vmatpush1.msra.mxu0 0.0
        %1976 = vmatprep.subr.mxu0 0.0
        %1977 = vmatpush1.msra.mxu0 0.0
        %1978 = vmatprep.subr.mxu0 0.0
        %1979 = vmatpush1.msra.mxu0 0.0
        %1980 = vmatprep.subr.mxu0 0.0
        %1981 = vmatpush1.msra.mxu0 0.0
        %1982 = vmatprep.subr.mxu0 0.0
        %1983 = vmatpush1.msra.mxu0 0.0
        %1984 = vmatprep.subr.mxu0 0.0
        %1985 = vmatpush1.msra.mxu0 0.0
        %1986 = vmatprep.subr.mxu0 0.0
        %1987 = vmatpush1.msra.mxu0 %v1103
        %1988 = vmatprep.subr.mxu0 0.0
        %1989 = vmatpush1.msra.mxu0 %v1102
        %1990 = vmatprep.subr.mxu0 0.0
        %1991 = vmatpush1.msra.mxu0 %v1101
        %1992 = vmatprep.subr.mxu0 0.0
        %1993 = vmatpush1.msra.mxu0 %v1100
        %1994 = vmatprep.subr.mxu0 0.0
        %1995 = vmatpush2.msra.mxu0 0.0
        %1996 = vmatprep.subr.mxu0 0.0
        %1997 = vmatpush2.msra.mxu0 0.0
        %1998 = vmatprep.subr.mxu0 0.0
        %1999 = vmatpush2.msra.mxu0 0.0
        %2000 = vmatprep.subr.mxu0 0.0
        %2001 = vmatpush2.msra.mxu0 0.0
        %2002 = vmatprep.subr.mxu0 0.0
        %2003 = vmatpush2.msra.mxu0 0.0
        %2004 = vmatprep.subr.mxu0 0.0
        %2005 = vmatpush2.msra.mxu0 0.0
        %2006 = vmatprep.subr.mxu0 0.0
        %2007 = vmatpush2.msra.mxu0 0.0
        %2008 = vmatprep.subr.mxu0 0.0
        %2009 = vmatpush2.msra.mxu0 0.0
        %2010 = vmatprep.subr.mxu0 0.0
        %2011 = vmatpush2.msra.mxu0 0.0
        %2012 = vmatprep.subr.mxu0 0.0
        %2013 = vmatpush2.msra.mxu0 0.0
        %2014 = vmatprep.subr.mxu0 0.0
        %2015 = vmatpush2.msra.mxu0 0.0
        %2016 = vmatprep.subr.mxu0 0.0
        %2017 = vmatpush2.msra.mxu0 0.0
        %2018 = vmatprep.subr.mxu0 0.0
        %2019 = vmatpush2.msra.mxu0 0.0
        %2020 = vmatprep.subr.mxu0 0.0
        %2021 = vmatpush2.msra.mxu0 0.0
        %2022 = vmatprep.subr.mxu0 0.0
        %2023 = vmatpush2.msra.mxu0 0.0
        %2024 = vmatprep.subr.mxu0 0.0
        %2025 = vmatpush2.msra.mxu0 0.0
        %2026 = vmatprep.mubr.f32.mxu0 0.0
        %2027 = vmatmul.mubr.f32.gmra.mxu0 %v1186
        %v2028 = vpop.f32.mrf.mxu0
        %v2029 = vadd.f32 0.0, %v2028
        %v2030 = vpop.f32.mrf.mxu0
        %2031 = vdwg.mxu0
        %vm2032 = vcmask 64512
        %v2034 = vsel %vm2032, %v1468, 0
        %v2037 = vsel %vm2032, %v1539, 0
        %2039 = vmatprep.subr.mxu0 0.0
        %2040 = vmatpush1.xpose.msra.mxu0 0.0
        %2041 = vmatprep.subr.mxu0 0.0
        %2042 = vmatpush1.xpose.msra.mxu0 0.0
        %2043 = vmatprep.subr.mxu0 0.0
        %2044 = vmatpush1.xpose.msra.mxu0 0.0
        %2045 = vmatprep.subr.mxu0 0.0
        %2046 = vmatpush1.xpose.msra.mxu0 0.0
        %2047 = vmatprep.subr.mxu0 0.0
        %2048 = vmatpush1.xpose.msra.mxu0 0.0
        %2049 = vmatprep.subr.mxu0 0.0
        %2050 = vmatpush1.xpose.msra.mxu0 0.0
        %2051 = vmatprep.subr.mxu0 0.0
        %2052 = vmatpush1.xpose.msra.mxu0 0.0
        %2053 = vmatprep.subr.mxu0 0.0
        %2054 = vmatpush1.xpose.msra.mxu0 0.0
        %2055 = vmatprep.subr.mxu0 0.0
        %2056 = vmatpush1.xpose.msra.mxu0 0.0
        %2057 = vmatprep.subr.mxu0 0.0
        %2058 = vmatpush1.xpose.msra.mxu0 0.0
        %2059 = vmatprep.subr.mxu0 0.0
        %2060 = vmatpush1.xpose.msra.mxu0 0.0
        %2061 = vmatprep.subr.mxu0 0.0
        %2062 = vmatpush1.xpose.msra.mxu0 0.0
        %2063 = vmatprep.subr.mxu0 0.0
        %2064 = vmatpush1.xpose.msra.mxu0 0.0
        %2065 = vmatprep.subr.mxu0 0.0
        %2066 = vmatpush1.xpose.msra.mxu0 0.0
        %2067 = vmatprep.subr.mxu0 0.0
        %2068 = vmatpush1.xpose.msra.mxu0 0.0
        %2069 = vmatprep.subr.mxu0 0.0
        %2070 = vmatpush1.xpose.msra.mxu0 %v2037
        %2071 = vmatprep.subr.mxu0 0.0
        %2072 = vmatpush2.xpose.msra.mxu0 0.0
        %2073 = vmatprep.subr.mxu0 0.0
        %2074 = vmatpush2.xpose.msra.mxu0 0.0
        %2075 = vmatprep.subr.mxu0 0.0
        %2076 = vmatpush2.xpose.msra.mxu0 0.0
        %2077 = vmatprep.subr.mxu0 0.0
        %2078 = vmatpush2.xpose.msra.mxu0 0.0
        %2079 = vmatprep.subr.mxu0 0.0
        %2080 = vmatpush2.xpose.msra.mxu0 0.0
        %2081 = vmatprep.subr.mxu0 0.0
        %2082 = vmatpush2.xpose.msra.mxu0 0.0
        %2083 = vmatprep.subr.mxu0 0.0
        %2084 = vmatpush2.xpose.msra.mxu0 0.0
        %2085 = vmatprep.subr.mxu0 0.0
        %2086 = vmatpush2.xpose.msra.mxu0 0.0
        %2087 = vmatprep.subr.mxu0 0.0
        %2088 = vmatpush2.xpose.msra.mxu0 0.0
        %2089 = vmatprep.subr.mxu0 0.0
        %2090 = vmatpush2.xpose.msra.mxu0 0.0
        %2091 = vmatprep.subr.mxu0 0.0
        %2092 = vmatpush2.xpose.msra.mxu0 0.0
        %2093 = vmatprep.subr.mxu0 0.0
        %2094 = vmatpush2.xpose.msra.mxu0 0.0
        %2095 = vmatprep.subr.mxu0 0.0
        %2096 = vmatpush2.xpose.msra.mxu0 0.0
        %2097 = vmatprep.subr.mxu0 0.0
        %2098 = vmatpush2.xpose.msra.mxu0 0.0
        %2099 = vmatprep.subr.mxu0 0.0
        %2100 = vmatpush2.xpose.msra.mxu0 0.0
        %2101 = vmatprep.subr.mxu0 0.0
        %2102 = vmatpush2.xpose.msra.mxu0 0.0
        %2103 = vmatprep.mubr.f32.mxu0 0.0
        %2104 = vmatmul.mubr.f32.gmra.mxu0 %v2034
        %v2105 = vpop.f32.mrf.mxu0
        %v2106 = vadd.f32 0.0, %v2105
        %v2107 = vpop.f32.mrf.mxu0
        %2108 = vdwg.mxu0
        %v2110 = vsel %vm2032, %v1469, 0
        %v2113 = vsel %vm2032, %v1609, 0
        %2115 = vmatprep.subr.mxu0 0.0
        %2116 = vmatpush1.xpose.msra.mxu0 0.0
        %2117 = vmatprep.subr.mxu0 0.0
        %2118 = vmatpush1.xpose.msra.mxu0 0.0
        %2119 = vmatprep.subr.mxu0 0.0
        %2120 = vmatpush1.xpose.msra.mxu0 0.0
        %2121 = vmatprep.subr.mxu0 0.0
        %2122 = vmatpush1.xpose.msra.mxu0 0.0
        %2123 = vmatprep.subr.mxu0 0.0
        %2124 = vmatpush1.xpose.msra.mxu0 0.0
        %2125 = vmatprep.subr.mxu0 0.0
        %2126 = vmatpush1.xpose.msra.mxu0 0.0
        %2127 = vmatprep.subr.mxu0 0.0
        %2128 = vmatpush1.xpose.msra.mxu0 0.0
        %2129 = vmatprep.subr.mxu0 0.0
        %2130 = vmatpush1.xpose.msra.mxu0 0.0
        %2131 = vmatprep.subr.mxu0 0.0
        %2132 = vmatpush1.xpose.msra.mxu0 0.0
        %2133 = vmatprep.subr.mxu0 0.0
        %2134 = vmatpush1.xpose.msra.mxu0 0.0
        %2135 = vmatprep.subr.mxu0 0.0
        %2136 = vmatpush1.xpose.msra.mxu0 0.0
        %2137 = vmatprep.subr.mxu0 0.0
        %2138 = vmatpush1.xpose.msra.mxu0 0.0
        %2139 = vmatprep.subr.mxu0 0.0
        %2140 = vmatpush1.xpose.msra.mxu0 0.0
        %2141 = vmatprep.subr.mxu0 0.0
        %2142 = vmatpush1.xpose.msra.mxu0 0.0
        %2143 = vmatprep.subr.mxu0 0.0
        %2144 = vmatpush1.xpose.msra.mxu0 0.0
        %2145 = vmatprep.subr.mxu0 0.0
        %2146 = vmatpush1.xpose.msra.mxu0 %v2113
        %2147 = vmatprep.subr.mxu0 0.0
        %2148 = vmatpush2.xpose.msra.mxu0 0.0
        %2149 = vmatprep.subr.mxu0 0.0
        %2150 = vmatpush2.xpose.msra.mxu0 0.0
        %2151 = vmatprep.subr.mxu0 0.0
        %2152 = vmatpush2.xpose.msra.mxu0 0.0
        %2153 = vmatprep.subr.mxu0 0.0
        %2154 = vmatpush2.xpose.msra.mxu0 0.0
        %2155 = vmatprep.subr.mxu0 0.0
        %2156 = vmatpush2.xpose.msra.mxu0 0.0
        %2157 = vmatprep.subr.mxu0 0.0
        %2158 = vmatpush2.xpose.msra.mxu0 0.0
        %2159 = vmatprep.subr.mxu0 0.0
        %2160 = vmatpush2.xpose.msra.mxu0 0.0
        %2161 = vmatprep.subr.mxu0 0.0
        %2162 = vmatpush2.xpose.msra.mxu0 0.0
        %2163 = vmatprep.subr.mxu0 0.0
        %2164 = vmatpush2.xpose.msra.mxu0 0.0
        %2165 = vmatprep.subr.mxu0 0.0
        %2166 = vmatpush2.xpose.msra.mxu0 0.0
        %2167 = vmatprep.subr.mxu0 0.0
        %2168 = vmatpush2.xpose.msra.mxu0 0.0
        %2169 = vmatprep.subr.mxu0 0.0
        %2170 = vmatpush2.xpose.msra.mxu0 0.0
        %2171 = vmatprep.subr.mxu0 0.0
        %2172 = vmatpush2.xpose.msra.mxu0 0.0
        %2173 = vmatprep.subr.mxu0 0.0
        %2174 = vmatpush2.xpose.msra.mxu0 0.0
        %2175 = vmatprep.subr.mxu0 0.0
        %2176 = vmatpush2.xpose.msra.mxu0 0.0
        %2177 = vmatprep.subr.mxu0 0.0
        %2178 = vmatpush2.xpose.msra.mxu0 0.0
        %2179 = vmatprep.mubr.f32.mxu0 0.0
        %2180 = vmatmul.mubr.f32.gmra.mxu0 %v2110
        %v2181 = vpop.f32.mrf.mxu0
        %v2182 = vadd.f32 0.0, %v2181
        %v2183 = vpop.f32.mrf.mxu0
        %2184 = vdwg.mxu0
        %v2186 = vsel %vm2032, %v1470, 0
        %v2189 = vsel %vm2032, %v1679, 0
        %2191 = vmatprep.subr.mxu0 0.0
        %2192 = vmatpush1.xpose.msra.mxu0 0.0
        %2193 = vmatprep.subr.mxu0 0.0
        %2194 = vmatpush1.xpose.msra.mxu0 0.0
        %2195 = vmatprep.subr.mxu0 0.0
        %2196 = vmatpush1.xpose.msra.mxu0 0.0
        %2197 = vmatprep.subr.mxu0 0.0
        %2198 = vmatpush1.xpose.msra.mxu0 0.0
        %2199 = vmatprep.subr.mxu0 0.0
        %2200 = vmatpush1.xpose.msra.mxu0 0.0
        %2201 = vmatprep.subr.mxu0 0.0
        %2202 = vmatpush1.xpose.msra.mxu0 0.0
        %2203 = vmatprep.subr.mxu0 0.0
        %2204 = vmatpush1.xpose.msra.mxu0 0.0
        %2205 = vmatprep.subr.mxu0 0.0
        %2206 = vmatpush1.xpose.msra.mxu0 0.0
        %2207 = vmatprep.subr.mxu0 0.0
        %2208 = vmatpush1.xpose.msra.mxu0 0.0
        %2209 = vmatprep.subr.mxu0 0.0
        %2210 = vmatpush1.xpose.msra.mxu0 0.0
        %2211 = vmatprep.subr.mxu0 0.0
        %2212 = vmatpush1.xpose.msra.mxu0 0.0
        %2213 = vmatprep.subr.mxu0 0.0
        %2214 = vmatpush1.xpose.msra.mxu0 0.0
        %2215 = vmatprep.subr.mxu0 0.0
        %2216 = vmatpush1.xpose.msra.mxu0 0.0
        %2217 = vmatprep.subr.mxu0 0.0
        %2218 = vmatpush1.xpose.msra.mxu0 0.0
        %2219 = vmatprep.subr.mxu0 0.0
        %2220 = vmatpush1.xpose.msra.mxu0 0.0
        %2221 = vmatprep.subr.mxu0 0.0
        %2222 = vmatpush1.xpose.msra.mxu0 %v2189
        %2223 = vmatprep.subr.mxu0 0.0
        %2224 = vmatpush2.xpose.msra.mxu0 0.0
        %2225 = vmatprep.subr.mxu0 0.0
        %2226 = vmatpush2.xpose.msra.mxu0 0.0
        %2227 = vmatprep.subr.mxu0 0.0
        %2228 = vmatpush2.xpose.msra.mxu0 0.0
        %2229 = vmatprep.subr.mxu0 0.0
        %2230 = vmatpush2.xpose.msra.mxu0 0.0
        %2231 = vmatprep.subr.mxu0 0.0
        %2232 = vmatpush2.xpose.msra.mxu0 0.0
        %2233 = vmatprep.subr.mxu0 0.0
        %2234 = vmatpush2.xpose.msra.mxu0 0.0
        %2235 = vmatprep.subr.mxu0 0.0
        %2236 = vmatpush2.xpose.msra.mxu0 0.0
        %2237 = vmatprep.subr.mxu0 0.0
        %2238 = vmatpush2.xpose.msra.mxu0 0.0
        %2239 = vmatprep.subr.mxu0 0.0
        %2240 = vmatpush2.xpose.msra.mxu0 0.0
        %2241 = vmatprep.subr.mxu0 0.0
        %2242 = vmatpush2.xpose.msra.mxu0 0.0
        %2243 = vmatprep.subr.mxu0 0.0
        %2244 = vmatpush2.xpose.msra.mxu0 0.0
        %2245 = vmatprep.subr.mxu0 0.0
        %2246 = vmatpush2.xpose.msra.mxu0 0.0
        %2247 = vmatprep.subr.mxu0 0.0
        %2248 = vmatpush2.xpose.msra.mxu0 0.0
        %2249 = vmatprep.subr.mxu0 0.0
        %2250 = vmatpush2.xpose.msra.mxu0 0.0
        %2251 = vmatprep.subr.mxu0 0.0
        %2252 = vmatpush2.xpose.msra.mxu0 0.0
        %2253 = vmatprep.subr.mxu0 0.0
        %2254 = vmatpush2.xpose.msra.mxu0 0.0
        %2255 = vmatprep.mubr.f32.mxu0 0.0
        %2256 = vmatmul.mubr.f32.gmra.mxu0 %v2186
        %v2257 = vpop.f32.mrf.mxu0
        %v2258 = vadd.f32 0.0, %v2257
        %v2259 = vpop.f32.mrf.mxu0
        %2260 = vdwg.mxu0
        %v2262 = vsel %vm2032, %v1471, 0
        %v2265 = vsel %vm2032, %v1749, 0
        %2267 = vmatprep.subr.mxu0 0.0
        %2268 = vmatpush1.xpose.msra.mxu0 0.0
        %2269 = vmatprep.subr.mxu0 0.0
        %2270 = vmatpush1.xpose.msra.mxu0 0.0
        %2271 = vmatprep.subr.mxu0 0.0
        %2272 = vmatpush1.xpose.msra.mxu0 0.0
        %2273 = vmatprep.subr.mxu0 0.0
        %2274 = vmatpush1.xpose.msra.mxu0 0.0
        %2275 = vmatprep.subr.mxu0 0.0
        %2276 = vmatpush1.xpose.msra.mxu0 0.0
        %2277 = vmatprep.subr.mxu0 0.0
        %2278 = vmatpush1.xpose.msra.mxu0 0.0
        %2279 = vmatprep.subr.mxu0 0.0
        %2280 = vmatpush1.xpose.msra.mxu0 0.0
        %2281 = vmatprep.subr.mxu0 0.0
        %2282 = vmatpush1.xpose.msra.mxu0 0.0
        %2283 = vmatprep.subr.mxu0 0.0
        %2284 = vmatpush1.xpose.msra.mxu0 0.0
        %2285 = vmatprep.subr.mxu0 0.0
        %2286 = vmatpush1.xpose.msra.mxu0 0.0
        %2287 = vmatprep.subr.mxu0 0.0
        %2288 = vmatpush1.xpose.msra.mxu0 0.0
        %2289 = vmatprep.subr.mxu0 0.0
        %2290 = vmatpush1.xpose.msra.mxu0 0.0
        %2291 = vmatprep.subr.mxu0 0.0
        %2292 = vmatpush1.xpose.msra.mxu0 0.0
        %2293 = vmatprep.subr.mxu0 0.0
        %2294 = vmatpush1.xpose.msra.mxu0 0.0
        %2295 = vmatprep.subr.mxu0 0.0
        %2296 = vmatpush1.xpose.msra.mxu0 0.0
        %2297 = vmatprep.subr.mxu0 0.0
        %2298 = vmatpush1.xpose.msra.mxu0 %v2265
        %2299 = vmatprep.subr.mxu0 0.0
        %2300 = vmatpush2.xpose.msra.mxu0 0.0
        %2301 = vmatprep.subr.mxu0 0.0
        %2302 = vmatpush2.xpose.msra.mxu0 0.0
        %2303 = vmatprep.subr.mxu0 0.0
        %2304 = vmatpush2.xpose.msra.mxu0 0.0
        %2305 = vmatprep.subr.mxu0 0.0
        %2306 = vmatpush2.xpose.msra.mxu0 0.0
        %2307 = vmatprep.subr.mxu0 0.0
        %2308 = vmatpush2.xpose.msra.mxu0 0.0
        %2309 = vmatprep.subr.mxu0 0.0
        %2310 = vmatpush2.xpose.msra.mxu0 0.0
        %2311 = vmatprep.subr.mxu0 0.0
        %2312 = vmatpush2.xpose.msra.mxu0 0.0
        %2313 = vmatprep.subr.mxu0 0.0
        %2314 = vmatpush2.xpose.msra.mxu0 0.0
        %2315 = vmatprep.subr.mxu0 0.0
        %2316 = vmatpush2.xpose.msra.mxu0 0.0
        %2317 = vmatprep.subr.mxu0 0.0
        %2318 = vmatpush2.xpose.msra.mxu0 0.0
        %2319 = vmatprep.subr.mxu0 0.0
        %2320 = vmatpush2.xpose.msra.mxu0 0.0
        %2321 = vmatprep.subr.mxu0 0.0
        %2322 = vmatpush2.xpose.msra.mxu0 0.0
        %2323 = vmatprep.subr.mxu0 0.0
        %2324 = vmatpush2.xpose.msra.mxu0 0.0
        %2325 = vmatprep.subr.mxu0 0.0
        %2326 = vmatpush2.xpose.msra.mxu0 0.0
        %2327 = vmatprep.subr.mxu0 0.0
        %2328 = vmatpush2.xpose.msra.mxu0 0.0
        %2329 = vmatprep.subr.mxu0 0.0
        %2330 = vmatpush2.xpose.msra.mxu0 0.0
        %2331 = vmatprep.mubr.f32.mxu0 0.0
        %2332 = vmatmul.mubr.f32.gmra.mxu0 %v2262
        %v2333 = vpop.f32.mrf.mxu0
        %v2334 = vadd.f32 0.0, %v2333
        %v2335 = vpop.f32.mrf.mxu0
        %2336 = vdwg.mxu0
        %v2337 = vsel %vm2032, %v2106, -inf
        %2338 = vmax.xlane.f32.xlu0 %v2337
        %v2339 = vpop.xlane.xlu0 %2338
        %v2340 = vsel %vm2032, %v2182, -inf
        %2341 = vmax.xlane.f32.xlu0 %v2340
        %v2342 = vpop.xlane.xlu0 %2341
        %v2343 = vsel %vm2032, %v2258, -inf
        %2344 = vmax.xlane.f32.xlu0 %v2343
        %v2345 = vpop.xlane.xlu0 %2344
        %v2346 = vsel %vm2032, %v2334, -inf
        %2347 = vmax.xlane.f32.xlu0 %v2346
        %v2348 = vpop.xlane.xlu0 %2347
        %v2349 = vsub.f32 %v2106, %v2339
        %v2350 = vsub.f32 %v2182, %v2342
        %v2351 = vsub.f32 %v2258, %v2345
        %v2352 = vsub.f32 %v2334, %v2348
        %v2353 = vmul.f32 %v2349, 1.442695
        %v2354 = vpow.pop %v2353
        %v2355 = vmul.f32 %v2350, 1.442695
        %v2356 = vpow.pop %v2355
        %v2357 = vmul.f32 %v2351, 1.442695
        %v2358 = vpow.pop %v2357
        %v2359 = vmul.f32 %v2352, 1.442695
        %v2360 = vpow.pop %v2359
        %v2361 = vsel %vm2032, %v2354, 0.0
        %2362 = vadd.xlane.f32.xlu0 %v2361
        %v2363 = vpop.xlane.xlu0 %2362
        %v2364 = vsel %vm2032, %v2356, 0.0
        %2365 = vadd.xlane.f32.xlu0 %v2364
        %v2366 = vpop.xlane.xlu0 %2365
        %v2367 = vsel %vm2032, %v2358, 0.0
        %2368 = vadd.xlane.f32.xlu0 %v2367
        %v2369 = vpop.xlane.xlu0 %2368
        %v2370 = vsel %vm2032, %v2360, 0.0
        %2371 = vadd.xlane.f32.xlu0 %v2370
        %v2372 = vpop.xlane.xlu0 %2371
        %v2373 = vrcp.pop %v2363
        %v2374 = vrcp.pop %v2366
        %v2375 = vrcp.pop %v2369
        %v2376 = vrcp.pop %v2372
        %v2377 = vmul.f32 %v2354, %v2373
        %v2378 = vmul.f32 %v2356, %v2374
        %v2379 = vmul.f32 %v2358, %v2375
        %v2380 = vmul.f32 %v2360, %v2376
        %v2382 = vsel %vm2032, %v2377, 0
        %2384 = vmatprep.subr.mxu0 0.0
        %2385 = vmatpush1.msra.mxu0 0.0
        %2386 = vmatprep.subr.mxu0 0.0
        %2387 = vmatpush1.msra.mxu0 0.0
        %2388 = vmatprep.subr.mxu0 0.0
        %2389 = vmatpush1.msra.mxu0 0.0
        %2390 = vmatprep.subr.mxu0 0.0
        %2391 = vmatpush1.msra.mxu0 0.0
        %2392 = vmatprep.subr.mxu0 0.0
        %2393 = vmatpush1.msra.mxu0 0.0
        %2394 = vmatprep.subr.mxu0 0.0
        %2395 = vmatpush1.msra.mxu0 0.0
        %2396 = vmatprep.subr.mxu0 0.0
        %2397 = vmatpush1.msra.mxu0 0.0
        %2398 = vmatprep.subr.mxu0 0.0
        %2399 = vmatpush1.msra.mxu0 0.0
        %2400 = vmatprep.subr.mxu0 0.0
        %2401 = vmatpush1.msra.mxu0 0.0
        %2402 = vmatprep.subr.mxu0 0.0
        %2403 = vmatpush1.msra.mxu0 0.0
        %2404 = vmatprep.subr.mxu0 0.0
        %2405 = vmatpush1.msra.mxu0 0.0
        %2406 = vmatprep.subr.mxu0 0.0
        %2407 = vmatpush1.msra.mxu0 0.0
        %2408 = vmatprep.subr.mxu0 0.0
        %2409 = vmatpush1.msra.mxu0 0.0
        %2410 = vmatprep.subr.mxu0 0.0
        %2411 = vmatpush1.msra.mxu0 0.0
        %2412 = vmatprep.subr.mxu0 0.0
        %2413 = vmatpush1.msra.mxu0 0.0
        %2414 = vmatprep.subr.mxu0 0.0
        %2415 = vmatpush1.msra.mxu0 %v1819
        %2416 = vmatprep.subr.mxu0 0.0
        %2417 = vmatpush2.msra.mxu0 0.0
        %2418 = vmatprep.subr.mxu0 0.0
        %2419 = vmatpush2.msra.mxu0 0.0
        %2420 = vmatprep.subr.mxu0 0.0
        %2421 = vmatpush2.msra.mxu0 0.0
        %2422 = vmatprep.subr.mxu0 0.0
        %2423 = vmatpush2.msra.mxu0 0.0
        %2424 = vmatprep.subr.mxu0 0.0
        %2425 = vmatpush2.msra.mxu0 0.0
        %2426 = vmatprep.subr.mxu0 0.0
        %2427 = vmatpush2.msra.mxu0 0.0
        %2428 = vmatprep.subr.mxu0 0.0
        %2429 = vmatpush2.msra.mxu0 0.0
        %2430 = vmatprep.subr.mxu0 0.0
        %2431 = vmatpush2.msra.mxu0 0.0
        %2432 = vmatprep.subr.mxu0 0.0
        %2433 = vmatpush2.msra.mxu0 0.0
        %2434 = vmatprep.subr.mxu0 0.0
        %2435 = vmatpush2.msra.mxu0 0.0
        %2436 = vmatprep.subr.mxu0 0.0
        %2437 = vmatpush2.msra.mxu0 0.0
        %2438 = vmatprep.subr.mxu0 0.0
        %2439 = vmatpush2.msra.mxu0 0.0
        %2440 = vmatprep.subr.mxu0 0.0
        %2441 = vmatpush2.msra.mxu0 0.0
        %2442 = vmatprep.subr.mxu0 0.0
        %2443 = vmatpush2.msra.mxu0 0.0
        %2444 = vmatprep.subr.mxu0 0.0
        %2445 = vmatpush2.msra.mxu0 0.0
        %2446 = vmatprep.subr.mxu0 0.0
        %2447 = vmatpush2.msra.mxu0 0.0
        %2448 = vmatprep.mubr.f32.mxu0 0.0
        %2449 = vmatmul.mubr.f32.gmra.mxu0 %v2382
        %v2450 = vpop.f32.mrf.mxu0
        %v2451 = vadd.f32 0.0, %v2450
        %v2452 = vpop.f32.mrf.mxu0
        %2453 = vdwg.mxu0
        %v2455 = vsel %vm2032, %v2378, 0
        %2457 = vmatprep.subr.mxu0 0.0
        %2458 = vmatpush1.msra.mxu0 0.0
        %2459 = vmatprep.subr.mxu0 0.0
        %2460 = vmatpush1.msra.mxu0 0.0
        %2461 = vmatprep.subr.mxu0 0.0
        %2462 = vmatpush1.msra.mxu0 0.0
        %2463 = vmatprep.subr.mxu0 0.0
        %2464 = vmatpush1.msra.mxu0 0.0
        %2465 = vmatprep.subr.mxu0 0.0
        %2466 = vmatpush1.msra.mxu0 0.0
        %2467 = vmatprep.subr.mxu0 0.0
        %2468 = vmatpush1.msra.mxu0 0.0
        %2469 = vmatprep.subr.mxu0 0.0
        %2470 = vmatpush1.msra.mxu0 0.0
        %2471 = vmatprep.subr.mxu0 0.0
        %2472 = vmatpush1.msra.mxu0 0.0
        %2473 = vmatprep.subr.mxu0 0.0
        %2474 = vmatpush1.msra.mxu0 0.0
        %2475 = vmatprep.subr.mxu0 0.0
        %2476 = vmatpush1.msra.mxu0 0.0
        %2477 = vmatprep.subr.mxu0 0.0
        %2478 = vmatpush1.msra.mxu0 0.0
        %2479 = vmatprep.subr.mxu0 0.0
        %2480 = vmatpush1.msra.mxu0 0.0
        %2481 = vmatprep.subr.mxu0 0.0
        %2482 = vmatpush1.msra.mxu0 0.0
        %2483 = vmatprep.subr.mxu0 0.0
        %2484 = vmatpush1.msra.mxu0 0.0
        %2485 = vmatprep.subr.mxu0 0.0
        %2486 = vmatpush1.msra.mxu0 0.0
        %2487 = vmatprep.subr.mxu0 0.0
        %2488 = vmatpush1.msra.mxu0 %v1889
        %2489 = vmatprep.subr.mxu0 0.0
        %2490 = vmatpush2.msra.mxu0 0.0
        %2491 = vmatprep.subr.mxu0 0.0
        %2492 = vmatpush2.msra.mxu0 0.0
        %2493 = vmatprep.subr.mxu0 0.0
        %2494 = vmatpush2.msra.mxu0 0.0
        %2495 = vmatprep.subr.mxu0 0.0
        %2496 = vmatpush2.msra.mxu0 0.0
        %2497 = vmatprep.subr.mxu0 0.0
        %2498 = vmatpush2.msra.mxu0 0.0
        %2499 = vmatprep.subr.mxu0 0.0
        %2500 = vmatpush2.msra.mxu0 0.0
        %2501 = vmatprep.subr.mxu0 0.0
        %2502 = vmatpush2.msra.mxu0 0.0
        %2503 = vmatprep.subr.mxu0 0.0
        %2504 = vmatpush2.msra.mxu0 0.0
        %2505 = vmatprep.subr.mxu0 0.0
        %2506 = vmatpush2.msra.mxu0 0.0
        %2507 = vmatprep.subr.mxu0 0.0
        %2508 = vmatpush2.msra.mxu0 0.0
        %2509 = vmatprep.subr.mxu0 0.0
        %2510 = vmatpush2.msra.mxu0 0.0
        %2511 = vmatprep.subr.mxu0 0.0
        %2512 = vmatpush2.msra.mxu0 0.0
        %2513 = vmatprep.subr.mxu0 0.0
        %2514 = vmatpush2.msra.mxu0 0.0
        %2515 = vmatprep.subr.mxu0 0.0
        %2516 = vmatpush2.msra.mxu0 0.0
        %2517 = vmatprep.subr.mxu0 0.0
        %2518 = vmatpush2.msra.mxu0 0.0
        %2519 = vmatprep.subr.mxu0 0.0
        %2520 = vmatpush2.msra.mxu0 0.0
        %2521 = vmatprep.mubr.f32.mxu0 0.0
        %2522 = vmatmul.mubr.f32.gmra.mxu0 %v2455
        %v2523 = vpop.f32.mrf.mxu0
        %v2524 = vadd.f32 0.0, %v2523
        %v2525 = vpop.f32.mrf.mxu0
        %2526 = vdwg.mxu0
        %v2528 = vsel %vm2032, %v2379, 0
        %2530 = vmatprep.subr.mxu0 0.0
        %2531 = vmatpush1.msra.mxu0 0.0
        %2532 = vmatprep.subr.mxu0 0.0
        %2533 = vmatpush1.msra.mxu0 0.0
        %2534 = vmatprep.subr.mxu0 0.0
        %2535 = vmatpush1.msra.mxu0 0.0
        %2536 = vmatprep.subr.mxu0 0.0
        %2537 = vmatpush1.msra.mxu0 0.0
        %2538 = vmatprep.subr.mxu0 0.0
        %2539 = vmatpush1.msra.mxu0 0.0
        %2540 = vmatprep.subr.mxu0 0.0
        %2541 = vmatpush1.msra.mxu0 0.0
        %2542 = vmatprep.subr.mxu0 0.0
        %2543 = vmatpush1.msra.mxu0 0.0
        %2544 = vmatprep.subr.mxu0 0.0
        %2545 = vmatpush1.msra.mxu0 0.0
        %2546 = vmatprep.subr.mxu0 0.0
        %2547 = vmatpush1.msra.mxu0 0.0
        %2548 = vmatprep.subr.mxu0 0.0
        %2549 = vmatpush1.msra.mxu0 0.0
        %2550 = vmatprep.subr.mxu0 0.0
        %2551 = vmatpush1.msra.mxu0 0.0
        %2552 = vmatprep.subr.mxu0 0.0
        %2553 = vmatpush1.msra.mxu0 0.0
        %2554 = vmatprep.subr.mxu0 0.0
        %2555 = vmatpush1.msra.mxu0 0.0
        %2556 = vmatprep.subr.mxu0 0.0
        %2557 = vmatpush1.msra.mxu0 0.0
        %2558 = vmatprep.subr.mxu0 0.0
        %2559 = vmatpush1.msra.mxu0 0.0
        %2560 = vmatprep.subr.mxu0 0.0
        %2561 = vmatpush1.msra.mxu0 %v1959
        %2562 = vmatprep.subr.mxu0 0.0
        %2563 = vmatpush2.msra.mxu0 0.0
        %2564 = vmatprep.subr.mxu0 0.0
        %2565 = vmatpush2.msra.mxu0 0.0
        %2566 = vmatprep.subr.mxu0 0.0
        %2567 = vmatpush2.msra.mxu0 0.0
        %2568 = vmatprep.subr.mxu0 0.0
        %2569 = vmatpush2.msra.mxu0 0.0
        %2570 = vmatprep.subr.mxu0 0.0
        %2571 = vmatpush2.msra.mxu0 0.0
        %2572 = vmatprep.subr.mxu0 0.0
        %2573 = vmatpush2.msra.mxu0 0.0
        %2574 = vmatprep.subr.mxu0 0.0
        %2575 = vmatpush2.msra.mxu0 0.0
        %2576 = vmatprep.subr.mxu0 0.0
        %2577 = vmatpush2.msra.mxu0 0.0
        %2578 = vmatprep.subr.mxu0 0.0
        %2579 = vmatpush2.msra.mxu0 0.0
        %2580 = vmatprep.subr.mxu0 0.0
        %2581 = vmatpush2.msra.mxu0 0.0
        %2582 = vmatprep.subr.mxu0 0.0
        %2583 = vmatpush2.msra.mxu0 0.0
        %2584 = vmatprep.subr.mxu0 0.0
        %2585 = vmatpush2.msra.mxu0 0.0
        %2586 = vmatprep.subr.mxu0 0.0
        %2587 = vmatpush2.msra.mxu0 0.0
        %2588 = vmatprep.subr.mxu0 0.0
        %2589 = vmatpush2.msra.mxu0 0.0
        %2590 = vmatprep.subr.mxu0 0.0
        %2591 = vmatpush2.msra.mxu0 0.0
        %2592 = vmatprep.subr.mxu0 0.0
        %2593 = vmatpush2.msra.mxu0 0.0
        %2594 = vmatprep.mubr.f32.mxu0 0.0
        %2595 = vmatmul.mubr.f32.gmra.mxu0 %v2528
        %v2596 = vpop.f32.mrf.mxu0
        %v2597 = vadd.f32 0.0, %v2596
        %v2598 = vpop.f32.mrf.mxu0
        %2599 = vdwg.mxu0
        %v2601 = vsel %vm2032, %v2380, 0
        %2603 = vmatprep.subr.mxu0 0.0
        %2604 = vmatpush1.msra.mxu0 0.0
        %2605 = vmatprep.subr.mxu0 0.0
        %2606 = vmatpush1.msra.mxu0 0.0
        %2607 = vmatprep.subr.mxu0 0.0
        %2608 = vmatpush1.msra.mxu0 0.0
        %2609 = vmatprep.subr.mxu0 0.0
        %2610 = vmatpush1.msra.mxu0 0.0
        %2611 = vmatprep.subr.mxu0 0.0
        %2612 = vmatpush1.msra.mxu0 0.0
        %2613 = vmatprep.subr.mxu0 0.0
        %2614 = vmatpush1.msra.mxu0 0.0
        %2615 = vmatprep.subr.mxu0 0.0
        %2616 = vmatpush1.msra.mxu0 0.0
        %2617 = vmatprep.subr.mxu0 0.0
        %2618 = vmatpush1.msra.mxu0 0.0
        %2619 = vmatprep.subr.mxu0 0.0
        %2620 = vmatpush1.msra.mxu0 0.0
        %2621 = vmatprep.subr.mxu0 0.0
        %2622 = vmatpush1.msra.mxu0 0.0
        %2623 = vmatprep.subr.mxu0 0.0
        %2624 = vmatpush1.msra.mxu0 0.0
        %2625 = vmatprep.subr.mxu0 0.0
        %2626 = vmatpush1.msra.mxu0 0.0
        %2627 = vmatprep.subr.mxu0 0.0
        %2628 = vmatpush1.msra.mxu0 0.0
        %2629 = vmatprep.subr.mxu0 0.0
        %2630 = vmatpush1.msra.mxu0 0.0
        %2631 = vmatprep.subr.mxu0 0.0
        %2632 = vmatpush1.msra.mxu0 0.0
        %2633 = vmatprep.subr.mxu0 0.0
        %2634 = vmatpush1.msra.mxu0 %v2029
        %2635 = vmatprep.subr.mxu0 0.0
        %2636 = vmatpush2.msra.mxu0 0.0
        %2637 = vmatprep.subr.mxu0 0.0
        %2638 = vmatpush2.msra.mxu0 0.0
        %2639 = vmatprep.subr.mxu0 0.0
        %2640 = vmatpush2.msra.mxu0 0.0
        %2641 = vmatprep.subr.mxu0 0.0
        %2642 = vmatpush2.msra.mxu0 0.0
        %2643 = vmatprep.subr.mxu0 0.0
        %2644 = vmatpush2.msra.mxu0 0.0
        %2645 = vmatprep.subr.mxu0 0.0
        %2646 = vmatpush2.msra.mxu0 0.0
        %2647 = vmatprep.subr.mxu0 0.0
        %2648 = vmatpush2.msra.mxu0 0.0
        %2649 = vmatprep.subr.mxu0 0.0
        %2650 = vmatpush2.msra.mxu0 0.0
        %2651 = vmatprep.subr.mxu0 0.0
        %2652 = vmatpush2.msra.mxu0 0.0
        %2653 = vmatprep.subr.mxu0 0.0
        %2654 = vmatpush2.msra.mxu0 0.0
        %2655 = vmatprep.subr.mxu0 0.0
        %2656 = vmatpush2.msra.mxu0 0.0
        %2657 = vmatprep.subr.mxu0 0.0
        %2658 = vmatpush2.msra.mxu0 0.0
        %2659 = vmatprep.subr.mxu0 0.0
        %2660 = vmatpush2.msra.mxu0 0.0
        %2661 = vmatprep.subr.mxu0 0.0
        %2662 = vmatpush2.msra.mxu0 0.0
        %2663 = vmatprep.subr.mxu0 0.0
        %2664 = vmatpush2.msra.mxu0 0.0
        %2665 = vmatprep.subr.mxu0 0.0
        %2666 = vmatpush2.msra.mxu0 0.0
        %2667 = vmatprep.mubr.f32.mxu0 0.0
        %2668 = vmatmul.mubr.f32.gmra.mxu0 %v2601
        %v2669 = vpop.f32.mrf.mxu0
        %v2670 = vadd.f32 0.0, %v2669
        %v2671 = vpop.f32.mrf.mxu0
        %2672 = vdwg.mxu0
        %v2674 = vsel %vm2032, %v2451, 0
        %2676 = vmatprep.subr.mxu0 0.0
        %2677 = vmatpush1.msra.mxu0 0.0
        %2678 = vmatprep.subr.mxu0 0.0
        %2679 = vmatpush1.msra.mxu0 0.0
        %2680 = vmatprep.subr.mxu0 0.0
        %2681 = vmatpush1.msra.mxu0 0.0
        %2682 = vmatprep.subr.mxu0 0.0
        %2683 = vmatpush1.msra.mxu0 0.0
        %2684 = vmatprep.subr.mxu0 0.0
        %2685 = vmatpush1.msra.mxu0 0.0
        %2686 = vmatprep.subr.mxu0 0.0
        %2687 = vmatpush1.msra.mxu0 0.0
        %2688 = vmatprep.subr.mxu0 0.0
        %2689 = vmatpush1.msra.mxu0 0.0
        %2690 = vmatprep.subr.mxu0 0.0
        %2691 = vmatpush1.msra.mxu0 0.0
        %2692 = vmatprep.subr.mxu0 0.0
        %2693 = vmatpush1.msra.mxu0 0.0
        %2694 = vmatprep.subr.mxu0 0.0
        %2695 = vmatpush1.msra.mxu0 0.0
        %2696 = vmatprep.subr.mxu0 0.0
        %2697 = vmatpush1.msra.mxu0 0.0
        %2698 = vmatprep.subr.mxu0 0.0
        %2699 = vmatpush1.msra.mxu0 0.0
        %2700 = vmatprep.subr.mxu0 0.0
        %2701 = vmatpush1.msra.mxu0 0.0
        %2702 = vmatprep.subr.mxu0 0.0
        %2703 = vmatpush1.msra.mxu0 0.0
        %2704 = vmatprep.subr.mxu0 0.0
        %2705 = vmatpush1.msra.mxu0 0.0
        %2706 = vmatprep.subr.mxu0 0.0
        %2707 = vmatpush1.msra.mxu0 %v1104
        %2708 = vmatprep.subr.mxu0 0.0
        %2709 = vmatpush2.msra.mxu0 0.0
        %2710 = vmatprep.subr.mxu0 0.0
        %2711 = vmatpush2.msra.mxu0 0.0
        %2712 = vmatprep.subr.mxu0 0.0
        %2713 = vmatpush2.msra.mxu0 0.0
        %2714 = vmatprep.subr.mxu0 0.0
        %2715 = vmatpush2.msra.mxu0 0.0
        %2716 = vmatprep.subr.mxu0 0.0
        %2717 = vmatpush2.msra.mxu0 0.0
        %2718 = vmatprep.subr.mxu0 0.0
        %2719 = vmatpush2.msra.mxu0 0.0
        %2720 = vmatprep.subr.mxu0 0.0
        %2721 = vmatpush2.msra.mxu0 0.0
        %2722 = vmatprep.subr.mxu0 0.0
        %2723 = vmatpush2.msra.mxu0 0.0
        %2724 = vmatprep.subr.mxu0 0.0
        %2725 = vmatpush2.msra.mxu0 0.0
        %2726 = vmatprep.subr.mxu0 0.0
        %2727 = vmatpush2.msra.mxu0 0.0
        %2728 = vmatprep.subr.mxu0 0.0
        %2729 = vmatpush2.msra.mxu0 0.0
        %2730 = vmatprep.subr.mxu0 0.0
        %2731 = vmatpush2.msra.mxu0 0.0
        %2732 = vmatprep.subr.mxu0 0.0
        %2733 = vmatpush2.msra.mxu0 0.0
        %2734 = vmatprep.subr.mxu0 0.0
        %2735 = vmatpush2.msra.mxu0 0.0
        %2736 = vmatprep.subr.mxu0 0.0
        %2737 = vmatpush2.msra.mxu0 0.0
        %2738 = vmatprep.subr.mxu0 0.0
        %2739 = vmatpush2.msra.mxu0 0.0
        %2740 = vmatprep.mubr.f32.mxu0 0.0
        %2741 = vmatmul.mubr.f32.gmra.mxu0 %v2674
        %v2742 = vpop.f32.mrf.mxu0
        %v2743 = vadd.f32 0.0, %v2742
        %v2744 = vpop.f32.mrf.mxu0
        %2745 = vdwg.mxu0
        %v2747 = vsel %vm2032, %v2524, 0
        %2749 = vmatprep.subr.mxu0 0.0
        %2750 = vmatpush1.msra.mxu0 0.0
        %2751 = vmatprep.subr.mxu0 0.0
        %2752 = vmatpush1.msra.mxu0 0.0
        %2753 = vmatprep.subr.mxu0 0.0
        %2754 = vmatpush1.msra.mxu0 0.0
        %2755 = vmatprep.subr.mxu0 0.0
        %2756 = vmatpush1.msra.mxu0 0.0
        %2757 = vmatprep.subr.mxu0 0.0
        %2758 = vmatpush1.msra.mxu0 0.0
        %2759 = vmatprep.subr.mxu0 0.0
        %2760 = vmatpush1.msra.mxu0 0.0
        %2761 = vmatprep.subr.mxu0 0.0
        %2762 = vmatpush1.msra.mxu0 0.0
        %2763 = vmatprep.subr.mxu0 0.0
        %2764 = vmatpush1.msra.mxu0 0.0
        %2765 = vmatprep.subr.mxu0 0.0
        %2766 = vmatpush1.msra.mxu0 0.0
        %2767 = vmatprep.subr.mxu0 0.0
        %2768 = vmatpush1.msra.mxu0 0.0
        %2769 = vmatprep.subr.mxu0 0.0
        %2770 = vmatpush1.msra.mxu0 0.0
        %2771 = vmatprep.subr.mxu0 0.0
        %2772 = vmatpush1.msra.mxu0 0.0
        %2773 = vmatprep.subr.mxu0 0.0
        %2774 = vmatpush1.msra.mxu0 0.0
        %2775 = vmatprep.subr.mxu0 0.0
        %2776 = vmatpush1.msra.mxu0 0.0
        %2777 = vmatprep.subr.mxu0 0.0
        %2778 = vmatpush1.msra.mxu0 0.0
        %2779 = vmatprep.subr.mxu0 0.0
        %2780 = vmatpush1.msra.mxu0 %v1105
        %2781 = vmatprep.subr.mxu0 0.0
        %2782 = vmatpush2.msra.mxu0 0.0
        %2783 = vmatprep.subr.mxu0 0.0
        %2784 = vmatpush2.msra.mxu0 0.0
        %2785 = vmatprep.subr.mxu0 0.0
        %2786 = vmatpush2.msra.mxu0 0.0
        %2787 = vmatprep.subr.mxu0 0.0
        %2788 = vmatpush2.msra.mxu0 0.0
        %2789 = vmatprep.subr.mxu0 0.0
        %2790 = vmatpush2.msra.mxu0 0.0
        %2791 = vmatprep.subr.mxu0 0.0
        %2792 = vmatpush2.msra.mxu0 0.0
        %2793 = vmatprep.subr.mxu0 0.0
        %2794 = vmatpush2.msra.mxu0 0.0
        %2795 = vmatprep.subr.mxu0 0.0
        %2796 = vmatpush2.msra.mxu0 0.0
        %2797 = vmatprep.subr.mxu0 0.0
        %2798 = vmatpush2.msra.mxu0 0.0
        %2799 = vmatprep.subr.mxu0 0.0
        %2800 = vmatpush2.msra.mxu0 0.0
        %2801 = vmatprep.subr.mxu0 0.0
        %2802 = vmatpush2.msra.mxu0 0.0
        %2803 = vmatprep.subr.mxu0 0.0
        %2804 = vmatpush2.msra.mxu0 0.0
        %2805 = vmatprep.subr.mxu0 0.0
        %2806 = vmatpush2.msra.mxu0 0.0
        %2807 = vmatprep.subr.mxu0 0.0
        %2808 = vmatpush2.msra.mxu0 0.0
        %2809 = vmatprep.subr.mxu0 0.0
        %2810 = vmatpush2.msra.mxu0 0.0
        %2811 = vmatprep.subr.mxu0 0.0
        %2812 = vmatpush2.msra.mxu0 0.0
        %2813 = vmatprep.mubr.f32.mxu0 0.0
        %2814 = vmatmul.mubr.f32.gmra.mxu0 %v2747
        %v2815 = vpop.f32.mrf.mxu0
        %v2816 = vadd.f32 0.0, %v2815
        %v2817 = vpop.f32.mrf.mxu0
        %2818 = vdwg.mxu0
        %v2820 = vsel %vm2032, %v2597, 0
        %2822 = vmatprep.subr.mxu0 0.0
        %2823 = vmatpush1.msra.mxu0 0.0
        %2824 = vmatprep.subr.mxu0 0.0
        %2825 = vmatpush1.msra.mxu0 0.0
        %2826 = vmatprep.subr.mxu0 0.0
        %2827 = vmatpush1.msra.mxu0 0.0
        %2828 = vmatprep.subr.mxu0 0.0
        %2829 = vmatpush1.msra.mxu0 0.0
        %2830 = vmatprep.subr.mxu0 0.0
        %2831 = vmatpush1.msra.mxu0 0.0
        %2832 = vmatprep.subr.mxu0 0.0
        %2833 = vmatpush1.msra.mxu0 0.0
        %2834 = vmatprep.subr.mxu0 0.0
        %2835 = vmatpush1.msra.mxu0 0.0
        %2836 = vmatprep.subr.mxu0 0.0
        %2837 = vmatpush1.msra.mxu0 0.0
        %2838 = vmatprep.subr.mxu0 0.0
        %2839 = vmatpush1.msra.mxu0 0.0
        %2840 = vmatprep.subr.mxu0 0.0
        %2841 = vmatpush1.msra.mxu0 0.0
        %2842 = vmatprep.subr.mxu0 0.0
        %2843 = vmatpush1.msra.mxu0 0.0
        %2844 = vmatprep.subr.mxu0 0.0
        %2845 = vmatpush1.msra.mxu0 0.0
        %2846 = vmatprep.subr.mxu0 0.0
        %2847 = vmatpush1.msra.mxu0 0.0
        %2848 = vmatprep.subr.mxu0 0.0
        %2849 = vmatpush1.msra.mxu0 0.0
        %2850 = vmatprep.subr.mxu0 0.0
        %2851 = vmatpush1.msra.mxu0 0.0
        %2852 = vmatprep.subr.mxu0 0.0
        %2853 = vmatpush1.msra.mxu0 %v1106
        %2854 = vmatprep.subr.mxu0 0.0
        %2855 = vmatpush2.msra.mxu0 0.0
        %2856 = vmatprep.subr.mxu0 0.0
        %2857 = vmatpush2.msra.mxu0 0.0
        %2858 = vmatprep.subr.mxu0 0.0
        %2859 = vmatpush2.msra.mxu0 0.0
        %2860 = vmatprep.subr.mxu0 0.0
        %2861 = vmatpush2.msra.mxu0 0.0
        %2862 = vmatprep.subr.mxu0 0.0
        %2863 = vmatpush2.msra.mxu0 0.0
        %2864 = vmatprep.subr.mxu0 0.0
        %2865 = vmatpush2.msra.mxu0 0.0
        %2866 = vmatprep.subr.mxu0 0.0
        %2867 = vmatpush2.msra.mxu0 0.0
        %2868 = vmatprep.subr.mxu0 0.0
        %2869 = vmatpush2.msra.mxu0 0.0
        %2870 = vmatprep.subr.mxu0 0.0
        %2871 = vmatpush2.msra.mxu0 0.0
        %2872 = vmatprep.subr.mxu0 0.0
        %2873 = vmatpush2.msra.mxu0 0.0
        %2874 = vmatprep.subr.mxu0 0.0
        %2875 = vmatpush2.msra.mxu0 0.0
        %2876 = vmatprep.subr.mxu0 0.0
        %2877 = vmatpush2.msra.mxu0 0.0
        %2878 = vmatprep.subr.mxu0 0.0
        %2879 = vmatpush2.msra.mxu0 0.0
        %2880 = vmatprep.subr.mxu0 0.0
        %2881 = vmatpush2.msra.mxu0 0.0
        %2882 = vmatprep.subr.mxu0 0.0
        %2883 = vmatpush2.msra.mxu0 0.0
        %2884 = vmatprep.subr.mxu0 0.0
        %2885 = vmatpush2.msra.mxu0 0.0
        %2886 = vmatprep.mubr.f32.mxu0 0.0
        %2887 = vmatmul.mubr.f32.gmra.mxu0 %v2820
        %v2888 = vpop.f32.mrf.mxu0
        %v2889 = vadd.f32 0.0, %v2888
        %v2890 = vpop.f32.mrf.mxu0
        %2891 = vdwg.mxu0
        %v2893 = vsel %vm2032, %v2670, 0
        %2895 = vmatprep.subr.mxu0 0.0
        %2896 = vmatpush1.msra.mxu0 0.0
        %2897 = vmatprep.subr.mxu0 0.0
        %2898 = vmatpush1.msra.mxu0 0.0
        %2899 = vmatprep.subr.mxu0 0.0
        %2900 = vmatpush1.msra.mxu0 0.0
        %2901 = vmatprep.subr.mxu0 0.0
        %2902 = vmatpush1.msra.mxu0 0.0
        %2903 = vmatprep.subr.mxu0 0.0
        %2904 = vmatpush1.msra.mxu0 0.0
        %2905 = vmatprep.subr.mxu0 0.0
        %2906 = vmatpush1.msra.mxu0 0.0
        %2907 = vmatprep.subr.mxu0 0.0
        %2908 = vmatpush1.msra.mxu0 0.0
        %2909 = vmatprep.subr.mxu0 0.0
        %2910 = vmatpush1.msra.mxu0 0.0
        %2911 = vmatprep.subr.mxu0 0.0
        %2912 = vmatpush1.msra.mxu0 0.0
        %2913 = vmatprep.subr.mxu0 0.0
        %2914 = vmatpush1.msra.mxu0 0.0
        %2915 = vmatprep.subr.mxu0 0.0
        %2916 = vmatpush1.msra.mxu0 0.0
        %2917 = vmatprep.subr.mxu0 0.0
        %2918 = vmatpush1.msra.mxu0 0.0
        %2919 = vmatprep.subr.mxu0 0.0
        %2920 = vmatpush1.msra.mxu0 0.0
        %2921 = vmatprep.subr.mxu0 0.0
        %2922 = vmatpush1.msra.mxu0 0.0
        %2923 = vmatprep.subr.mxu0 0.0
        %2924 = vmatpush1.msra.mxu0 0.0
        %2925 = vmatprep.subr.mxu0 0.0
        %2926 = vmatpush1.msra.mxu0 %v1107
        %2927 = vmatprep.subr.mxu0 0.0
        %2928 = vmatpush2.msra.mxu0 0.0
        %2929 = vmatprep.subr.mxu0 0.0
        %2930 = vmatpush2.msra.mxu0 0.0
        %2931 = vmatprep.subr.mxu0 0.0
        %2932 = vmatpush2.msra.mxu0 0.0
        %2933 = vmatprep.subr.mxu0 0.0
        %2934 = vmatpush2.msra.mxu0 0.0
        %2935 = vmatprep.subr.mxu0 0.0
        %2936 = vmatpush2.msra.mxu0 0.0
        %2937 = vmatprep.subr.mxu0 0.0
        %2938 = vmatpush2.msra.mxu0 0.0
        %2939 = vmatprep.subr.mxu0 0.0
        %2940 = vmatpush2.msra.mxu0 0.0
        %2941 = vmatprep.subr.mxu0 0.0
        %2942 = vmatpush2.msra.mxu0 0.0
        %2943 = vmatprep.subr.mxu0 0.0
        %2944 = vmatpush2.msra.mxu0 0.0
        %2945 = vmatprep.subr.mxu0 0.0
        %2946 = vmatpush2.msra.mxu0 0.0
        %2947 = vmatprep.subr.mxu0 0.0
        %2948 = vmatpush2.msra.mxu0 0.0
        %2949 = vmatprep.subr.mxu0 0.0
        %2950 = vmatpush2.msra.mxu0 0.0
        %2951 = vmatprep.subr.mxu0 0.0
        %2952 = vmatpush2.msra.mxu0 0.0
        %2953 = vmatprep.subr.mxu0 0.0
        %2954 = vmatpush2.msra.mxu0 0.0
        %2955 = vmatprep.subr.mxu0 0.0
        %2956 = vmatpush2.msra.mxu0 0.0
        %2957 = vmatprep.subr.mxu0 0.0
        %2958 = vmatpush2.msra.mxu0 0.0
        %2959 = vmatprep.mubr.f32.mxu0 0.0
        %2960 = vmatmul.mubr.f32.gmra.mxu0 %v2893
        %v2961 = vpop.f32.mrf.mxu0
        %v2962 = vadd.f32 0.0, %v2961
        %v2963 = vpop.f32.mrf.mxu0
        %2964 = vdwg.mxu0
        %v2965 = vsel %vm1184, %v2743, 0.0
        %v2966 = vsel %vm1184, %v2816, 0.0
        %v2967 = vadd.f32 %v2965, %v2966
        %v2968 = vsel %vm1184, %v2889, 0.0
        %v2969 = vadd.f32 %v2967, %v2968
        %v2970 = vsel %vm1184, %v2962, 0.0
        %v2971 = vadd.f32 %v2969, %v2970
        %v2972 = vadd.f32 %v2971, %v1054
        %v2973 = vsel %vm1184, %v2972, 0.0
        %2974 = vadd.xlane.f32.xlu0 %v2973
        %v2975 = vpop.xlane.xlu0 %2974
        %v2976 = vrcp.pop 32.0
        %v2977 = vmul.f32 %v2975, %v2976
        %v2978 = vsub.f32 %v2972, %v2977
        %v2979 = vmul.f32 %v2978, %v2978
        %v2980 = vsel %vm1184, %v2979, 0.0
        %2981 = vadd.xlane.f32.xlu0 %v2980
        %v2982 = vpop.xlane.xlu0 %2981
        %v2983 = vmul.f32 %v2982, %v2976
        %v2984 = vadd.f32 %v2983, 1e-06
        %v2985 = vrsqrt.pop %v2984
        %v2986 = vmul.f32 %v2978, %v2985
        %v2988 = vlaneseq
        %v2989 = vshrl.u32 %v2988, 7
        %v2990 = vsub.s32 0, %v2989
        %v2991 = vrot.slane %v1108, %v2990
        %v2993 = vmul.f32 %v2986, %v2991
        %v2995 = vlaneseq
        %v2996 = vshrl.u32 %v2995, 7
        %v2997 = vsub.s32 0, %v2996
        %v2998 = vrot.slane %v1109, %v2997
        %v3000 = vadd.f32 %v2993, %v2998
        %v3001 = vadd.f32 %v1054, %v3000
        %v3002 = vsel %vm1184, %v3001, 0.0
        %3003 = vadd.xlane.f32.xlu0 %v3002
        %v3004 = vpop.xlane.xlu0 %3003
        %v3005 = vmul.f32 %v3004, %v2976
        %v3006 = vsub.f32 %v3001, %v3005
        %v3007 = vmul.f32 %v3006, %v3006
        %v3008 = vsel %vm1184, %v3007, 0.0
        %3009 = vadd.xlane.f32.xlu0 %v3008
        %v3010 = vpop.xlane.xlu0 %3009
        %v3011 = vmul.f32 %v3010, %v2976
        %v3012 = vadd.f32 %v3011, 1e-06
        %v3013 = vrsqrt.pop %v3012
        %v3014 = vmul.f32 %v3006, %v3013
        %v3016 = vlaneseq
        %v3017 = vshrl.u32 %v3016, 7
        %v3018 = vsub.s32 0, %v3017
        %v3019 = vrot.slane %v1164, %v3018
        %v3021 = vmul.f32 %v3014, %v3019
        %v3023 = vlaneseq
        %v3024 = vshrl.u32 %v3023, 7
        %v3025 = vsub.s32 0, %v3024
        %v3026 = vrot.slane %v1165, %v3025
        %v3028 = vadd.f32 %v3021, %v3026
        %3029 = vmatprep.subr.mxu0 0.0
        %3030 = vmatpush1.msra.mxu0 0.0
        %3031 = vmatprep.subr.mxu0 0.0
        %3032 = vmatpush1.msra.mxu0 0.0
        %3033 = vmatprep.subr.mxu0 0.0
        %3034 = vmatpush1.msra.mxu0 0.0
        %3035 = vmatprep.subr.mxu0 0.0
        %3036 = vmatpush1.msra.mxu0 0.0
        %3037 = vmatprep.subr.mxu0 0.0
        %3038 = vmatpush1.msra.mxu0 0.0
        %3039 = vmatprep.subr.mxu0 0.0
        %3040 = vmatpush1.msra.mxu0 0.0
        %3041 = vmatprep.subr.mxu0 0.0
        %3042 = vmatpush1.msra.mxu0 0.0
        %3043 = vmatprep.subr.mxu0 0.0
        %3044 = vmatpush1.msra.mxu0 0.0
        %3045 = vmatprep.subr.mxu0 0.0
        %3046 = vmatpush1.msra.mxu0 0.0
        %3047 = vmatprep.subr.mxu0 0.0
        %3048 = vmatpush1.msra.mxu0 0.0
        %3049 = vmatprep.subr.mxu0 0.0
        %3050 = vmatpush1.msra.mxu0 0.0
        %3051 = vmatprep.subr.mxu0 0.0
        %3052 = vmatpush1.msra.mxu0 0.0
        %3053 = vmatprep.subr.mxu0 0.0
        %3054 = vmatpush1.msra.mxu0 %v1113
        %3055 = vmatprep.subr.mxu0 0.0
        %3056 = vmatpush1.msra.mxu0 %v1112
        %3057 = vmatprep.subr.mxu0 0.0
        %3058 = vmatpush1.msra.mxu0 %v1111
        %3059 = vmatprep.subr.mxu0 0.0
        %3060 = vmatpush1.msra.mxu0 %v1110
        %3061 = vmatprep.subr.mxu0 0.0
        %3062 = vmatpush2.msra.mxu0 0.0
        %3063 = vmatprep.subr.mxu0 0.0
        %3064 = vmatpush2.msra.mxu0 0.0
        %3065 = vmatprep.subr.mxu0 0.0
        %3066 = vmatpush2.msra.mxu0 0.0
        %3067 = vmatprep.subr.mxu0 0.0
        %3068 = vmatpush2.msra.mxu0 0.0
        %3069 = vmatprep.subr.mxu0 0.0
        %3070 = vmatpush2.msra.mxu0 0.0
        %3071 = vmatprep.subr.mxu0 0.0
        %3072 = vmatpush2.msra.mxu0 0.0
        %3073 = vmatprep.subr.mxu0 0.0
        %3074 = vmatpush2.msra.mxu0 0.0
        %3075 = vmatprep.subr.mxu0 0.0
        %3076 = vmatpush2.msra.mxu0 0.0
        %3077 = vmatprep.subr.mxu0 0.0
        %3078 = vmatpush2.msra.mxu0 0.0
        %3079 = vmatprep.subr.mxu0 0.0
        %3080 = vmatpush2.msra.mxu0 0.0
        %3081 = vmatprep.subr.mxu0 0.0
        %3082 = vmatpush2.msra.mxu0 0.0
        %3083 = vmatprep.subr.mxu0 0.0
        %3084 = vmatpush2.msra.mxu0 0.0
        %3085 = vmatprep.subr.mxu0 0.0
        %3086 = vmatpush2.msra.mxu0 0.0
        %3087 = vmatprep.subr.mxu0 0.0
        %3088 = vmatpush2.msra.mxu0 0.0
        %3089 = vmatprep.subr.mxu0 0.0
        %3090 = vmatpush2.msra.mxu0 0.0
        %3091 = vmatprep.subr.mxu0 0.0
        %3092 = vmatpush2.msra.mxu0 0.0
        %3093 = vmatprep.mubr.f32.mxu0 0.0
        %3094 = vmatmul.mubr.f32.gmra.mxu0 %v1186
        %v3095 = vpop.f32.mrf.mxu0
        %v3096 = vadd.f32 0.0, %v3095
        %v3097 = vpop.f32.mrf.mxu0
        %3098 = vdwg.mxu0
        %3099 = vmatprep.subr.mxu0 0.0
        %3100 = vmatpush1.msra.mxu0 0.0
        %3101 = vmatprep.subr.mxu0 0.0
        %3102 = vmatpush1.msra.mxu0 0.0
        %3103 = vmatprep.subr.mxu0 0.0
        %3104 = vmatpush1.msra.mxu0 0.0
        %3105 = vmatprep.subr.mxu0 0.0
        %3106 = vmatpush1.msra.mxu0 0.0
        %3107 = vmatprep.subr.mxu0 0.0
        %3108 = vmatpush1.msra.mxu0 0.0
        %3109 = vmatprep.subr.mxu0 0.0
        %3110 = vmatpush1.msra.mxu0 0.0
        %3111 = vmatprep.subr.mxu0 0.0
        %3112 = vmatpush1.msra.mxu0 0.0
        %3113 = vmatprep.subr.mxu0 0.0
        %3114 = vmatpush1.msra.mxu0 0.0
        %3115 = vmatprep.subr.mxu0 0.0
        %3116 = vmatpush1.msra.mxu0 0.0
        %3117 = vmatprep.subr.mxu0 0.0
        %3118 = vmatpush1.msra.mxu0 0.0
        %3119 = vmatprep.subr.mxu0 0.0
        %3120 = vmatpush1.msra.mxu0 0.0
        %3121 = vmatprep.subr.mxu0 0.0
        %3122 = vmatpush1.msra.mxu0 0.0
        %3123 = vmatprep.subr.mxu0 0.0
        %3124 = vmatpush1.msra.mxu0 %v1117
        %3125 = vmatprep.subr.mxu0 0.0
        %3126 = vmatpush1.msra.mxu0 %v1116
        %3127 = vmatprep.subr.mxu0 0.0
        %3128 = vmatpush1.msra.mxu0 %v1115
        %3129 = vmatprep.subr.mxu0 0.0
        %3130 = vmatpush1.msra.mxu0 %v1114
        %3131 = vmatprep.subr.mxu0 0.0
        %3132 = vmatpush2.msra.mxu0 0.0
        %3133 = vmatprep.subr.mxu0 0.0
        %3134 = vmatpush2.msra.mxu0 0.0
        %3135 = vmatprep.subr.mxu0 0.0
        %3136 = vmatpush2.msra.mxu0 0.0
        %3137 = vmatprep.subr.mxu0 0.0
        %3138 = vmatpush2.msra.mxu0 0.0
        %3139 = vmatprep.subr.mxu0 0.0
        %3140 = vmatpush2.msra.mxu0 0.0
        %3141 = vmatprep.subr.mxu0 0.0
        %3142 = vmatpush2.msra.mxu0 0.0
        %3143 = vmatprep.subr.mxu0 0.0
        %3144 = vmatpush2.msra.mxu0 0.0
        %3145 = vmatprep.subr.mxu0 0.0
        %3146 = vmatpush2.msra.mxu0 0.0
        %3147 = vmatprep.subr.mxu0 0.0
        %3148 = vmatpush2.msra.mxu0 0.0
        %3149 = vmatprep.subr.mxu0 0.0
        %3150 = vmatpush2.msra.mxu0 0.0
        %3151 = vmatprep.subr.mxu0 0.0
        %3152 = vmatpush2.msra.mxu0 0.0
        %3153 = vmatprep.subr.mxu0 0.0
        %3154 = vmatpush2.msra.mxu0 0.0
        %3155 = vmatprep.subr.mxu0 0.0
        %3156 = vmatpush2.msra.mxu0 0.0
        %3157 = vmatprep.subr.mxu0 0.0
        %3158 = vmatpush2.msra.mxu0 0.0
        %3159 = vmatprep.subr.mxu0 0.0
        %3160 = vmatpush2.msra.mxu0 0.0
        %3161 = vmatprep.subr.mxu0 0.0
        %3162 = vmatpush2.msra.mxu0 0.0
        %3163 = vmatprep.mubr.f32.mxu0 0.0
        %3164 = vmatmul.mubr.f32.gmra.mxu0 %v1186
        %v3165 = vpop.f32.mrf.mxu0
        %v3166 = vadd.f32 0.0, %v3165
        %v3167 = vpop.f32.mrf.mxu0
        %3168 = vdwg.mxu0
        %3169 = vmatprep.subr.mxu0 0.0
        %3170 = vmatpush1.msra.mxu0 0.0
        %3171 = vmatprep.subr.mxu0 0.0
        %3172 = vmatpush1.msra.mxu0 0.0
        %3173 = vmatprep.subr.mxu0 0.0
        %3174 = vmatpush1.msra.mxu0 0.0
        %3175 = vmatprep.subr.mxu0 0.0
        %3176 = vmatpush1.msra.mxu0 0.0
        %3177 = vmatprep.subr.mxu0 0.0
        %3178 = vmatpush1.msra.mxu0 0.0
        %3179 = vmatprep.subr.mxu0 0.0
        %3180 = vmatpush1.msra.mxu0 0.0
        %3181 = vmatprep.subr.mxu0 0.0
        %3182 = vmatpush1.msra.mxu0 0.0
        %3183 = vmatprep.subr.mxu0 0.0
        %3184 = vmatpush1.msra.mxu0 0.0
        %3185 = vmatprep.subr.mxu0 0.0
        %3186 = vmatpush1.msra.mxu0 0.0
        %3187 = vmatprep.subr.mxu0 0.0
        %3188 = vmatpush1.msra.mxu0 0.0
        %3189 = vmatprep.subr.mxu0 0.0
        %3190 = vmatpush1.msra.mxu0 0.0
        %3191 = vmatprep.subr.mxu0 0.0
        %3192 = vmatpush1.msra.mxu0 0.0
        %3193 = vmatprep.subr.mxu0 0.0
        %3194 = vmatpush1.msra.mxu0 %v1121
        %3195 = vmatprep.subr.mxu0 0.0
        %3196 = vmatpush1.msra.mxu0 %v1120
        %3197 = vmatprep.subr.mxu0 0.0
        %3198 = vmatpush1.msra.mxu0 %v1119
        %3199 = vmatprep.subr.mxu0 0.0
        %3200 = vmatpush1.msra.mxu0 %v1118
        %3201 = vmatprep.subr.mxu0 0.0
        %3202 = vmatpush2.msra.mxu0 0.0
        %3203 = vmatprep.subr.mxu0 0.0
        %3204 = vmatpush2.msra.mxu0 0.0
        %3205 = vmatprep.subr.mxu0 0.0
        %3206 = vmatpush2.msra.mxu0 0.0
        %3207 = vmatprep.subr.mxu0 0.0
        %3208 = vmatpush2.msra.mxu0 0.0
        %3209 = vmatprep.subr.mxu0 0.0
        %3210 = vmatpush2.msra.mxu0 0.0
        %3211 = vmatprep.subr.mxu0 0.0
        %3212 = vmatpush2.msra.mxu0 0.0
        %3213 = vmatprep.subr.mxu0 0.0
        %3214 = vmatpush2.msra.mxu0 0.0
        %3215 = vmatprep.subr.mxu0 0.0
        %3216 = vmatpush2.msra.mxu0 0.0
        %3217 = vmatprep.subr.mxu0 0.0
        %3218 = vmatpush2.msra.mxu0 0.0
        %3219 = vmatprep.subr.mxu0 0.0
        %3220 = vmatpush2.msra.mxu0 0.0
        %3221 = vmatprep.subr.mxu0 0.0
        %3222 = vmatpush2.msra.mxu0 0.0
        %3223 = vmatprep.subr.mxu0 0.0
        %3224 = vmatpush2.msra.mxu0 0.0
        %3225 = vmatprep.subr.mxu0 0.0
        %3226 = vmatpush2.msra.mxu0 0.0
        %3227 = vmatprep.subr.mxu0 0.0
        %3228 = vmatpush2.msra.mxu0 0.0
        %3229 = vmatprep.subr.mxu0 0.0
        %3230 = vmatpush2.msra.mxu0 0.0
        %3231 = vmatprep.subr.mxu0 0.0
        %3232 = vmatpush2.msra.mxu0 0.0
        %3233 = vmatprep.mubr.f32.mxu0 0.0
        %3234 = vmatmul.mubr.f32.gmra.mxu0 %v1186
        %v3235 = vpop.f32.mrf.mxu0
        %v3236 = vadd.f32 0.0, %v3235
        %v3237 = vpop.f32.mrf.mxu0
        %3238 = vdwg.mxu0
        %3239 = vmatprep.subr.mxu0 0.0
        %3240 = vmatpush1.msra.mxu0 0.0
        %3241 = vmatprep.subr.mxu0 0.0
        %3242 = vmatpush1.msra.mxu0 0.0
        %3243 = vmatprep.subr.mxu0 0.0
        %3244 = vmatpush1.msra.mxu0 0.0
        %3245 = vmatprep.subr.mxu0 0.0
        %3246 = vmatpush1.msra.mxu0 0.0
        %3247 = vmatprep.subr.mxu0 0.0
        %3248 = vmatpush1.msra.mxu0 0.0
        %3249 = vmatprep.subr.mxu0 0.0
        %3250 = vmatpush1.msra.mxu0 0.0
        %3251 = vmatprep.subr.mxu0 0.0
        %3252 = vmatpush1.msra.mxu0 0.0
        %3253 = vmatprep.subr.mxu0 0.0
        %3254 = vmatpush1.msra.mxu0 0.0
        %3255 = vmatprep.subr.mxu0 0.0
        %3256 = vmatpush1.msra.mxu0 0.0
        %3257 = vmatprep.subr.mxu0 0.0
        %3258 = vmatpush1.msra.mxu0 0.0
        %3259 = vmatprep.subr.mxu0 0.0
        %3260 = vmatpush1.msra.mxu0 0.0
        %3261 = vmatprep.subr.mxu0 0.0
        %3262 = vmatpush1.msra.mxu0 0.0
        %3263 = vmatprep.subr.mxu0 0.0
        %3264 = vmatpush1.msra.mxu0 %v1125
        %3265 = vmatprep.subr.mxu0 0.0
        %3266 = vmatpush1.msra.mxu0 %v1124
        %3267 = vmatprep.subr.mxu0 0.0
        %3268 = vmatpush1.msra.mxu0 %v1123
        %3269 = vmatprep.subr.mxu0 0.0
        %3270 = vmatpush1.msra.mxu0 %v1122
        %3271 = vmatprep.subr.mxu0 0.0
        %3272 = vmatpush2.msra.mxu0 0.0
        %3273 = vmatprep.subr.mxu0 0.0
        %3274 = vmatpush2.msra.mxu0 0.0
        %3275 = vmatprep.subr.mxu0 0.0
        %3276 = vmatpush2.msra.mxu0 0.0
        %3277 = vmatprep.subr.mxu0 0.0
        %3278 = vmatpush2.msra.mxu0 0.0
        %3279 = vmatprep.subr.mxu0 0.0
        %3280 = vmatpush2.msra.mxu0 0.0
        %3281 = vmatprep.subr.mxu0 0.0
        %3282 = vmatpush2.msra.mxu0 0.0
        %3283 = vmatprep.subr.mxu0 0.0
        %3284 = vmatpush2.msra.mxu0 0.0
        %3285 = vmatprep.subr.mxu0 0.0
        %3286 = vmatpush2.msra.mxu0 0.0
        %3287 = vmatprep.subr.mxu0 0.0
        %3288 = vmatpush2.msra.mxu0 0.0
        %3289 = vmatprep.subr.mxu0 0.0
        %3290 = vmatpush2.msra.mxu0 0.0
        %3291 = vmatprep.subr.mxu0 0.0
        %3292 = vmatpush2.msra.mxu0 0.0
        %3293 = vmatprep.subr.mxu0 0.0
        %3294 = vmatpush2.msra.mxu0 0.0
        %3295 = vmatprep.subr.mxu0 0.0
        %3296 = vmatpush2.msra.mxu0 0.0
        %3297 = vmatprep.subr.mxu0 0.0
        %3298 = vmatpush2.msra.mxu0 0.0
        %3299 = vmatprep.subr.mxu0 0.0
        %3300 = vmatpush2.msra.mxu0 0.0
        %3301 = vmatprep.subr.mxu0 0.0
        %3302 = vmatpush2.msra.mxu0 0.0
        %3303 = vmatprep.mubr.f32.mxu0 0.0
        %3304 = vmatmul.mubr.f32.gmra.mxu0 %v1186
        %v3305 = vpop.f32.mrf.mxu0
        %v3306 = vadd.f32 0.0, %v3305
        %v3307 = vpop.f32.mrf.mxu0
        %3308 = vdwg.mxu0
        %v3309 = vmul.f32 %v3096, 0.35355338
        %v3310 = vmul.f32 %v3166, 0.35355338
        %v3311 = vmul.f32 %v3236, 0.35355338
        %v3312 = vmul.f32 %v3306, 0.35355338
        %3313 = vmatprep.subr.mxu0 0.0
        %3314 = vmatpush1.msra.mxu0 0.0
        %3315 = vmatprep.subr.mxu0 0.0
        %3316 = vmatpush1.msra.mxu0 0.0
        %3317 = vmatprep.subr.mxu0 0.0
        %3318 = vmatpush1.msra.mxu0 0.0
        %3319 = vmatprep.subr.mxu0 0.0
        %3320 = vmatpush1.msra.mxu0 0.0
        %3321 = vmatprep.subr.mxu0 0.0
        %3322 = vmatpush1.msra.mxu0 0.0
        %3323 = vmatprep.subr.mxu0 0.0
        %3324 = vmatpush1.msra.mxu0 0.0
        %3325 = vmatprep.subr.mxu0 0.0
        %3326 = vmatpush1.msra.mxu0 0.0
        %3327 = vmatprep.subr.mxu0 0.0
        %3328 = vmatpush1.msra.mxu0 0.0
        %3329 = vmatprep.subr.mxu0 0.0
        %3330 = vmatpush1.msra.mxu0 0.0
        %3331 = vmatprep.subr.mxu0 0.0
        %3332 = vmatpush1.msra.mxu0 0.0
        %3333 = vmatprep.subr.mxu0 0.0
        %3334 = vmatpush1.msra.mxu0 0.0
        %3335 = vmatprep.subr.mxu0 0.0
        %3336 = vmatpush1.msra.mxu0 0.0
        %3337 = vmatprep.subr.mxu0 0.0
        %3338 = vmatpush1.msra.mxu0 %v1129
        %3339 = vmatprep.subr.mxu0 0.0
        %3340 = vmatpush1.msra.mxu0 %v1128
        %3341 = vmatprep.subr.mxu0 0.0
        %3342 = vmatpush1.msra.mxu0 %v1127
        %3343 = vmatprep.subr.mxu0 0.0
        %3344 = vmatpush1.msra.mxu0 %v1126
        %3345 = vmatprep.subr.mxu0 0.0
        %3346 = vmatpush2.msra.mxu0 0.0
        %3347 = vmatprep.subr.mxu0 0.0
        %3348 = vmatpush2.msra.mxu0 0.0
        %3349 = vmatprep.subr.mxu0 0.0
        %3350 = vmatpush2.msra.mxu0 0.0
        %3351 = vmatprep.subr.mxu0 0.0
        %3352 = vmatpush2.msra.mxu0 0.0
        %3353 = vmatprep.subr.mxu0 0.0
        %3354 = vmatpush2.msra.mxu0 0.0
        %3355 = vmatprep.subr.mxu0 0.0
        %3356 = vmatpush2.msra.mxu0 0.0
        %3357 = vmatprep.subr.mxu0 0.0
        %3358 = vmatpush2.msra.mxu0 0.0
        %3359 = vmatprep.subr.mxu0 0.0
        %3360 = vmatpush2.msra.mxu0 0.0
        %3361 = vmatprep.subr.mxu0 0.0
        %3362 = vmatpush2.msra.mxu0 0.0
        %3363 = vmatprep.subr.mxu0 0.0
        %3364 = vmatpush2.msra.mxu0 0.0
        %3365 = vmatprep.subr.mxu0 0.0
        %3366 = vmatpush2.msra.mxu0 0.0
        %3367 = vmatprep.subr.mxu0 0.0
        %3368 = vmatpush2.msra.mxu0 0.0
        %3369 = vmatprep.subr.mxu0 0.0
        %3370 = vmatpush2.msra.mxu0 0.0
        %3371 = vmatprep.subr.mxu0 0.0
        %3372 = vmatpush2.msra.mxu0 0.0
        %3373 = vmatprep.subr.mxu0 0.0
        %3374 = vmatpush2.msra.mxu0 0.0
        %3375 = vmatprep.subr.mxu0 0.0
        %3376 = vmatpush2.msra.mxu0 0.0
        %3377 = vmatprep.mubr.f32.mxu0 0.0
        %3378 = vmatmul.mubr.f32.gmra.mxu0 %v1186
        %v3379 = vpop.f32.mrf.mxu0
        %v3380 = vadd.f32 0.0, %v3379
        %v3381 = vpop.f32.mrf.mxu0
        %3382 = vdwg.mxu0
        %3383 = vmatprep.subr.mxu0 0.0
        %3384 = vmatpush1.msra.mxu0 0.0
        %3385 = vmatprep.subr.mxu0 0.0
        %3386 = vmatpush1.msra.mxu0 0.0
        %3387 = vmatprep.subr.mxu0 0.0
        %3388 = vmatpush1.msra.mxu0 0.0
        %3389 = vmatprep.subr.mxu0 0.0
        %3390 = vmatpush1.msra.mxu0 0.0
        %3391 = vmatprep.subr.mxu0 0.0
        %3392 = vmatpush1.msra.mxu0 0.0
        %3393 = vmatprep.subr.mxu0 0.0
        %3394 = vmatpush1.msra.mxu0 0.0
        %3395 = vmatprep.subr.mxu0 0.0
        %3396 = vmatpush1.msra.mxu0 0.0
        %3397 = vmatprep.subr.mxu0 0.0
        %3398 = vmatpush1.msra.mxu0 0.0
        %3399 = vmatprep.subr.mxu0 0.0
        %3400 = vmatpush1.msra.mxu0 0.0
        %3401 = vmatprep.subr.mxu0 0.0
        %3402 = vmatpush1.msra.mxu0 0.0
        %3403 = vmatprep.subr.mxu0 0.0
        %3404 = vmatpush1.msra.mxu0 0.0
        %3405 = vmatprep.subr.mxu0 0.0
        %3406 = vmatpush1.msra.mxu0 0.0
        %3407 = vmatprep.subr.mxu0 0.0
        %3408 = vmatpush1.msra.mxu0 %v1133
        %3409 = vmatprep.subr.mxu0 0.0
        %3410 = vmatpush1.msra.mxu0 %v1132
        %3411 = vmatprep.subr.mxu0 0.0
        %3412 = vmatpush1.msra.mxu0 %v1131
        %3413 = vmatprep.subr.mxu0 0.0
        %3414 = vmatpush1.msra.mxu0 %v1130
        %3415 = vmatprep.subr.mxu0 0.0
        %3416 = vmatpush2.msra.mxu0 0.0
        %3417 = vmatprep.subr.mxu0 0.0
        %3418 = vmatpush2.msra.mxu0 0.0
        %3419 = vmatprep.subr.mxu0 0.0
        %3420 = vmatpush2.msra.mxu0 0.0
        %3421 = vmatprep.subr.mxu0 0.0
        %3422 = vmatpush2.msra.mxu0 0.0
        %3423 = vmatprep.subr.mxu0 0.0
        %3424 = vmatpush2.msra.mxu0 0.0
        %3425 = vmatprep.subr.mxu0 0.0
        %3426 = vmatpush2.msra.mxu0 0.0
        %3427 = vmatprep.subr.mxu0 0.0
        %3428 = vmatpush2.msra.mxu0 0.0
        %3429 = vmatprep.subr.mxu0 0.0
        %3430 = vmatpush2.msra.mxu0 0.0
        %3431 = vmatprep.subr.mxu0 0.0
        %3432 = vmatpush2.msra.mxu0 0.0
        %3433 = vmatprep.subr.mxu0 0.0
        %3434 = vmatpush2.msra.mxu0 0.0
        %3435 = vmatprep.subr.mxu0 0.0
        %3436 = vmatpush2.msra.mxu0 0.0
        %3437 = vmatprep.subr.mxu0 0.0
        %3438 = vmatpush2.msra.mxu0 0.0
        %3439 = vmatprep.subr.mxu0 0.0
        %3440 = vmatpush2.msra.mxu0 0.0
        %3441 = vmatprep.subr.mxu0 0.0
        %3442 = vmatpush2.msra.mxu0 0.0
        %3443 = vmatprep.subr.mxu0 0.0
        %3444 = vmatpush2.msra.mxu0 0.0
        %3445 = vmatprep.subr.mxu0 0.0
        %3446 = vmatpush2.msra.mxu0 0.0
        %3447 = vmatprep.mubr.f32.mxu0 0.0
        %3448 = vmatmul.mubr.f32.gmra.mxu0 %v1186
        %v3449 = vpop.f32.mrf.mxu0
        %v3450 = vadd.f32 0.0, %v3449
        %v3451 = vpop.f32.mrf.mxu0
        %3452 = vdwg.mxu0
        %3453 = vmatprep.subr.mxu0 0.0
        %3454 = vmatpush1.msra.mxu0 0.0
        %3455 = vmatprep.subr.mxu0 0.0
        %3456 = vmatpush1.msra.mxu0 0.0
        %3457 = vmatprep.subr.mxu0 0.0
        %3458 = vmatpush1.msra.mxu0 0.0
        %3459 = vmatprep.subr.mxu0 0.0
        %3460 = vmatpush1.msra.mxu0 0.0
        %3461 = vmatprep.subr.mxu0 0.0
        %3462 = vmatpush1.msra.mxu0 0.0
        %3463 = vmatprep.subr.mxu0 0.0
        %3464 = vmatpush1.msra.mxu0 0.0
        %3465 = vmatprep.subr.mxu0 0.0
        %3466 = vmatpush1.msra.mxu0 0.0
        %3467 = vmatprep.subr.mxu0 0.0
        %3468 = vmatpush1.msra.mxu0 0.0
        %3469 = vmatprep.subr.mxu0 0.0
        %3470 = vmatpush1.msra.mxu0 0.0
        %3471 = vmatprep.subr.mxu0 0.0
        %3472 = vmatpush1.msra.mxu0 0.0
        %3473 = vmatprep.subr.mxu0 0.0
        %3474 = vmatpush1.msra.mxu0 0.0
        %3475 = vmatprep.subr.mxu0 0.0
        %3476 = vmatpush1.msra.mxu0 0.0
        %3477 = vmatprep.subr.mxu0 0.0
        %3478 = vmatpush1.msra.mxu0 %v1137
        %3479 = vmatprep.subr.mxu0 0.0
        %3480 = vmatpush1.msra.mxu0 %v1136
        %3481 = vmatprep.subr.mxu0 0.0
        %3482 = vmatpush1.msra.mxu0 %v1135
        %3483 = vmatprep.subr.mxu0 0.0
        %3484 = vmatpush1.msra.mxu0 %v1134
        %3485 = vmatprep.subr.mxu0 0.0
        %3486 = vmatpush2.msra.mxu0 0.0
        %3487 = vmatprep.subr.mxu0 0.0
        %3488 = vmatpush2.msra.mxu0 0.0
        %3489 = vmatprep.subr.mxu0 0.0
        %3490 = vmatpush2.msra.mxu0 0.0
        %3491 = vmatprep.subr.mxu0 0.0
        %3492 = vmatpush2.msra.mxu0 0.0
        %3493 = vmatprep.subr.mxu0 0.0
        %3494 = vmatpush2.msra.mxu0 0.0
        %3495 = vmatprep.subr.mxu0 0.0
        %3496 = vmatpush2.msra.mxu0 0.0
        %3497 = vmatprep.subr.mxu0 0.0
        %3498 = vmatpush2.msra.mxu0 0.0
        %3499 = vmatprep.subr.mxu0 0.0
        %3500 = vmatpush2.msra.mxu0 0.0
        %3501 = vmatprep.subr.mxu0 0.0
        %3502 = vmatpush2.msra.mxu0 0.0
        %3503 = vmatprep.subr.mxu0 0.0
        %3504 = vmatpush2.msra.mxu0 0.0
        %3505 = vmatprep.subr.mxu0 0.0
        %3506 = vmatpush2.msra.mxu0 0.0
        %3507 = vmatprep.subr.mxu0 0.0
        %3508 = vmatpush2.msra.mxu0 0.0
        %3509 = vmatprep.subr.mxu0 0.0
        %3510 = vmatpush2.msra.mxu0 0.0
        %3511 = vmatprep.subr.mxu0 0.0
        %3512 = vmatpush2.msra.mxu0 0.0
        %3513 = vmatprep.subr.mxu0 0.0
        %3514 = vmatpush2.msra.mxu0 0.0
        %3515 = vmatprep.subr.mxu0 0.0
        %3516 = vmatpush2.msra.mxu0 0.0
        %3517 = vmatprep.mubr.f32.mxu0 0.0
        %3518 = vmatmul.mubr.f32.gmra.mxu0 %v1186
        %v3519 = vpop.f32.mrf.mxu0
        %v3520 = vadd.f32 0.0, %v3519
        %v3521 = vpop.f32.mrf.mxu0
        %3522 = vdwg.mxu0
        %3523 = vmatprep.subr.mxu0 0.0
        %3524 = vmatpush1.msra.mxu0 0.0
        %3525 = vmatprep.subr.mxu0 0.0
        %3526 = vmatpush1.msra.mxu0 0.0
        %3527 = vmatprep.subr.mxu0 0.0
        %3528 = vmatpush1.msra.mxu0 0.0
        %3529 = vmatprep.subr.mxu0 0.0
        %3530 = vmatpush1.msra.mxu0 0.0
        %3531 = vmatprep.subr.mxu0 0.0
        %3532 = vmatpush1.msra.mxu0 0.0
        %3533 = vmatprep.subr.mxu0 0.0
        %3534 = vmatpush1.msra.mxu0 0.0
        %3535 = vmatprep.subr.mxu0 0.0
        %3536 = vmatpush1.msra.mxu0 0.0
        %3537 = vmatprep.subr.mxu0 0.0
        %3538 = vmatpush1.msra.mxu0 0.0
        %3539 = vmatprep.subr.mxu0 0.0
        %3540 = vmatpush1.msra.mxu0 0.0
        %3541 = vmatprep.subr.mxu0 0.0
        %3542 = vmatpush1.msra.mxu0 0.0
        %3543 = vmatprep.subr.mxu0 0.0
        %3544 = vmatpush1.msra.mxu0 0.0
        %3545 = vmatprep.subr.mxu0 0.0
        %3546 = vmatpush1.msra.mxu0 0.0
        %3547 = vmatprep.subr.mxu0 0.0
        %3548 = vmatpush1.msra.mxu0 %v1141
        %3549 = vmatprep.subr.mxu0 0.0
        %3550 = vmatpush1.msra.mxu0 %v1140
        %3551 = vmatprep.subr.mxu0 0.0
        %3552 = vmatpush1.msra.mxu0 %v1139
        %3553 = vmatprep.subr.mxu0 0.0
        %3554 = vmatpush1.msra.mxu0 %v1138
        %3555 = vmatprep.subr.mxu0 0.0
        %3556 = vmatpush2.msra.mxu0 0.0
        %3557 = vmatprep.subr.mxu0 0.0
        %3558 = vmatpush2.msra.mxu0 0.0
        %3559 = vmatprep.subr.mxu0 0.0
        %3560 = vmatpush2.msra.mxu0 0.0
        %3561 = vmatprep.subr.mxu0 0.0
        %3562 = vmatpush2.msra.mxu0 0.0
        %3563 = vmatprep.subr.mxu0 0.0
        %3564 = vmatpush2.msra.mxu0 0.0
        %3565 = vmatprep.subr.mxu0 0.0
        %3566 = vmatpush2.msra.mxu0 0.0
        %3567 = vmatprep.subr.mxu0 0.0
        %3568 = vmatpush2.msra.mxu0 0.0
        %3569 = vmatprep.subr.mxu0 0.0
        %3570 = vmatpush2.msra.mxu0 0.0
        %3571 = vmatprep.subr.mxu0 0.0
        %3572 = vmatpush2.msra.mxu0 0.0
        %3573 = vmatprep.subr.mxu0 0.0
        %3574 = vmatpush2.msra.mxu0 0.0
        %3575 = vmatprep.subr.mxu0 0.0
        %3576 = vmatpush2.msra.mxu0 0.0
        %3577 = vmatprep.subr.mxu0 0.0
        %3578 = vmatpush2.msra.mxu0 0.0
        %3579 = vmatprep.subr.mxu0 0.0
        %3580 = vmatpush2.msra.mxu0 0.0
        %3581 = vmatprep.subr.mxu0 0.0
        %3582 = vmatpush2.msra.mxu0 0.0
        %3583 = vmatprep.subr.mxu0 0.0
        %3584 = vmatpush2.msra.mxu0 0.0
        %3585 = vmatprep.subr.mxu0 0.0
        %3586 = vmatpush2.msra.mxu0 0.0
        %3587 = vmatprep.mubr.f32.mxu0 0.0
        %3588 = vmatmul.mubr.f32.gmra.mxu0 %v1186
        %v3589 = vpop.f32.mrf.mxu0
        %v3590 = vadd.f32 0.0, %v3589
        %v3591 = vpop.f32.mrf.mxu0
        %3592 = vdwg.mxu0
        %3593 = vmatprep.subr.mxu0 0.0
        %3594 = vmatpush1.msra.mxu0 0.0
        %3595 = vmatprep.subr.mxu0 0.0
        %3596 = vmatpush1.msra.mxu0 0.0
        %3597 = vmatprep.subr.mxu0 0.0
        %3598 = vmatpush1.msra.mxu0 0.0
        %3599 = vmatprep.subr.mxu0 0.0
        %3600 = vmatpush1.msra.mxu0 0.0
        %3601 = vmatprep.subr.mxu0 0.0
        %3602 = vmatpush1.msra.mxu0 0.0
        %3603 = vmatprep.subr.mxu0 0.0
        %3604 = vmatpush1.msra.mxu0 0.0
        %3605 = vmatprep.subr.mxu0 0.0
        %3606 = vmatpush1.msra.mxu0 0.0
        %3607 = vmatprep.subr.mxu0 0.0
        %3608 = vmatpush1.msra.mxu0 0.0
        %3609 = vmatprep.subr.mxu0 0.0
        %3610 = vmatpush1.msra.mxu0 0.0
        %3611 = vmatprep.subr.mxu0 0.0
        %3612 = vmatpush1.msra.mxu0 0.0
        %3613 = vmatprep.subr.mxu0 0.0
        %3614 = vmatpush1.msra.mxu0 0.0
        %3615 = vmatprep.subr.mxu0 0.0
        %3616 = vmatpush1.msra.mxu0 0.0
        %3617 = vmatprep.subr.mxu0 0.0
        %3618 = vmatpush1.msra.mxu0 %v1145
        %3619 = vmatprep.subr.mxu0 0.0
        %3620 = vmatpush1.msra.mxu0 %v1144
        %3621 = vmatprep.subr.mxu0 0.0
        %3622 = vmatpush1.msra.mxu0 %v1143
        %3623 = vmatprep.subr.mxu0 0.0
        %3624 = vmatpush1.msra.mxu0 %v1142
        %3625 = vmatprep.subr.mxu0 0.0
        %3626 = vmatpush2.msra.mxu0 0.0
        %3627 = vmatprep.subr.mxu0 0.0
        %3628 = vmatpush2.msra.mxu0 0.0
        %3629 = vmatprep.subr.mxu0 0.0
        %3630 = vmatpush2.msra.mxu0 0.0
        %3631 = vmatprep.subr.mxu0 0.0
        %3632 = vmatpush2.msra.mxu0 0.0
        %3633 = vmatprep.subr.mxu0 0.0
        %3634 = vmatpush2.msra.mxu0 0.0
        %3635 = vmatprep.subr.mxu0 0.0
        %3636 = vmatpush2.msra.mxu0 0.0
        %3637 = vmatprep.subr.mxu0 0.0
        %3638 = vmatpush2.msra.mxu0 0.0
        %3639 = vmatprep.subr.mxu0 0.0
        %3640 = vmatpush2.msra.mxu0 0.0
        %3641 = vmatprep.subr.mxu0 0.0
        %3642 = vmatpush2.msra.mxu0 0.0
        %3643 = vmatprep.subr.mxu0 0.0
        %3644 = vmatpush2.msra.mxu0 0.0
        %3645 = vmatprep.subr.mxu0 0.0
        %3646 = vmatpush2.msra.mxu0 0.0
        %3647 = vmatprep.subr.mxu0 0.0
        %3648 = vmatpush2.msra.mxu0 0.0
        %3649 = vmatprep.subr.mxu0 0.0
        %3650 = vmatpush2.msra.mxu0 0.0
        %3651 = vmatprep.subr.mxu0 0.0
        %3652 = vmatpush2.msra.mxu0 0.0
        %3653 = vmatprep.subr.mxu0 0.0
        %3654 = vmatpush2.msra.mxu0 0.0
        %3655 = vmatprep.subr.mxu0 0.0
        %3656 = vmatpush2.msra.mxu0 0.0
        %3657 = vmatprep.mubr.f32.mxu0 0.0
        %3658 = vmatmul.mubr.f32.gmra.mxu0 %v1186
        %v3659 = vpop.f32.mrf.mxu0
        %v3660 = vadd.f32 0.0, %v3659
        %v3661 = vpop.f32.mrf.mxu0
        %3662 = vdwg.mxu0
        %3663 = vmatprep.subr.mxu0 0.0
        %3664 = vmatpush1.msra.mxu0 0.0
        %3665 = vmatprep.subr.mxu0 0.0
        %3666 = vmatpush1.msra.mxu0 0.0
        %3667 = vmatprep.subr.mxu0 0.0
        %3668 = vmatpush1.msra.mxu0 0.0
        %3669 = vmatprep.subr.mxu0 0.0
        %3670 = vmatpush1.msra.mxu0 0.0
        %3671 = vmatprep.subr.mxu0 0.0
        %3672 = vmatpush1.msra.mxu0 0.0
        %3673 = vmatprep.subr.mxu0 0.0
        %3674 = vmatpush1.msra.mxu0 0.0
        %3675 = vmatprep.subr.mxu0 0.0
        %3676 = vmatpush1.msra.mxu0 0.0
        %3677 = vmatprep.subr.mxu0 0.0
        %3678 = vmatpush1.msra.mxu0 0.0
        %3679 = vmatprep.subr.mxu0 0.0
        %3680 = vmatpush1.msra.mxu0 0.0
        %3681 = vmatprep.subr.mxu0 0.0
        %3682 = vmatpush1.msra.mxu0 0.0
        %3683 = vmatprep.subr.mxu0 0.0
        %3684 = vmatpush1.msra.mxu0 0.0
        %3685 = vmatprep.subr.mxu0 0.0
        %3686 = vmatpush1.msra.mxu0 0.0
        %3687 = vmatprep.subr.mxu0 0.0
        %3688 = vmatpush1.msra.mxu0 %v1149
        %3689 = vmatprep.subr.mxu0 0.0
        %3690 = vmatpush1.msra.mxu0 %v1148
        %3691 = vmatprep.subr.mxu0 0.0
        %3692 = vmatpush1.msra.mxu0 %v1147
        %3693 = vmatprep.subr.mxu0 0.0
        %3694 = vmatpush1.msra.mxu0 %v1146
        %3695 = vmatprep.subr.mxu0 0.0
        %3696 = vmatpush2.msra.mxu0 0.0
        %3697 = vmatprep.subr.mxu0 0.0
        %3698 = vmatpush2.msra.mxu0 0.0
        %3699 = vmatprep.subr.mxu0 0.0
        %3700 = vmatpush2.msra.mxu0 0.0
        %3701 = vmatprep.subr.mxu0 0.0
        %3702 = vmatpush2.msra.mxu0 0.0
        %3703 = vmatprep.subr.mxu0 0.0
        %3704 = vmatpush2.msra.mxu0 0.0
        %3705 = vmatprep.subr.mxu0 0.0
        %3706 = vmatpush2.msra.mxu0 0.0
        %3707 = vmatprep.subr.mxu0 0.0
        %3708 = vmatpush2.msra.mxu0 0.0
        %3709 = vmatprep.subr.mxu0 0.0
        %3710 = vmatpush2.msra.mxu0 0.0
        %3711 = vmatprep.subr.mxu0 0.0
        %3712 = vmatpush2.msra.mxu0 0.0
        %3713 = vmatprep.subr.mxu0 0.0
        %3714 = vmatpush2.msra.mxu0 0.0
        %3715 = vmatprep.subr.mxu0 0.0
        %3716 = vmatpush2.msra.mxu0 0.0
        %3717 = vmatprep.subr.mxu0 0.0
        %3718 = vmatpush2.msra.mxu0 0.0
        %3719 = vmatprep.subr.mxu0 0.0
        %3720 = vmatpush2.msra.mxu0 0.0
        %3721 = vmatprep.subr.mxu0 0.0
        %3722 = vmatpush2.msra.mxu0 0.0
        %3723 = vmatprep.subr.mxu0 0.0
        %3724 = vmatpush2.msra.mxu0 0.0
        %3725 = vmatprep.subr.mxu0 0.0
        %3726 = vmatpush2.msra.mxu0 0.0
        %3727 = vmatprep.mubr.f32.mxu0 0.0
        %3728 = vmatmul.mubr.f32.gmra.mxu0 %v1186
        %v3729 = vpop.f32.mrf.mxu0
        %v3730 = vadd.f32 0.0, %v3729
        %v3731 = vpop.f32.mrf.mxu0
        %3732 = vdwg.mxu0
        %3733 = vmatprep.subr.mxu0 0.0
        %3734 = vmatpush1.msra.mxu0 0.0
        %3735 = vmatprep.subr.mxu0 0.0
        %3736 = vmatpush1.msra.mxu0 0.0
        %3737 = vmatprep.subr.mxu0 0.0
        %3738 = vmatpush1.msra.mxu0 0.0
        %3739 = vmatprep.subr.mxu0 0.0
        %3740 = vmatpush1.msra.mxu0 0.0
        %3741 = vmatprep.subr.mxu0 0.0
        %3742 = vmatpush1.msra.mxu0 0.0
        %3743 = vmatprep.subr.mxu0 0.0
        %3744 = vmatpush1.msra.mxu0 0.0
        %3745 = vmatprep.subr.mxu0 0.0
        %3746 = vmatpush1.msra.mxu0 0.0
        %3747 = vmatprep.subr.mxu0 0.0
        %3748 = vmatpush1.msra.mxu0 0.0
        %3749 = vmatprep.subr.mxu0 0.0
        %3750 = vmatpush1.msra.mxu0 0.0
        %3751 = vmatprep.subr.mxu0 0.0
        %3752 = vmatpush1.msra.mxu0 0.0
        %3753 = vmatprep.subr.mxu0 0.0
        %3754 = vmatpush1.msra.mxu0 0.0
        %3755 = vmatprep.subr.mxu0 0.0
        %3756 = vmatpush1.msra.mxu0 0.0
        %3757 = vmatprep.subr.mxu0 0.0
        %3758 = vmatpush1.msra.mxu0 %v1153
        %3759 = vmatprep.subr.mxu0 0.0
        %3760 = vmatpush1.msra.mxu0 %v1152
        %3761 = vmatprep.subr.mxu0 0.0
        %3762 = vmatpush1.msra.mxu0 %v1151
        %3763 = vmatprep.subr.mxu0 0.0
        %3764 = vmatpush1.msra.mxu0 %v1150
        %3765 = vmatprep.subr.mxu0 0.0
        %3766 = vmatpush2.msra.mxu0 0.0
        %3767 = vmatprep.subr.mxu0 0.0
        %3768 = vmatpush2.msra.mxu0 0.0
        %3769 = vmatprep.subr.mxu0 0.0
        %3770 = vmatpush2.msra.mxu0 0.0
        %3771 = vmatprep.subr.mxu0 0.0
        %3772 = vmatpush2.msra.mxu0 0.0
        %3773 = vmatprep.subr.mxu0 0.0
        %3774 = vmatpush2.msra.mxu0 0.0
        %3775 = vmatprep.subr.mxu0 0.0
        %3776 = vmatpush2.msra.mxu0 0.0
        %3777 = vmatprep.subr.mxu0 0.0
        %3778 = vmatpush2.msra.mxu0 0.0
        %3779 = vmatprep.subr.mxu0 0.0
        %3780 = vmatpush2.msra.mxu0 0.0
        %3781 = vmatprep.subr.mxu0 0.0
        %3782 = vmatpush2.msra.mxu0 0.0
        %3783 = vmatprep.subr.mxu0 0.0
        %3784 = vmatpush2.msra.mxu0 0.0
        %3785 = vmatprep.subr.mxu0 0.0
        %3786 = vmatpush2.msra.mxu0 0.0
        %3787 = vmatprep.subr.mxu0 0.0
        %3788 = vmatpush2.msra.mxu0 0.0
        %3789 = vmatprep.subr.mxu0 0.0
        %3790 = vmatpush2.msra.mxu0 0.0
        %3791 = vmatprep.subr.mxu0 0.0
        %3792 = vmatpush2.msra.mxu0 0.0
        %3793 = vmatprep.subr.mxu0 0.0
        %3794 = vmatpush2.msra.mxu0 0.0
        %3795 = vmatprep.subr.mxu0 0.0
        %3796 = vmatpush2.msra.mxu0 0.0
        %3797 = vmatprep.mubr.f32.mxu0 0.0
        %3798 = vmatmul.mubr.f32.gmra.mxu0 %v1186
        %v3799 = vpop.f32.mrf.mxu0
        %v3800 = vadd.f32 0.0, %v3799
        %v3801 = vpop.f32.mrf.mxu0
        %3802 = vdwg.mxu0
        %3803 = vmatprep.subr.mxu0 0.0
        %3804 = vmatpush1.msra.mxu0 0.0
        %3805 = vmatprep.subr.mxu0 0.0
        %3806 = vmatpush1.msra.mxu0 0.0
        %3807 = vmatprep.subr.mxu0 0.0
        %3808 = vmatpush1.msra.mxu0 0.0
        %3809 = vmatprep.subr.mxu0 0.0
        %3810 = vmatpush1.msra.mxu0 0.0
        %3811 = vmatprep.subr.mxu0 0.0
        %3812 = vmatpush1.msra.mxu0 0.0
        %3813 = vmatprep.subr.mxu0 0.0
        %3814 = vmatpush1.msra.mxu0 0.0
        %3815 = vmatprep.subr.mxu0 0.0
        %3816 = vmatpush1.msra.mxu0 0.0
        %3817 = vmatprep.subr.mxu0 0.0
        %3818 = vmatpush1.msra.mxu0 0.0
        %3819 = vmatprep.subr.mxu0 0.0
        %3820 = vmatpush1.msra.mxu0 0.0
        %3821 = vmatprep.subr.mxu0 0.0
        %3822 = vmatpush1.msra.mxu0 0.0
        %3823 = vmatprep.subr.mxu0 0.0
        %3824 = vmatpush1.msra.mxu0 0.0
        %3825 = vmatprep.subr.mxu0 0.0
        %3826 = vmatpush1.msra.mxu0 0.0
        %3827 = vmatprep.subr.mxu0 0.0
        %3828 = vmatpush1.msra.mxu0 %v1157
        %3829 = vmatprep.subr.mxu0 0.0
        %3830 = vmatpush1.msra.mxu0 %v1156
        %3831 = vmatprep.subr.mxu0 0.0
        %3832 = vmatpush1.msra.mxu0 %v1155
        %3833 = vmatprep.subr.mxu0 0.0
        %3834 = vmatpush1.msra.mxu0 %v1154
        %3835 = vmatprep.subr.mxu0 0.0
        %3836 = vmatpush2.msra.mxu0 0.0
        %3837 = vmatprep.subr.mxu0 0.0
        %3838 = vmatpush2.msra.mxu0 0.0
        %3839 = vmatprep.subr.mxu0 0.0
        %3840 = vmatpush2.msra.mxu0 0.0
        %3841 = vmatprep.subr.mxu0 0.0
        %3842 = vmatpush2.msra.mxu0 0.0
        %3843 = vmatprep.subr.mxu0 0.0
        %3844 = vmatpush2.msra.mxu0 0.0
        %3845 = vmatprep.subr.mxu0 0.0
        %3846 = vmatpush2.msra.mxu0 0.0
        %3847 = vmatprep.subr.mxu0 0.0
        %3848 = vmatpush2.msra.mxu0 0.0
        %3849 = vmatprep.subr.mxu0 0.0
        %3850 = vmatpush2.msra.mxu0 0.0
        %3851 = vmatprep.subr.mxu0 0.0
        %3852 = vmatpush2.msra.mxu0 0.0
        %3853 = vmatprep.subr.mxu0 0.0
        %3854 = vmatpush2.msra.mxu0 0.0
        %3855 = vmatprep.subr.mxu0 0.0
        %3856 = vmatpush2.msra.mxu0 0.0
        %3857 = vmatprep.subr.mxu0 0.0
        %3858 = vmatpush2.msra.mxu0 0.0
        %3859 = vmatprep.subr.mxu0 0.0
        %3860 = vmatpush2.msra.mxu0 0.0
        %3861 = vmatprep.subr.mxu0 0.0
        %3862 = vmatpush2.msra.mxu0 0.0
        %3863 = vmatprep.subr.mxu0 0.0
        %3864 = vmatpush2.msra.mxu0 0.0
        %3865 = vmatprep.subr.mxu0 0.0
        %3866 = vmatpush2.msra.mxu0 0.0
        %3867 = vmatprep.mubr.f32.mxu0 0.0
        %3868 = vmatmul.mubr.f32.gmra.mxu0 %v1186
        %v3869 = vpop.f32.mrf.mxu0
        %v3870 = vadd.f32 0.0, %v3869
        %v3871 = vpop.f32.mrf.mxu0
        %3872 = vdwg.mxu0
        %v3874 = vsel %vm2032, %v3309, 0
        %v3877 = vsel %vm2032, %v3380, 0
        %3879 = vmatprep.subr.mxu0 0.0
        %3880 = vmatpush1.xpose.msra.mxu0 0.0
        %3881 = vmatprep.subr.mxu0 0.0
        %3882 = vmatpush1.xpose.msra.mxu0 0.0
        %3883 = vmatprep.subr.mxu0 0.0
        %3884 = vmatpush1.xpose.msra.mxu0 0.0
        %3885 = vmatprep.subr.mxu0 0.0
        %3886 = vmatpush1.xpose.msra.mxu0 0.0
        %3887 = vmatprep.subr.mxu0 0.0
        %3888 = vmatpush1.xpose.msra.mxu0 0.0
        %3889 = vmatprep.subr.mxu0 0.0
        %3890 = vmatpush1.xpose.msra.mxu0 0.0
        %3891 = vmatprep.subr.mxu0 0.0
        %3892 = vmatpush1.xpose.msra.mxu0 0.0
        %3893 = vmatprep.subr.mxu0 0.0
        %3894 = vmatpush1.xpose.msra.mxu0 0.0
        %3895 = vmatprep.subr.mxu0 0.0
        %3896 = vmatpush1.xpose.msra.mxu0 0.0
        %3897 = vmatprep.subr.mxu0 0.0
        %3898 = vmatpush1.xpose.msra.mxu0 0.0
        %3899 = vmatprep.subr.mxu0 0.0
        %3900 = vmatpush1.xpose.msra.mxu0 0.0
        %3901 = vmatprep.subr.mxu0 0.0
        %3902 = vmatpush1.xpose.msra.mxu0 0.0
        %3903 = vmatprep.subr.mxu0 0.0
        %3904 = vmatpush1.xpose.msra.mxu0 0.0
        %3905 = vmatprep.subr.mxu0 0.0
        %3906 = vmatpush1.xpose.msra.mxu0 0.0
        %3907 = vmatprep.subr.mxu0 0.0
        %3908 = vmatpush1.xpose.msra.mxu0 0.0
        %3909 = vmatprep.subr.mxu0 0.0
        %3910 = vmatpush1.xpose.msra.mxu0 %v3877
        %3911 = vmatprep.subr.mxu0 0.0
        %3912 = vmatpush2.xpose.msra.mxu0 0.0
        %3913 = vmatprep.subr.mxu0 0.0
        %3914 = vmatpush2.xpose.msra.mxu0 0.0
        %3915 = vmatprep.subr.mxu0 0.0
        %3916 = vmatpush2.xpose.msra.mxu0 0.0
        %3917 = vmatprep.subr.mxu0 0.0
        %3918 = vmatpush2.xpose.msra.mxu0 0.0
        %3919 = vmatprep.subr.mxu0 0.0
        %3920 = vmatpush2.xpose.msra.mxu0 0.0
        %3921 = vmatprep.subr.mxu0 0.0
        %3922 = vmatpush2.xpose.msra.mxu0 0.0
        %3923 = vmatprep.subr.mxu0 0.0
        %3924 = vmatpush2.xpose.msra.mxu0 0.0
        %3925 = vmatprep.subr.mxu0 0.0
        %3926 = vmatpush2.xpose.msra.mxu0 0.0
        %3927 = vmatprep.subr.mxu0 0.0
        %3928 = vmatpush2.xpose.msra.mxu0 0.0
        %3929 = vmatprep.subr.mxu0 0.0
        %3930 = vmatpush2.xpose.msra.mxu0 0.0
        %3931 = vmatprep.subr.mxu0 0.0
        %3932 = vmatpush2.xpose.msra.mxu0 0.0
        %3933 = vmatprep.subr.mxu0 0.0
        %3934 = vmatpush2.xpose.msra.mxu0 0.0
        %3935 = vmatprep.subr.mxu0 0.0
        %3936 = vmatpush2.xpose.msra.mxu0 0.0
        %3937 = vmatprep.subr.mxu0 0.0
        %3938 = vmatpush2.xpose.msra.mxu0 0.0
        %3939 = vmatprep.subr.mxu0 0.0
        %3940 = vmatpush2.xpose.msra.mxu0 0.0
        %3941 = vmatprep.subr.mxu0 0.0
        %3942 = vmatpush2.xpose.msra.mxu0 0.0
        %3943 = vmatprep.mubr.f32.mxu0 0.0
        %3944 = vmatmul.mubr.f32.gmra.mxu0 %v3874
        %v3945 = vpop.f32.mrf.mxu0
        %v3946 = vadd.f32 0.0, %v3945
        %v3947 = vpop.f32.mrf.mxu0
        %3948 = vdwg.mxu0
        %v3950 = vsel %vm2032, %v3310, 0
        %v3953 = vsel %vm2032, %v3450, 0
        %3955 = vmatprep.subr.mxu0 0.0
        %3956 = vmatpush1.xpose.msra.mxu0 0.0
        %3957 = vmatprep.subr.mxu0 0.0
        %3958 = vmatpush1.xpose.msra.mxu0 0.0
        %3959 = vmatprep.subr.mxu0 0.0
        %3960 = vmatpush1.xpose.msra.mxu0 0.0
        %3961 = vmatprep.subr.mxu0 0.0
        %3962 = vmatpush1.xpose.msra.mxu0 0.0
        %3963 = vmatprep.subr.mxu0 0.0
        %3964 = vmatpush1.xpose.msra.mxu0 0.0
        %3965 = vmatprep.subr.mxu0 0.0
        %3966 = vmatpush1.xpose.msra.mxu0 0.0
        %3967 = vmatprep.subr.mxu0 0.0
        %3968 = vmatpush1.xpose.msra.mxu0 0.0
        %3969 = vmatprep.subr.mxu0 0.0
        %3970 = vmatpush1.xpose.msra.mxu0 0.0
        %3971 = vmatprep.subr.mxu0 0.0
        %3972 = vmatpush1.xpose.msra.mxu0 0.0
        %3973 = vmatprep.subr.mxu0 0.0
        %3974 = vmatpush1.xpose.msra.mxu0 0.0
        %3975 = vmatprep.subr.mxu0 0.0
        %3976 = vmatpush1.xpose.msra.mxu0 0.0
        %3977 = vmatprep.subr.mxu0 0.0
        %3978 = vmatpush1.xpose.msra.mxu0 0.0
        %3979 = vmatprep.subr.mxu0 0.0
        %3980 = vmatpush1.xpose.msra.mxu0 0.0
        %3981 = vmatprep.subr.mxu0 0.0
        %3982 = vmatpush1.xpose.msra.mxu0 0.0
        %3983 = vmatprep.subr.mxu0 0.0
        %3984 = vmatpush1.xpose.msra.mxu0 0.0
        %3985 = vmatprep.subr.mxu0 0.0
        %3986 = vmatpush1.xpose.msra.mxu0 %v3953
        %3987 = vmatprep.subr.mxu0 0.0
        %3988 = vmatpush2.xpose.msra.mxu0 0.0
        %3989 = vmatprep.subr.mxu0 0.0
        %3990 = vmatpush2.xpose.msra.mxu0 0.0
        %3991 = vmatprep.subr.mxu0 0.0
        %3992 = vmatpush2.xpose.msra.mxu0 0.0
        %3993 = vmatprep.subr.mxu0 0.0
        %3994 = vmatpush2.xpose.msra.mxu0 0.0
        %3995 = vmatprep.subr.mxu0 0.0
        %3996 = vmatpush2.xpose.msra.mxu0 0.0
        %3997 = vmatprep.subr.mxu0 0.0
        %3998 = vmatpush2.xpose.msra.mxu0 0.0
        %3999 = vmatprep.subr.mxu0 0.0
        %4000 = vmatpush2.xpose.msra.mxu0 0.0
        %4001 = vmatprep.subr.mxu0 0.0
        %4002 = vmatpush2.xpose.msra.mxu0 0.0
        %4003 = vmatprep.subr.mxu0 0.0
        %4004 = vmatpush2.xpose.msra.mxu0 0.0
        %4005 = vmatprep.subr.mxu0 0.0
        %4006 = vmatpush2.xpose.msra.mxu0 0.0
        %4007 = vmatprep.subr.mxu0 0.0
        %4008 = vmatpush2.xpose.msra.mxu0 0.0
        %4009 = vmatprep.subr.mxu0 0.0
        %4010 = vmatpush2.xpose.msra.mxu0 0.0
        %4011 = vmatprep.subr.mxu0 0.0
        %4012 = vmatpush2.xpose.msra.mxu0 0.0
        %4013 = vmatprep.subr.mxu0 0.0
        %4014 = vmatpush2.xpose.msra.mxu0 0.0
        %4015 = vmatprep.subr.mxu0 0.0
        %4016 = vmatpush2.xpose.msra.mxu0 0.0
        %4017 = vmatprep.subr.mxu0 0.0
        %4018 = vmatpush2.xpose.msra.mxu0 0.0
        %4019 = vmatprep.mubr.f32.mxu0 0.0
        %4020 = vmatmul.mubr.f32.gmra.mxu0 %v3950
        %v4021 = vpop.f32.mrf.mxu0
        %v4022 = vadd.f32 0.0, %v4021
        %v4023 = vpop.f32.mrf.mxu0
        %4024 = vdwg.mxu0
        %v4026 = vsel %vm2032, %v3311, 0
        %v4029 = vsel %vm2032, %v3520, 0
        %4031 = vmatprep.subr.mxu0 0.0
        %4032 = vmatpush1.xpose.msra.mxu0 0.0
        %4033 = vmatprep.subr.mxu0 0.0
        %4034 = vmatpush1.xpose.msra.mxu0 0.0
        %4035 = vmatprep.subr.mxu0 0.0
        %4036 = vmatpush1.xpose.msra.mxu0 0.0
        %4037 = vmatprep.subr.mxu0 0.0
        %4038 = vmatpush1.xpose.msra.mxu0 0.0
        %4039 = vmatprep.subr.mxu0 0.0
        %4040 = vmatpush1.xpose.msra.mxu0 0.0
        %4041 = vmatprep.subr.mxu0 0.0
        %4042 = vmatpush1.xpose.msra.mxu0 0.0
        %4043 = vmatprep.subr.mxu0 0.0
        %4044 = vmatpush1.xpose.msra.mxu0 0.0
        %4045 = vmatprep.subr.mxu0 0.0
        %4046 = vmatpush1.xpose.msra.mxu0 0.0
        %4047 = vmatprep.subr.mxu0 0.0
        %4048 = vmatpush1.xpose.msra.mxu0 0.0
        %4049 = vmatprep.subr.mxu0 0.0
        %4050 = vmatpush1.xpose.msra.mxu0 0.0
        %4051 = vmatprep.subr.mxu0 0.0
        %4052 = vmatpush1.xpose.msra.mxu0 0.0
        %4053 = vmatprep.subr.mxu0 0.0
        %4054 = vmatpush1.xpose.msra.mxu0 0.0
        %4055 = vmatprep.subr.mxu0 0.0
        %4056 = vmatpush1.xpose.msra.mxu0 0.0
        %4057 = vmatprep.subr.mxu0 0.0
        %4058 = vmatpush1.xpose.msra.mxu0 0.0
        %4059 = vmatprep.subr.mxu0 0.0
        %4060 = vmatpush1.xpose.msra.mxu0 0.0
        %4061 = vmatprep.subr.mxu0 0.0
        %4062 = vmatpush1.xpose.msra.mxu0 %v4029
        %4063 = vmatprep.subr.mxu0 0.0
        %4064 = vmatpush2.xpose.msra.mxu0 0.0
        %4065 = vmatprep.subr.mxu0 0.0
        %4066 = vmatpush2.xpose.msra.mxu0 0.0
        %4067 = vmatprep.subr.mxu0 0.0
        %4068 = vmatpush2.xpose.msra.mxu0 0.0
        %4069 = vmatprep.subr.mxu0 0.0
        %4070 = vmatpush2.xpose.msra.mxu0 0.0
        %4071 = vmatprep.subr.mxu0 0.0
        %4072 = vmatpush2.xpose.msra.mxu0 0.0
        %4073 = vmatprep.subr.mxu0 0.0
        %4074 = vmatpush2.xpose.msra.mxu0 0.0
        %4075 = vmatprep.subr.mxu0 0.0
        %4076 = vmatpush2.xpose.msra.mxu0 0.0
        %4077 = vmatprep.subr.mxu0 0.0
        %4078 = vmatpush2.xpose.msra.mxu0 0.0
        %4079 = vmatprep.subr.mxu0 0.0
        %4080 = vmatpush2.xpose.msra.mxu0 0.0
        %4081 = vmatprep.subr.mxu0 0.0
        %4082 = vmatpush2.xpose.msra.mxu0 0.0
        %4083 = vmatprep.subr.mxu0 0.0
        %4084 = vmatpush2.xpose.msra.mxu0 0.0
        %4085 = vmatprep.subr.mxu0 0.0
        %4086 = vmatpush2.xpose.msra.mxu0 0.0
        %4087 = vmatprep.subr.mxu0 0.0
        %4088 = vmatpush2.xpose.msra.mxu0 0.0
        %4089 = vmatprep.subr.mxu0 0.0
        %4090 = vmatpush2.xpose.msra.mxu0 0.0
        %4091 = vmatprep.subr.mxu0 0.0
        %4092 = vmatpush2.xpose.msra.mxu0 0.0
        %4093 = vmatprep.subr.mxu0 0.0
        %4094 = vmatpush2.xpose.msra.mxu0 0.0
        %4095 = vmatprep.mubr.f32.mxu0 0.0
        %4096 = vmatmul.mubr.f32.gmra.mxu0 %v4026
        %v4097 = vpop.f32.mrf.mxu0
        %v4098 = vadd.f32 0.0, %v4097
        %v4099 = vpop.f32.mrf.mxu0
        %4100 = vdwg.mxu0
        %v4102 = vsel %vm2032, %v3312, 0
        %v4105 = vsel %vm2032, %v3590, 0
        %4107 = vmatprep.subr.mxu0 0.0
        %4108 = vmatpush1.xpose.msra.mxu0 0.0
        %4109 = vmatprep.subr.mxu0 0.0
        %4110 = vmatpush1.xpose.msra.mxu0 0.0
        %4111 = vmatprep.subr.mxu0 0.0
        %4112 = vmatpush1.xpose.msra.mxu0 0.0
        %4113 = vmatprep.subr.mxu0 0.0
        %4114 = vmatpush1.xpose.msra.mxu0 0.0
        %4115 = vmatprep.subr.mxu0 0.0
        %4116 = vmatpush1.xpose.msra.mxu0 0.0
        %4117 = vmatprep.subr.mxu0 0.0
        %4118 = vmatpush1.xpose.msra.mxu0 0.0
        %4119 = vmatprep.subr.mxu0 0.0
        %4120 = vmatpush1.xpose.msra.mxu0 0.0
        %4121 = vmatprep.subr.mxu0 0.0
        %4122 = vmatpush1.xpose.msra.mxu0 0.0
        %4123 = vmatprep.subr.mxu0 0.0
        %4124 = vmatpush1.xpose.msra.mxu0 0.0
        %4125 = vmatprep.subr.mxu0 0.0
        %4126 = vmatpush1.xpose.msra.mxu0 0.0
        %4127 = vmatprep.subr.mxu0 0.0
        %4128 = vmatpush1.xpose.msra.mxu0 0.0
        %4129 = vmatprep.subr.mxu0 0.0
        %4130 = vmatpush1.xpose.msra.mxu0 0.0
        %4131 = vmatprep.subr.mxu0 0.0
        %4132 = vmatpush1.xpose.msra.mxu0 0.0
        %4133 = vmatprep.subr.mxu0 0.0
        %4134 = vmatpush1.xpose.msra.mxu0 0.0
        %4135 = vmatprep.subr.mxu0 0.0
        %4136 = vmatpush1.xpose.msra.mxu0 0.0
        %4137 = vmatprep.subr.mxu0 0.0
        %4138 = vmatpush1.xpose.msra.mxu0 %v4105
        %4139 = vmatprep.subr.mxu0 0.0
        %4140 = vmatpush2.xpose.msra.mxu0 0.0
        %4141 = vmatprep.subr.mxu0 0.0
        %4142 = vmatpush2.xpose.msra.mxu0 0.0
        %4143 = vmatprep.subr.mxu0 0.0
        %4144 = vmatpush2.xpose.msra.mxu0 0.0
        %4145 = vmatprep.subr.mxu0 0.0
        %4146 = vmatpush2.xpose.msra.mxu0 0.0
        %4147 = vmatprep.subr.mxu0 0.0
        %4148 = vmatpush2.xpose.msra.mxu0 0.0
        %4149 = vmatprep.subr.mxu0 0.0
        %4150 = vmatpush2.xpose.msra.mxu0 0.0
        %4151 = vmatprep.subr.mxu0 0.0
        %4152 = vmatpush2.xpose.msra.mxu0 0.0
        %4153 = vmatprep.subr.mxu0 0.0
        %4154 = vmatpush2.xpose.msra.mxu0 0.0
        %4155 = vmatprep.subr.mxu0 0.0
        %4156 = vmatpush2.xpose.msra.mxu0 0.0
        %4157 = vmatprep.subr.mxu0 0.0
        %4158 = vmatpush2.xpose.msra.mxu0 0.0
        %4159 = vmatprep.subr.mxu0 0.0
        %4160 = vmatpush2.xpose.msra.mxu0 0.0
        %4161 = vmatprep.subr.mxu0 0.0
        %4162 = vmatpush2.xpose.msra.mxu0 0.0
        %4163 = vmatprep.subr.mxu0 0.0
        %4164 = vmatpush2.xpose.msra.mxu0 0.0
        %4165 = vmatprep.subr.mxu0 0.0
        %4166 = vmatpush2.xpose.msra.mxu0 0.0
        %4167 = vmatprep.subr.mxu0 0.0
        %4168 = vmatpush2.xpose.msra.mxu0 0.0
        %4169 = vmatprep.subr.mxu0 0.0
        %4170 = vmatpush2.xpose.msra.mxu0 0.0
        %4171 = vmatprep.mubr.f32.mxu0 0.0
        %4172 = vmatmul.mubr.f32.gmra.mxu0 %v4102
        %v4173 = vpop.f32.mrf.mxu0
        %v4174 = vadd.f32 0.0, %v4173
        %v4175 = vpop.f32.mrf.mxu0
        %4176 = vdwg.mxu0
        %v4177 = vsel %vm2032, %v3946, -inf
        %4178 = vmax.xlane.f32.xlu0 %v4177
        %v4179 = vpop.xlane.xlu0 %4178
        %v4180 = vsel %vm2032, %v4022, -inf
        %4181 = vmax.xlane.f32.xlu0 %v4180
        %v4182 = vpop.xlane.xlu0 %4181
        %v4183 = vsel %vm2032, %v4098, -inf
        %4184 = vmax.xlane.f32.xlu0 %v4183
        %v4185 = vpop.xlane.xlu0 %4184
        %v4186 = vsel %vm2032, %v4174, -inf
        %4187 = vmax.xlane.f32.xlu0 %v4186
        %v4188 = vpop.xlane.xlu0 %4187
        %v4189 = vsub.f32 %v3946, %v4179
        %v4190 = vsub.f32 %v4022, %v4182
        %v4191 = vsub.f32 %v4098, %v4185
        %v4192 = vsub.f32 %v4174, %v4188
        %v4193 = vmul.f32 %v4189, 1.442695
        %v4194 = vpow.pop %v4193
        %v4195 = vmul.f32 %v4190, 1.442695
        %v4196 = vpow.pop %v4195
        %v4197 = vmul.f32 %v4191, 1.442695
        %v4198 = vpow.pop %v4197
        %v4199 = vmul.f32 %v4192, 1.442695
        %v4200 = vpow.pop %v4199
        %v4201 = vsel %vm2032, %v4194, 0.0
        %4202 = vadd.xlane.f32.xlu0 %v4201
        %v4203 = vpop.xlane.xlu0 %4202
        %v4204 = vsel %vm2032, %v4196, 0.0
        %4205 = vadd.xlane.f32.xlu0 %v4204
        %v4206 = vpop.xlane.xlu0 %4205
        %v4207 = vsel %vm2032, %v4198, 0.0
        %4208 = vadd.xlane.f32.xlu0 %v4207
        %v4209 = vpop.xlane.xlu0 %4208
        %v4210 = vsel %vm2032, %v4200, 0.0
        %4211 = vadd.xlane.f32.xlu0 %v4210
        %v4212 = vpop.xlane.xlu0 %4211
        %v4213 = vrcp.pop %v4203
        %v4214 = vrcp.pop %v4206
        %v4215 = vrcp.pop %v4209
        %v4216 = vrcp.pop %v4212
        %v4217 = vmul.f32 %v4194, %v4213
        %v4218 = vmul.f32 %v4196, %v4214
        %v4219 = vmul.f32 %v4198, %v4215
        %v4220 = vmul.f32 %v4200, %v4216
        %v4222 = vsel %vm2032, %v4217, 0
        %4224 = vmatprep.subr.mxu0 0.0
        %4225 = vmatpush1.msra.mxu0 0.0
        %4226 = vmatprep.subr.mxu0 0.0
        %4227 = vmatpush1.msra.mxu0 0.0
        %4228 = vmatprep.subr.mxu0 0.0
        %4229 = vmatpush1.msra.mxu0 0.0
        %4230 = vmatprep.subr.mxu0 0.0
        %4231 = vmatpush1.msra.mxu0 0.0
        %4232 = vmatprep.subr.mxu0 0.0
        %4233 = vmatpush1.msra.mxu0 0.0
        %4234 = vmatprep.subr.mxu0 0.0
        %4235 = vmatpush1.msra.mxu0 0.0
        %4236 = vmatprep.subr.mxu0 0.0
        %4237 = vmatpush1.msra.mxu0 0.0
        %4238 = vmatprep.subr.mxu0 0.0
        %4239 = vmatpush1.msra.mxu0 0.0
        %4240 = vmatprep.subr.mxu0 0.0
        %4241 = vmatpush1.msra.mxu0 0.0
        %4242 = vmatprep.subr.mxu0 0.0
        %4243 = vmatpush1.msra.mxu0 0.0
        %4244 = vmatprep.subr.mxu0 0.0
        %4245 = vmatpush1.msra.mxu0 0.0
        %4246 = vmatprep.subr.mxu0 0.0
        %4247 = vmatpush1.msra.mxu0 0.0
        %4248 = vmatprep.subr.mxu0 0.0
        %4249 = vmatpush1.msra.mxu0 0.0
        %4250 = vmatprep.subr.mxu0 0.0
        %4251 = vmatpush1.msra.mxu0 0.0
        %4252 = vmatprep.subr.mxu0 0.0
        %4253 = vmatpush1.msra.mxu0 0.0
        %4254 = vmatprep.subr.mxu0 0.0
        %4255 = vmatpush1.msra.mxu0 %v3660
        %4256 = vmatprep.subr.mxu0 0.0
        %4257 = vmatpush2.msra.mxu0 0.0
        %4258 = vmatprep.subr.mxu0 0.0
        %4259 = vmatpush2.msra.mxu0 0.0
        %4260 = vmatprep.subr.mxu0 0.0
        %4261 = vmatpush2.msra.mxu0 0.0
        %4262 = vmatprep.subr.mxu0 0.0
        %4263 = vmatpush2.msra.mxu0 0.0
        %4264 = vmatprep.subr.mxu0 0.0
        %4265 = vmatpush2.msra.mxu0 0.0
        %4266 = vmatprep.subr.mxu0 0.0
        %4267 = vmatpush2.msra.mxu0 0.0
        %4268 = vmatprep.subr.mxu0 0.0
        %4269 = vmatpush2.msra.mxu0 0.0
        %4270 = vmatprep.subr.mxu0 0.0
        %4271 = vmatpush2.msra.mxu0 0.0
        %4272 = vmatprep.subr.mxu0 0.0
        %4273 = vmatpush2.msra.mxu0 0.0
        %4274 = vmatprep.subr.mxu0 0.0
        %4275 = vmatpush2.msra.mxu0 0.0
        %4276 = vmatprep.subr.mxu0 0.0
        %4277 = vmatpush2.msra.mxu0 0.0
        %4278 = vmatprep.subr.mxu0 0.0
        %4279 = vmatpush2.msra.mxu0 0.0
        %4280 = vmatprep.subr.mxu0 0.0
        %4281 = vmatpush2.msra.mxu0 0.0
        %4282 = vmatprep.subr.mxu0 0.0
        %4283 = vmatpush2.msra.mxu0 0.0
        %4284 = vmatprep.subr.mxu0 0.0
        %4285 = vmatpush2.msra.mxu0 0.0
        %4286 = vmatprep.subr.mxu0 0.0
        %4287 = vmatpush2.msra.mxu0 0.0
        %4288 = vmatprep.mubr.f32.mxu0 0.0
        %4289 = vmatmul.mubr.f32.gmra.mxu0 %v4222
        %v4290 = vpop.f32.mrf.mxu0
        %v4291 = vadd.f32 0.0, %v4290
        %v4292 = vpop.f32.mrf.mxu0
        %4293 = vdwg.mxu0
        %v4295 = vsel %vm2032, %v4218, 0
        %4297 = vmatprep.subr.mxu0 0.0
        %4298 = vmatpush1.msra.mxu0 0.0
        %4299 = vmatprep.subr.mxu0 0.0
        %4300 = vmatpush1.msra.mxu0 0.0
        %4301 = vmatprep.subr.mxu0 0.0
        %4302 = vmatpush1.msra.mxu0 0.0
        %4303 = vmatprep.subr.mxu0 0.0
        %4304 = vmatpush1.msra.mxu0 0.0
        %4305 = vmatprep.subr.mxu0 0.0
        %4306 = vmatpush1.msra.mxu0 0.0
        %4307 = vmatprep.subr.mxu0 0.0
        %4308 = vmatpush1.msra.mxu0 0.0
        %4309 = vmatprep.subr.mxu0 0.0
        %4310 = vmatpush1.msra.mxu0 0.0
        %4311 = vmatprep.subr.mxu0 0.0
        %4312 = vmatpush1.msra.mxu0 0.0
        %4313 = vmatprep.subr.mxu0 0.0
        %4314 = vmatpush1.msra.mxu0 0.0
        %4315 = vmatprep.subr.mxu0 0.0
        %4316 = vmatpush1.msra.mxu0 0.0
        %4317 = vmatprep.subr.mxu0 0.0
        %4318 = vmatpush1.msra.mxu0 0.0
        %4319 = vmatprep.subr.mxu0 0.0
        %4320 = vmatpush1.msra.mxu0 0.0
        %4321 = vmatprep.subr.mxu0 0.0
        %4322 = vmatpush1.msra.mxu0 0.0
        %4323 = vmatprep.subr.mxu0 0.0
        %4324 = vmatpush1.msra.mxu0 0.0
        %4325 = vmatprep.subr.mxu0 0.0
        %4326 = vmatpush1.msra.mxu0 0.0
        %4327 = vmatprep.subr.mxu0 0.0
        %4328 = vmatpush1.msra.mxu0 %v3730
        %4329 = vmatprep.subr.mxu0 0.0
        %4330 = vmatpush2.msra.mxu0 0.0
        %4331 = vmatprep.subr.mxu0 0.0
        %4332 = vmatpush2.msra.mxu0 0.0
        %4333 = vmatprep.subr.mxu0 0.0
        %4334 = vmatpush2.msra.mxu0 0.0
        %4335 = vmatprep.subr.mxu0 0.0
        %4336 = vmatpush2.msra.mxu0 0.0
        %4337 = vmatprep.subr.mxu0 0.0
        %4338 = vmatpush2.msra.mxu0 0.0
        %4339 = vmatprep.subr.mxu0 0.0
        %4340 = vmatpush2.msra.mxu0 0.0
        %4341 = vmatprep.subr.mxu0 0.0
        %4342 = vmatpush2.msra.mxu0 0.0
        %4343 = vmatprep.subr.mxu0 0.0
        %4344 = vmatpush2.msra.mxu0 0.0
        %4345 = vmatprep.subr.mxu0 0.0
        %4346 = vmatpush2.msra.mxu0 0.0
        %4347 = vmatprep.subr.mxu0 0.0
        %4348 = vmatpush2.msra.mxu0 0.0
        %4349 = vmatprep.subr.mxu0 0.0
        %4350 = vmatpush2.msra.mxu0 0.0
        %4351 = vmatprep.subr.mxu0 0.0
        %4352 = vmatpush2.msra.mxu0 0.0
        %4353 = vmatprep.subr.mxu0 0.0
        %4354 = vmatpush2.msra.mxu0 0.0
        %4355 = vmatprep.subr.mxu0 0.0
        %4356 = vmatpush2.msra.mxu0 0.0
        %4357 = vmatprep.subr.mxu0 0.0
        %4358 = vmatpush2.msra.mxu0 0.0
        %4359 = vmatprep.subr.mxu0 0.0
        %4360 = vmatpush2.msra.mxu0 0.0
        %4361 = vmatprep.mubr.f32.mxu0 0.0
        %4362 = vmatmul.mubr.f32.gmra.mxu0 %v4295
        %v4363 = vpop.f32.mrf.mxu0
        %v4364 = vadd.f32 0.0, %v4363
        %v4365 = vpop.f32.mrf.mxu0
        %4366 = vdwg.mxu0
        %v4368 = vsel %vm2032, %v4219, 0
        %4370 = vmatprep.subr.mxu0 0.0
        %4371 = vmatpush1.msra.mxu0 0.0
        %4372 = vmatprep.subr.mxu0 0.0
        %4373 = vmatpush1.msra.mxu0 0.0
        %4374 = vmatprep.subr.mxu0 0.0
        %4375 = vmatpush1.msra.mxu0 0.0
        %4376 = vmatprep.subr.mxu0 0.0
        %4377 = vmatpush1.msra.mxu0 0.0
        %4378 = vmatprep.subr.mxu0 0.0
        %4379 = vmatpush1.msra.mxu0 0.0
        %4380 = vmatprep.subr.mxu0 0.0
        %4381 = vmatpush1.msra.mxu0 0.0
        %4382 = vmatprep.subr.mxu0 0.0
        %4383 = vmatpush1.msra.mxu0 0.0
        %4384 = vmatprep.subr.mxu0 0.0
        %4385 = vmatpush1.msra.mxu0 0.0
        %4386 = vmatprep.subr.mxu0 0.0
        %4387 = vmatpush1.msra.mxu0 0.0
        %4388 = vmatprep.subr.mxu0 0.0
        %4389 = vmatpush1.msra.mxu0 0.0
        %4390 = vmatprep.subr.mxu0 0.0
        %4391 = vmatpush1.msra.mxu0 0.0
        %4392 = vmatprep.subr.mxu0 0.0
        %4393 = vmatpush1.msra.mxu0 0.0
        %4394 = vmatprep.subr.mxu0 0.0
        %4395 = vmatpush1.msra.mxu0 0.0
        %4396 = vmatprep.subr.mxu0 0.0
        %4397 = vmatpush1.msra.mxu0 0.0
        %4398 = vmatprep.subr.mxu0 0.0
        %4399 = vmatpush1.msra.mxu0 0.0
        %4400 = vmatprep.subr.mxu0 0.0
        %4401 = vmatpush1.msra.mxu0 %v3800
        %4402 = vmatprep.subr.mxu0 0.0
        %4403 = vmatpush2.msra.mxu0 0.0
        %4404 = vmatprep.subr.mxu0 0.0
        %4405 = vmatpush2.msra.mxu0 0.0
        %4406 = vmatprep.subr.mxu0 0.0
        %4407 = vmatpush2.msra.mxu0 0.0
        %4408 = vmatprep.subr.mxu0 0.0
        %4409 = vmatpush2.msra.mxu0 0.0
        %4410 = vmatprep.subr.mxu0 0.0
        %4411 = vmatpush2.msra.mxu0 0.0
        %4412 = vmatprep.subr.mxu0 0.0
        %4413 = vmatpush2.msra.mxu0 0.0
        %4414 = vmatprep.subr.mxu0 0.0
        %4415 = vmatpush2.msra.mxu0 0.0
        %4416 = vmatprep.subr.mxu0 0.0
        %4417 = vmatpush2.msra.mxu0 0.0
        %4418 = vmatprep.subr.mxu0 0.0
        %4419 = vmatpush2.msra.mxu0 0.0
        %4420 = vmatprep.subr.mxu0 0.0
        %4421 = vmatpush2.msra.mxu0 0.0
        %4422 = vmatprep.subr.mxu0 0.0
        %4423 = vmatpush2.msra.mxu0 0.0
        %4424 = vmatprep.subr.mxu0 0.0
        %4425 = vmatpush2.msra.mxu0 0.0
        %4426 = vmatprep.subr.mxu0 0.0
        %4427 = vmatpush2.msra.mxu0 0.0
        %4428 = vmatprep.subr.mxu0 0.0
        %4429 = vmatpush2.msra.mxu0 0.0
        %4430 = vmatprep.subr.mxu0 0.0
        %4431 = vmatpush2.msra.mxu0 0.0
        %4432 = vmatprep.subr.mxu0 0.0
        %4433 = vmatpush2.msra.mxu0 0.0
        %4434 = vmatprep.mubr.f32.mxu0 0.0
        %4435 = vmatmul.mubr.f32.gmra.mxu0 %v4368
        %v4436 = vpop.f32.mrf.mxu0
        %v4437 = vadd.f32 0.0, %v4436
        %v4438 = vpop.f32.mrf.mxu0
        %4439 = vdwg.mxu0
        %v4441 = vsel %vm2032, %v4220, 0
        %4443 = vmatprep.subr.mxu0 0.0
        %4444 = vmatpush1.msra.mxu0 0.0
        %4445 = vmatprep.subr.mxu0 0.0
        %4446 = vmatpush1.msra.mxu0 0.0
        %4447 = vmatprep.subr.mxu0 0.0
        %4448 = vmatpush1.msra.mxu0 0.0
        %4449 = vmatprep.subr.mxu0 0.0
        %4450 = vmatpush1.msra.mxu0 0.0
        %4451 = vmatprep.subr.mxu0 0.0
        %4452 = vmatpush1.msra.mxu0 0.0
        %4453 = vmatprep.subr.mxu0 0.0
        %4454 = vmatpush1.msra.mxu0 0.0
        %4455 = vmatprep.subr.mxu0 0.0
        %4456 = vmatpush1.msra.mxu0 0.0
        %4457 = vmatprep.subr.mxu0 0.0
        %4458 = vmatpush1.msra.mxu0 0.0
        %4459 = vmatprep.subr.mxu0 0.0
        %4460 = vmatpush1.msra.mxu0 0.0
        %4461 = vmatprep.subr.mxu0 0.0
        %4462 = vmatpush1.msra.mxu0 0.0
        %4463 = vmatprep.subr.mxu0 0.0
        %4464 = vmatpush1.msra.mxu0 0.0
        %4465 = vmatprep.subr.mxu0 0.0
        %4466 = vmatpush1.msra.mxu0 0.0
        %4467 = vmatprep.subr.mxu0 0.0
        %4468 = vmatpush1.msra.mxu0 0.0
        %4469 = vmatprep.subr.mxu0 0.0
        %4470 = vmatpush1.msra.mxu0 0.0
        %4471 = vmatprep.subr.mxu0 0.0
        %4472 = vmatpush1.msra.mxu0 0.0
        %4473 = vmatprep.subr.mxu0 0.0
        %4474 = vmatpush1.msra.mxu0 %v3870
        %4475 = vmatprep.subr.mxu0 0.0
        %4476 = vmatpush2.msra.mxu0 0.0
        %4477 = vmatprep.subr.mxu0 0.0
        %4478 = vmatpush2.msra.mxu0 0.0
        %4479 = vmatprep.subr.mxu0 0.0
        %4480 = vmatpush2.msra.mxu0 0.0
        %4481 = vmatprep.subr.mxu0 0.0
        %4482 = vmatpush2.msra.mxu0 0.0
        %4483 = vmatprep.subr.mxu0 0.0
        %4484 = vmatpush2.msra.mxu0 0.0
        %4485 = vmatprep.subr.mxu0 0.0
        %4486 = vmatpush2.msra.mxu0 0.0
        %4487 = vmatprep.subr.mxu0 0.0
        %4488 = vmatpush2.msra.mxu0 0.0
        %4489 = vmatprep.subr.mxu0 0.0
        %4490 = vmatpush2.msra.mxu0 0.0
        %4491 = vmatprep.subr.mxu0 0.0
        %4492 = vmatpush2.msra.mxu0 0.0
        %4493 = vmatprep.subr.mxu0 0.0
        %4494 = vmatpush2.msra.mxu0 0.0
        %4495 = vmatprep.subr.mxu0 0.0
        %4496 = vmatpush2.msra.mxu0 0.0
        %4497 = vmatprep.subr.mxu0 0.0
        %4498 = vmatpush2.msra.mxu0 0.0
        %4499 = vmatprep.subr.mxu0 0.0
        %4500 = vmatpush2.msra.mxu0 0.0
        %4501 = vmatprep.subr.mxu0 0.0
        %4502 = vmatpush2.msra.mxu0 0.0
        %4503 = vmatprep.subr.mxu0 0.0
        %4504 = vmatpush2.msra.mxu0 0.0
        %4505 = vmatprep.subr.mxu0 0.0
        %4506 = vmatpush2.msra.mxu0 0.0
        %4507 = vmatprep.mubr.f32.mxu0 0.0
        %4508 = vmatmul.mubr.f32.gmra.mxu0 %v4441
        %v4509 = vpop.f32.mrf.mxu0
        %v4510 = vadd.f32 0.0, %v4509
        %v4511 = vpop.f32.mrf.mxu0
        %4512 = vdwg.mxu0
        %v4514 = vsel %vm2032, %v4291, 0
        %4516 = vmatprep.subr.mxu0 0.0
        %4517 = vmatpush1.msra.mxu0 0.0
        %4518 = vmatprep.subr.mxu0 0.0
        %4519 = vmatpush1.msra.mxu0 0.0
        %4520 = vmatprep.subr.mxu0 0.0
        %4521 = vmatpush1.msra.mxu0 0.0
        %4522 = vmatprep.subr.mxu0 0.0
        %4523 = vmatpush1.msra.mxu0 0.0
        %4524 = vmatprep.subr.mxu0 0.0
        %4525 = vmatpush1.msra.mxu0 0.0
        %4526 = vmatprep.subr.mxu0 0.0
        %4527 = vmatpush1.msra.mxu0 0.0
        %4528 = vmatprep.subr.mxu0 0.0
        %4529 = vmatpush1.msra.mxu0 0.0
        %4530 = vmatprep.subr.mxu0 0.0
        %4531 = vmatpush1.msra.mxu0 0.0
        %4532 = vmatprep.subr.mxu0 0.0
        %4533 = vmatpush1.msra.mxu0 0.0
        %4534 = vmatprep.subr.mxu0 0.0
        %4535 = vmatpush1.msra.mxu0 0.0
        %4536 = vmatprep.subr.mxu0 0.0
        %4537 = vmatpush1.msra.mxu0 0.0
        %4538 = vmatprep.subr.mxu0 0.0
        %4539 = vmatpush1.msra.mxu0 0.0
        %4540 = vmatprep.subr.mxu0 0.0
        %4541 = vmatpush1.msra.mxu0 0.0
        %4542 = vmatprep.subr.mxu0 0.0
        %4543 = vmatpush1.msra.mxu0 0.0
        %4544 = vmatprep.subr.mxu0 0.0
        %4545 = vmatpush1.msra.mxu0 0.0
        %4546 = vmatprep.subr.mxu0 0.0
        %4547 = vmatpush1.msra.mxu0 %v1158
        %4548 = vmatprep.subr.mxu0 0.0
        %4549 = vmatpush2.msra.mxu0 0.0
        %4550 = vmatprep.subr.mxu0 0.0
        %4551 = vmatpush2.msra.mxu0 0.0
        %4552 = vmatprep.subr.mxu0 0.0
        %4553 = vmatpush2.msra.mxu0 0.0
        %4554 = vmatprep.subr.mxu0 0.0
        %4555 = vmatpush2.msra.mxu0 0.0
        %4556 = vmatprep.subr.mxu0 0.0
        %4557 = vmatpush2.msra.mxu0 0.0
        %4558 = vmatprep.subr.mxu0 0.0
        %4559 = vmatpush2.msra.mxu0 0.0
        %4560 = vmatprep.subr.mxu0 0.0
        %4561 = vmatpush2.msra.mxu0 0.0
        %4562 = vmatprep.subr.mxu0 0.0
        %4563 = vmatpush2.msra.mxu0 0.0
        %4564 = vmatprep.subr.mxu0 0.0
        %4565 = vmatpush2.msra.mxu0 0.0
        %4566 = vmatprep.subr.mxu0 0.0
        %4567 = vmatpush2.msra.mxu0 0.0
        %4568 = vmatprep.subr.mxu0 0.0
        %4569 = vmatpush2.msra.mxu0 0.0
        %4570 = vmatprep.subr.mxu0 0.0
        %4571 = vmatpush2.msra.mxu0 0.0
        %4572 = vmatprep.subr.mxu0 0.0
        %4573 = vmatpush2.msra.mxu0 0.0
        %4574 = vmatprep.subr.mxu0 0.0
        %4575 = vmatpush2.msra.mxu0 0.0
        %4576 = vmatprep.subr.mxu0 0.0
        %4577 = vmatpush2.msra.mxu0 0.0
        %4578 = vmatprep.subr.mxu0 0.0
        %4579 = vmatpush2.msra.mxu0 0.0
        %4580 = vmatprep.mubr.f32.mxu0 0.0
        %4581 = vmatmul.mubr.f32.gmra.mxu0 %v4514
        %v4582 = vpop.f32.mrf.mxu0
        %v4583 = vadd.f32 0.0, %v4582
        %v4584 = vpop.f32.mrf.mxu0
        %4585 = vdwg.mxu0
        %v4587 = vsel %vm2032, %v4364, 0
        %4589 = vmatprep.subr.mxu0 0.0
        %4590 = vmatpush1.msra.mxu0 0.0
        %4591 = vmatprep.subr.mxu0 0.0
        %4592 = vmatpush1.msra.mxu0 0.0
        %4593 = vmatprep.subr.mxu0 0.0
        %4594 = vmatpush1.msra.mxu0 0.0
        %4595 = vmatprep.subr.mxu0 0.0
        %4596 = vmatpush1.msra.mxu0 0.0
        %4597 = vmatprep.subr.mxu0 0.0
        %4598 = vmatpush1.msra.mxu0 0.0
        %4599 = vmatprep.subr.mxu0 0.0
        %4600 = vmatpush1.msra.mxu0 0.0
        %4601 = vmatprep.subr.mxu0 0.0
        %4602 = vmatpush1.msra.mxu0 0.0
        %4603 = vmatprep.subr.mxu0 0.0
        %4604 = vmatpush1.msra.mxu0 0.0
        %4605 = vmatprep.subr.mxu0 0.0
        %4606 = vmatpush1.msra.mxu0 0.0
        %4607 = vmatprep.subr.mxu0 0.0
        %4608 = vmatpush1.msra.mxu0 0.0
        %4609 = vmatprep.subr.mxu0 0.0
        %4610 = vmatpush1.msra.mxu0 0.0
        %4611 = vmatprep.subr.mxu0 0.0
        %4612 = vmatpush1.msra.mxu0 0.0
        %4613 = vmatprep.subr.mxu0 0.0
        %4614 = vmatpush1.msra.mxu0 0.0
        %4615 = vmatprep.subr.mxu0 0.0
        %4616 = vmatpush1.msra.mxu0 0.0
        %4617 = vmatprep.subr.mxu0 0.0
        %4618 = vmatpush1.msra.mxu0 0.0
        %4619 = vmatprep.subr.mxu0 0.0
        %4620 = vmatpush1.msra.mxu0 %v1159
        %4621 = vmatprep.subr.mxu0 0.0
        %4622 = vmatpush2.msra.mxu0 0.0
        %4623 = vmatprep.subr.mxu0 0.0
        %4624 = vmatpush2.msra.mxu0 0.0
        %4625 = vmatprep.subr.mxu0 0.0
        %4626 = vmatpush2.msra.mxu0 0.0
        %4627 = vmatprep.subr.mxu0 0.0
        %4628 = vmatpush2.msra.mxu0 0.0
        %4629 = vmatprep.subr.mxu0 0.0
        %4630 = vmatpush2.msra.mxu0 0.0
        %4631 = vmatprep.subr.mxu0 0.0
        %4632 = vmatpush2.msra.mxu0 0.0
        %4633 = vmatprep.subr.mxu0 0.0
        %4634 = vmatpush2.msra.mxu0 0.0
        %4635 = vmatprep.subr.mxu0 0.0
        %4636 = vmatpush2.msra.mxu0 0.0
        %4637 = vmatprep.subr.mxu0 0.0
        %4638 = vmatpush2.msra.mxu0 0.0
        %4639 = vmatprep.subr.mxu0 0.0
        %4640 = vmatpush2.msra.mxu0 0.0
        %4641 = vmatprep.subr.mxu0 0.0
        %4642 = vmatpush2.msra.mxu0 0.0
        %4643 = vmatprep.subr.mxu0 0.0
        %4644 = vmatpush2.msra.mxu0 0.0
        %4645 = vmatprep.subr.mxu0 0.0
        %4646 = vmatpush2.msra.mxu0 0.0
        %4647 = vmatprep.subr.mxu0 0.0
        %4648 = vmatpush2.msra.mxu0 0.0
        %4649 = vmatprep.subr.mxu0 0.0
        %4650 = vmatpush2.msra.mxu0 0.0
        %4651 = vmatprep.subr.mxu0 0.0
        %4652 = vmatpush2.msra.mxu0 0.0
        %4653 = vmatprep.mubr.f32.mxu0 0.0
        %4654 = vmatmul.mubr.f32.gmra.mxu0 %v4587
        %v4655 = vpop.f32.mrf.mxu0
        %v4656 = vadd.f32 0.0, %v4655
        %v4657 = vpop.f32.mrf.mxu0
        %4658 = vdwg.mxu0
        %v4660 = vsel %vm2032, %v4437, 0
        %4662 = vmatprep.subr.mxu0 0.0
        %4663 = vmatpush1.msra.mxu0 0.0
        %4664 = vmatprep.subr.mxu0 0.0
        %4665 = vmatpush1.msra.mxu0 0.0
        %4666 = vmatprep.subr.mxu0 0.0
        %4667 = vmatpush1.msra.mxu0 0.0
        %4668 = vmatprep.subr.mxu0 0.0
        %4669 = vmatpush1.msra.mxu0 0.0
        %4670 = vmatprep.subr.mxu0 0.0
        %4671 = vmatpush1.msra.mxu0 0.0
        %4672 = vmatprep.subr.mxu0 0.0
        %4673 = vmatpush1.msra.mxu0 0.0
        %4674 = vmatprep.subr.mxu0 0.0
        %4675 = vmatpush1.msra.mxu0 0.0
        %4676 = vmatprep.subr.mxu0 0.0
        %4677 = vmatpush1.msra.mxu0 0.0
        %4678 = vmatprep.subr.mxu0 0.0
        %4679 = vmatpush1.msra.mxu0 0.0
        %4680 = vmatprep.subr.mxu0 0.0
        %4681 = vmatpush1.msra.mxu0 0.0
        %4682 = vmatprep.subr.mxu0 0.0
        %4683 = vmatpush1.msra.mxu0 0.0
        %4684 = vmatprep.subr.mxu0 0.0
        %4685 = vmatpush1.msra.mxu0 0.0
        %4686 = vmatprep.subr.mxu0 0.0
        %4687 = vmatpush1.msra.mxu0 0.0
        %4688 = vmatprep.subr.mxu0 0.0
        %4689 = vmatpush1.msra.mxu0 0.0
        %4690 = vmatprep.subr.mxu0 0.0
        %4691 = vmatpush1.msra.mxu0 0.0
        %4692 = vmatprep.subr.mxu0 0.0
        %4693 = vmatpush1.msra.mxu0 %v1160
        %4694 = vmatprep.subr.mxu0 0.0
        %4695 = vmatpush2.msra.mxu0 0.0
        %4696 = vmatprep.subr.mxu0 0.0
        %4697 = vmatpush2.msra.mxu0 0.0
        %4698 = vmatprep.subr.mxu0 0.0
        %4699 = vmatpush2.msra.mxu0 0.0
        %4700 = vmatprep.subr.mxu0 0.0
        %4701 = vmatpush2.msra.mxu0 0.0
        %4702 = vmatprep.subr.mxu0 0.0
        %4703 = vmatpush2.msra.mxu0 0.0
        %4704 = vmatprep.subr.mxu0 0.0
        %4705 = vmatpush2.msra.mxu0 0.0
        %4706 = vmatprep.subr.mxu0 0.0
        %4707 = vmatpush2.msra.mxu0 0.0
        %4708 = vmatprep.subr.mxu0 0.0
        %4709 = vmatpush2.msra.mxu0 0.0
        %4710 = vmatprep.subr.mxu0 0.0
        %4711 = vmatpush2.msra.mxu0 0.0
        %4712 = vmatprep.subr.mxu0 0.0
        %4713 = vmatpush2.msra.mxu0 0.0
        %4714 = vmatprep.subr.mxu0 0.0
        %4715 = vmatpush2.msra.mxu0 0.0
        %4716 = vmatprep.subr.mxu0 0.0
        %4717 = vmatpush2.msra.mxu0 0.0
        %4718 = vmatprep.subr.mxu0 0.0
        %4719 = vmatpush2.msra.mxu0 0.0
        %4720 = vmatprep.subr.mxu0 0.0
        %4721 = vmatpush2.msra.mxu0 0.0
        %4722 = vmatprep.subr.mxu0 0.0
        %4723 = vmatpush2.msra.mxu0 0.0
        %4724 = vmatprep.subr.mxu0 0.0
        %4725 = vmatpush2.msra.mxu0 0.0
        %4726 = vmatprep.mubr.f32.mxu0 0.0
        %4727 = vmatmul.mubr.f32.gmra.mxu0 %v4660
        %v4728 = vpop.f32.mrf.mxu0
        %v4729 = vadd.f32 0.0, %v4728
        %v4730 = vpop.f32.mrf.mxu0
        %4731 = vdwg.mxu0
        %v4733 = vsel %vm2032, %v4510, 0
        %4735 = vmatprep.subr.mxu0 0.0
        %4736 = vmatpush1.msra.mxu0 0.0
        %4737 = vmatprep.subr.mxu0 0.0
        %4738 = vmatpush1.msra.mxu0 0.0
        %4739 = vmatprep.subr.mxu0 0.0
        %4740 = vmatpush1.msra.mxu0 0.0
        %4741 = vmatprep.subr.mxu0 0.0
        %4742 = vmatpush1.msra.mxu0 0.0
        %4743 = vmatprep.subr.mxu0 0.0
        %4744 = vmatpush1.msra.mxu0 0.0
        %4745 = vmatprep.subr.mxu0 0.0
        %4746 = vmatpush1.msra.mxu0 0.0
        %4747 = vmatprep.subr.mxu0 0.0
        %4748 = vmatpush1.msra.mxu0 0.0
        %4749 = vmatprep.subr.mxu0 0.0
        %4750 = vmatpush1.msra.mxu0 0.0
        %4751 = vmatprep.subr.mxu0 0.0
        %4752 = vmatpush1.msra.mxu0 0.0
        %4753 = vmatprep.subr.mxu0 0.0
        %4754 = vmatpush1.msra.mxu0 0.0
        %4755 = vmatprep.subr.mxu0 0.0
        %4756 = vmatpush1.msra.mxu0 0.0
        %4757 = vmatprep.subr.mxu0 0.0
        %4758 = vmatpush1.msra.mxu0 0.0
        %4759 = vmatprep.subr.mxu0 0.0
        %4760 = vmatpush1.msra.mxu0 0.0
        %4761 = vmatprep.subr.mxu0 0.0
        %4762 = vmatpush1.msra.mxu0 0.0
        %4763 = vmatprep.subr.mxu0 0.0
        %4764 = vmatpush1.msra.mxu0 0.0
        %4765 = vmatprep.subr.mxu0 0.0
        %4766 = vmatpush1.msra.mxu0 %v1161
        %4767 = vmatprep.subr.mxu0 0.0
        %4768 = vmatpush2.msra.mxu0 0.0
        %4769 = vmatprep.subr.mxu0 0.0
        %4770 = vmatpush2.msra.mxu0 0.0
        %4771 = vmatprep.subr.mxu0 0.0
        %4772 = vmatpush2.msra.mxu0 0.0
        %4773 = vmatprep.subr.mxu0 0.0
        %4774 = vmatpush2.msra.mxu0 0.0
        %4775 = vmatprep.subr.mxu0 0.0
        %4776 = vmatpush2.msra.mxu0 0.0
        %4777 = vmatprep.subr.mxu0 0.0
        %4778 = vmatpush2.msra.mxu0 0.0
        %4779 = vmatprep.subr.mxu0 0.0
        %4780 = vmatpush2.msra.mxu0 0.0
        %4781 = vmatprep.subr.mxu0 0.0
        %4782 = vmatpush2.msra.mxu0 0.0
        %4783 = vmatprep.subr.mxu0 0.0
        %4784 = vmatpush2.msra.mxu0 0.0
        %4785 = vmatprep.subr.mxu0 0.0
        %4786 = vmatpush2.msra.mxu0 0.0
        %4787 = vmatprep.subr.mxu0 0.0
        %4788 = vmatpush2.msra.mxu0 0.0
        %4789 = vmatprep.subr.mxu0 0.0
        %4790 = vmatpush2.msra.mxu0 0.0
        %4791 = vmatprep.subr.mxu0 0.0
        %4792 = vmatpush2.msra.mxu0 0.0
        %4793 = vmatprep.subr.mxu0 0.0
        %4794 = vmatpush2.msra.mxu0 0.0
        %4795 = vmatprep.subr.mxu0 0.0
        %4796 = vmatpush2.msra.mxu0 0.0
        %4797 = vmatprep.subr.mxu0 0.0
        %4798 = vmatpush2.msra.mxu0 0.0
        %4799 = vmatprep.mubr.f32.mxu0 0.0
        %4800 = vmatmul.mubr.f32.gmra.mxu0 %v4733
        %v4801 = vpop.f32.mrf.mxu0
        %v4802 = vadd.f32 0.0, %v4801
        %v4803 = vpop.f32.mrf.mxu0
        %4804 = vdwg.mxu0
        %v4805 = vsel %vm1184, %v4583, 0.0
        %v4806 = vsel %vm1184, %v4656, 0.0
        %v4807 = vadd.f32 %v4805, %v4806
        %v4808 = vsel %vm1184, %v4729, 0.0
        %v4809 = vadd.f32 %v4807, %v4808
        %v4810 = vsel %vm1184, %v4802, 0.0
        %v4811 = vadd.f32 %v4809, %v4810
        %v4812 = vadd.f32 %v4811, %v1054
        %v4813 = vsel %vm1184, %v4812, 0.0
        %4814 = vadd.xlane.f32.xlu0 %v4813
        %v4815 = vpop.xlane.xlu0 %4814
        %v4816 = vmul.f32 %v4815, %v2976
        %v4817 = vsub.f32 %v4812, %v4816
        %v4818 = vmul.f32 %v4817, %v4817
        %v4819 = vsel %vm1184, %v4818, 0.0
        %4820 = vadd.xlane.f32.xlu0 %v4819
        %v4821 = vpop.xlane.xlu0 %4820
        %v4822 = vmul.f32 %v4821, %v2976
        %v4823 = vadd.f32 %v4822, 1e-06
        %v4824 = vrsqrt.pop %v4823
        %v4825 = vmul.f32 %v4817, %v4824
        %v4827 = vlaneseq
        %v4828 = vshrl.u32 %v4827, 7
        %v4829 = vsub.s32 0, %v4828
        %v4830 = vrot.slane %v1162, %v4829
        %v4832 = vmul.f32 %v4825, %v4830
        %v4834 = vlaneseq
        %v4835 = vshrl.u32 %v4834, 7
        %v4836 = vsub.s32 0, %v4835
        %v4837 = vrot.slane %v1163, %v4836
        %v4839 = vadd.f32 %v4832, %v4837
        %v4840 = vadd.f32 %v3028, %v4839
        %v4841 = vsel %vm1184, %v4840, 0.0
        %4842 = vadd.xlane.f32.xlu0 %v4841
        %v4843 = vpop.xlane.xlu0 %4842
        %v4844 = vmul.f32 %v4843, %v2976
        %v4845 = vsub.f32 %v4840, %v4844
        %v4846 = vmul.f32 %v4845, %v4845
        %v4847 = vsel %vm1184, %v4846, 0.0
        %4848 = vadd.xlane.f32.xlu0 %v4847
        %v4849 = vpop.xlane.xlu0 %4848
        %v4850 = vmul.f32 %v4849, %v2976
        %v4851 = vadd.f32 %v4850, 1e-06
        %v4852 = vrsqrt.pop %v4851
        %v4853 = vmul.f32 %v4845, %v4852
        %v4855 = vlaneseq
        %v4856 = vshrl.u32 %v4855, 7
        %v4857 = vsub.s32 0, %v4856
        %v4858 = vrot.slane %v1166, %v4857
        %v4860 = vmul.f32 %v4853, %v4858
        %v4862 = vlaneseq
        %v4863 = vshrl.u32 %v4862, 7
        %v4864 = vsub.s32 0, %v4863
        %v4865 = vrot.slane %v1167, %v4864
        %v4867 = vadd.f32 %v4860, %v4865
        %v4869 = vsel %vm1184, %v1055, 0
        %4871 = vmatprep.subr.mxu0 0.0
        %4872 = vmatpush1.msra.mxu0 0.0
        %4873 = vmatprep.subr.mxu0 0.0
        %4874 = vmatpush1.msra.mxu0 0.0
        %4875 = vmatprep.subr.mxu0 0.0
        %4876 = vmatpush1.msra.mxu0 0.0
        %4877 = vmatprep.subr.mxu0 0.0
        %4878 = vmatpush1.msra.mxu0 0.0
        %4879 = vmatprep.subr.mxu0 0.0
        %4880 = vmatpush1.msra.mxu0 0.0
        %4881 = vmatprep.subr.mxu0 0.0
        %4882 = vmatpush1.msra.mxu0 0.0
        %4883 = vmatprep.subr.mxu0 0.0
        %4884 = vmatpush1.msra.mxu0 0.0
        %4885 = vmatprep.subr.mxu0 0.0
        %4886 = vmatpush1.msra.mxu0 0.0
        %4887 = vmatprep.subr.mxu0 0.0
        %4888 = vmatpush1.msra.mxu0 0.0
        %4889 = vmatprep.subr.mxu0 0.0
        %4890 = vmatpush1.msra.mxu0 0.0
        %4891 = vmatprep.subr.mxu0 0.0
        %4892 = vmatpush1.msra.mxu0 0.0
        %4893 = vmatprep.subr.mxu0 0.0
        %4894 = vmatpush1.msra.mxu0 0.0
        %4895 = vmatprep.subr.mxu0 0.0
        %4896 = vmatpush1.msra.mxu0 %v1059
        %4897 = vmatprep.subr.mxu0 0.0
        %4898 = vmatpush1.msra.mxu0 %v1058
        %4899 = vmatprep.subr.mxu0 0.0
        %4900 = vmatpush1.msra.mxu0 %v1057
        %4901 = vmatprep.subr.mxu0 0.0
        %4902 = vmatpush1.msra.mxu0 %v1056
        %4903 = vmatprep.subr.mxu0 0.0
        %4904 = vmatpush2.msra.mxu0 0.0
        %4905 = vmatprep.subr.mxu0 0.0
        %4906 = vmatpush2.msra.mxu0 0.0
        %4907 = vmatprep.subr.mxu0 0.0
        %4908 = vmatpush2.msra.mxu0 0.0
        %4909 = vmatprep.subr.mxu0 0.0
        %4910 = vmatpush2.msra.mxu0 0.0
        %4911 = vmatprep.subr.mxu0 0.0
        %4912 = vmatpush2.msra.mxu0 0.0
        %4913 = vmatprep.subr.mxu0 0.0
        %4914 = vmatpush2.msra.mxu0 0.0
        %4915 = vmatprep.subr.mxu0 0.0
        %4916 = vmatpush2.msra.mxu0 0.0
        %4917 = vmatprep.subr.mxu0 0.0
        %4918 = vmatpush2.msra.mxu0 0.0
        %4919 = vmatprep.subr.mxu0 0.0
        %4920 = vmatpush2.msra.mxu0 0.0
        %4921 = vmatprep.subr.mxu0 0.0
        %4922 = vmatpush2.msra.mxu0 0.0
        %4923 = vmatprep.subr.mxu0 0.0
        %4924 = vmatpush2.msra.mxu0 0.0
        %4925 = vmatprep.subr.mxu0 0.0
        %4926 = vmatpush2.msra.mxu0 0.0
        %4927 = vmatprep.subr.mxu0 0.0
        %4928 = vmatpush2.msra.mxu0 0.0
        %4929 = vmatprep.subr.mxu0 0.0
        %4930 = vmatpush2.msra.mxu0 0.0
        %4931 = vmatprep.subr.mxu0 0.0
        %4932 = vmatpush2.msra.mxu0 0.0
        %4933 = vmatprep.subr.mxu0 0.0
        %4934 = vmatpush2.msra.mxu0 0.0
        %4935 = vmatprep.mubr.f32.mxu0 0.0
        %4936 = vmatmul.mubr.f32.gmra.mxu0 %v4869
        %v4937 = vpop.f32.mrf.mxu0
        %v4938 = vadd.f32 0.0, %v4937
        %v4939 = vpop.f32.mrf.mxu0
        %4940 = vdwg.mxu0
        %4941 = vmatprep.subr.mxu0 0.0
        %4942 = vmatpush1.msra.mxu0 0.0
        %4943 = vmatprep.subr.mxu0 0.0
        %4944 = vmatpush1.msra.mxu0 0.0
        %4945 = vmatprep.subr.mxu0 0.0
        %4946 = vmatpush1.msra.mxu0 0.0
        %4947 = vmatprep.subr.mxu0 0.0
        %4948 = vmatpush1.msra.mxu0 0.0
        %4949 = vmatprep.subr.mxu0 0.0
        %4950 = vmatpush1.msra.mxu0 0.0
        %4951 = vmatprep.subr.mxu0 0.0
        %4952 = vmatpush1.msra.mxu0 0.0
        %4953 = vmatprep.subr.mxu0 0.0
        %4954 = vmatpush1.msra.mxu0 0.0
        %4955 = vmatprep.subr.mxu0 0.0
        %4956 = vmatpush1.msra.mxu0 0.0
        %4957 = vmatprep.subr.mxu0 0.0
        %4958 = vmatpush1.msra.mxu0 0.0
        %4959 = vmatprep.subr.mxu0 0.0
        %4960 = vmatpush1.msra.mxu0 0.0
        %4961 = vmatprep.subr.mxu0 0.0
        %4962 = vmatpush1.msra.mxu0 0.0
        %4963 = vmatprep.subr.mxu0 0.0
        %4964 = vmatpush1.msra.mxu0 0.0
        %4965 = vmatprep.subr.mxu0 0.0
        %4966 = vmatpush1.msra.mxu0 %v1063
        %4967 = vmatprep.subr.mxu0 0.0
        %4968 = vmatpush1.msra.mxu0 %v1062
        %4969 = vmatprep.subr.mxu0 0.0
        %4970 = vmatpush1.msra.mxu0 %v1061
        %4971 = vmatprep.subr.mxu0 0.0
        %4972 = vmatpush1.msra.mxu0 %v1060
        %4973 = vmatprep.subr.mxu0 0.0
        %4974 = vmatpush2.msra.mxu0 0.0
        %4975 = vmatprep.subr.mxu0 0.0
        %4976 = vmatpush2.msra.mxu0 0.0
        %4977 = vmatprep.subr.mxu0 0.0
        %4978 = vmatpush2.msra.mxu0 0.0
        %4979 = vmatprep.subr.mxu0 0.0
        %4980 = vmatpush2.msra.mxu0 0.0
        %4981 = vmatprep.subr.mxu0 0.0
        %4982 = vmatpush2.msra.mxu0 0.0
        %4983 = vmatprep.subr.mxu0 0.0
        %4984 = vmatpush2.msra.mxu0 0.0
        %4985 = vmatprep.subr.mxu0 0.0
        %4986 = vmatpush2.msra.mxu0 0.0
        %4987 = vmatprep.subr.mxu0 0.0
        %4988 = vmatpush2.msra.mxu0 0.0
        %4989 = vmatprep.subr.mxu0 0.0
        %4990 = vmatpush2.msra.mxu0 0.0
        %4991 = vmatprep.subr.mxu0 0.0
        %4992 = vmatpush2.msra.mxu0 0.0
        %4993 = vmatprep.subr.mxu0 0.0
        %4994 = vmatpush2.msra.mxu0 0.0
        %4995 = vmatprep.subr.mxu0 0.0
        %4996 = vmatpush2.msra.mxu0 0.0
        %4997 = vmatprep.subr.mxu0 0.0
        %4998 = vmatpush2.msra.mxu0 0.0
        %4999 = vmatprep.subr.mxu0 0.0
        %5000 = vmatpush2.msra.mxu0 0.0
        %5001 = vmatprep.subr.mxu0 0.0
        %5002 = vmatpush2.msra.mxu0 0.0
        %5003 = vmatprep.subr.mxu0 0.0
        %5004 = vmatpush2.msra.mxu0 0.0
        %5005 = vmatprep.mubr.f32.mxu0 0.0
        %5006 = vmatmul.mubr.f32.gmra.mxu0 %v4869
        %v5007 = vpop.f32.mrf.mxu0
        %v5008 = vadd.f32 0.0, %v5007
        %v5009 = vpop.f32.mrf.mxu0
        %5010 = vdwg.mxu0
        %5011 = vmatprep.subr.mxu0 0.0
        %5012 = vmatpush1.msra.mxu0 0.0
        %5013 = vmatprep.subr.mxu0 0.0
        %5014 = vmatpush1.msra.mxu0 0.0
        %5015 = vmatprep.subr.mxu0 0.0
        %5016 = vmatpush1.msra.mxu0 0.0
        %5017 = vmatprep.subr.mxu0 0.0
        %5018 = vmatpush1.msra.mxu0 0.0
        %5019 = vmatprep.subr.mxu0 0.0
        %5020 = vmatpush1.msra.mxu0 0.0
        %5021 = vmatprep.subr.mxu0 0.0
        %5022 = vmatpush1.msra.mxu0 0.0
        %5023 = vmatprep.subr.mxu0 0.0
        %5024 = vmatpush1.msra.mxu0 0.0
        %5025 = vmatprep.subr.mxu0 0.0
        %5026 = vmatpush1.msra.mxu0 0.0
        %5027 = vmatprep.subr.mxu0 0.0
        %5028 = vmatpush1.msra.mxu0 0.0
        %5029 = vmatprep.subr.mxu0 0.0
        %5030 = vmatpush1.msra.mxu0 0.0
        %5031 = vmatprep.subr.mxu0 0.0
        %5032 = vmatpush1.msra.mxu0 0.0
        %5033 = vmatprep.subr.mxu0 0.0
        %5034 = vmatpush1.msra.mxu0 0.0
        %5035 = vmatprep.subr.mxu0 0.0
        %5036 = vmatpush1.msra.mxu0 %v1067
        %5037 = vmatprep.subr.mxu0 0.0
        %5038 = vmatpush1.msra.mxu0 %v1066
        %5039 = vmatprep.subr.mxu0 0.0
        %5040 = vmatpush1.msra.mxu0 %v1065
        %5041 = vmatprep.subr.mxu0 0.0
        %5042 = vmatpush1.msra.mxu0 %v1064
        %5043 = vmatprep.subr.mxu0 0.0
        %5044 = vmatpush2.msra.mxu0 0.0
        %5045 = vmatprep.subr.mxu0 0.0
        %5046 = vmatpush2.msra.mxu0 0.0
        %5047 = vmatprep.subr.mxu0 0.0
        %5048 = vmatpush2.msra.mxu0 0.0
        %5049 = vmatprep.subr.mxu0 0.0
        %5050 = vmatpush2.msra.mxu0 0.0
        %5051 = vmatprep.subr.mxu0 0.0
        %5052 = vmatpush2.msra.mxu0 0.0
        %5053 = vmatprep.subr.mxu0 0.0
        %5054 = vmatpush2.msra.mxu0 0.0
        %5055 = vmatprep.subr.mxu0 0.0
        %5056 = vmatpush2.msra.mxu0 0.0
        %5057 = vmatprep.subr.mxu0 0.0
        %5058 = vmatpush2.msra.mxu0 0.0
        %5059 = vmatprep.subr.mxu0 0.0
        %5060 = vmatpush2.msra.mxu0 0.0
        %5061 = vmatprep.subr.mxu0 0.0
        %5062 = vmatpush2.msra.mxu0 0.0
        %5063 = vmatprep.subr.mxu0 0.0
        %5064 = vmatpush2.msra.mxu0 0.0
        %5065 = vmatprep.subr.mxu0 0.0
        %5066 = vmatpush2.msra.mxu0 0.0
        %5067 = vmatprep.subr.mxu0 0.0
        %5068 = vmatpush2.msra.mxu0 0.0
        %5069 = vmatprep.subr.mxu0 0.0
        %5070 = vmatpush2.msra.mxu0 0.0
        %5071 = vmatprep.subr.mxu0 0.0
        %5072 = vmatpush2.msra.mxu0 0.0
        %5073 = vmatprep.subr.mxu0 0.0
        %5074 = vmatpush2.msra.mxu0 0.0
        %5075 = vmatprep.mubr.f32.mxu0 0.0
        %5076 = vmatmul.mubr.f32.gmra.mxu0 %v4869
        %v5077 = vpop.f32.mrf.mxu0
        %v5078 = vadd.f32 0.0, %v5077
        %v5079 = vpop.f32.mrf.mxu0
        %5080 = vdwg.mxu0
        %5081 = vmatprep.subr.mxu0 0.0
        %5082 = vmatpush1.msra.mxu0 0.0
        %5083 = vmatprep.subr.mxu0 0.0
        %5084 = vmatpush1.msra.mxu0 0.0
        %5085 = vmatprep.subr.mxu0 0.0
        %5086 = vmatpush1.msra.mxu0 0.0
        %5087 = vmatprep.subr.mxu0 0.0
        %5088 = vmatpush1.msra.mxu0 0.0
        %5089 = vmatprep.subr.mxu0 0.0
        %5090 = vmatpush1.msra.mxu0 0.0
        %5091 = vmatprep.subr.mxu0 0.0
        %5092 = vmatpush1.msra.mxu0 0.0
        %5093 = vmatprep.subr.mxu0 0.0
        %5094 = vmatpush1.msra.mxu0 0.0
        %5095 = vmatprep.subr.mxu0 0.0
        %5096 = vmatpush1.msra.mxu0 0.0
        %5097 = vmatprep.subr.mxu0 0.0
        %5098 = vmatpush1.msra.mxu0 0.0
        %5099 = vmatprep.subr.mxu0 0.0
        %5100 = vmatpush1.msra.mxu0 0.0
        %5101 = vmatprep.subr.mxu0 0.0
        %5102 = vmatpush1.msra.mxu0 0.0
        %5103 = vmatprep.subr.mxu0 0.0
        %5104 = vmatpush1.msra.mxu0 0.0
        %5105 = vmatprep.subr.mxu0 0.0
        %5106 = vmatpush1.msra.mxu0 %v1071
        %5107 = vmatprep.subr.mxu0 0.0
        %5108 = vmatpush1.msra.mxu0 %v1070
        %5109 = vmatprep.subr.mxu0 0.0
        %5110 = vmatpush1.msra.mxu0 %v1069
        %5111 = vmatprep.subr.mxu0 0.0
        %5112 = vmatpush1.msra.mxu0 %v1068
        %5113 = vmatprep.subr.mxu0 0.0
        %5114 = vmatpush2.msra.mxu0 0.0
        %5115 = vmatprep.subr.mxu0 0.0
        %5116 = vmatpush2.msra.mxu0 0.0
        %5117 = vmatprep.subr.mxu0 0.0
        %5118 = vmatpush2.msra.mxu0 0.0
        %5119 = vmatprep.subr.mxu0 0.0
        %5120 = vmatpush2.msra.mxu0 0.0
        %5121 = vmatprep.subr.mxu0 0.0
        %5122 = vmatpush2.msra.mxu0 0.0
        %5123 = vmatprep.subr.mxu0 0.0
        %5124 = vmatpush2.msra.mxu0 0.0
        %5125 = vmatprep.subr.mxu0 0.0
        %5126 = vmatpush2.msra.mxu0 0.0
        %5127 = vmatprep.subr.mxu0 0.0
        %5128 = vmatpush2.msra.mxu0 0.0
        %5129 = vmatprep.subr.mxu0 0.0
        %5130 = vmatpush2.msra.mxu0 0.0
        %5131 = vmatprep.subr.mxu0 0.0
        %5132 = vmatpush2.msra.mxu0 0.0
        %5133 = vmatprep.subr.mxu0 0.0
        %5134 = vmatpush2.msra.mxu0 0.0
        %5135 = vmatprep.subr.mxu0 0.0
        %5136 = vmatpush2.msra.mxu0 0.0
        %5137 = vmatprep.subr.mxu0 0.0
        %5138 = vmatpush2.msra.mxu0 0.0
        %5139 = vmatprep.subr.mxu0 0.0
        %5140 = vmatpush2.msra.mxu0 0.0
        %5141 = vmatprep.subr.mxu0 0.0
        %5142 = vmatpush2.msra.mxu0 0.0
        %5143 = vmatprep.subr.mxu0 0.0
        %5144 = vmatpush2.msra.mxu0 0.0
        %5145 = vmatprep.mubr.f32.mxu0 0.0
        %5146 = vmatmul.mubr.f32.gmra.mxu0 %v4869
        %v5147 = vpop.f32.mrf.mxu0
        %v5148 = vadd.f32 0.0, %v5147
        %v5149 = vpop.f32.mrf.mxu0
        %5150 = vdwg.mxu0
        %v5151 = vmul.f32 %v4938, 0.35355338
        %v5152 = vmul.f32 %v5008, 0.35355338
        %v5153 = vmul.f32 %v5078, 0.35355338
        %v5154 = vmul.f32 %v5148, 0.35355338
        %5155 = vmatprep.subr.mxu0 0.0
        %5156 = vmatpush1.msra.mxu0 0.0
        %5157 = vmatprep.subr.mxu0 0.0
        %5158 = vmatpush1.msra.mxu0 0.0
        %5159 = vmatprep.subr.mxu0 0.0
        %5160 = vmatpush1.msra.mxu0 0.0
        %5161 = vmatprep.subr.mxu0 0.0
        %5162 = vmatpush1.msra.mxu0 0.0
        %5163 = vmatprep.subr.mxu0 0.0
        %5164 = vmatpush1.msra.mxu0 0.0
        %5165 = vmatprep.subr.mxu0 0.0
        %5166 = vmatpush1.msra.mxu0 0.0
        %5167 = vmatprep.subr.mxu0 0.0
        %5168 = vmatpush1.msra.mxu0 0.0
        %5169 = vmatprep.subr.mxu0 0.0
        %5170 = vmatpush1.msra.mxu0 0.0
        %5171 = vmatprep.subr.mxu0 0.0
        %5172 = vmatpush1.msra.mxu0 0.0
        %5173 = vmatprep.subr.mxu0 0.0
        %5174 = vmatpush1.msra.mxu0 0.0
        %5175 = vmatprep.subr.mxu0 0.0
        %5176 = vmatpush1.msra.mxu0 0.0
        %5177 = vmatprep.subr.mxu0 0.0
        %5178 = vmatpush1.msra.mxu0 0.0
        %5179 = vmatprep.subr.mxu0 0.0
        %5180 = vmatpush1.msra.mxu0 %v1075
        %5181 = vmatprep.subr.mxu0 0.0
        %5182 = vmatpush1.msra.mxu0 %v1074
        %5183 = vmatprep.subr.mxu0 0.0
        %5184 = vmatpush1.msra.mxu0 %v1073
        %5185 = vmatprep.subr.mxu0 0.0
        %5186 = vmatpush1.msra.mxu0 %v1072
        %5187 = vmatprep.subr.mxu0 0.0
        %5188 = vmatpush2.msra.mxu0 0.0
        %5189 = vmatprep.subr.mxu0 0.0
        %5190 = vmatpush2.msra.mxu0 0.0
        %5191 = vmatprep.subr.mxu0 0.0
        %5192 = vmatpush2.msra.mxu0 0.0
        %5193 = vmatprep.subr.mxu0 0.0
        %5194 = vmatpush2.msra.mxu0 0.0
        %5195 = vmatprep.subr.mxu0 0.0
        %5196 = vmatpush2.msra.mxu0 0.0
        %5197 = vmatprep.subr.mxu0 0.0
        %5198 = vmatpush2.msra.mxu0 0.0
        %5199 = vmatprep.subr.mxu0 0.0
        %5200 = vmatpush2.msra.mxu0 0.0
        %5201 = vmatprep.subr.mxu0 0.0
        %5202 = vmatpush2.msra.mxu0 0.0
        %5203 = vmatprep.subr.mxu0 0.0
        %5204 = vmatpush2.msra.mxu0 0.0
        %5205 = vmatprep.subr.mxu0 0.0
        %5206 = vmatpush2.msra.mxu0 0.0
        %5207 = vmatprep.subr.mxu0 0.0
        %5208 = vmatpush2.msra.mxu0 0.0
        %5209 = vmatprep.subr.mxu0 0.0
        %5210 = vmatpush2.msra.mxu0 0.0
        %5211 = vmatprep.subr.mxu0 0.0
        %5212 = vmatpush2.msra.mxu0 0.0
        %5213 = vmatprep.subr.mxu0 0.0
        %5214 = vmatpush2.msra.mxu0 0.0
        %5215 = vmatprep.subr.mxu0 0.0
        %5216 = vmatpush2.msra.mxu0 0.0
        %5217 = vmatprep.subr.mxu0 0.0
        %5218 = vmatpush2.msra.mxu0 0.0
        %5219 = vmatprep.mubr.f32.mxu0 0.0
        %5220 = vmatmul.mubr.f32.gmra.mxu0 %v4869
        %v5221 = vpop.f32.mrf.mxu0
        %v5222 = vadd.f32 0.0, %v5221
        %v5223 = vpop.f32.mrf.mxu0
        %5224 = vdwg.mxu0
        %5225 = vmatprep.subr.mxu0 0.0
        %5226 = vmatpush1.msra.mxu0 0.0
        %5227 = vmatprep.subr.mxu0 0.0
        %5228 = vmatpush1.msra.mxu0 0.0
        %5229 = vmatprep.subr.mxu0 0.0
        %5230 = vmatpush1.msra.mxu0 0.0
        %5231 = vmatprep.subr.mxu0 0.0
        %5232 = vmatpush1.msra.mxu0 0.0
        %5233 = vmatprep.subr.mxu0 0.0
        %5234 = vmatpush1.msra.mxu0 0.0
        %5235 = vmatprep.subr.mxu0 0.0
        %5236 = vmatpush1.msra.mxu0 0.0
        %5237 = vmatprep.subr.mxu0 0.0
        %5238 = vmatpush1.msra.mxu0 0.0
        %5239 = vmatprep.subr.mxu0 0.0
        %5240 = vmatpush1.msra.mxu0 0.0
        %5241 = vmatprep.subr.mxu0 0.0
        %5242 = vmatpush1.msra.mxu0 0.0
        %5243 = vmatprep.subr.mxu0 0.0
        %5244 = vmatpush1.msra.mxu0 0.0
        %5245 = vmatprep.subr.mxu0 0.0
        %5246 = vmatpush1.msra.mxu0 0.0
        %5247 = vmatprep.subr.mxu0 0.0
        %5248 = vmatpush1.msra.mxu0 0.0
        %5249 = vmatprep.subr.mxu0 0.0
        %5250 = vmatpush1.msra.mxu0 %v1079
        %5251 = vmatprep.subr.mxu0 0.0
        %5252 = vmatpush1.msra.mxu0 %v1078
        %5253 = vmatprep.subr.mxu0 0.0
        %5254 = vmatpush1.msra.mxu0 %v1077
        %5255 = vmatprep.subr.mxu0 0.0
        %5256 = vmatpush1.msra.mxu0 %v1076
        %5257 = vmatprep.subr.mxu0 0.0
        %5258 = vmatpush2.msra.mxu0 0.0
        %5259 = vmatprep.subr.mxu0 0.0
        %5260 = vmatpush2.msra.mxu0 0.0
        %5261 = vmatprep.subr.mxu0 0.0
        %5262 = vmatpush2.msra.mxu0 0.0
        %5263 = vmatprep.subr.mxu0 0.0
        %5264 = vmatpush2.msra.mxu0 0.0
        %5265 = vmatprep.subr.mxu0 0.0
        %5266 = vmatpush2.msra.mxu0 0.0
        %5267 = vmatprep.subr.mxu0 0.0
        %5268 = vmatpush2.msra.mxu0 0.0
        %5269 = vmatprep.subr.mxu0 0.0
        %5270 = vmatpush2.msra.mxu0 0.0
        %5271 = vmatprep.subr.mxu0 0.0
        %5272 = vmatpush2.msra.mxu0 0.0
        %5273 = vmatprep.subr.mxu0 0.0
        %5274 = vmatpush2.msra.mxu0 0.0
        %5275 = vmatprep.subr.mxu0 0.0
        %5276 = vmatpush2.msra.mxu0 0.0
        %5277 = vmatprep.subr.mxu0 0.0
        %5278 = vmatpush2.msra.mxu0 0.0
        %5279 = vmatprep.subr.mxu0 0.0
        %5280 = vmatpush2.msra.mxu0 0.0
        %5281 = vmatprep.subr.mxu0 0.0
        %5282 = vmatpush2.msra.mxu0 0.0
        %5283 = vmatprep.subr.mxu0 0.0
        %5284 = vmatpush2.msra.mxu0 0.0
        %5285 = vmatprep.subr.mxu0 0.0
        %5286 = vmatpush2.msra.mxu0 0.0
        %5287 = vmatprep.subr.mxu0 0.0
        %5288 = vmatpush2.msra.mxu0 0.0
        %5289 = vmatprep.mubr.f32.mxu0 0.0
        %5290 = vmatmul.mubr.f32.gmra.mxu0 %v4869
        %v5291 = vpop.f32.mrf.mxu0
        %v5292 = vadd.f32 0.0, %v5291
        %v5293 = vpop.f32.mrf.mxu0
        %5294 = vdwg.mxu0
        %5295 = vmatprep.subr.mxu0 0.0
        %5296 = vmatpush1.msra.mxu0 0.0
        %5297 = vmatprep.subr.mxu0 0.0
        %5298 = vmatpush1.msra.mxu0 0.0
        %5299 = vmatprep.subr.mxu0 0.0
        %5300 = vmatpush1.msra.mxu0 0.0
        %5301 = vmatprep.subr.mxu0 0.0
        %5302 = vmatpush1.msra.mxu0 0.0
        %5303 = vmatprep.subr.mxu0 0.0
        %5304 = vmatpush1.msra.mxu0 0.0
        %5305 = vmatprep.subr.mxu0 0.0
        %5306 = vmatpush1.msra.mxu0 0.0
        %5307 = vmatprep.subr.mxu0 0.0
        %5308 = vmatpush1.msra.mxu0 0.0
        %5309 = vmatprep.subr.mxu0 0.0
        %5310 = vmatpush1.msra.mxu0 0.0
        %5311 = vmatprep.subr.mxu0 0.0
        %5312 = vmatpush1.msra.mxu0 0.0
        %5313 = vmatprep.subr.mxu0 0.0
        %5314 = vmatpush1.msra.mxu0 0.0
        %5315 = vmatprep.subr.mxu0 0.0
        %5316 = vmatpush1.msra.mxu0 0.0
        %5317 = vmatprep.subr.mxu0 0.0
        %5318 = vmatpush1.msra.mxu0 0.0
        %5319 = vmatprep.subr.mxu0 0.0
        %5320 = vmatpush1.msra.mxu0 %v1083
        %5321 = vmatprep.subr.mxu0 0.0
        %5322 = vmatpush1.msra.mxu0 %v1082
        %5323 = vmatprep.subr.mxu0 0.0
        %5324 = vmatpush1.msra.mxu0 %v1081
        %5325 = vmatprep.subr.mxu0 0.0
        %5326 = vmatpush1.msra.mxu0 %v1080
        %5327 = vmatprep.subr.mxu0 0.0
        %5328 = vmatpush2.msra.mxu0 0.0
        %5329 = vmatprep.subr.mxu0 0.0
        %5330 = vmatpush2.msra.mxu0 0.0
        %5331 = vmatprep.subr.mxu0 0.0
        %5332 = vmatpush2.msra.mxu0 0.0
        %5333 = vmatprep.subr.mxu0 0.0
        %5334 = vmatpush2.msra.mxu0 0.0
        %5335 = vmatprep.subr.mxu0 0.0
        %5336 = vmatpush2.msra.mxu0 0.0
        %5337 = vmatprep.subr.mxu0 0.0
        %5338 = vmatpush2.msra.mxu0 0.0
        %5339 = vmatprep.subr.mxu0 0.0
        %5340 = vmatpush2.msra.mxu0 0.0
        %5341 = vmatprep.subr.mxu0 0.0
        %5342 = vmatpush2.msra.mxu0 0.0
        %5343 = vmatprep.subr.mxu0 0.0
        %5344 = vmatpush2.msra.mxu0 0.0
        %5345 = vmatprep.subr.mxu0 0.0
        %5346 = vmatpush2.msra.mxu0 0.0
        %5347 = vmatprep.subr.mxu0 0.0
        %5348 = vmatpush2.msra.mxu0 0.0
        %5349 = vmatprep.subr.mxu0 0.0
        %5350 = vmatpush2.msra.mxu0 0.0
        %5351 = vmatprep.subr.mxu0 0.0
        %5352 = vmatpush2.msra.mxu0 0.0
        %5353 = vmatprep.subr.mxu0 0.0
        %5354 = vmatpush2.msra.mxu0 0.0
        %5355 = vmatprep.subr.mxu0 0.0
        %5356 = vmatpush2.msra.mxu0 0.0
        %5357 = vmatprep.subr.mxu0 0.0
        %5358 = vmatpush2.msra.mxu0 0.0
        %5359 = vmatprep.mubr.f32.mxu0 0.0
        %5360 = vmatmul.mubr.f32.gmra.mxu0 %v4869
        %v5361 = vpop.f32.mrf.mxu0
        %v5362 = vadd.f32 0.0, %v5361
        %v5363 = vpop.f32.mrf.mxu0
        %5364 = vdwg.mxu0
        %5365 = vmatprep.subr.mxu0 0.0
        %5366 = vmatpush1.msra.mxu0 0.0
        %5367 = vmatprep.subr.mxu0 0.0
        %5368 = vmatpush1.msra.mxu0 0.0
        %5369 = vmatprep.subr.mxu0 0.0
        %5370 = vmatpush1.msra.mxu0 0.0
        %5371 = vmatprep.subr.mxu0 0.0
        %5372 = vmatpush1.msra.mxu0 0.0
        %5373 = vmatprep.subr.mxu0 0.0
        %5374 = vmatpush1.msra.mxu0 0.0
        %5375 = vmatprep.subr.mxu0 0.0
        %5376 = vmatpush1.msra.mxu0 0.0
        %5377 = vmatprep.subr.mxu0 0.0
        %5378 = vmatpush1.msra.mxu0 0.0
        %5379 = vmatprep.subr.mxu0 0.0
        %5380 = vmatpush1.msra.mxu0 0.0
        %5381 = vmatprep.subr.mxu0 0.0
        %5382 = vmatpush1.msra.mxu0 0.0
        %5383 = vmatprep.subr.mxu0 0.0
        %5384 = vmatpush1.msra.mxu0 0.0
        %5385 = vmatprep.subr.mxu0 0.0
        %5386 = vmatpush1.msra.mxu0 0.0
        %5387 = vmatprep.subr.mxu0 0.0
        %5388 = vmatpush1.msra.mxu0 0.0
        %5389 = vmatprep.subr.mxu0 0.0
        %5390 = vmatpush1.msra.mxu0 %v1087
        %5391 = vmatprep.subr.mxu0 0.0
        %5392 = vmatpush1.msra.mxu0 %v1086
        %5393 = vmatprep.subr.mxu0 0.0
        %5394 = vmatpush1.msra.mxu0 %v1085
        %5395 = vmatprep.subr.mxu0 0.0
        %5396 = vmatpush1.msra.mxu0 %v1084
        %5397 = vmatprep.subr.mxu0 0.0
        %5398 = vmatpush2.msra.mxu0 0.0
        %5399 = vmatprep.subr.mxu0 0.0
        %5400 = vmatpush2.msra.mxu0 0.0
        %5401 = vmatprep.subr.mxu0 0.0
        %5402 = vmatpush2.msra.mxu0 0.0
        %5403 = vmatprep.subr.mxu0 0.0
        %5404 = vmatpush2.msra.mxu0 0.0
        %5405 = vmatprep.subr.mxu0 0.0
        %5406 = vmatpush2.msra.mxu0 0.0
        %5407 = vmatprep.subr.mxu0 0.0
        %5408 = vmatpush2.msra.mxu0 0.0
        %5409 = vmatprep.subr.mxu0 0.0
        %5410 = vmatpush2.msra.mxu0 0.0
        %5411 = vmatprep.subr.mxu0 0.0
        %5412 = vmatpush2.msra.mxu0 0.0
        %5413 = vmatprep.subr.mxu0 0.0
        %5414 = vmatpush2.msra.mxu0 0.0
        %5415 = vmatprep.subr.mxu0 0.0
        %5416 = vmatpush2.msra.mxu0 0.0
        %5417 = vmatprep.subr.mxu0 0.0
        %5418 = vmatpush2.msra.mxu0 0.0
        %5419 = vmatprep.subr.mxu0 0.0
        %5420 = vmatpush2.msra.mxu0 0.0
        %5421 = vmatprep.subr.mxu0 0.0
        %5422 = vmatpush2.msra.mxu0 0.0
        %5423 = vmatprep.subr.mxu0 0.0
        %5424 = vmatpush2.msra.mxu0 0.0
        %5425 = vmatprep.subr.mxu0 0.0
        %5426 = vmatpush2.msra.mxu0 0.0
        %5427 = vmatprep.subr.mxu0 0.0
        %5428 = vmatpush2.msra.mxu0 0.0
        %5429 = vmatprep.mubr.f32.mxu0 0.0
        %5430 = vmatmul.mubr.f32.gmra.mxu0 %v4869
        %v5431 = vpop.f32.mrf.mxu0
        %v5432 = vadd.f32 0.0, %v5431
        %v5433 = vpop.f32.mrf.mxu0
        %5434 = vdwg.mxu0
        %5435 = vmatprep.subr.mxu0 0.0
        %5436 = vmatpush1.msra.mxu0 0.0
        %5437 = vmatprep.subr.mxu0 0.0
        %5438 = vmatpush1.msra.mxu0 0.0
        %5439 = vmatprep.subr.mxu0 0.0
        %5440 = vmatpush1.msra.mxu0 0.0
        %5441 = vmatprep.subr.mxu0 0.0
        %5442 = vmatpush1.msra.mxu0 0.0
        %5443 = vmatprep.subr.mxu0 0.0
        %5444 = vmatpush1.msra.mxu0 0.0
        %5445 = vmatprep.subr.mxu0 0.0
        %5446 = vmatpush1.msra.mxu0 0.0
        %5447 = vmatprep.subr.mxu0 0.0
        %5448 = vmatpush1.msra.mxu0 0.0
        %5449 = vmatprep.subr.mxu0 0.0
        %5450 = vmatpush1.msra.mxu0 0.0
        %5451 = vmatprep.subr.mxu0 0.0
        %5452 = vmatpush1.msra.mxu0 0.0
        %5453 = vmatprep.subr.mxu0 0.0
        %5454 = vmatpush1.msra.mxu0 0.0
        %5455 = vmatprep.subr.mxu0 0.0
        %5456 = vmatpush1.msra.mxu0 0.0
        %5457 = vmatprep.subr.mxu0 0.0
        %5458 = vmatpush1.msra.mxu0 0.0
        %5459 = vmatprep.subr.mxu0 0.0
        %5460 = vmatpush1.msra.mxu0 %v1091
        %5461 = vmatprep.subr.mxu0 0.0
        %5462 = vmatpush1.msra.mxu0 %v1090
        %5463 = vmatprep.subr.mxu0 0.0
        %5464 = vmatpush1.msra.mxu0 %v1089
        %5465 = vmatprep.subr.mxu0 0.0
        %5466 = vmatpush1.msra.mxu0 %v1088
        %5467 = vmatprep.subr.mxu0 0.0
        %5468 = vmatpush2.msra.mxu0 0.0
        %5469 = vmatprep.subr.mxu0 0.0
        %5470 = vmatpush2.msra.mxu0 0.0
        %5471 = vmatprep.subr.mxu0 0.0
        %5472 = vmatpush2.msra.mxu0 0.0
        %5473 = vmatprep.subr.mxu0 0.0
        %5474 = vmatpush2.msra.mxu0 0.0
        %5475 = vmatprep.subr.mxu0 0.0
        %5476 = vmatpush2.msra.mxu0 0.0
        %5477 = vmatprep.subr.mxu0 0.0
        %5478 = vmatpush2.msra.mxu0 0.0
        %5479 = vmatprep.subr.mxu0 0.0
        %5480 = vmatpush2.msra.mxu0 0.0
        %5481 = vmatprep.subr.mxu0 0.0
        %5482 = vmatpush2.msra.mxu0 0.0
        %5483 = vmatprep.subr.mxu0 0.0
        %5484 = vmatpush2.msra.mxu0 0.0
        %5485 = vmatprep.subr.mxu0 0.0
        %5486 = vmatpush2.msra.mxu0 0.0
        %5487 = vmatprep.subr.mxu0 0.0
        %5488 = vmatpush2.msra.mxu0 0.0
        %5489 = vmatprep.subr.mxu0 0.0
        %5490 = vmatpush2.msra.mxu0 0.0
        %5491 = vmatprep.subr.mxu0 0.0
        %5492 = vmatpush2.msra.mxu0 0.0
        %5493 = vmatprep.subr.mxu0 0.0
        %5494 = vmatpush2.msra.mxu0 0.0
        %5495 = vmatprep.subr.mxu0 0.0
        %5496 = vmatpush2.msra.mxu0 0.0
        %5497 = vmatprep.subr.mxu0 0.0
        %5498 = vmatpush2.msra.mxu0 0.0
        %5499 = vmatprep.mubr.f32.mxu0 0.0
        %5500 = vmatmul.mubr.f32.gmra.mxu0 %v4869
        %v5501 = vpop.f32.mrf.mxu0
        %v5502 = vadd.f32 0.0, %v5501
        %v5503 = vpop.f32.mrf.mxu0
        %5504 = vdwg.mxu0
        %5505 = vmatprep.subr.mxu0 0.0
        %5506 = vmatpush1.msra.mxu0 0.0
        %5507 = vmatprep.subr.mxu0 0.0
        %5508 = vmatpush1.msra.mxu0 0.0
        %5509 = vmatprep.subr.mxu0 0.0
        %5510 = vmatpush1.msra.mxu0 0.0
        %5511 = vmatprep.subr.mxu0 0.0
        %5512 = vmatpush1.msra.mxu0 0.0
        %5513 = vmatprep.subr.mxu0 0.0
        %5514 = vmatpush1.msra.mxu0 0.0
        %5515 = vmatprep.subr.mxu0 0.0
        %5516 = vmatpush1.msra.mxu0 0.0
        %5517 = vmatprep.subr.mxu0 0.0
        %5518 = vmatpush1.msra.mxu0 0.0
        %5519 = vmatprep.subr.mxu0 0.0
        %5520 = vmatpush1.msra.mxu0 0.0
        %5521 = vmatprep.subr.mxu0 0.0
        %5522 = vmatpush1.msra.mxu0 0.0
        %5523 = vmatprep.subr.mxu0 0.0
        %5524 = vmatpush1.msra.mxu0 0.0
        %5525 = vmatprep.subr.mxu0 0.0
        %5526 = vmatpush1.msra.mxu0 0.0
        %5527 = vmatprep.subr.mxu0 0.0
        %5528 = vmatpush1.msra.mxu0 0.0
        %5529 = vmatprep.subr.mxu0 0.0
        %5530 = vmatpush1.msra.mxu0 %v1095
        %5531 = vmatprep.subr.mxu0 0.0
        %5532 = vmatpush1.msra.mxu0 %v1094
        %5533 = vmatprep.subr.mxu0 0.0
        %5534 = vmatpush1.msra.mxu0 %v1093
        %5535 = vmatprep.subr.mxu0 0.0
        %5536 = vmatpush1.msra.mxu0 %v1092
        %5537 = vmatprep.subr.mxu0 0.0
        %5538 = vmatpush2.msra.mxu0 0.0
        %5539 = vmatprep.subr.mxu0 0.0
        %5540 = vmatpush2.msra.mxu0 0.0
        %5541 = vmatprep.subr.mxu0 0.0
        %5542 = vmatpush2.msra.mxu0 0.0
        %5543 = vmatprep.subr.mxu0 0.0
        %5544 = vmatpush2.msra.mxu0 0.0
        %5545 = vmatprep.subr.mxu0 0.0
        %5546 = vmatpush2.msra.mxu0 0.0
        %5547 = vmatprep.subr.mxu0 0.0
        %5548 = vmatpush2.msra.mxu0 0.0
        %5549 = vmatprep.subr.mxu0 0.0
        %5550 = vmatpush2.msra.mxu0 0.0
        %5551 = vmatprep.subr.mxu0 0.0
        %5552 = vmatpush2.msra.mxu0 0.0
        %5553 = vmatprep.subr.mxu0 0.0
        %5554 = vmatpush2.msra.mxu0 0.0
        %5555 = vmatprep.subr.mxu0 0.0
        %5556 = vmatpush2.msra.mxu0 0.0
        %5557 = vmatprep.subr.mxu0 0.0
        %5558 = vmatpush2.msra.mxu0 0.0
        %5559 = vmatprep.subr.mxu0 0.0
        %5560 = vmatpush2.msra.mxu0 0.0
        %5561 = vmatprep.subr.mxu0 0.0
        %5562 = vmatpush2.msra.mxu0 0.0
        %5563 = vmatprep.subr.mxu0 0.0
        %5564 = vmatpush2.msra.mxu0 0.0
        %5565 = vmatprep.subr.mxu0 0.0
        %5566 = vmatpush2.msra.mxu0 0.0
        %5567 = vmatprep.subr.mxu0 0.0
        %5568 = vmatpush2.msra.mxu0 0.0
        %5569 = vmatprep.mubr.f32.mxu0 0.0
        %5570 = vmatmul.mubr.f32.gmra.mxu0 %v4869
        %v5571 = vpop.f32.mrf.mxu0
        %v5572 = vadd.f32 0.0, %v5571
        %v5573 = vpop.f32.mrf.mxu0
        %5574 = vdwg.mxu0
        %5575 = vmatprep.subr.mxu0 0.0
        %5576 = vmatpush1.msra.mxu0 0.0
        %5577 = vmatprep.subr.mxu0 0.0
        %5578 = vmatpush1.msra.mxu0 0.0
        %5579 = vmatprep.subr.mxu0 0.0
        %5580 = vmatpush1.msra.mxu0 0.0
        %5581 = vmatprep.subr.mxu0 0.0
        %5582 = vmatpush1.msra.mxu0 0.0
        %5583 = vmatprep.subr.mxu0 0.0
        %5584 = vmatpush1.msra.mxu0 0.0
        %5585 = vmatprep.subr.mxu0 0.0
        %5586 = vmatpush1.msra.mxu0 0.0
        %5587 = vmatprep.subr.mxu0 0.0
        %5588 = vmatpush1.msra.mxu0 0.0
        %5589 = vmatprep.subr.mxu0 0.0
        %5590 = vmatpush1.msra.mxu0 0.0
        %5591 = vmatprep.subr.mxu0 0.0
        %5592 = vmatpush1.msra.mxu0 0.0
        %5593 = vmatprep.subr.mxu0 0.0
        %5594 = vmatpush1.msra.mxu0 0.0
        %5595 = vmatprep.subr.mxu0 0.0
        %5596 = vmatpush1.msra.mxu0 0.0
        %5597 = vmatprep.subr.mxu0 0.0
        %5598 = vmatpush1.msra.mxu0 0.0
        %5599 = vmatprep.subr.mxu0 0.0
        %5600 = vmatpush1.msra.mxu0 %v1099
        %5601 = vmatprep.subr.mxu0 0.0
        %5602 = vmatpush1.msra.mxu0 %v1098
        %5603 = vmatprep.subr.mxu0 0.0
        %5604 = vmatpush1.msra.mxu0 %v1097
        %5605 = vmatprep.subr.mxu0 0.0
        %5606 = vmatpush1.msra.mxu0 %v1096
        %5607 = vmatprep.subr.mxu0 0.0
        %5608 = vmatpush2.msra.mxu0 0.0
        %5609 = vmatprep.subr.mxu0 0.0
        %5610 = vmatpush2.msra.mxu0 0.0
        %5611 = vmatprep.subr.mxu0 0.0
        %5612 = vmatpush2.msra.mxu0 0.0
        %5613 = vmatprep.subr.mxu0 0.0
        %5614 = vmatpush2.msra.mxu0 0.0
        %5615 = vmatprep.subr.mxu0 0.0
        %5616 = vmatpush2.msra.mxu0 0.0
        %5617 = vmatprep.subr.mxu0 0.0
        %5618 = vmatpush2.msra.mxu0 0.0
        %5619 = vmatprep.subr.mxu0 0.0
        %5620 = vmatpush2.msra.mxu0 0.0
        %5621 = vmatprep.subr.mxu0 0.0
        %5622 = vmatpush2.msra.mxu0 0.0
        %5623 = vmatprep.subr.mxu0 0.0
        %5624 = vmatpush2.msra.mxu0 0.0
        %5625 = vmatprep.subr.mxu0 0.0
        %5626 = vmatpush2.msra.mxu0 0.0
        %5627 = vmatprep.subr.mxu0 0.0
        %5628 = vmatpush2.msra.mxu0 0.0
        %5629 = vmatprep.subr.mxu0 0.0
        %5630 = vmatpush2.msra.mxu0 0.0
        %5631 = vmatprep.subr.mxu0 0.0
        %5632 = vmatpush2.msra.mxu0 0.0
        %5633 = vmatprep.subr.mxu0 0.0
        %5634 = vmatpush2.msra.mxu0 0.0
        %5635 = vmatprep.subr.mxu0 0.0
        %5636 = vmatpush2.msra.mxu0 0.0
        %5637 = vmatprep.subr.mxu0 0.0
        %5638 = vmatpush2.msra.mxu0 0.0
        %5639 = vmatprep.mubr.f32.mxu0 0.0
        %5640 = vmatmul.mubr.f32.gmra.mxu0 %v4869
        %v5641 = vpop.f32.mrf.mxu0
        %v5642 = vadd.f32 0.0, %v5641
        %v5643 = vpop.f32.mrf.mxu0
        %5644 = vdwg.mxu0
        %5645 = vmatprep.subr.mxu0 0.0
        %5646 = vmatpush1.msra.mxu0 0.0
        %5647 = vmatprep.subr.mxu0 0.0
        %5648 = vmatpush1.msra.mxu0 0.0
        %5649 = vmatprep.subr.mxu0 0.0
        %5650 = vmatpush1.msra.mxu0 0.0
        %5651 = vmatprep.subr.mxu0 0.0
        %5652 = vmatpush1.msra.mxu0 0.0
        %5653 = vmatprep.subr.mxu0 0.0
        %5654 = vmatpush1.msra.mxu0 0.0
        %5655 = vmatprep.subr.mxu0 0.0
        %5656 = vmatpush1.msra.mxu0 0.0
        %5657 = vmatprep.subr.mxu0 0.0
        %5658 = vmatpush1.msra.mxu0 0.0
        %5659 = vmatprep.subr.mxu0 0.0
        %5660 = vmatpush1.msra.mxu0 0.0
        %5661 = vmatprep.subr.mxu0 0.0
        %5662 = vmatpush1.msra.mxu0 0.0
        %5663 = vmatprep.subr.mxu0 0.0
        %5664 = vmatpush1.msra.mxu0 0.0
        %5665 = vmatprep.subr.mxu0 0.0
        %5666 = vmatpush1.msra.mxu0 0.0
        %5667 = vmatprep.subr.mxu0 0.0
        %5668 = vmatpush1.msra.mxu0 0.0
        %5669 = vmatprep.subr.mxu0 0.0
        %5670 = vmatpush1.msra.mxu0 %v1103
        %5671 = vmatprep.subr.mxu0 0.0
        %5672 = vmatpush1.msra.mxu0 %v1102
        %5673 = vmatprep.subr.mxu0 0.0
        %5674 = vmatpush1.msra.mxu0 %v1101
        %5675 = vmatprep.subr.mxu0 0.0
        %5676 = vmatpush1.msra.mxu0 %v1100
        %5677 = vmatprep.subr.mxu0 0.0
        %5678 = vmatpush2.msra.mxu0 0.0
        %5679 = vmatprep.subr.mxu0 0.0
        %5680 = vmatpush2.msra.mxu0 0.0
        %5681 = vmatprep.subr.mxu0 0.0
        %5682 = vmatpush2.msra.mxu0 0.0
        %5683 = vmatprep.subr.mxu0 0.0
        %5684 = vmatpush2.msra.mxu0 0.0
        %5685 = vmatprep.subr.mxu0 0.0
        %5686 = vmatpush2.msra.mxu0 0.0
        %5687 = vmatprep.subr.mxu0 0.0
        %5688 = vmatpush2.msra.mxu0 0.0
        %5689 = vmatprep.subr.mxu0 0.0
        %5690 = vmatpush2.msra.mxu0 0.0
        %5691 = vmatprep.subr.mxu0 0.0
        %5692 = vmatpush2.msra.mxu0 0.0
        %5693 = vmatprep.subr.mxu0 0.0
        %5694 = vmatpush2.msra.mxu0 0.0
        %5695 = vmatprep.subr.mxu0 0.0
        %5696 = vmatpush2.msra.mxu0 0.0
        %5697 = vmatprep.subr.mxu0 0.0
        %5698 = vmatpush2.msra.mxu0 0.0
        %5699 = vmatprep.subr.mxu0 0.0
        %5700 = vmatpush2.msra.mxu0 0.0
        %5701 = vmatprep.subr.mxu0 0.0
        %5702 = vmatpush2.msra.mxu0 0.0
        %5703 = vmatprep.subr.mxu0 0.0
        %5704 = vmatpush2.msra.mxu0 0.0
        %5705 = vmatprep.subr.mxu0 0.0
        %5706 = vmatpush2.msra.mxu0 0.0
        %5707 = vmatprep.subr.mxu0 0.0
        %5708 = vmatpush2.msra.mxu0 0.0
        %5709 = vmatprep.mubr.f32.mxu0 0.0
        %5710 = vmatmul.mubr.f32.gmra.mxu0 %v4869
        %v5711 = vpop.f32.mrf.mxu0
        %v5712 = vadd.f32 0.0, %v5711
        %v5713 = vpop.f32.mrf.mxu0
        %5714 = vdwg.mxu0
        %v5716 = vsel %vm2032, %v5151, 0
        %v5719 = vsel %vm2032, %v5222, 0
        %5721 = vmatprep.subr.mxu0 0.0
        %5722 = vmatpush1.xpose.msra.mxu0 0.0
        %5723 = vmatprep.subr.mxu0 0.0
        %5724 = vmatpush1.xpose.msra.mxu0 0.0
        %5725 = vmatprep.subr.mxu0 0.0
        %5726 = vmatpush1.xpose.msra.mxu0 0.0
        %5727 = vmatprep.subr.mxu0 0.0
        %5728 = vmatpush1.xpose.msra.mxu0 0.0
        %5729 = vmatprep.subr.mxu0 0.0
        %5730 = vmatpush1.xpose.msra.mxu0 0.0
        %5731 = vmatprep.subr.mxu0 0.0
        %5732 = vmatpush1.xpose.msra.mxu0 0.0
        %5733 = vmatprep.subr.mxu0 0.0
        %5734 = vmatpush1.xpose.msra.mxu0 0.0
        %5735 = vmatprep.subr.mxu0 0.0
        %5736 = vmatpush1.xpose.msra.mxu0 0.0
        %5737 = vmatprep.subr.mxu0 0.0
        %5738 = vmatpush1.xpose.msra.mxu0 0.0
        %5739 = vmatprep.subr.mxu0 0.0
        %5740 = vmatpush1.xpose.msra.mxu0 0.0
        %5741 = vmatprep.subr.mxu0 0.0
        %5742 = vmatpush1.xpose.msra.mxu0 0.0
        %5743 = vmatprep.subr.mxu0 0.0
        %5744 = vmatpush1.xpose.msra.mxu0 0.0
        %5745 = vmatprep.subr.mxu0 0.0
        %5746 = vmatpush1.xpose.msra.mxu0 0.0
        %5747 = vmatprep.subr.mxu0 0.0
        %5748 = vmatpush1.xpose.msra.mxu0 0.0
        %5749 = vmatprep.subr.mxu0 0.0
        %5750 = vmatpush1.xpose.msra.mxu0 0.0
        %5751 = vmatprep.subr.mxu0 0.0
        %5752 = vmatpush1.xpose.msra.mxu0 %v5719
        %5753 = vmatprep.subr.mxu0 0.0
        %5754 = vmatpush2.xpose.msra.mxu0 0.0
        %5755 = vmatprep.subr.mxu0 0.0
        %5756 = vmatpush2.xpose.msra.mxu0 0.0
        %5757 = vmatprep.subr.mxu0 0.0
        %5758 = vmatpush2.xpose.msra.mxu0 0.0
        %5759 = vmatprep.subr.mxu0 0.0
        %5760 = vmatpush2.xpose.msra.mxu0 0.0
        %5761 = vmatprep.subr.mxu0 0.0
        %5762 = vmatpush2.xpose.msra.mxu0 0.0
        %5763 = vmatprep.subr.mxu0 0.0
        %5764 = vmatpush2.xpose.msra.mxu0 0.0
        %5765 = vmatprep.subr.mxu0 0.0
        %5766 = vmatpush2.xpose.msra.mxu0 0.0
        %5767 = vmatprep.subr.mxu0 0.0
        %5768 = vmatpush2.xpose.msra.mxu0 0.0
        %5769 = vmatprep.subr.mxu0 0.0
        %5770 = vmatpush2.xpose.msra.mxu0 0.0
        %5771 = vmatprep.subr.mxu0 0.0
        %5772 = vmatpush2.xpose.msra.mxu0 0.0
        %5773 = vmatprep.subr.mxu0 0.0
        %5774 = vmatpush2.xpose.msra.mxu0 0.0
        %5775 = vmatprep.subr.mxu0 0.0
        %5776 = vmatpush2.xpose.msra.mxu0 0.0
        %5777 = vmatprep.subr.mxu0 0.0
        %5778 = vmatpush2.xpose.msra.mxu0 0.0
        %5779 = vmatprep.subr.mxu0 0.0
        %5780 = vmatpush2.xpose.msra.mxu0 0.0
        %5781 = vmatprep.subr.mxu0 0.0
        %5782 = vmatpush2.xpose.msra.mxu0 0.0
        %5783 = vmatprep.subr.mxu0 0.0
        %5784 = vmatpush2.xpose.msra.mxu0 0.0
        %5785 = vmatprep.mubr.f32.mxu0 0.0
        %5786 = vmatmul.mubr.f32.gmra.mxu0 %v5716
        %v5787 = vpop.f32.mrf.mxu0
        %v5788 = vadd.f32 0.0, %v5787
        %v5789 = vpop.f32.mrf.mxu0
        %5790 = vdwg.mxu0
        %v5792 = vsel %vm2032, %v5152, 0
        %v5795 = vsel %vm2032, %v5292, 0
        %5797 = vmatprep.subr.mxu0 0.0
        %5798 = vmatpush1.xpose.msra.mxu0 0.0
        %5799 = vmatprep.subr.mxu0 0.0
        %5800 = vmatpush1.xpose.msra.mxu0 0.0
        %5801 = vmatprep.subr.mxu0 0.0
        %5802 = vmatpush1.xpose.msra.mxu0 0.0
        %5803 = vmatprep.subr.mxu0 0.0
        %5804 = vmatpush1.xpose.msra.mxu0 0.0
        %5805 = vmatprep.subr.mxu0 0.0
        %5806 = vmatpush1.xpose.msra.mxu0 0.0
        %5807 = vmatprep.subr.mxu0 0.0
        %5808 = vmatpush1.xpose.msra.mxu0 0.0
        %5809 = vmatprep.subr.mxu0 0.0
        %5810 = vmatpush1.xpose.msra.mxu0 0.0
        %5811 = vmatprep.subr.mxu0 0.0
        %5812 = vmatpush1.xpose.msra.mxu0 0.0
        %5813 = vmatprep.subr.mxu0 0.0
        %5814 = vmatpush1.xpose.msra.mxu0 0.0
        %5815 = vmatprep.subr.mxu0 0.0
        %5816 = vmatpush1.xpose.msra.mxu0 0.0
        %5817 = vmatprep.subr.mxu0 0.0
        %5818 = vmatpush1.xpose.msra.mxu0 0.0
        %5819 = vmatprep.subr.mxu0 0.0
        %5820 = vmatpush1.xpose.msra.mxu0 0.0
        %5821 = vmatprep.subr.mxu0 0.0
        %5822 = vmatpush1.xpose.msra.mxu0 0.0
        %5823 = vmatprep.subr.mxu0 0.0
        %5824 = vmatpush1.xpose.msra.mxu0 0.0
        %5825 = vmatprep.subr.mxu0 0.0
        %5826 = vmatpush1.xpose.msra.mxu0 0.0
        %5827 = vmatprep.subr.mxu0 0.0
        %5828 = vmatpush1.xpose.msra.mxu0 %v5795
        %5829 = vmatprep.subr.mxu0 0.0
        %5830 = vmatpush2.xpose.msra.mxu0 0.0
        %5831 = vmatprep.subr.mxu0 0.0
        %5832 = vmatpush2.xpose.msra.mxu0 0.0
        %5833 = vmatprep.subr.mxu0 0.0
        %5834 = vmatpush2.xpose.msra.mxu0 0.0
        %5835 = vmatprep.subr.mxu0 0.0
        %5836 = vmatpush2.xpose.msra.mxu0 0.0
        %5837 = vmatprep.subr.mxu0 0.0
        %5838 = vmatpush2.xpose.msra.mxu0 0.0
        %5839 = vmatprep.subr.mxu0 0.0
        %5840 = vmatpush2.xpose.msra.mxu0 0.0
        %5841 = vmatprep.subr.mxu0 0.0
        %5842 = vmatpush2.xpose.msra.mxu0 0.0
        %5843 = vmatprep.subr.mxu0 0.0
        %5844 = vmatpush2.xpose.msra.mxu0 0.0
        %5845 = vmatprep.subr.mxu0 0.0
        %5846 = vmatpush2.xpose.msra.mxu0 0.0
        %5847 = vmatprep.subr.mxu0 0.0
        %5848 = vmatpush2.xpose.msra.mxu0 0.0
        %5849 = vmatprep.subr.mxu0 0.0
        %5850 = vmatpush2.xpose.msra.mxu0 0.0
        %5851 = vmatprep.subr.mxu0 0.0
        %5852 = vmatpush2.xpose.msra.mxu0 0.0
        %5853 = vmatprep.subr.mxu0 0.0
        %5854 = vmatpush2.xpose.msra.mxu0 0.0
        %5855 = vmatprep.subr.mxu0 0.0
        %5856 = vmatpush2.xpose.msra.mxu0 0.0
        %5857 = vmatprep.subr.mxu0 0.0
        %5858 = vmatpush2.xpose.msra.mxu0 0.0
        %5859 = vmatprep.subr.mxu0 0.0
        %5860 = vmatpush2.xpose.msra.mxu0 0.0
        %5861 = vmatprep.mubr.f32.mxu0 0.0
        %5862 = vmatmul.mubr.f32.gmra.mxu0 %v5792
        %v5863 = vpop.f32.mrf.mxu0
        %v5864 = vadd.f32 0.0, %v5863
        %v5865 = vpop.f32.mrf.mxu0
        %5866 = vdwg.mxu0
        %v5868 = vsel %vm2032, %v5153, 0
        %v5871 = vsel %vm2032, %v5362, 0
        %5873 = vmatprep.subr.mxu0 0.0
        %5874 = vmatpush1.xpose.msra.mxu0 0.0
        %5875 = vmatprep.subr.mxu0 0.0
        %5876 = vmatpush1.xpose.msra.mxu0 0.0
        %5877 = vmatprep.subr.mxu0 0.0
        %5878 = vmatpush1.xpose.msra.mxu0 0.0
        %5879 = vmatprep.subr.mxu0 0.0
        %5880 = vmatpush1.xpose.msra.mxu0 0.0
        %5881 = vmatprep.subr.mxu0 0.0
        %5882 = vmatpush1.xpose.msra.mxu0 0.0
        %5883 = vmatprep.subr.mxu0 0.0
        %5884 = vmatpush1.xpose.msra.mxu0 0.0
        %5885 = vmatprep.subr.mxu0 0.0
        %5886 = vmatpush1.xpose.msra.mxu0 0.0
        %5887 = vmatprep.subr.mxu0 0.0
        %5888 = vmatpush1.xpose.msra.mxu0 0.0
        %5889 = vmatprep.subr.mxu0 0.0
        %5890 = vmatpush1.xpose.msra.mxu0 0.0
        %5891 = vmatprep.subr.mxu0 0.0
        %5892 = vmatpush1.xpose.msra.mxu0 0.0
        %5893 = vmatprep.subr.mxu0 0.0
        %5894 = vmatpush1.xpose.msra.mxu0 0.0
        %5895 = vmatprep.subr.mxu0 0.0
        %5896 = vmatpush1.xpose.msra.mxu0 0.0
        %5897 = vmatprep.subr.mxu0 0.0
        %5898 = vmatpush1.xpose.msra.mxu0 0.0
        %5899 = vmatprep.subr.mxu0 0.0
        %5900 = vmatpush1.xpose.msra.mxu0 0.0
        %5901 = vmatprep.subr.mxu0 0.0
        %5902 = vmatpush1.xpose.msra.mxu0 0.0
        %5903 = vmatprep.subr.mxu0 0.0
        %5904 = vmatpush1.xpose.msra.mxu0 %v5871
        %5905 = vmatprep.subr.mxu0 0.0
        %5906 = vmatpush2.xpose.msra.mxu0 0.0
        %5907 = vmatprep.subr.mxu0 0.0
        %5908 = vmatpush2.xpose.msra.mxu0 0.0
        %5909 = vmatprep.subr.mxu0 0.0
        %5910 = vmatpush2.xpose.msra.mxu0 0.0
        %5911 = vmatprep.subr.mxu0 0.0
        %5912 = vmatpush2.xpose.msra.mxu0 0.0
        %5913 = vmatprep.subr.mxu0 0.0
        %5914 = vmatpush2.xpose.msra.mxu0 0.0
        %5915 = vmatprep.subr.mxu0 0.0
        %5916 = vmatpush2.xpose.msra.mxu0 0.0
        %5917 = vmatprep.subr.mxu0 0.0
        %5918 = vmatpush2.xpose.msra.mxu0 0.0
        %5919 = vmatprep.subr.mxu0 0.0
        %5920 = vmatpush2.xpose.msra.mxu0 0.0
        %5921 = vmatprep.subr.mxu0 0.0
        %5922 = vmatpush2.xpose.msra.mxu0 0.0
        %5923 = vmatprep.subr.mxu0 0.0
        %5924 = vmatpush2.xpose.msra.mxu0 0.0
        %5925 = vmatprep.subr.mxu0 0.0
        %5926 = vmatpush2.xpose.msra.mxu0 0.0
        %5927 = vmatprep.subr.mxu0 0.0
        %5928 = vmatpush2.xpose.msra.mxu0 0.0
        %5929 = vmatprep.subr.mxu0 0.0
        %5930 = vmatpush2.xpose.msra.mxu0 0.0
        %5931 = vmatprep.subr.mxu0 0.0
        %5932 = vmatpush2.xpose.msra.mxu0 0.0
        %5933 = vmatprep.subr.mxu0 0.0
        %5934 = vmatpush2.xpose.msra.mxu0 0.0
        %5935 = vmatprep.subr.mxu0 0.0
        %5936 = vmatpush2.xpose.msra.mxu0 0.0
        %5937 = vmatprep.mubr.f32.mxu0 0.0
        %5938 = vmatmul.mubr.f32.gmra.mxu0 %v5868
        %v5939 = vpop.f32.mrf.mxu0
        %v5940 = vadd.f32 0.0, %v5939
        %v5941 = vpop.f32.mrf.mxu0
        %5942 = vdwg.mxu0
        %v5944 = vsel %vm2032, %v5154, 0
        %v5947 = vsel %vm2032, %v5432, 0
        %5949 = vmatprep.subr.mxu0 0.0
        %5950 = vmatpush1.xpose.msra.mxu0 0.0
        %5951 = vmatprep.subr.mxu0 0.0
        %5952 = vmatpush1.xpose.msra.mxu0 0.0
        %5953 = vmatprep.subr.mxu0 0.0
        %5954 = vmatpush1.xpose.msra.mxu0 0.0
        %5955 = vmatprep.subr.mxu0 0.0
        %5956 = vmatpush1.xpose.msra.mxu0 0.0
        %5957 = vmatprep.subr.mxu0 0.0
        %5958 = vmatpush1.xpose.msra.mxu0 0.0
        %5959 = vmatprep.subr.mxu0 0.0
        %5960 = vmatpush1.xpose.msra.mxu0 0.0
        %5961 = vmatprep.subr.mxu0 0.0
        %5962 = vmatpush1.xpose.msra.mxu0 0.0
        %5963 = vmatprep.subr.mxu0 0.0
        %5964 = vmatpush1.xpose.msra.mxu0 0.0
        %5965 = vmatprep.subr.mxu0 0.0
        %5966 = vmatpush1.xpose.msra.mxu0 0.0
        %5967 = vmatprep.subr.mxu0 0.0
        %5968 = vmatpush1.xpose.msra.mxu0 0.0
        %5969 = vmatprep.subr.mxu0 0.0
        %5970 = vmatpush1.xpose.msra.mxu0 0.0
        %5971 = vmatprep.subr.mxu0 0.0
        %5972 = vmatpush1.xpose.msra.mxu0 0.0
        %5973 = vmatprep.subr.mxu0 0.0
        %5974 = vmatpush1.xpose.msra.mxu0 0.0
        %5975 = vmatprep.subr.mxu0 0.0
        %5976 = vmatpush1.xpose.msra.mxu0 0.0
        %5977 = vmatprep.subr.mxu0 0.0
        %5978 = vmatpush1.xpose.msra.mxu0 0.0
        %5979 = vmatprep.subr.mxu0 0.0
        %5980 = vmatpush1.xpose.msra.mxu0 %v5947
        %5981 = vmatprep.subr.mxu0 0.0
        %5982 = vmatpush2.xpose.msra.mxu0 0.0
        %5983 = vmatprep.subr.mxu0 0.0
        %5984 = vmatpush2.xpose.msra.mxu0 0.0
        %5985 = vmatprep.subr.mxu0 0.0
        %5986 = vmatpush2.xpose.msra.mxu0 0.0
        %5987 = vmatprep.subr.mxu0 0.0
        %5988 = vmatpush2.xpose.msra.mxu0 0.0
        %5989 = vmatprep.subr.mxu0 0.0
        %5990 = vmatpush2.xpose.msra.mxu0 0.0
        %5991 = vmatprep.subr.mxu0 0.0
        %5992 = vmatpush2.xpose.msra.mxu0 0.0
        %5993 = vmatprep.subr.mxu0 0.0
        %5994 = vmatpush2.xpose.msra.mxu0 0.0
        %5995 = vmatprep.subr.mxu0 0.0
        %5996 = vmatpush2.xpose.msra.mxu0 0.0
        %5997 = vmatprep.subr.mxu0 0.0
        %5998 = vmatpush2.xpose.msra.mxu0 0.0
        %5999 = vmatprep.subr.mxu0 0.0
        %6000 = vmatpush2.xpose.msra.mxu0 0.0
        %6001 = vmatprep.subr.mxu0 0.0
        %6002 = vmatpush2.xpose.msra.mxu0 0.0
        %6003 = vmatprep.subr.mxu0 0.0
        %6004 = vmatpush2.xpose.msra.mxu0 0.0
        %6005 = vmatprep.subr.mxu0 0.0
        %6006 = vmatpush2.xpose.msra.mxu0 0.0
        %6007 = vmatprep.subr.mxu0 0.0
        %6008 = vmatpush2.xpose.msra.mxu0 0.0
        %6009 = vmatprep.subr.mxu0 0.0
        %6010 = vmatpush2.xpose.msra.mxu0 0.0
        %6011 = vmatprep.subr.mxu0 0.0
        %6012 = vmatpush2.xpose.msra.mxu0 0.0
        %6013 = vmatprep.mubr.f32.mxu0 0.0
        %6014 = vmatmul.mubr.f32.gmra.mxu0 %v5944
        %v6015 = vpop.f32.mrf.mxu0
        %v6016 = vadd.f32 0.0, %v6015
        %v6017 = vpop.f32.mrf.mxu0
        %6018 = vdwg.mxu0
        %v6019 = vsel %vm2032, %v5788, -inf
        %6020 = vmax.xlane.f32.xlu0 %v6019
        %v6021 = vpop.xlane.xlu0 %6020
        %v6022 = vsel %vm2032, %v5864, -inf
        %6023 = vmax.xlane.f32.xlu0 %v6022
        %v6024 = vpop.xlane.xlu0 %6023
        %v6025 = vsel %vm2032, %v5940, -inf
        %6026 = vmax.xlane.f32.xlu0 %v6025
        %v6027 = vpop.xlane.xlu0 %6026
        %v6028 = vsel %vm2032, %v6016, -inf
        %6029 = vmax.xlane.f32.xlu0 %v6028
        %v6030 = vpop.xlane.xlu0 %6029
        %v6031 = vsub.f32 %v5788, %v6021
        %v6032 = vsub.f32 %v5864, %v6024
        %v6033 = vsub.f32 %v5940, %v6027
        %v6034 = vsub.f32 %v6016, %v6030
        %v6035 = vmul.f32 %v6031, 1.442695
        %v6036 = vpow.pop %v6035
        %v6037 = vmul.f32 %v6032, 1.442695
        %v6038 = vpow.pop %v6037
        %v6039 = vmul.f32 %v6033, 1.442695
        %v6040 = vpow.pop %v6039
        %v6041 = vmul.f32 %v6034, 1.442695
        %v6042 = vpow.pop %v6041
        %v6043 = vsel %vm2032, %v6036, 0.0
        %6044 = vadd.xlane.f32.xlu0 %v6043
        %v6045 = vpop.xlane.xlu0 %6044
        %v6046 = vsel %vm2032, %v6038, 0.0
        %6047 = vadd.xlane.f32.xlu0 %v6046
        %v6048 = vpop.xlane.xlu0 %6047
        %v6049 = vsel %vm2032, %v6040, 0.0
        %6050 = vadd.xlane.f32.xlu0 %v6049
        %v6051 = vpop.xlane.xlu0 %6050
        %v6052 = vsel %vm2032, %v6042, 0.0
        %6053 = vadd.xlane.f32.xlu0 %v6052
        %v6054 = vpop.xlane.xlu0 %6053
        %v6055 = vrcp.pop %v6045
        %v6056 = vrcp.pop %v6048
        %v6057 = vrcp.pop %v6051
        %v6058 = vrcp.pop %v6054
        %v6059 = vmul.f32 %v6036, %v6055
        %v6060 = vmul.f32 %v6038, %v6056
        %v6061 = vmul.f32 %v6040, %v6057
        %v6062 = vmul.f32 %v6042, %v6058
        %v6064 = vsel %vm2032, %v6059, 0
        %6066 = vmatprep.subr.mxu0 0.0
        %6067 = vmatpush1.msra.mxu0 0.0
        %6068 = vmatprep.subr.mxu0 0.0
        %6069 = vmatpush1.msra.mxu0 0.0
        %6070 = vmatprep.subr.mxu0 0.0
        %6071 = vmatpush1.msra.mxu0 0.0
        %6072 = vmatprep.subr.mxu0 0.0
        %6073 = vmatpush1.msra.mxu0 0.0
        %6074 = vmatprep.subr.mxu0 0.0
        %6075 = vmatpush1.msra.mxu0 0.0
        %6076 = vmatprep.subr.mxu0 0.0
        %6077 = vmatpush1.msra.mxu0 0.0
        %6078 = vmatprep.subr.mxu0 0.0
        %6079 = vmatpush1.msra.mxu0 0.0
        %6080 = vmatprep.subr.mxu0 0.0
        %6081 = vmatpush1.msra.mxu0 0.0
        %6082 = vmatprep.subr.mxu0 0.0
        %6083 = vmatpush1.msra.mxu0 0.0
        %6084 = vmatprep.subr.mxu0 0.0
        %6085 = vmatpush1.msra.mxu0 0.0
        %6086 = vmatprep.subr.mxu0 0.0
        %6087 = vmatpush1.msra.mxu0 0.0
        %6088 = vmatprep.subr.mxu0 0.0
        %6089 = vmatpush1.msra.mxu0 0.0
        %6090 = vmatprep.subr.mxu0 0.0
        %6091 = vmatpush1.msra.mxu0 0.0
        %6092 = vmatprep.subr.mxu0 0.0
        %6093 = vmatpush1.msra.mxu0 0.0
        %6094 = vmatprep.subr.mxu0 0.0
        %6095 = vmatpush1.msra.mxu0 0.0
        %6096 = vmatprep.subr.mxu0 0.0
        %6097 = vmatpush1.msra.mxu0 %v5502
        %6098 = vmatprep.subr.mxu0 0.0
        %6099 = vmatpush2.msra.mxu0 0.0
        %6100 = vmatprep.subr.mxu0 0.0
        %6101 = vmatpush2.msra.mxu0 0.0
        %6102 = vmatprep.subr.mxu0 0.0
        %6103 = vmatpush2.msra.mxu0 0.0
        %6104 = vmatprep.subr.mxu0 0.0
        %6105 = vmatpush2.msra.mxu0 0.0
        %6106 = vmatprep.subr.mxu0 0.0
        %6107 = vmatpush2.msra.mxu0 0.0
        %6108 = vmatprep.subr.mxu0 0.0
        %6109 = vmatpush2.msra.mxu0 0.0
        %6110 = vmatprep.subr.mxu0 0.0
        %6111 = vmatpush2.msra.mxu0 0.0
        %6112 = vmatprep.subr.mxu0 0.0
        %6113 = vmatpush2.msra.mxu0 0.0
        %6114 = vmatprep.subr.mxu0 0.0
        %6115 = vmatpush2.msra.mxu0 0.0
        %6116 = vmatprep.subr.mxu0 0.0
        %6117 = vmatpush2.msra.mxu0 0.0
        %6118 = vmatprep.subr.mxu0 0.0
        %6119 = vmatpush2.msra.mxu0 0.0
        %6120 = vmatprep.subr.mxu0 0.0
        %6121 = vmatpush2.msra.mxu0 0.0
        %6122 = vmatprep.subr.mxu0 0.0
        %6123 = vmatpush2.msra.mxu0 0.0
        %6124 = vmatprep.subr.mxu0 0.0
        %6125 = vmatpush2.msra.mxu0 0.0
        %6126 = vmatprep.subr.mxu0 0.0
        %6127 = vmatpush2.msra.mxu0 0.0
        %6128 = vmatprep.subr.mxu0 0.0
        %6129 = vmatpush2.msra.mxu0 0.0
        %6130 = vmatprep.mubr.f32.mxu0 0.0
        %6131 = vmatmul.mubr.f32.gmra.mxu0 %v6064
        %v6132 = vpop.f32.mrf.mxu0
        %v6133 = vadd.f32 0.0, %v6132
        %v6134 = vpop.f32.mrf.mxu0
        %6135 = vdwg.mxu0
        %v6137 = vsel %vm2032, %v6060, 0
        %6139 = vmatprep.subr.mxu0 0.0
        %6140 = vmatpush1.msra.mxu0 0.0
        %6141 = vmatprep.subr.mxu0 0.0
        %6142 = vmatpush1.msra.mxu0 0.0
        %6143 = vmatprep.subr.mxu0 0.0
        %6144 = vmatpush1.msra.mxu0 0.0
        %6145 = vmatprep.subr.mxu0 0.0
        %6146 = vmatpush1.msra.mxu0 0.0
        %6147 = vmatprep.subr.mxu0 0.0
        %6148 = vmatpush1.msra.mxu0 0.0
        %6149 = vmatprep.subr.mxu0 0.0
        %6150 = vmatpush1.msra.mxu0 0.0
        %6151 = vmatprep.subr.mxu0 0.0
        %6152 = vmatpush1.msra.mxu0 0.0
        %6153 = vmatprep.subr.mxu0 0.0
        %6154 = vmatpush1.msra.mxu0 0.0
        %6155 = vmatprep.subr.mxu0 0.0
        %6156 = vmatpush1.msra.mxu0 0.0
        %6157 = vmatprep.subr.mxu0 0.0
        %6158 = vmatpush1.msra.mxu0 0.0
        %6159 = vmatprep.subr.mxu0 0.0
        %6160 = vmatpush1.msra.mxu0 0.0
        %6161 = vmatprep.subr.mxu0 0.0
        %6162 = vmatpush1.msra.mxu0 0.0
        %6163 = vmatprep.subr.mxu0 0.0
        %6164 = vmatpush1.msra.mxu0 0.0
        %6165 = vmatprep.subr.mxu0 0.0
        %6166 = vmatpush1.msra.mxu0 0.0
        %6167 = vmatprep.subr.mxu0 0.0
        %6168 = vmatpush1.msra.mxu0 0.0
        %6169 = vmatprep.subr.mxu0 0.0
        %6170 = vmatpush1.msra.mxu0 %v5572
        %6171 = vmatprep.subr.mxu0 0.0
        %6172 = vmatpush2.msra.mxu0 0.0
        %6173 = vmatprep.subr.mxu0 0.0
        %6174 = vmatpush2.msra.mxu0 0.0
        %6175 = vmatprep.subr.mxu0 0.0
        %6176 = vmatpush2.msra.mxu0 0.0
        %6177 = vmatprep.subr.mxu0 0.0
        %6178 = vmatpush2.msra.mxu0 0.0
        %6179 = vmatprep.subr.mxu0 0.0
        %6180 = vmatpush2.msra.mxu0 0.0
        %6181 = vmatprep.subr.mxu0 0.0
        %6182 = vmatpush2.msra.mxu0 0.0
        %6183 = vmatprep.subr.mxu0 0.0
        %6184 = vmatpush2.msra.mxu0 0.0
        %6185 = vmatprep.subr.mxu0 0.0
        %6186 = vmatpush2.msra.mxu0 0.0
        %6187 = vmatprep.subr.mxu0 0.0
        %6188 = vmatpush2.msra.mxu0 0.0
        %6189 = vmatprep.subr.mxu0 0.0
        %6190 = vmatpush2.msra.mxu0 0.0
        %6191 = vmatprep.subr.mxu0 0.0
        %6192 = vmatpush2.msra.mxu0 0.0
        %6193 = vmatprep.subr.mxu0 0.0
        %6194 = vmatpush2.msra.mxu0 0.0
        %6195 = vmatprep.subr.mxu0 0.0
        %6196 = vmatpush2.msra.mxu0 0.0
        %6197 = vmatprep.subr.mxu0 0.0
        %6198 = vmatpush2.msra.mxu0 0.0
        %6199 = vmatprep.subr.mxu0 0.0
        %6200 = vmatpush2.msra.mxu0 0.0
        %6201 = vmatprep.subr.mxu0 0.0
        %6202 = vmatpush2.msra.mxu0 0.0
        %6203 = vmatprep.mubr.f32.mxu0 0.0
        %6204 = vmatmul.mubr.f32.gmra.mxu0 %v6137
        %v6205 = vpop.f32.mrf.mxu0
        %v6206 = vadd.f32 0.0, %v6205
        %v6207 = vpop.f32.mrf.mxu0
        %6208 = vdwg.mxu0
        %v6210 = vsel %vm2032, %v6061, 0
        %6212 = vmatprep.subr.mxu0 0.0
        %6213 = vmatpush1.msra.mxu0 0.0
        %6214 = vmatprep.subr.mxu0 0.0
        %6215 = vmatpush1.msra.mxu0 0.0
        %6216 = vmatprep.subr.mxu0 0.0
        %6217 = vmatpush1.msra.mxu0 0.0
        %6218 = vmatprep.subr.mxu0 0.0
        %6219 = vmatpush1.msra.mxu0 0.0
        %6220 = vmatprep.subr.mxu0 0.0
        %6221 = vmatpush1.msra.mxu0 0.0
        %6222 = vmatprep.subr.mxu0 0.0
        %6223 = vmatpush1.msra.mxu0 0.0
        %6224 = vmatprep.subr.mxu0 0.0
        %6225 = vmatpush1.msra.mxu0 0.0
        %6226 = vmatprep.subr.mxu0 0.0
        %6227 = vmatpush1.msra.mxu0 0.0
        %6228 = vmatprep.subr.mxu0 0.0
        %6229 = vmatpush1.msra.mxu0 0.0
        %6230 = vmatprep.subr.mxu0 0.0
        %6231 = vmatpush1.msra.mxu0 0.0
        %6232 = vmatprep.subr.mxu0 0.0
        %6233 = vmatpush1.msra.mxu0 0.0
        %6234 = vmatprep.subr.mxu0 0.0
        %6235 = vmatpush1.msra.mxu0 0.0
        %6236 = vmatprep.subr.mxu0 0.0
        %6237 = vmatpush1.msra.mxu0 0.0
        %6238 = vmatprep.subr.mxu0 0.0
        %6239 = vmatpush1.msra.mxu0 0.0
        %6240 = vmatprep.subr.mxu0 0.0
        %6241 = vmatpush1.msra.mxu0 0.0
        %6242 = vmatprep.subr.mxu0 0.0
        %6243 = vmatpush1.msra.mxu0 %v5642
        %6244 = vmatprep.subr.mxu0 0.0
        %6245 = vmatpush2.msra.mxu0 0.0
        %6246 = vmatprep.subr.mxu0 0.0
        %6247 = vmatpush2.msra.mxu0 0.0
        %6248 = vmatprep.subr.mxu0 0.0
        %6249 = vmatpush2.msra.mxu0 0.0
        %6250 = vmatprep.subr.mxu0 0.0
        %6251 = vmatpush2.msra.mxu0 0.0
        %6252 = vmatprep.subr.mxu0 0.0
        %6253 = vmatpush2.msra.mxu0 0.0
        %6254 = vmatprep.subr.mxu0 0.0
        %6255 = vmatpush2.msra.mxu0 0.0
        %6256 = vmatprep.subr.mxu0 0.0
        %6257 = vmatpush2.msra.mxu0 0.0
        %6258 = vmatprep.subr.mxu0 0.0
        %6259 = vmatpush2.msra.mxu0 0.0
        %6260 = vmatprep.subr.mxu0 0.0
        %6261 = vmatpush2.msra.mxu0 0.0
        %6262 = vmatprep.subr.mxu0 0.0
        %6263 = vmatpush2.msra.mxu0 0.0
        %6264 = vmatprep.subr.mxu0 0.0
        %6265 = vmatpush2.msra.mxu0 0.0
        %6266 = vmatprep.subr.mxu0 0.0
        %6267 = vmatpush2.msra.mxu0 0.0
        %6268 = vmatprep.subr.mxu0 0.0
        %6269 = vmatpush2.msra.mxu0 0.0
        %6270 = vmatprep.subr.mxu0 0.0
        %6271 = vmatpush2.msra.mxu0 0.0
        %6272 = vmatprep.subr.mxu0 0.0
        %6273 = vmatpush2.msra.mxu0 0.0
        %6274 = vmatprep.subr.mxu0 0.0
        %6275 = vmatpush2.msra.mxu0 0.0
        %6276 = vmatprep.mubr.f32.mxu0 0.0
        %6277 = vmatmul.mubr.f32.gmra.mxu0 %v6210
        %v6278 = vpop.f32.mrf.mxu0
        %v6279 = vadd.f32 0.0, %v6278
        %v6280 = vpop.f32.mrf.mxu0
        %6281 = vdwg.mxu0
        %v6283 = vsel %vm2032, %v6062, 0
        %6285 = vmatprep.subr.mxu0 0.0
        %6286 = vmatpush1.msra.mxu0 0.0
        %6287 = vmatprep.subr.mxu0 0.0
        %6288 = vmatpush1.msra.mxu0 0.0
        %6289 = vmatprep.subr.mxu0 0.0
        %6290 = vmatpush1.msra.mxu0 0.0
        %6291 = vmatprep.subr.mxu0 0.0
        %6292 = vmatpush1.msra.mxu0 0.0
        %6293 = vmatprep.subr.mxu0 0.0
        %6294 = vmatpush1.msra.mxu0 0.0
        %6295 = vmatprep.subr.mxu0 0.0
        %6296 = vmatpush1.msra.mxu0 0.0
        %6297 = vmatprep.subr.mxu0 0.0
        %6298 = vmatpush1.msra.mxu0 0.0
        %6299 = vmatprep.subr.mxu0 0.0
        %6300 = vmatpush1.msra.mxu0 0.0
        %6301 = vmatprep.subr.mxu0 0.0
        %6302 = vmatpush1.msra.mxu0 0.0
        %6303 = vmatprep.subr.mxu0 0.0
        %6304 = vmatpush1.msra.mxu0 0.0
        %6305 = vmatprep.subr.mxu0 0.0
        %6306 = vmatpush1.msra.mxu0 0.0
        %6307 = vmatprep.subr.mxu0 0.0
        %6308 = vmatpush1.msra.mxu0 0.0
        %6309 = vmatprep.subr.mxu0 0.0
        %6310 = vmatpush1.msra.mxu0 0.0
        %6311 = vmatprep.subr.mxu0 0.0
        %6312 = vmatpush1.msra.mxu0 0.0
        %6313 = vmatprep.subr.mxu0 0.0
        %6314 = vmatpush1.msra.mxu0 0.0
        %6315 = vmatprep.subr.mxu0 0.0
        %6316 = vmatpush1.msra.mxu0 %v5712
        %6317 = vmatprep.subr.mxu0 0.0
        %6318 = vmatpush2.msra.mxu0 0.0
        %6319 = vmatprep.subr.mxu0 0.0
        %6320 = vmatpush2.msra.mxu0 0.0
        %6321 = vmatprep.subr.mxu0 0.0
        %6322 = vmatpush2.msra.mxu0 0.0
        %6323 = vmatprep.subr.mxu0 0.0
        %6324 = vmatpush2.msra.mxu0 0.0
        %6325 = vmatprep.subr.mxu0 0.0
        %6326 = vmatpush2.msra.mxu0 0.0
        %6327 = vmatprep.subr.mxu0 0.0
        %6328 = vmatpush2.msra.mxu0 0.0
        %6329 = vmatprep.subr.mxu0 0.0
        %6330 = vmatpush2.msra.mxu0 0.0
        %6331 = vmatprep.subr.mxu0 0.0
        %6332 = vmatpush2.msra.mxu0 0.0
        %6333 = vmatprep.subr.mxu0 0.0
        %6334 = vmatpush2.msra.mxu0 0.0
        %6335 = vmatprep.subr.mxu0 0.0
        %6336 = vmatpush2.msra.mxu0 0.0
        %6337 = vmatprep.subr.mxu0 0.0
        %6338 = vmatpush2.msra.mxu0 0.0
        %6339 = vmatprep.subr.mxu0 0.0
        %6340 = vmatpush2.msra.mxu0 0.0
        %6341 = vmatprep.subr.mxu0 0.0
        %6342 = vmatpush2.msra.mxu0 0.0
        %6343 = vmatprep.subr.mxu0 0.0
        %6344 = vmatpush2.msra.mxu0 0.0
        %6345 = vmatprep.subr.mxu0 0.0
        %6346 = vmatpush2.msra.mxu0 0.0
        %6347 = vmatprep.subr.mxu0 0.0
        %6348 = vmatpush2.msra.mxu0 0.0
        %6349 = vmatprep.mubr.f32.mxu0 0.0
        %6350 = vmatmul.mubr.f32.gmra.mxu0 %v6283
        %v6351 = vpop.f32.mrf.mxu0
        %v6352 = vadd.f32 0.0, %v6351
        %v6353 = vpop.f32.mrf.mxu0
        %6354 = vdwg.mxu0
        %v6356 = vsel %vm2032, %v6133, 0
        %6358 = vmatprep.subr.mxu0 0.0
        %6359 = vmatpush1.msra.mxu0 0.0
        %6360 = vmatprep.subr.mxu0 0.0
        %6361 = vmatpush1.msra.mxu0 0.0
        %6362 = vmatprep.subr.mxu0 0.0
        %6363 = vmatpush1.msra.mxu0 0.0
        %6364 = vmatprep.subr.mxu0 0.0
        %6365 = vmatpush1.msra.mxu0 0.0
        %6366 = vmatprep.subr.mxu0 0.0
        %6367 = vmatpush1.msra.mxu0 0.0
        %6368 = vmatprep.subr.mxu0 0.0
        %6369 = vmatpush1.msra.mxu0 0.0
        %6370 = vmatprep.subr.mxu0 0.0
        %6371 = vmatpush1.msra.mxu0 0.0
        %6372 = vmatprep.subr.mxu0 0.0
        %6373 = vmatpush1.msra.mxu0 0.0
        %6374 = vmatprep.subr.mxu0 0.0
        %6375 = vmatpush1.msra.mxu0 0.0
        %6376 = vmatprep.subr.mxu0 0.0
        %6377 = vmatpush1.msra.mxu0 0.0
        %6378 = vmatprep.subr.mxu0 0.0
        %6379 = vmatpush1.msra.mxu0 0.0
        %6380 = vmatprep.subr.mxu0 0.0
        %6381 = vmatpush1.msra.mxu0 0.0
        %6382 = vmatprep.subr.mxu0 0.0
        %6383 = vmatpush1.msra.mxu0 0.0
        %6384 = vmatprep.subr.mxu0 0.0
        %6385 = vmatpush1.msra.mxu0 0.0
        %6386 = vmatprep.subr.mxu0 0.0
        %6387 = vmatpush1.msra.mxu0 0.0
        %6388 = vmatprep.subr.mxu0 0.0
        %6389 = vmatpush1.msra.mxu0 %v1104
        %6390 = vmatprep.subr.mxu0 0.0
        %6391 = vmatpush2.msra.mxu0 0.0
        %6392 = vmatprep.subr.mxu0 0.0
        %6393 = vmatpush2.msra.mxu0 0.0
        %6394 = vmatprep.subr.mxu0 0.0
        %6395 = vmatpush2.msra.mxu0 0.0
        %6396 = vmatprep.subr.mxu0 0.0
        %6397 = vmatpush2.msra.mxu0 0.0
        %6398 = vmatprep.subr.mxu0 0.0
        %6399 = vmatpush2.msra.mxu0 0.0
        %6400 = vmatprep.subr.mxu0 0.0
        %6401 = vmatpush2.msra.mxu0 0.0
        %6402 = vmatprep.subr.mxu0 0.0
        %6403 = vmatpush2.msra.mxu0 0.0
        %6404 = vmatprep.subr.mxu0 0.0
        %6405 = vmatpush2.msra.mxu0 0.0
        %6406 = vmatprep.subr.mxu0 0.0
        %6407 = vmatpush2.msra.mxu0 0.0
        %6408 = vmatprep.subr.mxu0 0.0
        %6409 = vmatpush2.msra.mxu0 0.0
        %6410 = vmatprep.subr.mxu0 0.0
        %6411 = vmatpush2.msra.mxu0 0.0
        %6412 = vmatprep.subr.mxu0 0.0
        %6413 = vmatpush2.msra.mxu0 0.0
        %6414 = vmatprep.subr.mxu0 0.0
        %6415 = vmatpush2.msra.mxu0 0.0
        %6416 = vmatprep.subr.mxu0 0.0
        %6417 = vmatpush2.msra.mxu0 0.0
        %6418 = vmatprep.subr.mxu0 0.0
        %6419 = vmatpush2.msra.mxu0 0.0
        %6420 = vmatprep.subr.mxu0 0.0
        %6421 = vmatpush2.msra.mxu0 0.0
        %6422 = vmatprep.mubr.f32.mxu0 0.0
        %6423 = vmatmul.mubr.f32.gmra.mxu0 %v6356
        %v6424 = vpop.f32.mrf.mxu0
        %v6425 = vadd.f32 0.0, %v6424
        %v6426 = vpop.f32.mrf.mxu0
        %6427 = vdwg.mxu0
        %v6429 = vsel %vm2032, %v6206, 0
        %6431 = vmatprep.subr.mxu0 0.0
        %6432 = vmatpush1.msra.mxu0 0.0
        %6433 = vmatprep.subr.mxu0 0.0
        %6434 = vmatpush1.msra.mxu0 0.0
        %6435 = vmatprep.subr.mxu0 0.0
        %6436 = vmatpush1.msra.mxu0 0.0
        %6437 = vmatprep.subr.mxu0 0.0
        %6438 = vmatpush1.msra.mxu0 0.0
        %6439 = vmatprep.subr.mxu0 0.0
        %6440 = vmatpush1.msra.mxu0 0.0
        %6441 = vmatprep.subr.mxu0 0.0
        %6442 = vmatpush1.msra.mxu0 0.0
        %6443 = vmatprep.subr.mxu0 0.0
        %6444 = vmatpush1.msra.mxu0 0.0
        %6445 = vmatprep.subr.mxu0 0.0
        %6446 = vmatpush1.msra.mxu0 0.0
        %6447 = vmatprep.subr.mxu0 0.0
        %6448 = vmatpush1.msra.mxu0 0.0
        %6449 = vmatprep.subr.mxu0 0.0
        %6450 = vmatpush1.msra.mxu0 0.0
        %6451 = vmatprep.subr.mxu0 0.0
        %6452 = vmatpush1.msra.mxu0 0.0
        %6453 = vmatprep.subr.mxu0 0.0
        %6454 = vmatpush1.msra.mxu0 0.0
        %6455 = vmatprep.subr.mxu0 0.0
        %6456 = vmatpush1.msra.mxu0 0.0
        %6457 = vmatprep.subr.mxu0 0.0
        %6458 = vmatpush1.msra.mxu0 0.0
        %6459 = vmatprep.subr.mxu0 0.0
        %6460 = vmatpush1.msra.mxu0 0.0
        %6461 = vmatprep.subr.mxu0 0.0
        %6462 = vmatpush1.msra.mxu0 %v1105
        %6463 = vmatprep.subr.mxu0 0.0
        %6464 = vmatpush2.msra.mxu0 0.0
        %6465 = vmatprep.subr.mxu0 0.0
        %6466 = vmatpush2.msra.mxu0 0.0
        %6467 = vmatprep.subr.mxu0 0.0
        %6468 = vmatpush2.msra.mxu0 0.0
        %6469 = vmatprep.subr.mxu0 0.0
        %6470 = vmatpush2.msra.mxu0 0.0
        %6471 = vmatprep.subr.mxu0 0.0
        %6472 = vmatpush2.msra.mxu0 0.0
        %6473 = vmatprep.subr.mxu0 0.0
        %6474 = vmatpush2.msra.mxu0 0.0
        %6475 = vmatprep.subr.mxu0 0.0
        %6476 = vmatpush2.msra.mxu0 0.0
        %6477 = vmatprep.subr.mxu0 0.0
        %6478 = vmatpush2.msra.mxu0 0.0
        %6479 = vmatprep.subr.mxu0 0.0
        %6480 = vmatpush2.msra.mxu0 0.0
        %6481 = vmatprep.subr.mxu0 0.0
        %6482 = vmatpush2.msra.mxu0 0.0
        %6483 = vmatprep.subr.mxu0 0.0
        %6484 = vmatpush2.msra.mxu0 0.0
        %6485 = vmatprep.subr.mxu0 0.0
        %6486 = vmatpush2.msra.mxu0 0.0
        %6487 = vmatprep.subr.mxu0 0.0
        %6488 = vmatpush2.msra.mxu0 0.0
        %6489 = vmatprep.subr.mxu0 0.0
        %6490 = vmatpush2.msra.mxu0 0.0
        %6491 = vmatprep.subr.mxu0 0.0
        %6492 = vmatpush2.msra.mxu0 0.0
        %6493 = vmatprep.subr.mxu0 0.0
        %6494 = vmatpush2.msra.mxu0 0.0
        %6495 = vmatprep.mubr.f32.mxu0 0.0
        %6496 = vmatmul.mubr.f32.gmra.mxu0 %v6429
        %v6497 = vpop.f32.mrf.mxu0
        %v6498 = vadd.f32 0.0, %v6497
        %v6499 = vpop.f32.mrf.mxu0
        %6500 = vdwg.mxu0
        %v6502 = vsel %vm2032, %v6279, 0
        %6504 = vmatprep.subr.mxu0 0.0
        %6505 = vmatpush1.msra.mxu0 0.0
        %6506 = vmatprep.subr.mxu0 0.0
        %6507 = vmatpush1.msra.mxu0 0.0
        %6508 = vmatprep.subr.mxu0 0.0
        %6509 = vmatpush1.msra.mxu0 0.0
        %6510 = vmatprep.subr.mxu0 0.0
        %6511 = vmatpush1.msra.mxu0 0.0
        %6512 = vmatprep.subr.mxu0 0.0
        %6513 = vmatpush1.msra.mxu0 0.0
        %6514 = vmatprep.subr.mxu0 0.0
        %6515 = vmatpush1.msra.mxu0 0.0
        %6516 = vmatprep.subr.mxu0 0.0
        %6517 = vmatpush1.msra.mxu0 0.0
        %6518 = vmatprep.subr.mxu0 0.0
        %6519 = vmatpush1.msra.mxu0 0.0
        %6520 = vmatprep.subr.mxu0 0.0
        %6521 = vmatpush1.msra.mxu0 0.0
        %6522 = vmatprep.subr.mxu0 0.0
        %6523 = vmatpush1.msra.mxu0 0.0
        %6524 = vmatprep.subr.mxu0 0.0
        %6525 = vmatpush1.msra.mxu0 0.0
        %6526 = vmatprep.subr.mxu0 0.0
        %6527 = vmatpush1.msra.mxu0 0.0
        %6528 = vmatprep.subr.mxu0 0.0
        %6529 = vmatpush1.msra.mxu0 0.0
        %6530 = vmatprep.subr.mxu0 0.0
        %6531 = vmatpush1.msra.mxu0 0.0
        %6532 = vmatprep.subr.mxu0 0.0
        %6533 = vmatpush1.msra.mxu0 0.0
        %6534 = vmatprep.subr.mxu0 0.0
        %6535 = vmatpush1.msra.mxu0 %v1106
        %6536 = vmatprep.subr.mxu0 0.0
        %6537 = vmatpush2.msra.mxu0 0.0
        %6538 = vmatprep.subr.mxu0 0.0
        %6539 = vmatpush2.msra.mxu0 0.0
        %6540 = vmatprep.subr.mxu0 0.0
        %6541 = vmatpush2.msra.mxu0 0.0
        %6542 = vmatprep.subr.mxu0 0.0
        %6543 = vmatpush2.msra.mxu0 0.0
        %6544 = vmatprep.subr.mxu0 0.0
        %6545 = vmatpush2.msra.mxu0 0.0
        %6546 = vmatprep.subr.mxu0 0.0
        %6547 = vmatpush2.msra.mxu0 0.0
        %6548 = vmatprep.subr.mxu0 0.0
        %6549 = vmatpush2.msra.mxu0 0.0
        %6550 = vmatprep.subr.mxu0 0.0
        %6551 = vmatpush2.msra.mxu0 0.0
        %6552 = vmatprep.subr.mxu0 0.0
        %6553 = vmatpush2.msra.mxu0 0.0
        %6554 = vmatprep.subr.mxu0 0.0
        %6555 = vmatpush2.msra.mxu0 0.0
        %6556 = vmatprep.subr.mxu0 0.0
        %6557 = vmatpush2.msra.mxu0 0.0
        %6558 = vmatprep.subr.mxu0 0.0
        %6559 = vmatpush2.msra.mxu0 0.0
        %6560 = vmatprep.subr.mxu0 0.0
        %6561 = vmatpush2.msra.mxu0 0.0
        %6562 = vmatprep.subr.mxu0 0.0
        %6563 = vmatpush2.msra.mxu0 0.0
        %6564 = vmatprep.subr.mxu0 0.0
        %6565 = vmatpush2.msra.mxu0 0.0
        %6566 = vmatprep.subr.mxu0 0.0
        %6567 = vmatpush2.msra.mxu0 0.0
        %6568 = vmatprep.mubr.f32.mxu0 0.0
        %6569 = vmatmul.mubr.f32.gmra.mxu0 %v6502
        %v6570 = vpop.f32.mrf.mxu0
        %v6571 = vadd.f32 0.0, %v6570
        %v6572 = vpop.f32.mrf.mxu0
        %6573 = vdwg.mxu0
        %v6575 = vsel %vm2032, %v6352, 0
        %6577 = vmatprep.subr.mxu0 0.0
        %6578 = vmatpush1.msra.mxu0 0.0
        %6579 = vmatprep.subr.mxu0 0.0
        %6580 = vmatpush1.msra.mxu0 0.0
        %6581 = vmatprep.subr.mxu0 0.0
        %6582 = vmatpush1.msra.mxu0 0.0
        %6583 = vmatprep.subr.mxu0 0.0
        %6584 = vmatpush1.msra.mxu0 0.0
        %6585 = vmatprep.subr.mxu0 0.0
        %6586 = vmatpush1.msra.mxu0 0.0
        %6587 = vmatprep.subr.mxu0 0.0
        %6588 = vmatpush1.msra.mxu0 0.0
        %6589 = vmatprep.subr.mxu0 0.0
        %6590 = vmatpush1.msra.mxu0 0.0
        %6591 = vmatprep.subr.mxu0 0.0
        %6592 = vmatpush1.msra.mxu0 0.0
        %6593 = vmatprep.subr.mxu0 0.0
        %6594 = vmatpush1.msra.mxu0 0.0
        %6595 = vmatprep.subr.mxu0 0.0
        %6596 = vmatpush1.msra.mxu0 0.0
        %6597 = vmatprep.subr.mxu0 0.0
        %6598 = vmatpush1.msra.mxu0 0.0
        %6599 = vmatprep.subr.mxu0 0.0
        %6600 = vmatpush1.msra.mxu0 0.0
        %6601 = vmatprep.subr.mxu0 0.0
        %6602 = vmatpush1.msra.mxu0 0.0
        %6603 = vmatprep.subr.mxu0 0.0
        %6604 = vmatpush1.msra.mxu0 0.0
        %6605 = vmatprep.subr.mxu0 0.0
        %6606 = vmatpush1.msra.mxu0 0.0
        %6607 = vmatprep.subr.mxu0 0.0
        %6608 = vmatpush1.msra.mxu0 %v1107
        %6609 = vmatprep.subr.mxu0 0.0
        %6610 = vmatpush2.msra.mxu0 0.0
        %6611 = vmatprep.subr.mxu0 0.0
        %6612 = vmatpush2.msra.mxu0 0.0
        %6613 = vmatprep.subr.mxu0 0.0
        %6614 = vmatpush2.msra.mxu0 0.0
        %6615 = vmatprep.subr.mxu0 0.0
        %6616 = vmatpush2.msra.mxu0 0.0
        %6617 = vmatprep.subr.mxu0 0.0
        %6618 = vmatpush2.msra.mxu0 0.0
        %6619 = vmatprep.subr.mxu0 0.0
        %6620 = vmatpush2.msra.mxu0 0.0
        %6621 = vmatprep.subr.mxu0 0.0
        %6622 = vmatpush2.msra.mxu0 0.0
        %6623 = vmatprep.subr.mxu0 0.0
        %6624 = vmatpush2.msra.mxu0 0.0
        %6625 = vmatprep.subr.mxu0 0.0
        %6626 = vmatpush2.msra.mxu0 0.0
        %6627 = vmatprep.subr.mxu0 0.0
        %6628 = vmatpush2.msra.mxu0 0.0
        %6629 = vmatprep.subr.mxu0 0.0
        %6630 = vmatpush2.msra.mxu0 0.0
        %6631 = vmatprep.subr.mxu0 0.0
        %6632 = vmatpush2.msra.mxu0 0.0
        %6633 = vmatprep.subr.mxu0 0.0
        %6634 = vmatpush2.msra.mxu0 0.0
        %6635 = vmatprep.subr.mxu0 0.0
        %6636 = vmatpush2.msra.mxu0 0.0
        %6637 = vmatprep.subr.mxu0 0.0
        %6638 = vmatpush2.msra.mxu0 0.0
        %6639 = vmatprep.subr.mxu0 0.0
        %6640 = vmatpush2.msra.mxu0 0.0
        %6641 = vmatprep.mubr.f32.mxu0 0.0
        %6642 = vmatmul.mubr.f32.gmra.mxu0 %v6575
        %v6643 = vpop.f32.mrf.mxu0
        %v6644 = vadd.f32 0.0, %v6643
        %v6645 = vpop.f32.mrf.mxu0
        %6646 = vdwg.mxu0
        %v6647 = vsel %vm1184, %v6425, 0.0
        %v6648 = vsel %vm1184, %v6498, 0.0
        %v6649 = vadd.f32 %v6647, %v6648
        %v6650 = vsel %vm1184, %v6571, 0.0
        %v6651 = vadd.f32 %v6649, %v6650
        %v6652 = vsel %vm1184, %v6644, 0.0
        %v6653 = vadd.f32 %v6651, %v6652
        %v6654 = vadd.f32 %v6653, %v1055
        %v6655 = vsel %vm1184, %v6654, 0.0
        %6656 = vadd.xlane.f32.xlu0 %v6655
        %v6657 = vpop.xlane.xlu0 %6656
        %v6658 = vmul.f32 %v6657, %v2976
        %v6659 = vsub.f32 %v6654, %v6658
        %v6660 = vmul.f32 %v6659, %v6659
        %v6661 = vsel %vm1184, %v6660, 0.0
        %6662 = vadd.xlane.f32.xlu0 %v6661
        %v6663 = vpop.xlane.xlu0 %6662
        %v6664 = vmul.f32 %v6663, %v2976
        %v6665 = vadd.f32 %v6664, 1e-06
        %v6666 = vrsqrt.pop %v6665
        %v6667 = vmul.f32 %v6659, %v6666
        %v6668 = vmul.f32 %v6667, %v2991
        %v6669 = vadd.f32 %v6668, %v2998
        %v6670 = vadd.f32 %v1055, %v6669
        %v6671 = vsel %vm1184, %v6670, 0.0
        %6672 = vadd.xlane.f32.xlu0 %v6671
        %v6673 = vpop.xlane.xlu0 %6672
        %v6674 = vmul.f32 %v6673, %v2976
        %v6675 = vsub.f32 %v6670, %v6674
        %v6676 = vmul.f32 %v6675, %v6675
        %v6677 = vsel %vm1184, %v6676, 0.0
        %6678 = vadd.xlane.f32.xlu0 %v6677
        %v6679 = vpop.xlane.xlu0 %6678
        %v6680 = vmul.f32 %v6679, %v2976
        %v6681 = vadd.f32 %v6680, 1e-06
        %v6682 = vrsqrt.pop %v6681
        %v6683 = vmul.f32 %v6675, %v6682
        %v6684 = vmul.f32 %v6683, %v3019
        %v6685 = vadd.f32 %v6684, %v3026
        %6686 = vmatprep.subr.mxu0 0.0
        %6687 = vmatpush1.msra.mxu0 0.0
        %6688 = vmatprep.subr.mxu0 0.0
        %6689 = vmatpush1.msra.mxu0 0.0
        %6690 = vmatprep.subr.mxu0 0.0
        %6691 = vmatpush1.msra.mxu0 0.0
        %6692 = vmatprep.subr.mxu0 0.0
        %6693 = vmatpush1.msra.mxu0 0.0
        %6694 = vmatprep.subr.mxu0 0.0
        %6695 = vmatpush1.msra.mxu0 0.0
        %6696 = vmatprep.subr.mxu0 0.0
        %6697 = vmatpush1.msra.mxu0 0.0
        %6698 = vmatprep.subr.mxu0 0.0
        %6699 = vmatpush1.msra.mxu0 0.0
        %6700 = vmatprep.subr.mxu0 0.0
        %6701 = vmatpush1.msra.mxu0 0.0
        %6702 = vmatprep.subr.mxu0 0.0
        %6703 = vmatpush1.msra.mxu0 0.0
        %6704 = vmatprep.subr.mxu0 0.0
        %6705 = vmatpush1.msra.mxu0 0.0
        %6706 = vmatprep.subr.mxu0 0.0
        %6707 = vmatpush1.msra.mxu0 0.0
        %6708 = vmatprep.subr.mxu0 0.0
        %6709 = vmatpush1.msra.mxu0 0.0
        %6710 = vmatprep.subr.mxu0 0.0
        %6711 = vmatpush1.msra.mxu0 %v1113
        %6712 = vmatprep.subr.mxu0 0.0
        %6713 = vmatpush1.msra.mxu0 %v1112
        %6714 = vmatprep.subr.mxu0 0.0
        %6715 = vmatpush1.msra.mxu0 %v1111
        %6716 = vmatprep.subr.mxu0 0.0
        %6717 = vmatpush1.msra.mxu0 %v1110
        %6718 = vmatprep.subr.mxu0 0.0
        %6719 = vmatpush2.msra.mxu0 0.0
        %6720 = vmatprep.subr.mxu0 0.0
        %6721 = vmatpush2.msra.mxu0 0.0
        %6722 = vmatprep.subr.mxu0 0.0
        %6723 = vmatpush2.msra.mxu0 0.0
        %6724 = vmatprep.subr.mxu0 0.0
        %6725 = vmatpush2.msra.mxu0 0.0
        %6726 = vmatprep.subr.mxu0 0.0
        %6727 = vmatpush2.msra.mxu0 0.0
        %6728 = vmatprep.subr.mxu0 0.0
        %6729 = vmatpush2.msra.mxu0 0.0
        %6730 = vmatprep.subr.mxu0 0.0
        %6731 = vmatpush2.msra.mxu0 0.0
        %6732 = vmatprep.subr.mxu0 0.0
        %6733 = vmatpush2.msra.mxu0 0.0
        %6734 = vmatprep.subr.mxu0 0.0
        %6735 = vmatpush2.msra.mxu0 0.0
        %6736 = vmatprep.subr.mxu0 0.0
        %6737 = vmatpush2.msra.mxu0 0.0
        %6738 = vmatprep.subr.mxu0 0.0
        %6739 = vmatpush2.msra.mxu0 0.0
        %6740 = vmatprep.subr.mxu0 0.0
        %6741 = vmatpush2.msra.mxu0 0.0
        %6742 = vmatprep.subr.mxu0 0.0
        %6743 = vmatpush2.msra.mxu0 0.0
        %6744 = vmatprep.subr.mxu0 0.0
        %6745 = vmatpush2.msra.mxu0 0.0
        %6746 = vmatprep.subr.mxu0 0.0
        %6747 = vmatpush2.msra.mxu0 0.0
        %6748 = vmatprep.subr.mxu0 0.0
        %6749 = vmatpush2.msra.mxu0 0.0
        %6750 = vmatprep.mubr.f32.mxu0 0.0
        %6751 = vmatmul.mubr.f32.gmra.mxu0 %v4869
        %v6752 = vpop.f32.mrf.mxu0
        %v6753 = vadd.f32 0.0, %v6752
        %v6754 = vpop.f32.mrf.mxu0
        %6755 = vdwg.mxu0
        %6756 = vmatprep.subr.mxu0 0.0
        %6757 = vmatpush1.msra.mxu0 0.0
        %6758 = vmatprep.subr.mxu0 0.0
        %6759 = vmatpush1.msra.mxu0 0.0
        %6760 = vmatprep.subr.mxu0 0.0
        %6761 = vmatpush1.msra.mxu0 0.0
        %6762 = vmatprep.subr.mxu0 0.0
        %6763 = vmatpush1.msra.mxu0 0.0
        %6764 = vmatprep.subr.mxu0 0.0
        %6765 = vmatpush1.msra.mxu0 0.0
        %6766 = vmatprep.subr.mxu0 0.0
        %6767 = vmatpush1.msra.mxu0 0.0
        %6768 = vmatprep.subr.mxu0 0.0
        %6769 = vmatpush1.msra.mxu0 0.0
        %6770 = vmatprep.subr.mxu0 0.0
        %6771 = vmatpush1.msra.mxu0 0.0
        %6772 = vmatprep.subr.mxu0 0.0
        %6773 = vmatpush1.msra.mxu0 0.0
        %6774 = vmatprep.subr.mxu0 0.0
        %6775 = vmatpush1.msra.mxu0 0.0
        %6776 = vmatprep.subr.mxu0 0.0
        %6777 = vmatpush1.msra.mxu0 0.0
        %6778 = vmatprep.subr.mxu0 0.0
        %6779 = vmatpush1.msra.mxu0 0.0
        %6780 = vmatprep.subr.mxu0 0.0
        %6781 = vmatpush1.msra.mxu0 %v1117
        %6782 = vmatprep.subr.mxu0 0.0
        %6783 = vmatpush1.msra.mxu0 %v1116
        %6784 = vmatprep.subr.mxu0 0.0
        %6785 = vmatpush1.msra.mxu0 %v1115
        %6786 = vmatprep.subr.mxu0 0.0
        %6787 = vmatpush1.msra.mxu0 %v1114
        %6788 = vmatprep.subr.mxu0 0.0
        %6789 = vmatpush2.msra.mxu0 0.0
        %6790 = vmatprep.subr.mxu0 0.0
        %6791 = vmatpush2.msra.mxu0 0.0
        %6792 = vmatprep.subr.mxu0 0.0
        %6793 = vmatpush2.msra.mxu0 0.0
        %6794 = vmatprep.subr.mxu0 0.0
        %6795 = vmatpush2.msra.mxu0 0.0
        %6796 = vmatprep.subr.mxu0 0.0
        %6797 = vmatpush2.msra.mxu0 0.0
        %6798 = vmatprep.subr.mxu0 0.0
        %6799 = vmatpush2.msra.mxu0 0.0
        %6800 = vmatprep.subr.mxu0 0.0
        %6801 = vmatpush2.msra.mxu0 0.0
        %6802 = vmatprep.subr.mxu0 0.0
        %6803 = vmatpush2.msra.mxu0 0.0
        %6804 = vmatprep.subr.mxu0 0.0
        %6805 = vmatpush2.msra.mxu0 0.0
        %6806 = vmatprep.subr.mxu0 0.0
        %6807 = vmatpush2.msra.mxu0 0.0
        %6808 = vmatprep.subr.mxu0 0.0
        %6809 = vmatpush2.msra.mxu0 0.0
        %6810 = vmatprep.subr.mxu0 0.0
        %6811 = vmatpush2.msra.mxu0 0.0
        %6812 = vmatprep.subr.mxu0 0.0
        %6813 = vmatpush2.msra.mxu0 0.0
        %6814 = vmatprep.subr.mxu0 0.0
        %6815 = vmatpush2.msra.mxu0 0.0
        %6816 = vmatprep.subr.mxu0 0.0
        %6817 = vmatpush2.msra.mxu0 0.0
        %6818 = vmatprep.subr.mxu0 0.0
        %6819 = vmatpush2.msra.mxu0 0.0
        %6820 = vmatprep.mubr.f32.mxu0 0.0
        %6821 = vmatmul.mubr.f32.gmra.mxu0 %v4869
        %v6822 = vpop.f32.mrf.mxu0
        %v6823 = vadd.f32 0.0, %v6822
        %v6824 = vpop.f32.mrf.mxu0
        %6825 = vdwg.mxu0
        %6826 = vmatprep.subr.mxu0 0.0
        %6827 = vmatpush1.msra.mxu0 0.0
        %6828 = vmatprep.subr.mxu0 0.0
        %6829 = vmatpush1.msra.mxu0 0.0
        %6830 = vmatprep.subr.mxu0 0.0
        %6831 = vmatpush1.msra.mxu0 0.0
        %6832 = vmatprep.subr.mxu0 0.0
        %6833 = vmatpush1.msra.mxu0 0.0
        %6834 = vmatprep.subr.mxu0 0.0
        %6835 = vmatpush1.msra.mxu0 0.0
        %6836 = vmatprep.subr.mxu0 0.0
        %6837 = vmatpush1.msra.mxu0 0.0
        %6838 = vmatprep.subr.mxu0 0.0
        %6839 = vmatpush1.msra.mxu0 0.0
        %6840 = vmatprep.subr.mxu0 0.0
        %6841 = vmatpush1.msra.mxu0 0.0
        %6842 = vmatprep.subr.mxu0 0.0
        %6843 = vmatpush1.msra.mxu0 0.0
        %6844 = vmatprep.subr.mxu0 0.0
        %6845 = vmatpush1.msra.mxu0 0.0
        %6846 = vmatprep.subr.mxu0 0.0
        %6847 = vmatpush1.msra.mxu0 0.0
        %6848 = vmatprep.subr.mxu0 0.0
        %6849 = vmatpush1.msra.mxu0 0.0
        %6850 = vmatprep.subr.mxu0 0.0
        %6851 = vmatpush1.msra.mxu0 %v1121
        %6852 = vmatprep.subr.mxu0 0.0
        %6853 = vmatpush1.msra.mxu0 %v1120
        %6854 = vmatprep.subr.mxu0 0.0
        %6855 = vmatpush1.msra.mxu0 %v1119
        %6856 = vmatprep.subr.mxu0 0.0
        %6857 = vmatpush1.msra.mxu0 %v1118
        %6858 = vmatprep.subr.mxu0 0.0
        %6859 = vmatpush2.msra.mxu0 0.0
        %6860 = vmatprep.subr.mxu0 0.0
        %6861 = vmatpush2.msra.mxu0 0.0
        %6862 = vmatprep.subr.mxu0 0.0
        %6863 = vmatpush2.msra.mxu0 0.0
        %6864 = vmatprep.subr.mxu0 0.0
        %6865 = vmatpush2.msra.mxu0 0.0
        %6866 = vmatprep.subr.mxu0 0.0
        %6867 = vmatpush2.msra.mxu0 0.0
        %6868 = vmatprep.subr.mxu0 0.0
        %6869 = vmatpush2.msra.mxu0 0.0
        %6870 = vmatprep.subr.mxu0 0.0
        %6871 = vmatpush2.msra.mxu0 0.0
        %6872 = vmatprep.subr.mxu0 0.0
        %6873 = vmatpush2.msra.mxu0 0.0
        %6874 = vmatprep.subr.mxu0 0.0
        %6875 = vmatpush2.msra.mxu0 0.0
        %6876 = vmatprep.subr.mxu0 0.0
        %6877 = vmatpush2.msra.mxu0 0.0
        %6878 = vmatprep.subr.mxu0 0.0
        %6879 = vmatpush2.msra.mxu0 0.0
        %6880 = vmatprep.subr.mxu0 0.0
        %6881 = vmatpush2.msra.mxu0 0.0
        %6882 = vmatprep.subr.mxu0 0.0
        %6883 = vmatpush2.msra.mxu0 0.0
        %6884 = vmatprep.subr.mxu0 0.0
        %6885 = vmatpush2.msra.mxu0 0.0
        %6886 = vmatprep.subr.mxu0 0.0
        %6887 = vmatpush2.msra.mxu0 0.0
        %6888 = vmatprep.subr.mxu0 0.0
        %6889 = vmatpush2.msra.mxu0 0.0
        %6890 = vmatprep.mubr.f32.mxu0 0.0
        %6891 = vmatmul.mubr.f32.gmra.mxu0 %v4869
        %v6892 = vpop.f32.mrf.mxu0
        %v6893 = vadd.f32 0.0, %v6892
        %v6894 = vpop.f32.mrf.mxu0
        %6895 = vdwg.mxu0
        %6896 = vmatprep.subr.mxu0 0.0
        %6897 = vmatpush1.msra.mxu0 0.0
        %6898 = vmatprep.subr.mxu0 0.0
        %6899 = vmatpush1.msra.mxu0 0.0
        %6900 = vmatprep.subr.mxu0 0.0
        %6901 = vmatpush1.msra.mxu0 0.0
        %6902 = vmatprep.subr.mxu0 0.0
        %6903 = vmatpush1.msra.mxu0 0.0
        %6904 = vmatprep.subr.mxu0 0.0
        %6905 = vmatpush1.msra.mxu0 0.0
        %6906 = vmatprep.subr.mxu0 0.0
        %6907 = vmatpush1.msra.mxu0 0.0
        %6908 = vmatprep.subr.mxu0 0.0
        %6909 = vmatpush1.msra.mxu0 0.0
        %6910 = vmatprep.subr.mxu0 0.0
        %6911 = vmatpush1.msra.mxu0 0.0
        %6912 = vmatprep.subr.mxu0 0.0
        %6913 = vmatpush1.msra.mxu0 0.0
        %6914 = vmatprep.subr.mxu0 0.0
        %6915 = vmatpush1.msra.mxu0 0.0
        %6916 = vmatprep.subr.mxu0 0.0
        %6917 = vmatpush1.msra.mxu0 0.0
        %6918 = vmatprep.subr.mxu0 0.0
        %6919 = vmatpush1.msra.mxu0 0.0
        %6920 = vmatprep.subr.mxu0 0.0
        %6921 = vmatpush1.msra.mxu0 %v1125
        %6922 = vmatprep.subr.mxu0 0.0
        %6923 = vmatpush1.msra.mxu0 %v1124
        %6924 = vmatprep.subr.mxu0 0.0
        %6925 = vmatpush1.msra.mxu0 %v1123
        %6926 = vmatprep.subr.mxu0 0.0
        %6927 = vmatpush1.msra.mxu0 %v1122
        %6928 = vmatprep.subr.mxu0 0.0
        %6929 = vmatpush2.msra.mxu0 0.0
        %6930 = vmatprep.subr.mxu0 0.0
        %6931 = vmatpush2.msra.mxu0 0.0
        %6932 = vmatprep.subr.mxu0 0.0
        %6933 = vmatpush2.msra.mxu0 0.0
        %6934 = vmatprep.subr.mxu0 0.0
        %6935 = vmatpush2.msra.mxu0 0.0
        %6936 = vmatprep.subr.mxu0 0.0
        %6937 = vmatpush2.msra.mxu0 0.0
        %6938 = vmatprep.subr.mxu0 0.0
        %6939 = vmatpush2.msra.mxu0 0.0
        %6940 = vmatprep.subr.mxu0 0.0
        %6941 = vmatpush2.msra.mxu0 0.0
        %6942 = vmatprep.subr.mxu0 0.0
        %6943 = vmatpush2.msra.mxu0 0.0
        %6944 = vmatprep.subr.mxu0 0.0
        %6945 = vmatpush2.msra.mxu0 0.0
        %6946 = vmatprep.subr.mxu0 0.0
        %6947 = vmatpush2.msra.mxu0 0.0
        %6948 = vmatprep.subr.mxu0 0.0
        %6949 = vmatpush2.msra.mxu0 0.0
        %6950 = vmatprep.subr.mxu0 0.0
        %6951 = vmatpush2.msra.mxu0 0.0
        %6952 = vmatprep.subr.mxu0 0.0
        %6953 = vmatpush2.msra.mxu0 0.0
        %6954 = vmatprep.subr.mxu0 0.0
        %6955 = vmatpush2.msra.mxu0 0.0
        %6956 = vmatprep.subr.mxu0 0.0
        %6957 = vmatpush2.msra.mxu0 0.0
        %6958 = vmatprep.subr.mxu0 0.0
        %6959 = vmatpush2.msra.mxu0 0.0
        %6960 = vmatprep.mubr.f32.mxu0 0.0
        %6961 = vmatmul.mubr.f32.gmra.mxu0 %v4869
        %v6962 = vpop.f32.mrf.mxu0
        %v6963 = vadd.f32 0.0, %v6962
        %v6964 = vpop.f32.mrf.mxu0
        %6965 = vdwg.mxu0
        %v6966 = vmul.f32 %v6753, 0.35355338
        %v6967 = vmul.f32 %v6823, 0.35355338
        %v6968 = vmul.f32 %v6893, 0.35355338
        %v6969 = vmul.f32 %v6963, 0.35355338
        %6970 = vmatprep.subr.mxu0 0.0
        %6971 = vmatpush1.msra.mxu0 0.0
        %6972 = vmatprep.subr.mxu0 0.0
        %6973 = vmatpush1.msra.mxu0 0.0
        %6974 = vmatprep.subr.mxu0 0.0
        %6975 = vmatpush1.msra.mxu0 0.0
        %6976 = vmatprep.subr.mxu0 0.0
        %6977 = vmatpush1.msra.mxu0 0.0
        %6978 = vmatprep.subr.mxu0 0.0
        %6979 = vmatpush1.msra.mxu0 0.0
        %6980 = vmatprep.subr.mxu0 0.0
        %6981 = vmatpush1.msra.mxu0 0.0
        %6982 = vmatprep.subr.mxu0 0.0
        %6983 = vmatpush1.msra.mxu0 0.0
        %6984 = vmatprep.subr.mxu0 0.0
        %6985 = vmatpush1.msra.mxu0 0.0
        %6986 = vmatprep.subr.mxu0 0.0
        %6987 = vmatpush1.msra.mxu0 0.0
        %6988 = vmatprep.subr.mxu0 0.0
        %6989 = vmatpush1.msra.mxu0 0.0
        %6990 = vmatprep.subr.mxu0 0.0
        %6991 = vmatpush1.msra.mxu0 0.0
        %6992 = vmatprep.subr.mxu0 0.0
        %6993 = vmatpush1.msra.mxu0 0.0
        %6994 = vmatprep.subr.mxu0 0.0
        %6995 = vmatpush1.msra.mxu0 %v1129
        %6996 = vmatprep.subr.mxu0 0.0
        %6997 = vmatpush1.msra.mxu0 %v1128
        %6998 = vmatprep.subr.mxu0 0.0
        %6999 = vmatpush1.msra.mxu0 %v1127
        %7000 = vmatprep.subr.mxu0 0.0
        %7001 = vmatpush1.msra.mxu0 %v1126
        %7002 = vmatprep.subr.mxu0 0.0
        %7003 = vmatpush2.msra.mxu0 0.0
        %7004 = vmatprep.subr.mxu0 0.0
        %7005 = vmatpush2.msra.mxu0 0.0
        %7006 = vmatprep.subr.mxu0 0.0
        %7007 = vmatpush2.msra.mxu0 0.0
        %7008 = vmatprep.subr.mxu0 0.0
        %7009 = vmatpush2.msra.mxu0 0.0
        %7010 = vmatprep.subr.mxu0 0.0
        %7011 = vmatpush2.msra.mxu0 0.0
        %7012 = vmatprep.subr.mxu0 0.0
        %7013 = vmatpush2.msra.mxu0 0.0
        %7014 = vmatprep.subr.mxu0 0.0
        %7015 = vmatpush2.msra.mxu0 0.0
        %7016 = vmatprep.subr.mxu0 0.0
        %7017 = vmatpush2.msra.mxu0 0.0
        %7018 = vmatprep.subr.mxu0 0.0
        %7019 = vmatpush2.msra.mxu0 0.0
        %7020 = vmatprep.subr.mxu0 0.0
        %7021 = vmatpush2.msra.mxu0 0.0
        %7022 = vmatprep.subr.mxu0 0.0
        %7023 = vmatpush2.msra.mxu0 0.0
        %7024 = vmatprep.subr.mxu0 0.0
        %7025 = vmatpush2.msra.mxu0 0.0
        %7026 = vmatprep.subr.mxu0 0.0
        %7027 = vmatpush2.msra.mxu0 0.0
        %7028 = vmatprep.subr.mxu0 0.0
        %7029 = vmatpush2.msra.mxu0 0.0
        %7030 = vmatprep.subr.mxu0 0.0
        %7031 = vmatpush2.msra.mxu0 0.0
        %7032 = vmatprep.subr.mxu0 0.0
        %7033 = vmatpush2.msra.mxu0 0.0
        %7034 = vmatprep.mubr.f32.mxu0 0.0
        %7035 = vmatmul.mubr.f32.gmra.mxu0 %v4869
        %v7036 = vpop.f32.mrf.mxu0
        %v7037 = vadd.f32 0.0, %v7036
        %v7038 = vpop.f32.mrf.mxu0
        %7039 = vdwg.mxu0
        %7040 = vmatprep.subr.mxu0 0.0
        %7041 = vmatpush1.msra.mxu0 0.0
        %7042 = vmatprep.subr.mxu0 0.0
        %7043 = vmatpush1.msra.mxu0 0.0
        %7044 = vmatprep.subr.mxu0 0.0
        %7045 = vmatpush1.msra.mxu0 0.0
        %7046 = vmatprep.subr.mxu0 0.0
        %7047 = vmatpush1.msra.mxu0 0.0
        %7048 = vmatprep.subr.mxu0 0.0
        %7049 = vmatpush1.msra.mxu0 0.0
        %7050 = vmatprep.subr.mxu0 0.0
        %7051 = vmatpush1.msra.mxu0 0.0
        %7052 = vmatprep.subr.mxu0 0.0
        %7053 = vmatpush1.msra.mxu0 0.0
        %7054 = vmatprep.subr.mxu0 0.0
        %7055 = vmatpush1.msra.mxu0 0.0
        %7056 = vmatprep.subr.mxu0 0.0
        %7057 = vmatpush1.msra.mxu0 0.0
        %7058 = vmatprep.subr.mxu0 0.0
        %7059 = vmatpush1.msra.mxu0 0.0
        %7060 = vmatprep.subr.mxu0 0.0
        %7061 = vmatpush1.msra.mxu0 0.0
        %7062 = vmatprep.subr.mxu0 0.0
        %7063 = vmatpush1.msra.mxu0 0.0
        %7064 = vmatprep.subr.mxu0 0.0
        %7065 = vmatpush1.msra.mxu0 %v1133
        %7066 = vmatprep.subr.mxu0 0.0
        %7067 = vmatpush1.msra.mxu0 %v1132
        %7068 = vmatprep.subr.mxu0 0.0
        %7069 = vmatpush1.msra.mxu0 %v1131
        %7070 = vmatprep.subr.mxu0 0.0
        %7071 = vmatpush1.msra.mxu0 %v1130
        %7072 = vmatprep.subr.mxu0 0.0
        %7073 = vmatpush2.msra.mxu0 0.0
        %7074 = vmatprep.subr.mxu0 0.0
        %7075 = vmatpush2.msra.mxu0 0.0
        %7076 = vmatprep.subr.mxu0 0.0
        %7077 = vmatpush2.msra.mxu0 0.0
        %7078 = vmatprep.subr.mxu0 0.0
        %7079 = vmatpush2.msra.mxu0 0.0
        %7080 = vmatprep.subr.mxu0 0.0
        %7081 = vmatpush2.msra.mxu0 0.0
        %7082 = vmatprep.subr.mxu0 0.0
        %7083 = vmatpush2.msra.mxu0 0.0
        %7084 = vmatprep.subr.mxu0 0.0
        %7085 = vmatpush2.msra.mxu0 0.0
        %7086 = vmatprep.subr.mxu0 0.0
        %7087 = vmatpush2.msra.mxu0 0.0
        %7088 = vmatprep.subr.mxu0 0.0
        %7089 = vmatpush2.msra.mxu0 0.0
        %7090 = vmatprep.subr.mxu0 0.0
        %7091 = vmatpush2.msra.mxu0 0.0
        %7092 = vmatprep.subr.mxu0 0.0
        %7093 = vmatpush2.msra.mxu0 0.0
        %7094 = vmatprep.subr.mxu0 0.0
        %7095 = vmatpush2.msra.mxu0 0.0
        %7096 = vmatprep.subr.mxu0 0.0
        %7097 = vmatpush2.msra.mxu0 0.0
        %7098 = vmatprep.subr.mxu0 0.0
        %7099 = vmatpush2.msra.mxu0 0.0
        %7100 = vmatprep.subr.mxu0 0.0
        %7101 = vmatpush2.msra.mxu0 0.0
        %7102 = vmatprep.subr.mxu0 0.0
        %7103 = vmatpush2.msra.mxu0 0.0
        %7104 = vmatprep.mubr.f32.mxu0 0.0
        %7105 = vmatmul.mubr.f32.gmra.mxu0 %v4869
        %v7106 = vpop.f32.mrf.mxu0
        %v7107 = vadd.f32 0.0, %v7106
        %v7108 = vpop.f32.mrf.mxu0
        %7109 = vdwg.mxu0
        %7110 = vmatprep.subr.mxu0 0.0
        %7111 = vmatpush1.msra.mxu0 0.0
        %7112 = vmatprep.subr.mxu0 0.0
        %7113 = vmatpush1.msra.mxu0 0.0
        %7114 = vmatprep.subr.mxu0 0.0
        %7115 = vmatpush1.msra.mxu0 0.0
        %7116 = vmatprep.subr.mxu0 0.0
        %7117 = vmatpush1.msra.mxu0 0.0
        %7118 = vmatprep.subr.mxu0 0.0
        %7119 = vmatpush1.msra.mxu0 0.0
        %7120 = vmatprep.subr.mxu0 0.0
        %7121 = vmatpush1.msra.mxu0 0.0
        %7122 = vmatprep.subr.mxu0 0.0
        %7123 = vmatpush1.msra.mxu0 0.0
        %7124 = vmatprep.subr.mxu0 0.0
        %7125 = vmatpush1.msra.mxu0 0.0
        %7126 = vmatprep.subr.mxu0 0.0
        %7127 = vmatpush1.msra.mxu0 0.0
        %7128 = vmatprep.subr.mxu0 0.0
        %7129 = vmatpush1.msra.mxu0 0.0
        %7130 = vmatprep.subr.mxu0 0.0
        %7131 = vmatpush1.msra.mxu0 0.0
        %7132 = vmatprep.subr.mxu0 0.0
        %7133 = vmatpush1.msra.mxu0 0.0
        %7134 = vmatprep.subr.mxu0 0.0
        %7135 = vmatpush1.msra.mxu0 %v1137
        %7136 = vmatprep.subr.mxu0 0.0
        %7137 = vmatpush1.msra.mxu0 %v1136
        %7138 = vmatprep.subr.mxu0 0.0
        %7139 = vmatpush1.msra.mxu0 %v1135
        %7140 = vmatprep.subr.mxu0 0.0
        %7141 = vmatpush1.msra.mxu0 %v1134
        %7142 = vmatprep.subr.mxu0 0.0
        %7143 = vmatpush2.msra.mxu0 0.0
        %7144 = vmatprep.subr.mxu0 0.0
        %7145 = vmatpush2.msra.mxu0 0.0
        %7146 = vmatprep.subr.mxu0 0.0
        %7147 = vmatpush2.msra.mxu0 0.0
        %7148 = vmatprep.subr.mxu0 0.0
        %7149 = vmatpush2.msra.mxu0 0.0
        %7150 = vmatprep.subr.mxu0 0.0
        %7151 = vmatpush2.msra.mxu0 0.0
        %7152 = vmatprep.subr.mxu0 0.0
        %7153 = vmatpush2.msra.mxu0 0.0
        %7154 = vmatprep.subr.mxu0 0.0
        %7155 = vmatpush2.msra.mxu0 0.0
        %7156 = vmatprep.subr.mxu0 0.0
        %7157 = vmatpush2.msra.mxu0 0.0
        %7158 = vmatprep.subr.mxu0 0.0
        %7159 = vmatpush2.msra.mxu0 0.0
        %7160 = vmatprep.subr.mxu0 0.0
        %7161 = vmatpush2.msra.mxu0 0.0
        %7162 = vmatprep.subr.mxu0 0.0
        %7163 = vmatpush2.msra.mxu0 0.0
        %7164 = vmatprep.subr.mxu0 0.0
        %7165 = vmatpush2.msra.mxu0 0.0
        %7166 = vmatprep.subr.mxu0 0.0
        %7167 = vmatpush2.msra.mxu0 0.0
        %7168 = vmatprep.subr.mxu0 0.0
        %7169 = vmatpush2.msra.mxu0 0.0
        %7170 = vmatprep.subr.mxu0 0.0
        %7171 = vmatpush2.msra.mxu0 0.0
        %7172 = vmatprep.subr.mxu0 0.0
        %7173 = vmatpush2.msra.mxu0 0.0
        %7174 = vmatprep.mubr.f32.mxu0 0.0
        %7175 = vmatmul.mubr.f32.gmra.mxu0 %v4869
        %v7176 = vpop.f32.mrf.mxu0
        %v7177 = vadd.f32 0.0, %v7176
        %v7178 = vpop.f32.mrf.mxu0
        %7179 = vdwg.mxu0
        %7180 = vmatprep.subr.mxu0 0.0
        %7181 = vmatpush1.msra.mxu0 0.0
        %7182 = vmatprep.subr.mxu0 0.0
        %7183 = vmatpush1.msra.mxu0 0.0
        %7184 = vmatprep.subr.mxu0 0.0
        %7185 = vmatpush1.msra.mxu0 0.0
        %7186 = vmatprep.subr.mxu0 0.0
        %7187 = vmatpush1.msra.mxu0 0.0
        %7188 = vmatprep.subr.mxu0 0.0
        %7189 = vmatpush1.msra.mxu0 0.0
        %7190 = vmatprep.subr.mxu0 0.0
        %7191 = vmatpush1.msra.mxu0 0.0
        %7192 = vmatprep.subr.mxu0 0.0
        %7193 = vmatpush1.msra.mxu0 0.0
        %7194 = vmatprep.subr.mxu0 0.0
        %7195 = vmatpush1.msra.mxu0 0.0
        %7196 = vmatprep.subr.mxu0 0.0
        %7197 = vmatpush1.msra.mxu0 0.0
        %7198 = vmatprep.subr.mxu0 0.0
        %7199 = vmatpush1.msra.mxu0 0.0
        %7200 = vmatprep.subr.mxu0 0.0
        %7201 = vmatpush1.msra.mxu0 0.0
        %7202 = vmatprep.subr.mxu0 0.0
        %7203 = vmatpush1.msra.mxu0 0.0
        %7204 = vmatprep.subr.mxu0 0.0
        %7205 = vmatpush1.msra.mxu0 %v1141
        %7206 = vmatprep.subr.mxu0 0.0
        %7207 = vmatpush1.msra.mxu0 %v1140
        %7208 = vmatprep.subr.mxu0 0.0
        %7209 = vmatpush1.msra.mxu0 %v1139
        %7210 = vmatprep.subr.mxu0 0.0
        %7211 = vmatpush1.msra.mxu0 %v1138
        %7212 = vmatprep.subr.mxu0 0.0
        %7213 = vmatpush2.msra.mxu0 0.0
        %7214 = vmatprep.subr.mxu0 0.0
        %7215 = vmatpush2.msra.mxu0 0.0
        %7216 = vmatprep.subr.mxu0 0.0
        %7217 = vmatpush2.msra.mxu0 0.0
        %7218 = vmatprep.subr.mxu0 0.0
        %7219 = vmatpush2.msra.mxu0 0.0
        %7220 = vmatprep.subr.mxu0 0.0
        %7221 = vmatpush2.msra.mxu0 0.0
        %7222 = vmatprep.subr.mxu0 0.0
        %7223 = vmatpush2.msra.mxu0 0.0
        %7224 = vmatprep.subr.mxu0 0.0
        %7225 = vmatpush2.msra.mxu0 0.0
        %7226 = vmatprep.subr.mxu0 0.0
        %7227 = vmatpush2.msra.mxu0 0.0
        %7228 = vmatprep.subr.mxu0 0.0
        %7229 = vmatpush2.msra.mxu0 0.0
        %7230 = vmatprep.subr.mxu0 0.0
        %7231 = vmatpush2.msra.mxu0 0.0
        %7232 = vmatprep.subr.mxu0 0.0
        %7233 = vmatpush2.msra.mxu0 0.0
        %7234 = vmatprep.subr.mxu0 0.0
        %7235 = vmatpush2.msra.mxu0 0.0
        %7236 = vmatprep.subr.mxu0 0.0
        %7237 = vmatpush2.msra.mxu0 0.0
        %7238 = vmatprep.subr.mxu0 0.0
        %7239 = vmatpush2.msra.mxu0 0.0
        %7240 = vmatprep.subr.mxu0 0.0
        %7241 = vmatpush2.msra.mxu0 0.0
        %7242 = vmatprep.subr.mxu0 0.0
        %7243 = vmatpush2.msra.mxu0 0.0
        %7244 = vmatprep.mubr.f32.mxu0 0.0
        %7245 = vmatmul.mubr.f32.gmra.mxu0 %v4869
        %v7246 = vpop.f32.mrf.mxu0
        %v7247 = vadd.f32 0.0, %v7246
        %v7248 = vpop.f32.mrf.mxu0
        %7249 = vdwg.mxu0
        %7250 = vmatprep.subr.mxu0 0.0
        %7251 = vmatpush1.msra.mxu0 0.0
        %7252 = vmatprep.subr.mxu0 0.0
        %7253 = vmatpush1.msra.mxu0 0.0
        %7254 = vmatprep.subr.mxu0 0.0
        %7255 = vmatpush1.msra.mxu0 0.0
        %7256 = vmatprep.subr.mxu0 0.0
        %7257 = vmatpush1.msra.mxu0 0.0
        %7258 = vmatprep.subr.mxu0 0.0
        %7259 = vmatpush1.msra.mxu0 0.0
        %7260 = vmatprep.subr.mxu0 0.0
        %7261 = vmatpush1.msra.mxu0 0.0
        %7262 = vmatprep.subr.mxu0 0.0
        %7263 = vmatpush1.msra.mxu0 0.0
        %7264 = vmatprep.subr.mxu0 0.0
        %7265 = vmatpush1.msra.mxu0 0.0
        %7266 = vmatprep.subr.mxu0 0.0
        %7267 = vmatpush1.msra.mxu0 0.0
        %7268 = vmatprep.subr.mxu0 0.0
        %7269 = vmatpush1.msra.mxu0 0.0
        %7270 = vmatprep.subr.mxu0 0.0
        %7271 = vmatpush1.msra.mxu0 0.0
        %7272 = vmatprep.subr.mxu0 0.0
        %7273 = vmatpush1.msra.mxu0 0.0
        %7274 = vmatprep.subr.mxu0 0.0
        %7275 = vmatpush1.msra.mxu0 %v1145
        %7276 = vmatprep.subr.mxu0 0.0
        %7277 = vmatpush1.msra.mxu0 %v1144
        %7278 = vmatprep.subr.mxu0 0.0
        %7279 = vmatpush1.msra.mxu0 %v1143
        %7280 = vmatprep.subr.mxu0 0.0
        %7281 = vmatpush1.msra.mxu0 %v1142
        %7282 = vmatprep.subr.mxu0 0.0
        %7283 = vmatpush2.msra.mxu0 0.0
        %7284 = vmatprep.subr.mxu0 0.0
        %7285 = vmatpush2.msra.mxu0 0.0
        %7286 = vmatprep.subr.mxu0 0.0
        %7287 = vmatpush2.msra.mxu0 0.0
        %7288 = vmatprep.subr.mxu0 0.0
        %7289 = vmatpush2.msra.mxu0 0.0
        %7290 = vmatprep.subr.mxu0 0.0
        %7291 = vmatpush2.msra.mxu0 0.0
        %7292 = vmatprep.subr.mxu0 0.0
        %7293 = vmatpush2.msra.mxu0 0.0
        %7294 = vmatprep.subr.mxu0 0.0
        %7295 = vmatpush2.msra.mxu0 0.0
        %7296 = vmatprep.subr.mxu0 0.0
        %7297 = vmatpush2.msra.mxu0 0.0
        %7298 = vmatprep.subr.mxu0 0.0
        %7299 = vmatpush2.msra.mxu0 0.0
        %7300 = vmatprep.subr.mxu0 0.0
        %7301 = vmatpush2.msra.mxu0 0.0
        %7302 = vmatprep.subr.mxu0 0.0
        %7303 = vmatpush2.msra.mxu0 0.0
        %7304 = vmatprep.subr.mxu0 0.0
        %7305 = vmatpush2.msra.mxu0 0.0
        %7306 = vmatprep.subr.mxu0 0.0
        %7307 = vmatpush2.msra.mxu0 0.0
        %7308 = vmatprep.subr.mxu0 0.0
        %7309 = vmatpush2.msra.mxu0 0.0
        %7310 = vmatprep.subr.mxu0 0.0
        %7311 = vmatpush2.msra.mxu0 0.0
        %7312 = vmatprep.subr.mxu0 0.0
        %7313 = vmatpush2.msra.mxu0 0.0
        %7314 = vmatprep.mubr.f32.mxu0 0.0
        %7315 = vmatmul.mubr.f32.gmra.mxu0 %v4869
        %v7316 = vpop.f32.mrf.mxu0
        %v7317 = vadd.f32 0.0, %v7316
        %v7318 = vpop.f32.mrf.mxu0
        %7319 = vdwg.mxu0
        %7320 = vmatprep.subr.mxu0 0.0
        %7321 = vmatpush1.msra.mxu0 0.0
        %7322 = vmatprep.subr.mxu0 0.0
        %7323 = vmatpush1.msra.mxu0 0.0
        %7324 = vmatprep.subr.mxu0 0.0
        %7325 = vmatpush1.msra.mxu0 0.0
        %7326 = vmatprep.subr.mxu0 0.0
        %7327 = vmatpush1.msra.mxu0 0.0
        %7328 = vmatprep.subr.mxu0 0.0
        %7329 = vmatpush1.msra.mxu0 0.0
        %7330 = vmatprep.subr.mxu0 0.0
        %7331 = vmatpush1.msra.mxu0 0.0
        %7332 = vmatprep.subr.mxu0 0.0
        %7333 = vmatpush1.msra.mxu0 0.0
        %7334 = vmatprep.subr.mxu0 0.0
        %7335 = vmatpush1.msra.mxu0 0.0
        %7336 = vmatprep.subr.mxu0 0.0
        %7337 = vmatpush1.msra.mxu0 0.0
        %7338 = vmatprep.subr.mxu0 0.0
        %7339 = vmatpush1.msra.mxu0 0.0
        %7340 = vmatprep.subr.mxu0 0.0
        %7341 = vmatpush1.msra.mxu0 0.0
        %7342 = vmatprep.subr.mxu0 0.0
        %7343 = vmatpush1.msra.mxu0 0.0
        %7344 = vmatprep.subr.mxu0 0.0
        %7345 = vmatpush1.msra.mxu0 %v1149
        %7346 = vmatprep.subr.mxu0 0.0
        %7347 = vmatpush1.msra.mxu0 %v1148
        %7348 = vmatprep.subr.mxu0 0.0
        %7349 = vmatpush1.msra.mxu0 %v1147
        %7350 = vmatprep.subr.mxu0 0.0
        %7351 = vmatpush1.msra.mxu0 %v1146
        %7352 = vmatprep.subr.mxu0 0.0
        %7353 = vmatpush2.msra.mxu0 0.0
        %7354 = vmatprep.subr.mxu0 0.0
        %7355 = vmatpush2.msra.mxu0 0.0
        %7356 = vmatprep.subr.mxu0 0.0
        %7357 = vmatpush2.msra.mxu0 0.0
        %7358 = vmatprep.subr.mxu0 0.0
        %7359 = vmatpush2.msra.mxu0 0.0
        %7360 = vmatprep.subr.mxu0 0.0
        %7361 = vmatpush2.msra.mxu0 0.0
        %7362 = vmatprep.subr.mxu0 0.0
        %7363 = vmatpush2.msra.mxu0 0.0
        %7364 = vmatprep.subr.mxu0 0.0
        %7365 = vmatpush2.msra.mxu0 0.0
        %7366 = vmatprep.subr.mxu0 0.0
        %7367 = vmatpush2.msra.mxu0 0.0
        %7368 = vmatprep.subr.mxu0 0.0
        %7369 = vmatpush2.msra.mxu0 0.0
        %7370 = vmatprep.subr.mxu0 0.0
        %7371 = vmatpush2.msra.mxu0 0.0
        %7372 = vmatprep.subr.mxu0 0.0
        %7373 = vmatpush2.msra.mxu0 0.0
        %7374 = vmatprep.subr.mxu0 0.0
        %7375 = vmatpush2.msra.mxu0 0.0
        %7376 = vmatprep.subr.mxu0 0.0
        %7377 = vmatpush2.msra.mxu0 0.0
        %7378 = vmatprep.subr.mxu0 0.0
        %7379 = vmatpush2.msra.mxu0 0.0
        %7380 = vmatprep.subr.mxu0 0.0
        %7381 = vmatpush2.msra.mxu0 0.0
        %7382 = vmatprep.subr.mxu0 0.0
        %7383 = vmatpush2.msra.mxu0 0.0
        %7384 = vmatprep.mubr.f32.mxu0 0.0
        %7385 = vmatmul.mubr.f32.gmra.mxu0 %v4869
        %v7386 = vpop.f32.mrf.mxu0
        %v7387 = vadd.f32 0.0, %v7386
        %v7388 = vpop.f32.mrf.mxu0
        %7389 = vdwg.mxu0
        %7390 = vmatprep.subr.mxu0 0.0
        %7391 = vmatpush1.msra.mxu0 0.0
        %7392 = vmatprep.subr.mxu0 0.0
        %7393 = vmatpush1.msra.mxu0 0.0
        %7394 = vmatprep.subr.mxu0 0.0
        %7395 = vmatpush1.msra.mxu0 0.0
        %7396 = vmatprep.subr.mxu0 0.0
        %7397 = vmatpush1.msra.mxu0 0.0
        %7398 = vmatprep.subr.mxu0 0.0
        %7399 = vmatpush1.msra.mxu0 0.0
        %7400 = vmatprep.subr.mxu0 0.0
        %7401 = vmatpush1.msra.mxu0 0.0
        %7402 = vmatprep.subr.mxu0 0.0
        %7403 = vmatpush1.msra.mxu0 0.0
        %7404 = vmatprep.subr.mxu0 0.0
        %7405 = vmatpush1.msra.mxu0 0.0
        %7406 = vmatprep.subr.mxu0 0.0
        %7407 = vmatpush1.msra.mxu0 0.0
        %7408 = vmatprep.subr.mxu0 0.0
        %7409 = vmatpush1.msra.mxu0 0.0
        %7410 = vmatprep.subr.mxu0 0.0
        %7411 = vmatpush1.msra.mxu0 0.0
        %7412 = vmatprep.subr.mxu0 0.0
        %7413 = vmatpush1.msra.mxu0 0.0
        %7414 = vmatprep.subr.mxu0 0.0
        %7415 = vmatpush1.msra.mxu0 %v1153
        %7416 = vmatprep.subr.mxu0 0.0
        %7417 = vmatpush1.msra.mxu0 %v1152
        %7418 = vmatprep.subr.mxu0 0.0
        %7419 = vmatpush1.msra.mxu0 %v1151
        %7420 = vmatprep.subr.mxu0 0.0
        %7421 = vmatpush1.msra.mxu0 %v1150
        %7422 = vmatprep.subr.mxu0 0.0
        %7423 = vmatpush2.msra.mxu0 0.0
        %7424 = vmatprep.subr.mxu0 0.0
        %7425 = vmatpush2.msra.mxu0 0.0
        %7426 = vmatprep.subr.mxu0 0.0
        %7427 = vmatpush2.msra.mxu0 0.0
        %7428 = vmatprep.subr.mxu0 0.0
        %7429 = vmatpush2.msra.mxu0 0.0
        %7430 = vmatprep.subr.mxu0 0.0
        %7431 = vmatpush2.msra.mxu0 0.0
        %7432 = vmatprep.subr.mxu0 0.0
        %7433 = vmatpush2.msra.mxu0 0.0
        %7434 = vmatprep.subr.mxu0 0.0
        %7435 = vmatpush2.msra.mxu0 0.0
        %7436 = vmatprep.subr.mxu0 0.0
        %7437 = vmatpush2.msra.mxu0 0.0
        %7438 = vmatprep.subr.mxu0 0.0
        %7439 = vmatpush2.msra.mxu0 0.0
        %7440 = vmatprep.subr.mxu0 0.0
        %7441 = vmatpush2.msra.mxu0 0.0
        %7442 = vmatprep.subr.mxu0 0.0
        %7443 = vmatpush2.msra.mxu0 0.0
        %7444 = vmatprep.subr.mxu0 0.0
        %7445 = vmatpush2.msra.mxu0 0.0
        %7446 = vmatprep.subr.mxu0 0.0
        %7447 = vmatpush2.msra.mxu0 0.0
        %7448 = vmatprep.subr.mxu0 0.0
        %7449 = vmatpush2.msra.mxu0 0.0
        %7450 = vmatprep.subr.mxu0 0.0
        %7451 = vmatpush2.msra.mxu0 0.0
        %7452 = vmatprep.subr.mxu0 0.0
        %7453 = vmatpush2.msra.mxu0 0.0
        %7454 = vmatprep.mubr.f32.mxu0 0.0
        %7455 = vmatmul.mubr.f32.gmra.mxu0 %v4869
        %v7456 = vpop.f32.mrf.mxu0
        %v7457 = vadd.f32 0.0, %v7456
        %v7458 = vpop.f32.mrf.mxu0
        %7459 = vdwg.mxu0
        %7460 = vmatprep.subr.mxu0 0.0
        %7461 = vmatpush1.msra.mxu0 0.0
        %7462 = vmatprep.subr.mxu0 0.0
        %7463 = vmatpush1.msra.mxu0 0.0
        %7464 = vmatprep.subr.mxu0 0.0
        %7465 = vmatpush1.msra.mxu0 0.0
        %7466 = vmatprep.subr.mxu0 0.0
        %7467 = vmatpush1.msra.mxu0 0.0
        %7468 = vmatprep.subr.mxu0 0.0
        %7469 = vmatpush1.msra.mxu0 0.0
        %7470 = vmatprep.subr.mxu0 0.0
        %7471 = vmatpush1.msra.mxu0 0.0
        %7472 = vmatprep.subr.mxu0 0.0
        %7473 = vmatpush1.msra.mxu0 0.0
        %7474 = vmatprep.subr.mxu0 0.0
        %7475 = vmatpush1.msra.mxu0 0.0
        %7476 = vmatprep.subr.mxu0 0.0
        %7477 = vmatpush1.msra.mxu0 0.0
        %7478 = vmatprep.subr.mxu0 0.0
        %7479 = vmatpush1.msra.mxu0 0.0
        %7480 = vmatprep.subr.mxu0 0.0
        %7481 = vmatpush1.msra.mxu0 0.0
        %7482 = vmatprep.subr.mxu0 0.0
        %7483 = vmatpush1.msra.mxu0 0.0
        %7484 = vmatprep.subr.mxu0 0.0
        %7485 = vmatpush1.msra.mxu0 %v1157
        %7486 = vmatprep.subr.mxu0 0.0
        %7487 = vmatpush1.msra.mxu0 %v1156
        %7488 = vmatprep.subr.mxu0 0.0
        %7489 = vmatpush1.msra.mxu0 %v1155
        %7490 = vmatprep.subr.mxu0 0.0
        %7491 = vmatpush1.msra.mxu0 %v1154
        %7492 = vmatprep.subr.mxu0 0.0
        %7493 = vmatpush2.msra.mxu0 0.0
        %7494 = vmatprep.subr.mxu0 0.0
        %7495 = vmatpush2.msra.mxu0 0.0
        %7496 = vmatprep.subr.mxu0 0.0
        %7497 = vmatpush2.msra.mxu0 0.0
        %7498 = vmatprep.subr.mxu0 0.0
        %7499 = vmatpush2.msra.mxu0 0.0
        %7500 = vmatprep.subr.mxu0 0.0
        %7501 = vmatpush2.msra.mxu0 0.0
        %7502 = vmatprep.subr.mxu0 0.0
        %7503 = vmatpush2.msra.mxu0 0.0
        %7504 = vmatprep.subr.mxu0 0.0
        %7505 = vmatpush2.msra.mxu0 0.0
        %7506 = vmatprep.subr.mxu0 0.0
        %7507 = vmatpush2.msra.mxu0 0.0
        %7508 = vmatprep.subr.mxu0 0.0
        %7509 = vmatpush2.msra.mxu0 0.0
        %7510 = vmatprep.subr.mxu0 0.0
        %7511 = vmatpush2.msra.mxu0 0.0
        %7512 = vmatprep.subr.mxu0 0.0
        %7513 = vmatpush2.msra.mxu0 0.0
        %7514 = vmatprep.subr.mxu0 0.0
        %7515 = vmatpush2.msra.mxu0 0.0
        %7516 = vmatprep.subr.mxu0 0.0
        %7517 = vmatpush2.msra.mxu0 0.0
        %7518 = vmatprep.subr.mxu0 0.0
        %7519 = vmatpush2.msra.mxu0 0.0
        %7520 = vmatprep.subr.mxu0 0.0
        %7521 = vmatpush2.msra.mxu0 0.0
        %7522 = vmatprep.subr.mxu0 0.0
        %7523 = vmatpush2.msra.mxu0 0.0
        %7524 = vmatprep.mubr.f32.mxu0 0.0
        %7525 = vmatmul.mubr.f32.gmra.mxu0 %v4869
        %v7526 = vpop.f32.mrf.mxu0
        %v7527 = vadd.f32 0.0, %v7526
        %v7528 = vpop.f32.mrf.mxu0
        %7529 = vdwg.mxu0
        %v7531 = vsel %vm2032, %v6966, 0
        %v7534 = vsel %vm2032, %v7037, 0
        %7536 = vmatprep.subr.mxu0 0.0
        %7537 = vmatpush1.xpose.msra.mxu0 0.0
        %7538 = vmatprep.subr.mxu0 0.0
        %7539 = vmatpush1.xpose.msra.mxu0 0.0
        %7540 = vmatprep.subr.mxu0 0.0
        %7541 = vmatpush1.xpose.msra.mxu0 0.0
        %7542 = vmatprep.subr.mxu0 0.0
        %7543 = vmatpush1.xpose.msra.mxu0 0.0
        %7544 = vmatprep.subr.mxu0 0.0
        %7545 = vmatpush1.xpose.msra.mxu0 0.0
        %7546 = vmatprep.subr.mxu0 0.0
        %7547 = vmatpush1.xpose.msra.mxu0 0.0
        %7548 = vmatprep.subr.mxu0 0.0
        %7549 = vmatpush1.xpose.msra.mxu0 0.0
        %7550 = vmatprep.subr.mxu0 0.0
        %7551 = vmatpush1.xpose.msra.mxu0 0.0
        %7552 = vmatprep.subr.mxu0 0.0
        %7553 = vmatpush1.xpose.msra.mxu0 0.0
        %7554 = vmatprep.subr.mxu0 0.0
        %7555 = vmatpush1.xpose.msra.mxu0 0.0
        %7556 = vmatprep.subr.mxu0 0.0
        %7557 = vmatpush1.xpose.msra.mxu0 0.0
        %7558 = vmatprep.subr.mxu0 0.0
        %7559 = vmatpush1.xpose.msra.mxu0 0.0
        %7560 = vmatprep.subr.mxu0 0.0
        %7561 = vmatpush1.xpose.msra.mxu0 0.0
        %7562 = vmatprep.subr.mxu0 0.0
        %7563 = vmatpush1.xpose.msra.mxu0 0.0
        %7564 = vmatprep.subr.mxu0 0.0
        %7565 = vmatpush1.xpose.msra.mxu0 0.0
        %7566 = vmatprep.subr.mxu0 0.0
        %7567 = vmatpush1.xpose.msra.mxu0 %v7534
        %7568 = vmatprep.subr.mxu0 0.0
        %7569 = vmatpush2.xpose.msra.mxu0 0.0
        %7570 = vmatprep.subr.mxu0 0.0
        %7571 = vmatpush2.xpose.msra.mxu0 0.0
        %7572 = vmatprep.subr.mxu0 0.0
        %7573 = vmatpush2.xpose.msra.mxu0 0.0
        %7574 = vmatprep.subr.mxu0 0.0
        %7575 = vmatpush2.xpose.msra.mxu0 0.0
        %7576 = vmatprep.subr.mxu0 0.0
        %7577 = vmatpush2.xpose.msra.mxu0 0.0
        %7578 = vmatprep.subr.mxu0 0.0
        %7579 = vmatpush2.xpose.msra.mxu0 0.0
        %7580 = vmatprep.subr.mxu0 0.0
        %7581 = vmatpush2.xpose.msra.mxu0 0.0
        %7582 = vmatprep.subr.mxu0 0.0
        %7583 = vmatpush2.xpose.msra.mxu0 0.0
        %7584 = vmatprep.subr.mxu0 0.0
        %7585 = vmatpush2.xpose.msra.mxu0 0.0
        %7586 = vmatprep.subr.mxu0 0.0
        %7587 = vmatpush2.xpose.msra.mxu0 0.0
        %7588 = vmatprep.subr.mxu0 0.0
        %7589 = vmatpush2.xpose.msra.mxu0 0.0
        %7590 = vmatprep.subr.mxu0 0.0
        %7591 = vmatpush2.xpose.msra.mxu0 0.0
        %7592 = vmatprep.subr.mxu0 0.0
        %7593 = vmatpush2.xpose.msra.mxu0 0.0
        %7594 = vmatprep.subr.mxu0 0.0
        %7595 = vmatpush2.xpose.msra.mxu0 0.0
        %7596 = vmatprep.subr.mxu0 0.0
        %7597 = vmatpush2.xpose.msra.mxu0 0.0
        %7598 = vmatprep.subr.mxu0 0.0
        %7599 = vmatpush2.xpose.msra.mxu0 0.0
        %7600 = vmatprep.mubr.f32.mxu0 0.0
        %7601 = vmatmul.mubr.f32.gmra.mxu0 %v7531
        %v7602 = vpop.f32.mrf.mxu0
        %v7603 = vadd.f32 0.0, %v7602
        %v7604 = vpop.f32.mrf.mxu0
        %7605 = vdwg.mxu0
        %v7607 = vsel %vm2032, %v6967, 0
        %v7610 = vsel %vm2032, %v7107, 0
        %7612 = vmatprep.subr.mxu0 0.0
        %7613 = vmatpush1.xpose.msra.mxu0 0.0
        %7614 = vmatprep.subr.mxu0 0.0
        %7615 = vmatpush1.xpose.msra.mxu0 0.0
        %7616 = vmatprep.subr.mxu0 0.0
        %7617 = vmatpush1.xpose.msra.mxu0 0.0
        %7618 = vmatprep.subr.mxu0 0.0
        %7619 = vmatpush1.xpose.msra.mxu0 0.0
        %7620 = vmatprep.subr.mxu0 0.0
        %7621 = vmatpush1.xpose.msra.mxu0 0.0
        %7622 = vmatprep.subr.mxu0 0.0
        %7623 = vmatpush1.xpose.msra.mxu0 0.0
        %7624 = vmatprep.subr.mxu0 0.0
        %7625 = vmatpush1.xpose.msra.mxu0 0.0
        %7626 = vmatprep.subr.mxu0 0.0
        %7627 = vmatpush1.xpose.msra.mxu0 0.0
        %7628 = vmatprep.subr.mxu0 0.0
        %7629 = vmatpush1.xpose.msra.mxu0 0.0
        %7630 = vmatprep.subr.mxu0 0.0
        %7631 = vmatpush1.xpose.msra.mxu0 0.0
        %7632 = vmatprep.subr.mxu0 0.0
        %7633 = vmatpush1.xpose.msra.mxu0 0.0
        %7634 = vmatprep.subr.mxu0 0.0
        %7635 = vmatpush1.xpose.msra.mxu0 0.0
        %7636 = vmatprep.subr.mxu0 0.0
        %7637 = vmatpush1.xpose.msra.mxu0 0.0
        %7638 = vmatprep.subr.mxu0 0.0
        %7639 = vmatpush1.xpose.msra.mxu0 0.0
        %7640 = vmatprep.subr.mxu0 0.0
        %7641 = vmatpush1.xpose.msra.mxu0 0.0
        %7642 = vmatprep.subr.mxu0 0.0
        %7643 = vmatpush1.xpose.msra.mxu0 %v7610
        %7644 = vmatprep.subr.mxu0 0.0
        %7645 = vmatpush2.xpose.msra.mxu0 0.0
        %7646 = vmatprep.subr.mxu0 0.0
        %7647 = vmatpush2.xpose.msra.mxu0 0.0
        %7648 = vmatprep.subr.mxu0 0.0
        %7649 = vmatpush2.xpose.msra.mxu0 0.0
        %7650 = vmatprep.subr.mxu0 0.0
        %7651 = vmatpush2.xpose.msra.mxu0 0.0
        %7652 = vmatprep.subr.mxu0 0.0
        %7653 = vmatpush2.xpose.msra.mxu0 0.0
        %7654 = vmatprep.subr.mxu0 0.0
        %7655 = vmatpush2.xpose.msra.mxu0 0.0
        %7656 = vmatprep.subr.mxu0 0.0
        %7657 = vmatpush2.xpose.msra.mxu0 0.0
        %7658 = vmatprep.subr.mxu0 0.0
        %7659 = vmatpush2.xpose.msra.mxu0 0.0
        %7660 = vmatprep.subr.mxu0 0.0
        %7661 = vmatpush2.xpose.msra.mxu0 0.0
        %7662 = vmatprep.subr.mxu0 0.0
        %7663 = vmatpush2.xpose.msra.mxu0 0.0
        %7664 = vmatprep.subr.mxu0 0.0
        %7665 = vmatpush2.xpose.msra.mxu0 0.0
        %7666 = vmatprep.subr.mxu0 0.0
        %7667 = vmatpush2.xpose.msra.mxu0 0.0
        %7668 = vmatprep.subr.mxu0 0.0
        %7669 = vmatpush2.xpose.msra.mxu0 0.0
        %7670 = vmatprep.subr.mxu0 0.0
        %7671 = vmatpush2.xpose.msra.mxu0 0.0
        %7672 = vmatprep.subr.mxu0 0.0
        %7673 = vmatpush2.xpose.msra.mxu0 0.0
        %7674 = vmatprep.subr.mxu0 0.0
        %7675 = vmatpush2.xpose.msra.mxu0 0.0
        %7676 = vmatprep.mubr.f32.mxu0 0.0
        %7677 = vmatmul.mubr.f32.gmra.mxu0 %v7607
        %v7678 = vpop.f32.mrf.mxu0
        %v7679 = vadd.f32 0.0, %v7678
        %v7680 = vpop.f32.mrf.mxu0
        %7681 = vdwg.mxu0
        %v7683 = vsel %vm2032, %v6968, 0
        %v7686 = vsel %vm2032, %v7177, 0
        %7688 = vmatprep.subr.mxu0 0.0
        %7689 = vmatpush1.xpose.msra.mxu0 0.0
        %7690 = vmatprep.subr.mxu0 0.0
        %7691 = vmatpush1.xpose.msra.mxu0 0.0
        %7692 = vmatprep.subr.mxu0 0.0
        %7693 = vmatpush1.xpose.msra.mxu0 0.0
        %7694 = vmatprep.subr.mxu0 0.0
        %7695 = vmatpush1.xpose.msra.mxu0 0.0
        %7696 = vmatprep.subr.mxu0 0.0
        %7697 = vmatpush1.xpose.msra.mxu0 0.0
        %7698 = vmatprep.subr.mxu0 0.0
        %7699 = vmatpush1.xpose.msra.mxu0 0.0
        %7700 = vmatprep.subr.mxu0 0.0
        %7701 = vmatpush1.xpose.msra.mxu0 0.0
        %7702 = vmatprep.subr.mxu0 0.0
        %7703 = vmatpush1.xpose.msra.mxu0 0.0
        %7704 = vmatprep.subr.mxu0 0.0
        %7705 = vmatpush1.xpose.msra.mxu0 0.0
        %7706 = vmatprep.subr.mxu0 0.0
        %7707 = vmatpush1.xpose.msra.mxu0 0.0
        %7708 = vmatprep.subr.mxu0 0.0
        %7709 = vmatpush1.xpose.msra.mxu0 0.0
        %7710 = vmatprep.subr.mxu0 0.0
        %7711 = vmatpush1.xpose.msra.mxu0 0.0
        %7712 = vmatprep.subr.mxu0 0.0
        %7713 = vmatpush1.xpose.msra.mxu0 0.0
        %7714 = vmatprep.subr.mxu0 0.0
        %7715 = vmatpush1.xpose.msra.mxu0 0.0
        %7716 = vmatprep.subr.mxu0 0.0
        %7717 = vmatpush1.xpose.msra.mxu0 0.0
        %7718 = vmatprep.subr.mxu0 0.0
        %7719 = vmatpush1.xpose.msra.mxu0 %v7686
        %7720 = vmatprep.subr.mxu0 0.0
        %7721 = vmatpush2.xpose.msra.mxu0 0.0
        %7722 = vmatprep.subr.mxu0 0.0
        %7723 = vmatpush2.xpose.msra.mxu0 0.0
        %7724 = vmatprep.subr.mxu0 0.0
        %7725 = vmatpush2.xpose.msra.mxu0 0.0
        %7726 = vmatprep.subr.mxu0 0.0
        %7727 = vmatpush2.xpose.msra.mxu0 0.0
        %7728 = vmatprep.subr.mxu0 0.0
        %7729 = vmatpush2.xpose.msra.mxu0 0.0
        %7730 = vmatprep.subr.mxu0 0.0
        %7731 = vmatpush2.xpose.msra.mxu0 0.0
        %7732 = vmatprep.subr.mxu0 0.0
        %7733 = vmatpush2.xpose.msra.mxu0 0.0
        %7734 = vmatprep.subr.mxu0 0.0
        %7735 = vmatpush2.xpose.msra.mxu0 0.0
        %7736 = vmatprep.subr.mxu0 0.0
        %7737 = vmatpush2.xpose.msra.mxu0 0.0
        %7738 = vmatprep.subr.mxu0 0.0
        %7739 = vmatpush2.xpose.msra.mxu0 0.0
        %7740 = vmatprep.subr.mxu0 0.0
        %7741 = vmatpush2.xpose.msra.mxu0 0.0
        %7742 = vmatprep.subr.mxu0 0.0
        %7743 = vmatpush2.xpose.msra.mxu0 0.0
        %7744 = vmatprep.subr.mxu0 0.0
        %7745 = vmatpush2.xpose.msra.mxu0 0.0
        %7746 = vmatprep.subr.mxu0 0.0
        %7747 = vmatpush2.xpose.msra.mxu0 0.0
        %7748 = vmatprep.subr.mxu0 0.0
        %7749 = vmatpush2.xpose.msra.mxu0 0.0
        %7750 = vmatprep.subr.mxu0 0.0
        %7751 = vmatpush2.xpose.msra.mxu0 0.0
        %7752 = vmatprep.mubr.f32.mxu0 0.0
        %7753 = vmatmul.mubr.f32.gmra.mxu0 %v7683
        %v7754 = vpop.f32.mrf.mxu0
        %v7755 = vadd.f32 0.0, %v7754
        %v7756 = vpop.f32.mrf.mxu0
        %7757 = vdwg.mxu0
        %v7759 = vsel %vm2032, %v6969, 0
        %v7762 = vsel %vm2032, %v7247, 0
        %7764 = vmatprep.subr.mxu0 0.0
        %7765 = vmatpush1.xpose.msra.mxu0 0.0
        %7766 = vmatprep.subr.mxu0 0.0
        %7767 = vmatpush1.xpose.msra.mxu0 0.0
        %7768 = vmatprep.subr.mxu0 0.0
        %7769 = vmatpush1.xpose.msra.mxu0 0.0
        %7770 = vmatprep.subr.mxu0 0.0
        %7771 = vmatpush1.xpose.msra.mxu0 0.0
        %7772 = vmatprep.subr.mxu0 0.0
        %7773 = vmatpush1.xpose.msra.mxu0 0.0
        %7774 = vmatprep.subr.mxu0 0.0
        %7775 = vmatpush1.xpose.msra.mxu0 0.0
        %7776 = vmatprep.subr.mxu0 0.0
        %7777 = vmatpush1.xpose.msra.mxu0 0.0
        %7778 = vmatprep.subr.mxu0 0.0
        %7779 = vmatpush1.xpose.msra.mxu0 0.0
        %7780 = vmatprep.subr.mxu0 0.0
        %7781 = vmatpush1.xpose.msra.mxu0 0.0
        %7782 = vmatprep.subr.mxu0 0.0
        %7783 = vmatpush1.xpose.msra.mxu0 0.0
        %7784 = vmatprep.subr.mxu0 0.0
        %7785 = vmatpush1.xpose.msra.mxu0 0.0
        %7786 = vmatprep.subr.mxu0 0.0
        %7787 = vmatpush1.xpose.msra.mxu0 0.0
        %7788 = vmatprep.subr.mxu0 0.0
        %7789 = vmatpush1.xpose.msra.mxu0 0.0
        %7790 = vmatprep.subr.mxu0 0.0
        %7791 = vmatpush1.xpose.msra.mxu0 0.0
        %7792 = vmatprep.subr.mxu0 0.0
        %7793 = vmatpush1.xpose.msra.mxu0 0.0
        %7794 = vmatprep.subr.mxu0 0.0
        %7795 = vmatpush1.xpose.msra.mxu0 %v7762
        %7796 = vmatprep.subr.mxu0 0.0
        %7797 = vmatpush2.xpose.msra.mxu0 0.0
        %7798 = vmatprep.subr.mxu0 0.0
        %7799 = vmatpush2.xpose.msra.mxu0 0.0
        %7800 = vmatprep.subr.mxu0 0.0
        %7801 = vmatpush2.xpose.msra.mxu0 0.0
        %7802 = vmatprep.subr.mxu0 0.0
        %7803 = vmatpush2.xpose.msra.mxu0 0.0
        %7804 = vmatprep.subr.mxu0 0.0
        %7805 = vmatpush2.xpose.msra.mxu0 0.0
        %7806 = vmatprep.subr.mxu0 0.0
        %7807 = vmatpush2.xpose.msra.mxu0 0.0
        %7808 = vmatprep.subr.mxu0 0.0
        %7809 = vmatpush2.xpose.msra.mxu0 0.0
        %7810 = vmatprep.subr.mxu0 0.0
        %7811 = vmatpush2.xpose.msra.mxu0 0.0
        %7812 = vmatprep.subr.mxu0 0.0
        %7813 = vmatpush2.xpose.msra.mxu0 0.0
        %7814 = vmatprep.subr.mxu0 0.0
        %7815 = vmatpush2.xpose.msra.mxu0 0.0
        %7816 = vmatprep.subr.mxu0 0.0
        %7817 = vmatpush2.xpose.msra.mxu0 0.0
        %7818 = vmatprep.subr.mxu0 0.0
        %7819 = vmatpush2.xpose.msra.mxu0 0.0
        %7820 = vmatprep.subr.mxu0 0.0
        %7821 = vmatpush2.xpose.msra.mxu0 0.0
        %7822 = vmatprep.subr.mxu0 0.0
        %7823 = vmatpush2.xpose.msra.mxu0 0.0
        %7824 = vmatprep.subr.mxu0 0.0
        %7825 = vmatpush2.xpose.msra.mxu0 0.0
        %7826 = vmatprep.subr.mxu0 0.0
        %7827 = vmatpush2.xpose.msra.mxu0 0.0
        %7828 = vmatprep.mubr.f32.mxu0 0.0
        %7829 = vmatmul.mubr.f32.gmra.mxu0 %v7759
        %v7830 = vpop.f32.mrf.mxu0
        %v7831 = vadd.f32 0.0, %v7830
        %v7832 = vpop.f32.mrf.mxu0
        %7833 = vdwg.mxu0
        %v7834 = vsel %vm2032, %v7603, -inf
        %7835 = vmax.xlane.f32.xlu0 %v7834
        %v7836 = vpop.xlane.xlu0 %7835
        %v7837 = vsel %vm2032, %v7679, -inf
        %7838 = vmax.xlane.f32.xlu0 %v7837
        %v7839 = vpop.xlane.xlu0 %7838
        %v7840 = vsel %vm2032, %v7755, -inf
        %7841 = vmax.xlane.f32.xlu0 %v7840
        %v7842 = vpop.xlane.xlu0 %7841
        %v7843 = vsel %vm2032, %v7831, -inf
        %7844 = vmax.xlane.f32.xlu0 %v7843
        %v7845 = vpop.xlane.xlu0 %7844
        %v7846 = vsub.f32 %v7603, %v7836
        %v7847 = vsub.f32 %v7679, %v7839
        %v7848 = vsub.f32 %v7755, %v7842
        %v7849 = vsub.f32 %v7831, %v7845
        %v7850 = vmul.f32 %v7846, 1.442695
        %v7851 = vpow.pop %v7850
        %v7852 = vmul.f32 %v7847, 1.442695
        %v7853 = vpow.pop %v7852
        %v7854 = vmul.f32 %v7848, 1.442695
        %v7855 = vpow.pop %v7854
        %v7856 = vmul.f32 %v7849, 1.442695
        %v7857 = vpow.pop %v7856
        %v7858 = vsel %vm2032, %v7851, 0.0
        %7859 = vadd.xlane.f32.xlu0 %v7858
        %v7860 = vpop.xlane.xlu0 %7859
        %v7861 = vsel %vm2032, %v7853, 0.0
        %7862 = vadd.xlane.f32.xlu0 %v7861
        %v7863 = vpop.xlane.xlu0 %7862
        %v7864 = vsel %vm2032, %v7855, 0.0
        %7865 = vadd.xlane.f32.xlu0 %v7864
        %v7866 = vpop.xlane.xlu0 %7865
        %v7867 = vsel %vm2032, %v7857, 0.0
        %7868 = vadd.xlane.f32.xlu0 %v7867
        %v7869 = vpop.xlane.xlu0 %7868
        %v7870 = vrcp.pop %v7860
        %v7871 = vrcp.pop %v7863
        %v7872 = vrcp.pop %v7866
        %v7873 = vrcp.pop %v7869
        %v7874 = vmul.f32 %v7851, %v7870
        %v7875 = vmul.f32 %v7853, %v7871
        %v7876 = vmul.f32 %v7855, %v7872
        %v7877 = vmul.f32 %v7857, %v7873
        %v7879 = vsel %vm2032, %v7874, 0
        %7881 = vmatprep.subr.mxu0 0.0
        %7882 = vmatpush1.msra.mxu0 0.0
        %7883 = vmatprep.subr.mxu0 0.0
        %7884 = vmatpush1.msra.mxu0 0.0
        %7885 = vmatprep.subr.mxu0 0.0
        %7886 = vmatpush1.msra.mxu0 0.0
        %7887 = vmatprep.subr.mxu0 0.0
        %7888 = vmatpush1.msra.mxu0 0.0
        %7889 = vmatprep.subr.mxu0 0.0
        %7890 = vmatpush1.msra.mxu0 0.0
        %7891 = vmatprep.subr.mxu0 0.0
        %7892 = vmatpush1.msra.mxu0 0.0
        %7893 = vmatprep.subr.mxu0 0.0
        %7894 = vmatpush1.msra.mxu0 0.0
        %7895 = vmatprep.subr.mxu0 0.0
        %7896 = vmatpush1.msra.mxu0 0.0
        %7897 = vmatprep.subr.mxu0 0.0
        %7898 = vmatpush1.msra.mxu0 0.0
        %7899 = vmatprep.subr.mxu0 0.0
        %7900 = vmatpush1.msra.mxu0 0.0
        %7901 = vmatprep.subr.mxu0 0.0
        %7902 = vmatpush1.msra.mxu0 0.0
        %7903 = vmatprep.subr.mxu0 0.0
        %7904 = vmatpush1.msra.mxu0 0.0
        %7905 = vmatprep.subr.mxu0 0.0
        %7906 = vmatpush1.msra.mxu0 0.0
        %7907 = vmatprep.subr.mxu0 0.0
        %7908 = vmatpush1.msra.mxu0 0.0
        %7909 = vmatprep.subr.mxu0 0.0
        %7910 = vmatpush1.msra.mxu0 0.0
        %7911 = vmatprep.subr.mxu0 0.0
        %7912 = vmatpush1.msra.mxu0 %v7317
        %7913 = vmatprep.subr.mxu0 0.0
        %7914 = vmatpush2.msra.mxu0 0.0
        %7915 = vmatprep.subr.mxu0 0.0
        %7916 = vmatpush2.msra.mxu0 0.0
        %7917 = vmatprep.subr.mxu0 0.0
        %7918 = vmatpush2.msra.mxu0 0.0
        %7919 = vmatprep.subr.mxu0 0.0
        %7920 = vmatpush2.msra.mxu0 0.0
        %7921 = vmatprep.subr.mxu0 0.0
        %7922 = vmatpush2.msra.mxu0 0.0
        %7923 = vmatprep.subr.mxu0 0.0
        %7924 = vmatpush2.msra.mxu0 0.0
        %7925 = vmatprep.subr.mxu0 0.0
        %7926 = vmatpush2.msra.mxu0 0.0
        %7927 = vmatprep.subr.mxu0 0.0
        %7928 = vmatpush2.msra.mxu0 0.0
        %7929 = vmatprep.subr.mxu0 0.0
        %7930 = vmatpush2.msra.mxu0 0.0
        %7931 = vmatprep.subr.mxu0 0.0
        %7932 = vmatpush2.msra.mxu0 0.0
        %7933 = vmatprep.subr.mxu0 0.0
        %7934 = vmatpush2.msra.mxu0 0.0
        %7935 = vmatprep.subr.mxu0 0.0
        %7936 = vmatpush2.msra.mxu0 0.0
        %7937 = vmatprep.subr.mxu0 0.0
        %7938 = vmatpush2.msra.mxu0 0.0
        %7939 = vmatprep.subr.mxu0 0.0
        %7940 = vmatpush2.msra.mxu0 0.0
        %7941 = vmatprep.subr.mxu0 0.0
        %7942 = vmatpush2.msra.mxu0 0.0
        %7943 = vmatprep.subr.mxu0 0.0
        %7944 = vmatpush2.msra.mxu0 0.0
        %7945 = vmatprep.mubr.f32.mxu0 0.0
        %7946 = vmatmul.mubr.f32.gmra.mxu0 %v7879
        %v7947 = vpop.f32.mrf.mxu0
        %v7948 = vadd.f32 0.0, %v7947
        %v7949 = vpop.f32.mrf.mxu0
        %7950 = vdwg.mxu0
        %v7952 = vsel %vm2032, %v7875, 0
        %7954 = vmatprep.subr.mxu0 0.0
        %7955 = vmatpush1.msra.mxu0 0.0
        %7956 = vmatprep.subr.mxu0 0.0
        %7957 = vmatpush1.msra.mxu0 0.0
        %7958 = vmatprep.subr.mxu0 0.0
        %7959 = vmatpush1.msra.mxu0 0.0
        %7960 = vmatprep.subr.mxu0 0.0
        %7961 = vmatpush1.msra.mxu0 0.0
        %7962 = vmatprep.subr.mxu0 0.0
        %7963 = vmatpush1.msra.mxu0 0.0
        %7964 = vmatprep.subr.mxu0 0.0
        %7965 = vmatpush1.msra.mxu0 0.0
        %7966 = vmatprep.subr.mxu0 0.0
        %7967 = vmatpush1.msra.mxu0 0.0
        %7968 = vmatprep.subr.mxu0 0.0
        %7969 = vmatpush1.msra.mxu0 0.0
        %7970 = vmatprep.subr.mxu0 0.0
        %7971 = vmatpush1.msra.mxu0 0.0
        %7972 = vmatprep.subr.mxu0 0.0
        %7973 = vmatpush1.msra.mxu0 0.0
        %7974 = vmatprep.subr.mxu0 0.0
        %7975 = vmatpush1.msra.mxu0 0.0
        %7976 = vmatprep.subr.mxu0 0.0
        %7977 = vmatpush1.msra.mxu0 0.0
        %7978 = vmatprep.subr.mxu0 0.0
        %7979 = vmatpush1.msra.mxu0 0.0
        %7980 = vmatprep.subr.mxu0 0.0
        %7981 = vmatpush1.msra.mxu0 0.0
        %7982 = vmatprep.subr.mxu0 0.0
        %7983 = vmatpush1.msra.mxu0 0.0
        %7984 = vmatprep.subr.mxu0 0.0
        %7985 = vmatpush1.msra.mxu0 %v7387
        %7986 = vmatprep.subr.mxu0 0.0
        %7987 = vmatpush2.msra.mxu0 0.0
        %7988 = vmatprep.subr.mxu0 0.0
        %7989 = vmatpush2.msra.mxu0 0.0
        %7990 = vmatprep.subr.mxu0 0.0
        %7991 = vmatpush2.msra.mxu0 0.0
        %7992 = vmatprep.subr.mxu0 0.0
        %7993 = vmatpush2.msra.mxu0 0.0
        %7994 = vmatprep.subr.mxu0 0.0
        %7995 = vmatpush2.msra.mxu0 0.0
        %7996 = vmatprep.subr.mxu0 0.0
        %7997 = vmatpush2.msra.mxu0 0.0
        %7998 = vmatprep.subr.mxu0 0.0
        %7999 = vmatpush2.msra.mxu0 0.0
        %8000 = vmatprep.subr.mxu0 0.0
        %8001 = vmatpush2.msra.mxu0 0.0
        %8002 = vmatprep.subr.mxu0 0.0
        %8003 = vmatpush2.msra.mxu0 0.0
        %8004 = vmatprep.subr.mxu0 0.0
        %8005 = vmatpush2.msra.mxu0 0.0
        %8006 = vmatprep.subr.mxu0 0.0
        %8007 = vmatpush2.msra.mxu0 0.0
        %8008 = vmatprep.subr.mxu0 0.0
        %8009 = vmatpush2.msra.mxu0 0.0
        %8010 = vmatprep.subr.mxu0 0.0
        %8011 = vmatpush2.msra.mxu0 0.0
        %8012 = vmatprep.subr.mxu0 0.0
        %8013 = vmatpush2.msra.mxu0 0.0
        %8014 = vmatprep.subr.mxu0 0.0
        %8015 = vmatpush2.msra.mxu0 0.0
        %8016 = vmatprep.subr.mxu0 0.0
        %8017 = vmatpush2.msra.mxu0 0.0
        %8018 = vmatprep.mubr.f32.mxu0 0.0
        %8019 = vmatmul.mubr.f32.gmra.mxu0 %v7952
        %v8020 = vpop.f32.mrf.mxu0
        %v8021 = vadd.f32 0.0, %v8020
        %v8022 = vpop.f32.mrf.mxu0
        %8023 = vdwg.mxu0
        %v8025 = vsel %vm2032, %v7876, 0
        %8027 = vmatprep.subr.mxu0 0.0
        %8028 = vmatpush1.msra.mxu0 0.0
        %8029 = vmatprep.subr.mxu0 0.0
        %8030 = vmatpush1.msra.mxu0 0.0
        %8031 = vmatprep.subr.mxu0 0.0
        %8032 = vmatpush1.msra.mxu0 0.0
        %8033 = vmatprep.subr.mxu0 0.0
        %8034 = vmatpush1.msra.mxu0 0.0
        %8035 = vmatprep.subr.mxu0 0.0
        %8036 = vmatpush1.msra.mxu0 0.0
        %8037 = vmatprep.subr.mxu0 0.0
        %8038 = vmatpush1.msra.mxu0 0.0
        %8039 = vmatprep.subr.mxu0 0.0
        %8040 = vmatpush1.msra.mxu0 0.0
        %8041 = vmatprep.subr.mxu0 0.0
        %8042 = vmatpush1.msra.mxu0 0.0
        %8043 = vmatprep.subr.mxu0 0.0
        %8044 = vmatpush1.msra.mxu0 0.0
        %8045 = vmatprep.subr.mxu0 0.0
        %8046 = vmatpush1.msra.mxu0 0.0
        %8047 = vmatprep.subr.mxu0 0.0
        %8048 = vmatpush1.msra.mxu0 0.0
        %8049 = vmatprep.subr.mxu0 0.0
        %8050 = vmatpush1.msra.mxu0 0.0
        %8051 = vmatprep.subr.mxu0 0.0
        %8052 = vmatpush1.msra.mxu0 0.0
        %8053 = vmatprep.subr.mxu0 0.0
        %8054 = vmatpush1.msra.mxu0 0.0
        %8055 = vmatprep.subr.mxu0 0.0
        %8056 = vmatpush1.msra.mxu0 0.0
        %8057 = vmatprep.subr.mxu0 0.0
        %8058 = vmatpush1.msra.mxu0 %v7457
        %8059 = vmatprep.subr.mxu0 0.0
        %8060 = vmatpush2.msra.mxu0 0.0
        %8061 = vmatprep.subr.mxu0 0.0
        %8062 = vmatpush2.msra.mxu0 0.0
        %8063 = vmatprep.subr.mxu0 0.0
        %8064 = vmatpush2.msra.mxu0 0.0
        %8065 = vmatprep.subr.mxu0 0.0
        %8066 = vmatpush2.msra.mxu0 0.0
        %8067 = vmatprep.subr.mxu0 0.0
        %8068 = vmatpush2.msra.mxu0 0.0
        %8069 = vmatprep.subr.mxu0 0.0
        %8070 = vmatpush2.msra.mxu0 0.0
        %8071 = vmatprep.subr.mxu0 0.0
        %8072 = vmatpush2.msra.mxu0 0.0
        %8073 = vmatprep.subr.mxu0 0.0
        %8074 = vmatpush2.msra.mxu0 0.0
        %8075 = vmatprep.subr.mxu0 0.0
        %8076 = vmatpush2.msra.mxu0 0.0
        %8077 = vmatprep.subr.mxu0 0.0
        %8078 = vmatpush2.msra.mxu0 0.0
        %8079 = vmatprep.subr.mxu0 0.0
        %8080 = vmatpush2.msra.mxu0 0.0
        %8081 = vmatprep.subr.mxu0 0.0
        %8082 = vmatpush2.msra.mxu0 0.0
        %8083 = vmatprep.subr.mxu0 0.0
        %8084 = vmatpush2.msra.mxu0 0.0
        %8085 = vmatprep.subr.mxu0 0.0
        %8086 = vmatpush2.msra.mxu0 0.0
        %8087 = vmatprep.subr.mxu0 0.0
        %8088 = vmatpush2.msra.mxu0 0.0
        %8089 = vmatprep.subr.mxu0 0.0
        %8090 = vmatpush2.msra.mxu0 0.0
        %8091 = vmatprep.mubr.f32.mxu0 0.0
        %8092 = vmatmul.mubr.f32.gmra.mxu0 %v8025
        %v8093 = vpop.f32.mrf.mxu0
        %v8094 = vadd.f32 0.0, %v8093
        %v8095 = vpop.f32.mrf.mxu0
        %8096 = vdwg.mxu0
        %v8098 = vsel %vm2032, %v7877, 0
        %8100 = vmatprep.subr.mxu0 0.0
        %8101 = vmatpush1.msra.mxu0 0.0
        %8102 = vmatprep.subr.mxu0 0.0
        %8103 = vmatpush1.msra.mxu0 0.0
        %8104 = vmatprep.subr.mxu0 0.0
        %8105 = vmatpush1.msra.mxu0 0.0
        %8106 = vmatprep.subr.mxu0 0.0
        %8107 = vmatpush1.msra.mxu0 0.0
        %8108 = vmatprep.subr.mxu0 0.0
        %8109 = vmatpush1.msra.mxu0 0.0
        %8110 = vmatprep.subr.mxu0 0.0
        %8111 = vmatpush1.msra.mxu0 0.0
        %8112 = vmatprep.subr.mxu0 0.0
        %8113 = vmatpush1.msra.mxu0 0.0
        %8114 = vmatprep.subr.mxu0 0.0
        %8115 = vmatpush1.msra.mxu0 0.0
        %8116 = vmatprep.subr.mxu0 0.0
        %8117 = vmatpush1.msra.mxu0 0.0
        %8118 = vmatprep.subr.mxu0 0.0
        %8119 = vmatpush1.msra.mxu0 0.0
        %8120 = vmatprep.subr.mxu0 0.0
        %8121 = vmatpush1.msra.mxu0 0.0
        %8122 = vmatprep.subr.mxu0 0.0
        %8123 = vmatpush1.msra.mxu0 0.0
        %8124 = vmatprep.subr.mxu0 0.0
        %8125 = vmatpush1.msra.mxu0 0.0
        %8126 = vmatprep.subr.mxu0 0.0
        %8127 = vmatpush1.msra.mxu0 0.0
        %8128 = vmatprep.subr.mxu0 0.0
        %8129 = vmatpush1.msra.mxu0 0.0
        %8130 = vmatprep.subr.mxu0 0.0
        %8131 = vmatpush1.msra.mxu0 %v7527
        %8132 = vmatprep.subr.mxu0 0.0
        %8133 = vmatpush2.msra.mxu0 0.0
        %8134 = vmatprep.subr.mxu0 0.0
        %8135 = vmatpush2.msra.mxu0 0.0
        %8136 = vmatprep.subr.mxu0 0.0
        %8137 = vmatpush2.msra.mxu0 0.0
        %8138 = vmatprep.subr.mxu0 0.0
        %8139 = vmatpush2.msra.mxu0 0.0
        %8140 = vmatprep.subr.mxu0 0.0
        %8141 = vmatpush2.msra.mxu0 0.0
        %8142 = vmatprep.subr.mxu0 0.0
        %8143 = vmatpush2.msra.mxu0 0.0
        %8144 = vmatprep.subr.mxu0 0.0
        %8145 = vmatpush2.msra.mxu0 0.0
        %8146 = vmatprep.subr.mxu0 0.0
        %8147 = vmatpush2.msra.mxu0 0.0
        %8148 = vmatprep.subr.mxu0 0.0
        %8149 = vmatpush2.msra.mxu0 0.0
        %8150 = vmatprep.subr.mxu0 0.0
        %8151 = vmatpush2.msra.mxu0 0.0
        %8152 = vmatprep.subr.mxu0 0.0
        %8153 = vmatpush2.msra.mxu0 0.0
        %8154 = vmatprep.subr.mxu0 0.0
        %8155 = vmatpush2.msra.mxu0 0.0
        %8156 = vmatprep.subr.mxu0 0.0
        %8157 = vmatpush2.msra.mxu0 0.0
        %8158 = vmatprep.subr.mxu0 0.0
        %8159 = vmatpush2.msra.mxu0 0.0
        %8160 = vmatprep.subr.mxu0 0.0
        %8161 = vmatpush2.msra.mxu0 0.0
        %8162 = vmatprep.subr.mxu0 0.0
        %8163 = vmatpush2.msra.mxu0 0.0
        %8164 = vmatprep.mubr.f32.mxu0 0.0
        %8165 = vmatmul.mubr.f32.gmra.mxu0 %v8098
        %v8166 = vpop.f32.mrf.mxu0
        %v8167 = vadd.f32 0.0, %v8166
        %v8168 = vpop.f32.mrf.mxu0
        %8169 = vdwg.mxu0
        %v8171 = vsel %vm2032, %v7948, 0
        %8173 = vmatprep.subr.mxu0 0.0
        %8174 = vmatpush1.msra.mxu0 0.0
        %8175 = vmatprep.subr.mxu0 0.0
        %8176 = vmatpush1.msra.mxu0 0.0
        %8177 = vmatprep.subr.mxu0 0.0
        %8178 = vmatpush1.msra.mxu0 0.0
        %8179 = vmatprep.subr.mxu0 0.0
        %8180 = vmatpush1.msra.mxu0 0.0
        %8181 = vmatprep.subr.mxu0 0.0
        %8182 = vmatpush1.msra.mxu0 0.0
        %8183 = vmatprep.subr.mxu0 0.0
        %8184 = vmatpush1.msra.mxu0 0.0
        %8185 = vmatprep.subr.mxu0 0.0
        %8186 = vmatpush1.msra.mxu0 0.0
        %8187 = vmatprep.subr.mxu0 0.0
        %8188 = vmatpush1.msra.mxu0 0.0
        %8189 = vmatprep.subr.mxu0 0.0
        %8190 = vmatpush1.msra.mxu0 0.0
        %8191 = vmatprep.subr.mxu0 0.0
        %8192 = vmatpush1.msra.mxu0 0.0
        %8193 = vmatprep.subr.mxu0 0.0
        %8194 = vmatpush1.msra.mxu0 0.0
        %8195 = vmatprep.subr.mxu0 0.0
        %8196 = vmatpush1.msra.mxu0 0.0
        %8197 = vmatprep.subr.mxu0 0.0
        %8198 = vmatpush1.msra.mxu0 0.0
        %8199 = vmatprep.subr.mxu0 0.0
        %8200 = vmatpush1.msra.mxu0 0.0
        %8201 = vmatprep.subr.mxu0 0.0
        %8202 = vmatpush1.msra.mxu0 0.0
        %8203 = vmatprep.subr.mxu0 0.0
        %8204 = vmatpush1.msra.mxu0 %v1158
        %8205 = vmatprep.subr.mxu0 0.0
        %8206 = vmatpush2.msra.mxu0 0.0
        %8207 = vmatprep.subr.mxu0 0.0
        %8208 = vmatpush2.msra.mxu0 0.0
        %8209 = vmatprep.subr.mxu0 0.0
        %8210 = vmatpush2.msra.mxu0 0.0
        %8211 = vmatprep.subr.mxu0 0.0
        %8212 = vmatpush2.msra.mxu0 0.0
        %8213 = vmatprep.subr.mxu0 0.0
        %8214 = vmatpush2.msra.mxu0 0.0
        %8215 = vmatprep.subr.mxu0 0.0
        %8216 = vmatpush2.msra.mxu0 0.0
        %8217 = vmatprep.subr.mxu0 0.0
        %8218 = vmatpush2.msra.mxu0 0.0
        %8219 = vmatprep.subr.mxu0 0.0
        %8220 = vmatpush2.msra.mxu0 0.0
        %8221 = vmatprep.subr.mxu0 0.0
        %8222 = vmatpush2.msra.mxu0 0.0
        %8223 = vmatprep.subr.mxu0 0.0
        %8224 = vmatpush2.msra.mxu0 0.0
        %8225 = vmatprep.subr.mxu0 0.0
        %8226 = vmatpush2.msra.mxu0 0.0
        %8227 = vmatprep.subr.mxu0 0.0
        %8228 = vmatpush2.msra.mxu0 0.0
        %8229 = vmatprep.subr.mxu0 0.0
        %8230 = vmatpush2.msra.mxu0 0.0
        %8231 = vmatprep.subr.mxu0 0.0
        %8232 = vmatpush2.msra.mxu0 0.0
        %8233 = vmatprep.subr.mxu0 0.0
        %8234 = vmatpush2.msra.mxu0 0.0
        %8235 = vmatprep.subr.mxu0 0.0
        %8236 = vmatpush2.msra.mxu0 0.0
        %8237 = vmatprep.mubr.f32.mxu0 0.0
        %8238 = vmatmul.mubr.f32.gmra.mxu0 %v8171
        %v8239 = vpop.f32.mrf.mxu0
        %v8240 = vadd.f32 0.0, %v8239
        %v8241 = vpop.f32.mrf.mxu0
        %8242 = vdwg.mxu0
        %v8244 = vsel %vm2032, %v8021, 0
        %8246 = vmatprep.subr.mxu0 0.0
        %8247 = vmatpush1.msra.mxu0 0.0
        %8248 = vmatprep.subr.mxu0 0.0
        %8249 = vmatpush1.msra.mxu0 0.0
        %8250 = vmatprep.subr.mxu0 0.0
        %8251 = vmatpush1.msra.mxu0 0.0
        %8252 = vmatprep.subr.mxu0 0.0
        %8253 = vmatpush1.msra.mxu0 0.0
        %8254 = vmatprep.subr.mxu0 0.0
        %8255 = vmatpush1.msra.mxu0 0.0
        %8256 = vmatprep.subr.mxu0 0.0
        %8257 = vmatpush1.msra.mxu0 0.0
        %8258 = vmatprep.subr.mxu0 0.0
        %8259 = vmatpush1.msra.mxu0 0.0
        %8260 = vmatprep.subr.mxu0 0.0
        %8261 = vmatpush1.msra.mxu0 0.0
        %8262 = vmatprep.subr.mxu0 0.0
        %8263 = vmatpush1.msra.mxu0 0.0
        %8264 = vmatprep.subr.mxu0 0.0
        %8265 = vmatpush1.msra.mxu0 0.0
        %8266 = vmatprep.subr.mxu0 0.0
        %8267 = vmatpush1.msra.mxu0 0.0
        %8268 = vmatprep.subr.mxu0 0.0
        %8269 = vmatpush1.msra.mxu0 0.0
        %8270 = vmatprep.subr.mxu0 0.0
        %8271 = vmatpush1.msra.mxu0 0.0
        %8272 = vmatprep.subr.mxu0 0.0
        %8273 = vmatpush1.msra.mxu0 0.0
        %8274 = vmatprep.subr.mxu0 0.0
        %8275 = vmatpush1.msra.mxu0 0.0
        %8276 = vmatprep.subr.mxu0 0.0
        %8277 = vmatpush1.msra.mxu0 %v1159
        %8278 = vmatprep.subr.mxu0 0.0
        %8279 = vmatpush2.msra.mxu0 0.0
        %8280 = vmatprep.subr.mxu0 0.0
        %8281 = vmatpush2.msra.mxu0 0.0
        %8282 = vmatprep.subr.mxu0 0.0
        %8283 = vmatpush2.msra.mxu0 0.0
        %8284 = vmatprep.subr.mxu0 0.0
        %8285 = vmatpush2.msra.mxu0 0.0
        %8286 = vmatprep.subr.mxu0 0.0
        %8287 = vmatpush2.msra.mxu0 0.0
        %8288 = vmatprep.subr.mxu0 0.0
        %8289 = vmatpush2.msra.mxu0 0.0
        %8290 = vmatprep.subr.mxu0 0.0
        %8291 = vmatpush2.msra.mxu0 0.0
        %8292 = vmatprep.subr.mxu0 0.0
        %8293 = vmatpush2.msra.mxu0 0.0
        %8294 = vmatprep.subr.mxu0 0.0
        %8295 = vmatpush2.msra.mxu0 0.0
        %8296 = vmatprep.subr.mxu0 0.0
        %8297 = vmatpush2.msra.mxu0 0.0
        %8298 = vmatprep.subr.mxu0 0.0
        %8299 = vmatpush2.msra.mxu0 0.0
        %8300 = vmatprep.subr.mxu0 0.0
        %8301 = vmatpush2.msra.mxu0 0.0
        %8302 = vmatprep.subr.mxu0 0.0
        %8303 = vmatpush2.msra.mxu0 0.0
        %8304 = vmatprep.subr.mxu0 0.0
        %8305 = vmatpush2.msra.mxu0 0.0
        %8306 = vmatprep.subr.mxu0 0.0
        %8307 = vmatpush2.msra.mxu0 0.0
        %8308 = vmatprep.subr.mxu0 0.0
        %8309 = vmatpush2.msra.mxu0 0.0
        %8310 = vmatprep.mubr.f32.mxu0 0.0
        %8311 = vmatmul.mubr.f32.gmra.mxu0 %v8244
        %v8312 = vpop.f32.mrf.mxu0
        %v8313 = vadd.f32 0.0, %v8312
        %v8314 = vpop.f32.mrf.mxu0
        %8315 = vdwg.mxu0
        %v8317 = vsel %vm2032, %v8094, 0
        %8319 = vmatprep.subr.mxu0 0.0
        %8320 = vmatpush1.msra.mxu0 0.0
        %8321 = vmatprep.subr.mxu0 0.0
        %8322 = vmatpush1.msra.mxu0 0.0
        %8323 = vmatprep.subr.mxu0 0.0
        %8324 = vmatpush1.msra.mxu0 0.0
        %8325 = vmatprep.subr.mxu0 0.0
        %8326 = vmatpush1.msra.mxu0 0.0
        %8327 = vmatprep.subr.mxu0 0.0
        %8328 = vmatpush1.msra.mxu0 0.0
        %8329 = vmatprep.subr.mxu0 0.0
        %8330 = vmatpush1.msra.mxu0 0.0
        %8331 = vmatprep.subr.mxu0 0.0
        %8332 = vmatpush1.msra.mxu0 0.0
        %8333 = vmatprep.subr.mxu0 0.0
        %8334 = vmatpush1.msra.mxu0 0.0
        %8335 = vmatprep.subr.mxu0 0.0
        %8336 = vmatpush1.msra.mxu0 0.0
        %8337 = vmatprep.subr.mxu0 0.0
        %8338 = vmatpush1.msra.mxu0 0.0
        %8339 = vmatprep.subr.mxu0 0.0
        %8340 = vmatpush1.msra.mxu0 0.0
        %8341 = vmatprep.subr.mxu0 0.0
        %8342 = vmatpush1.msra.mxu0 0.0
        %8343 = vmatprep.subr.mxu0 0.0
        %8344 = vmatpush1.msra.mxu0 0.0
        %8345 = vmatprep.subr.mxu0 0.0
        %8346 = vmatpush1.msra.mxu0 0.0
        %8347 = vmatprep.subr.mxu0 0.0
        %8348 = vmatpush1.msra.mxu0 0.0
        %8349 = vmatprep.subr.mxu0 0.0
        %8350 = vmatpush1.msra.mxu0 %v1160
        %8351 = vmatprep.subr.mxu0 0.0
        %8352 = vmatpush2.msra.mxu0 0.0
        %8353 = vmatprep.subr.mxu0 0.0
        %8354 = vmatpush2.msra.mxu0 0.0
        %8355 = vmatprep.subr.mxu0 0.0
        %8356 = vmatpush2.msra.mxu0 0.0
        %8357 = vmatprep.subr.mxu0 0.0
        %8358 = vmatpush2.msra.mxu0 0.0
        %8359 = vmatprep.subr.mxu0 0.0
        %8360 = vmatpush2.msra.mxu0 0.0
        %8361 = vmatprep.subr.mxu0 0.0
        %8362 = vmatpush2.msra.mxu0 0.0
        %8363 = vmatprep.subr.mxu0 0.0
        %8364 = vmatpush2.msra.mxu0 0.0
        %8365 = vmatprep.subr.mxu0 0.0
        %8366 = vmatpush2.msra.mxu0 0.0
        %8367 = vmatprep.subr.mxu0 0.0
        %8368 = vmatpush2.msra.mxu0 0.0
        %8369 = vmatprep.subr.mxu0 0.0
        %8370 = vmatpush2.msra.mxu0 0.0
        %8371 = vmatprep.subr.mxu0 0.0
        %8372 = vmatpush2.msra.mxu0 0.0
        %8373 = vmatprep.subr.mxu0 0.0
        %8374 = vmatpush2.msra.mxu0 0.0
        %8375 = vmatprep.subr.mxu0 0.0
        %8376 = vmatpush2.msra.mxu0 0.0
        %8377 = vmatprep.subr.mxu0 0.0
        %8378 = vmatpush2.msra.mxu0 0.0
        %8379 = vmatprep.subr.mxu0 0.0
        %8380 = vmatpush2.msra.mxu0 0.0
        %8381 = vmatprep.subr.mxu0 0.0
        %8382 = vmatpush2.msra.mxu0 0.0
        %8383 = vmatprep.mubr.f32.mxu0 0.0
        %8384 = vmatmul.mubr.f32.gmra.mxu0 %v8317
        %v8385 = vpop.f32.mrf.mxu0
        %v8386 = vadd.f32 0.0, %v8385
        %v8387 = vpop.f32.mrf.mxu0
        %8388 = vdwg.mxu0
        %v8390 = vsel %vm2032, %v8167, 0
        %8392 = vmatprep.subr.mxu0 0.0
        %8393 = vmatpush1.msra.mxu0 0.0
        %8394 = vmatprep.subr.mxu0 0.0
        %8395 = vmatpush1.msra.mxu0 0.0
        %8396 = vmatprep.subr.mxu0 0.0
        %8397 = vmatpush1.msra.mxu0 0.0
        %8398 = vmatprep.subr.mxu0 0.0
        %8399 = vmatpush1.msra.mxu0 0.0
        %8400 = vmatprep.subr.mxu0 0.0
        %8401 = vmatpush1.msra.mxu0 0.0
        %8402 = vmatprep.subr.mxu0 0.0
        %8403 = vmatpush1.msra.mxu0 0.0
        %8404 = vmatprep.subr.mxu0 0.0
        %8405 = vmatpush1.msra.mxu0 0.0
        %8406 = vmatprep.subr.mxu0 0.0
        %8407 = vmatpush1.msra.mxu0 0.0
        %8408 = vmatprep.subr.mxu0 0.0
        %8409 = vmatpush1.msra.mxu0 0.0
        %8410 = vmatprep.subr.mxu0 0.0
        %8411 = vmatpush1.msra.mxu0 0.0
        %8412 = vmatprep.subr.mxu0 0.0
        %8413 = vmatpush1.msra.mxu0 0.0
        %8414 = vmatprep.subr.mxu0 0.0
        %8415 = vmatpush1.msra.mxu0 0.0
        %8416 = vmatprep.subr.mxu0 0.0
        %8417 = vmatpush1.msra.mxu0 0.0
        %8418 = vmatprep.subr.mxu0 0.0
        %8419 = vmatpush1.msra.mxu0 0.0
        %8420 = vmatprep.subr.mxu0 0.0
        %8421 = vmatpush1.msra.mxu0 0.0
        %8422 = vmatprep.subr.mxu0 0.0
        %8423 = vmatpush1.msra.mxu0 %v1161
        %8424 = vmatprep.subr.mxu0 0.0
        %8425 = vmatpush2.msra.mxu0 0.0
        %8426 = vmatprep.subr.mxu0 0.0
        %8427 = vmatpush2.msra.mxu0 0.0
        %8428 = vmatprep.subr.mxu0 0.0
        %8429 = vmatpush2.msra.mxu0 0.0
        %8430 = vmatprep.subr.mxu0 0.0
        %8431 = vmatpush2.msra.mxu0 0.0
        %8432 = vmatprep.subr.mxu0 0.0
        %8433 = vmatpush2.msra.mxu0 0.0
        %8434 = vmatprep.subr.mxu0 0.0
        %8435 = vmatpush2.msra.mxu0 0.0
        %8436 = vmatprep.subr.mxu0 0.0
        %8437 = vmatpush2.msra.mxu0 0.0
        %8438 = vmatprep.subr.mxu0 0.0
        %8439 = vmatpush2.msra.mxu0 0.0
        %8440 = vmatprep.subr.mxu0 0.0
        %8441 = vmatpush2.msra.mxu0 0.0
        %8442 = vmatprep.subr.mxu0 0.0
        %8443 = vmatpush2.msra.mxu0 0.0
        %8444 = vmatprep.subr.mxu0 0.0
        %8445 = vmatpush2.msra.mxu0 0.0
        %8446 = vmatprep.subr.mxu0 0.0
        %8447 = vmatpush2.msra.mxu0 0.0
        %8448 = vmatprep.subr.mxu0 0.0
        %8449 = vmatpush2.msra.mxu0 0.0
        %8450 = vmatprep.subr.mxu0 0.0
        %8451 = vmatpush2.msra.mxu0 0.0
        %8452 = vmatprep.subr.mxu0 0.0
        %8453 = vmatpush2.msra.mxu0 0.0
        %8454 = vmatprep.subr.mxu0 0.0
        %8455 = vmatpush2.msra.mxu0 0.0
        %8456 = vmatprep.mubr.f32.mxu0 0.0
        %8457 = vmatmul.mubr.f32.gmra.mxu0 %v8390
        %v8458 = vpop.f32.mrf.mxu0
        %v8459 = vadd.f32 0.0, %v8458
        %v8460 = vpop.f32.mrf.mxu0
        %8461 = vdwg.mxu0
        %v8462 = vsel %vm1184, %v8240, 0.0
        %v8463 = vsel %vm1184, %v8313, 0.0
        %v8464 = vadd.f32 %v8462, %v8463
        %v8465 = vsel %vm1184, %v8386, 0.0
        %v8466 = vadd.f32 %v8464, %v8465
        %v8467 = vsel %vm1184, %v8459, 0.0
        %v8468 = vadd.f32 %v8466, %v8467
        %v8469 = vadd.f32 %v8468, %v1055
        %v8470 = vsel %vm1184, %v8469, 0.0
        %8471 = vadd.xlane.f32.xlu0 %v8470
        %v8472 = vpop.xlane.xlu0 %8471
        %v8473 = vmul.f32 %v8472, %v2976
        %v8474 = vsub.f32 %v8469, %v8473
        %v8475 = vmul.f32 %v8474, %v8474
        %v8476 = vsel %vm1184, %v8475, 0.0
        %8477 = vadd.xlane.f32.xlu0 %v8476
        %v8478 = vpop.xlane.xlu0 %8477
        %v8479 = vmul.f32 %v8478, %v2976
        %v8480 = vadd.f32 %v8479, 1e-06
        %v8481 = vrsqrt.pop %v8480
        %v8482 = vmul.f32 %v8474, %v8481
        %v8483 = vmul.f32 %v8482, %v4830
        %v8484 = vadd.f32 %v8483, %v4837
        %v8485 = vadd.f32 %v6685, %v8484
        %v8486 = vsel %vm1184, %v8485, 0.0
        %8487 = vadd.xlane.f32.xlu0 %v8486
        %v8488 = vpop.xlane.xlu0 %8487
        %v8489 = vmul.f32 %v8488, %v2976
        %v8490 = vsub.f32 %v8485, %v8489
        %v8491 = vmul.f32 %v8490, %v8490
        %v8492 = vsel %vm1184, %v8491, 0.0
        %8493 = vadd.xlane.f32.xlu0 %v8492
        %v8494 = vpop.xlane.xlu0 %8493
        %v8495 = vmul.f32 %v8494, %v2976
        %v8496 = vadd.f32 %v8495, 1e-06
        %v8497 = vrsqrt.pop %v8496
        %v8498 = vmul.f32 %v8490, %v8497
        %v8499 = vmul.f32 %v8498, %v4858
        %v8500 = vadd.f32 %v8499, %v4865
        %v8502 = vlaneseq
        %v8503 = vshrl.u32 %v8502, 7
        %v8504 = vsub.s32 0, %v8503
        %v8505 = vrot.slane %v1172, %v8504
        %v8508 = vsel %vm1184, %v4867, 0
        %v8511 = vsel %vm1184, %v8500, 0
        %8513 = vmatprep.subr.mxu0 0.0
        %8514 = vmatpush1.msra.mxu0 0.0
        %8515 = vmatprep.subr.mxu0 0.0
        %8516 = vmatpush1.msra.mxu0 0.0
        %8517 = vmatprep.subr.mxu0 0.0
        %8518 = vmatpush1.msra.mxu0 0.0
        %8519 = vmatprep.subr.mxu0 0.0
        %8520 = vmatpush1.msra.mxu0 0.0
        %8521 = vmatprep.subr.mxu0 0.0
        %8522 = vmatpush1.msra.mxu0 0.0
        %8523 = vmatprep.subr.mxu0 0.0
        %8524 = vmatpush1.msra.mxu0 0.0
        %8525 = vmatprep.subr.mxu0 0.0
        %8526 = vmatpush1.msra.mxu0 0.0
        %8527 = vmatprep.subr.mxu0 0.0
        %8528 = vmatpush1.msra.mxu0 0.0
        %8529 = vmatprep.subr.mxu0 0.0
        %8530 = vmatpush1.msra.mxu0 0.0
        %8531 = vmatprep.subr.mxu0 0.0
        %8532 = vmatpush1.msra.mxu0 0.0
        %8533 = vmatprep.subr.mxu0 0.0
        %8534 = vmatpush1.msra.mxu0 0.0
        %8535 = vmatprep.subr.mxu0 0.0
        %8536 = vmatpush1.msra.mxu0 0.0
        %8537 = vmatprep.subr.mxu0 0.0
        %8538 = vmatpush1.msra.mxu0 %v1171
        %8539 = vmatprep.subr.mxu0 0.0
        %8540 = vmatpush1.msra.mxu0 %v1170
        %8541 = vmatprep.subr.mxu0 0.0
        %8542 = vmatpush1.msra.mxu0 %v1169
        %8543 = vmatprep.subr.mxu0 0.0
        %8544 = vmatpush1.msra.mxu0 %v1168
        %8545 = vmatprep.subr.mxu0 0.0
        %8546 = vmatpush2.msra.mxu0 0.0
        %8547 = vmatprep.subr.mxu0 0.0
        %8548 = vmatpush2.msra.mxu0 0.0
        %8549 = vmatprep.subr.mxu0 0.0
        %8550 = vmatpush2.msra.mxu0 0.0
        %8551 = vmatprep.subr.mxu0 0.0
        %8552 = vmatpush2.msra.mxu0 0.0
        %8553 = vmatprep.subr.mxu0 0.0
        %8554 = vmatpush2.msra.mxu0 0.0
        %8555 = vmatprep.subr.mxu0 0.0
        %8556 = vmatpush2.msra.mxu0 0.0
        %8557 = vmatprep.subr.mxu0 0.0
        %8558 = vmatpush2.msra.mxu0 0.0
        %8559 = vmatprep.subr.mxu0 0.0
        %8560 = vmatpush2.msra.mxu0 0.0
        %8561 = vmatprep.subr.mxu0 0.0
        %8562 = vmatpush2.msra.mxu0 0.0
        %8563 = vmatprep.subr.mxu0 0.0
        %8564 = vmatpush2.msra.mxu0 0.0
        %8565 = vmatprep.subr.mxu0 0.0
        %8566 = vmatpush2.msra.mxu0 0.0
        %8567 = vmatprep.subr.mxu0 0.0
        %8568 = vmatpush2.msra.mxu0 0.0
        %8569 = vmatprep.subr.mxu0 0.0
        %8570 = vmatpush2.msra.mxu0 0.0
        %8571 = vmatprep.subr.mxu0 0.0
        %8572 = vmatpush2.msra.mxu0 0.0
        %8573 = vmatprep.subr.mxu0 0.0
        %8574 = vmatpush2.msra.mxu0 0.0
        %8575 = vmatprep.subr.mxu0 0.0
        %8576 = vmatpush2.msra.mxu0 0.0
        %8577 = vmatprep.mubr.f32.mxu0 0.0
        %8578 = vmatmul.mubr.f32.gmra.mxu0 %v8508
        %v8579 = vpop.f32.mrf.mxu0
        %v8580 = vadd.f32 %v8505, %v8579
        %v8581 = vpop.f32.mrf.mxu0
        %8582 = vmatprep.mubr.f32.mxu0 0.0
        %8583 = vmatmul.mubr.f32.gmra.mxu0 %v8511
        %v8584 = vpop.f32.mrf.mxu0
        %v8585 = vadd.f32 %v8505, %v8584
        %v8586 = vpop.f32.mrf.mxu0
        %8587 = vdwg.mxu0
        %v8588 = vmax.f32 %v8580, 0.0
        %v8589 = vmax.f32 %v8585, 0.0
        %v8591 = vlaneseq
        %v8592 = vshrl.u32 %v8591, 7
        %v8593 = vsub.s32 0, %v8592
        %v8594 = vrot.slane %v1181, %v8593
        %vm8596 = vcmask 523264
        %v8598 = vsel %vm8596, %v8588, 0
        %v8601 = vsel %vm8596, %v8589, 0
        %8603 = vmatprep.subr.mxu0 0.0
        %8604 = vmatpush1.msra.mxu0 0.0
        %8605 = vmatprep.subr.mxu0 0.0
        %8606 = vmatpush1.msra.mxu0 0.0
        %8607 = vmatprep.subr.mxu0 0.0
        %8608 = vmatpush1.msra.mxu0 0.0
        %8609 = vmatprep.subr.mxu0 0.0
        %8610 = vmatpush1.msra.mxu0 0.0
        %8611 = vmatprep.subr.mxu0 0.0
        %8612 = vmatpush1.msra.mxu0 0.0
        %8613 = vmatprep.subr.mxu0 0.0
        %8614 = vmatpush1.msra.mxu0 0.0
        %8615 = vmatprep.subr.mxu0 0.0
        %8616 = vmatpush1.msra.mxu0 0.0
        %8617 = vmatprep.subr.mxu0 0.0
        %8618 = vmatpush1.msra.mxu0 0.0
        %8619 = vmatprep.subr.mxu0 0.0
        %8620 = vmatpush1.msra.mxu0 %v1180
        %8621 = vmatprep.subr.mxu0 0.0
        %8622 = vmatpush1.msra.mxu0 %v1179
        %8623 = vmatprep.subr.mxu0 0.0
        %8624 = vmatpush1.msra.mxu0 %v1178
        %8625 = vmatprep.subr.mxu0 0.0
        %8626 = vmatpush1.msra.mxu0 %v1177
        %8627 = vmatprep.subr.mxu0 0.0
        %8628 = vmatpush1.msra.mxu0 %v1176
        %8629 = vmatprep.subr.mxu0 0.0
        %8630 = vmatpush1.msra.mxu0 %v1175
        %8631 = vmatprep.subr.mxu0 0.0
        %8632 = vmatpush1.msra.mxu0 %v1174
        %8633 = vmatprep.subr.mxu0 0.0
        %8634 = vmatpush1.msra.mxu0 %v1173
        %8635 = vmatprep.subr.mxu0 0.0
        %8636 = vmatpush2.msra.mxu0 0.0
        %8637 = vmatprep.subr.mxu0 0.0
        %8638 = vmatpush2.msra.mxu0 0.0
        %8639 = vmatprep.subr.mxu0 0.0
        %8640 = vmatpush2.msra.mxu0 0.0
        %8641 = vmatprep.subr.mxu0 0.0
        %8642 = vmatpush2.msra.mxu0 0.0
        %8643 = vmatprep.subr.mxu0 0.0
        %8644 = vmatpush2.msra.mxu0 0.0
        %8645 = vmatprep.subr.mxu0 0.0
        %8646 = vmatpush2.msra.mxu0 0.0
        %8647 = vmatprep.subr.mxu0 0.0
        %8648 = vmatpush2.msra.mxu0 0.0
        %8649 = vmatprep.subr.mxu0 0.0
        %8650 = vmatpush2.msra.mxu0 0.0
        %8651 = vmatprep.subr.mxu0 0.0
        %8652 = vmatpush2.msra.mxu0 0.0
        %8653 = vmatprep.subr.mxu0 0.0
        %8654 = vmatpush2.msra.mxu0 0.0
        %8655 = vmatprep.subr.mxu0 0.0
        %8656 = vmatpush2.msra.mxu0 0.0
        %8657 = vmatprep.subr.mxu0 0.0
        %8658 = vmatpush2.msra.mxu0 0.0
        %8659 = vmatprep.subr.mxu0 0.0
        %8660 = vmatpush2.msra.mxu0 0.0
        %8661 = vmatprep.subr.mxu0 0.0
        %8662 = vmatpush2.msra.mxu0 0.0
        %8663 = vmatprep.subr.mxu0 0.0
        %8664 = vmatpush2.msra.mxu0 0.0
        %8665 = vmatprep.subr.mxu0 0.0
        %8666 = vmatpush2.msra.mxu0 0.0
        %8667 = vmatprep.mubr.f32.mxu0 0.0
        %8668 = vmatmul.mubr.f32.gmra.mxu0 %v8598
        %v8669 = vpop.f32.mrf.mxu0
        %v8670 = vadd.f32 %v8594, %v8669
        %v8671 = vpop.f32.mrf.mxu0
        %8672 = vmatprep.mubr.f32.mxu0 0.0
        %8673 = vmatmul.mubr.f32.gmra.mxu0 %v8601
        %v8674 = vpop.f32.mrf.mxu0
        %v8675 = vadd.f32 %v8594, %v8674
        %v8676 = vpop.f32.mrf.mxu0
        %8677 = vdwg.mxu0
        %v8678 = vadd.f32 %v8670, %v4867
        %v8679 = vadd.f32 %v8675, %v8500
        %v8680 = vsel %vm1184, %v8678, 0.0
        %8681 = vadd.xlane.f32.xlu0 %v8680
        %v8682 = vpop.xlane.xlu0 %8681
        %v8683 = vsel %vm1184, %v8679, 0.0
        %8684 = vadd.xlane.f32.xlu0 %v8683
        %v8685 = vpop.xlane.xlu0 %8684
        %v8686 = vmul.f32 %v8682, %v2976
        %v8687 = vmul.f32 %v8685, %v2976
        %v8688 = vsub.f32 %v8678, %v8686
        %v8689 = vsub.f32 %v8679, %v8687
        %v8690 = vmul.f32 %v8688, %v8688
        %v8691 = vmul.f32 %v8689, %v8689
        %v8692 = vsel %vm1184, %v8690, 0.0
        %8693 = vadd.xlane.f32.xlu0 %v8692
        %v8694 = vpop.xlane.xlu0 %8693
        %v8695 = vsel %vm1184, %v8691, 0.0
        %8696 = vadd.xlane.f32.xlu0 %v8695
        %v8697 = vpop.xlane.xlu0 %8696
        %v8698 = vmul.f32 %v8694, %v2976
        %v8699 = vmul.f32 %v8697, %v2976
        %v8700 = vadd.f32 %v8698, 1e-06
        %v8701 = vadd.f32 %v8699, 1e-06
        %v8702 = vrsqrt.pop %v8700
        %v8703 = vrsqrt.pop %v8701
        %v8704 = vmul.f32 %v8688, %v8702
        %v8705 = vmul.f32 %v8689, %v8703
        %v8707 = vlaneseq
        %v8708 = vshrl.u32 %v8707, 7
        %v8709 = vsub.s32 0, %v8708
        %v8710 = vrot.slane %v1182, %v8709
        %v8712 = vmul.f32 %v8704, %v8710
        %v8713 = vmul.f32 %v8705, %v8710
        %v8715 = vlaneseq
        %v8716 = vshrl.u32 %v8715, 7
        %v8717 = vsub.s32 0, %v8716
        %v8718 = vrot.slane %v1183, %v8717
        %v8720 = vadd.f32 %v8712, %v8718
        %v8721 = vadd.f32 %v8713, %v8718
        %8722 = vst.msk [vmem:[#allocation2] sm:$0xff] %vm1184, %v8720
        %8723 = vst.msk [vmem:[#allocation2 + $0x8] sm:$0xff] %vm1184, %v8721
        // Predicated region
        $region117: #{encoder_forward.1} parent=111 // pred_check
          %p8724 = pneg %p641
        $region118: #{encoder_forward.1} parent=111 // pred_check_branch
          %8726 = sbr.rel (%p8724) target = $region120
        $region119: #{encoder_forward.1} parent=111 // pred_region
          %s8728 = ssub.s32 256, 256
          %8729 = vsyncadd [#allocation3], %s8728
          %s8730 = sshll.u32 [#allocation2], 4
          %s8731 = int_to_ptr.vmem [resolvable:$true] %s8730
          %8736 = dma.vmem_to_hbm [thread:$0]  %s8731, 256, %s23, [#allocation3], 128, 128, 8
        $region120: #{encoder_forward.1} parent=111 // pred_fallthru
          _
        // Predicated region
        $region121: #{encoder_forward.1} parent=111 // pred_check
          %p8737 = pneg %p641
        $region122: #{encoder_forward.1} parent=111 // pred_check_branch
          %8739 = sbr.rel (%p8737) target = $region124
        $region123: #{encoder_forward.1} parent=111 // pred_region
          %8740 = dma.done [#allocation3], 256
        $region124: #{encoder_forward.1} parent=111 // pred_fallthru
          _
      $region112: #{encoder_forward.1} parent=5 // pred_fallthru
        _
      %p8741 = scmp.le.s32.totalorder 2, %s30
      // Predicated region
      $region125: #{encoder_forward.1} parent=5 // pred_check
        %p8742 = pneg %p8741
      $region126: #{encoder_forward.1} parent=5 // pred_check_branch
        %8744 = sbr.rel (%p8742) target = $region128
      $region127: #{encoder_forward.1} parent=5 // pred_region
        %s8745 = ssub.s32 %s30, 2
      $region128: #{encoder_forward.1} parent=5 // pred_fallthru
        _
    $region6: #{encoder_forward.1} parent=1 // loop_footer
      %s34 = sadd.s32 1, %s30
    $region7: #{encoder_forward.1} parent=1 // loop_footer_branch
      %29 = sbr.rel target = $region3
    $region8: #{encoder_forward.1} parent=1 // loop_exit
      _
    %8746 = vsyncpa [#allocation3], 1
    %s8747 = scalar_lea.sflag [#allocation3], 1
    %8748 = vsyncpa %s8747, 1

</llo_original>
